<compile_context>
chip_gen: v6e
topology: v6e:2x2x1
jax: 0.10.0
libtpu: 0.0.40
codegen_flags: <defaults>
</compile_context>

<pallas_src>
import functools
import math

import jax
import jax.numpy as jnp
from jax.experimental import pallas as pl
from jax.experimental.pallas import tpu as pltpu


# ----------------------------------------------------------------------------
# Kernel 1: patch embedding (conv-as-matmul) + conv bias + positional encodings
# ----------------------------------------------------------------------------
def _patch_embed_kernel(p_ref, w_ref, b_ref, pos_ref, o_ref):
    # p_ref: (S, CPP), w_ref: (CPP, E), b_ref: (1, E), pos_ref: (S, E)
    acc = jnp.dot(p_ref[...], w_ref[...], preferred_element_type=jnp.float32)
    o_ref[...] = (acc + b_ref[...] + pos_ref[...]).astype(o_ref.dtype)


def patch_embed_pallas(x, conv_w, conv_b, pos, patch_size):
    """x: (N, C, H, W) -> (N, S, E) with S = (H/P)*(W/P)."""
    n, c, h, w = x.shape
    e = conv_w.shape[0]
    p = patch_size
    assert h % p == 0 and w % p == 0, "spatial dims must be divisible by patch_size"
    hp, wp = h // p, w // p
    s = hp * wp
    cpp = c * p * p
    assert s <= pos.shape[0], "sequence longer than positional-encoding table"

    # Patch extraction (layout glue, plain JAX): (n, s, c*p*p) in (c, ky, kx) order
    patches = (
        x.reshape(n, c, hp, p, wp, p)
        .transpose(0, 2, 4, 1, 3, 5)
        .reshape(n, s, cpp)
    )
    w_flat = conv_w.reshape(e, cpp).T          # (CPP, E)
    bias2d = conv_b.reshape(1, e)              # (1, E)
    pos_s = pos[:s, :]                          # (S, E)

    cost = pl.CostEstimate(
        flops=2 * n * s * cpp * e,
        transcendentals=0,
        bytes_accessed=4 * (n * s * cpp + cpp * e + e + s * e + n * s * e),
    )

    return pl.pallas_call(
        _patch_embed_kernel,
        out_shape=jax.ShapeDtypeStruct((n, s, e), x.dtype),
        grid_spec=pltpu.PrefetchScalarGridSpec(
            num_scalar_prefetch=0,
            grid=(n,),
            in_specs=[
                pl.BlockSpec((None, s, cpp), lambda i: (i, 0, 0)),
                pl.BlockSpec((cpp, e), lambda i: (0, 0)),
                pl.BlockSpec((1, e), lambda i: (0, 0)),
                pl.BlockSpec((s, e), lambda i: (0, 0)),
            ],
            out_specs=pl.BlockSpec((None, s, e), lambda i: (i, 0, 0)),
        ),
        compiler_params=pltpu.CompilerParams(dimension_semantics=("parallel",)),
        cost_estimate=cost,
    )(patches, w_flat, bias2d, pos_s)


# ----------------------------------------------------------------------------
# Kernel 2: one fused post-norm transformer encoder layer (per batch element)
# ----------------------------------------------------------------------------
def _encoder_layer_kernel(
    x_ref, wqkv_ref, bqkv_ref, wo_ref, bo_ref,
    g1_ref, beta1_ref, w1_ref, b1_ref, w2_ref, b2_ref, g2_ref, beta2_ref,
    o_ref, *, num_heads, eps,
):
    x = x_ref[...].astype(jnp.float32)          # (S, E)
    s_len, e = x.shape
    dh = e // num_heads
    scale = 1.0 / math.sqrt(dh)

    # ---- multi-head self-attention ----
    qkv = jnp.dot(x, wqkv_ref[...], preferred_element_type=jnp.float32) + bqkv_ref[...]
    q = qkv[:, :e] * scale
    k = qkv[:, e:2 * e]
    v = qkv[:, 2 * e:]

    wo = wo_ref[...]
    attn = jnp.zeros((s_len, e), jnp.float32)
    for h in range(num_heads):                  # static unroll, 4 heads
        lo, hi = h * dh, (h + 1) * dh
        qh = q[:, lo:hi]
        kh = k[:, lo:hi]
        vh = v[:, lo:hi]
        sc = jax.lax.dot_general(
            qh, kh, (((1,), (1,)), ((), ())),
            preferred_element_type=jnp.float32,
        )                                       # (S, S)
        sc = sc - jnp.max(sc, axis=-1, keepdims=True)
        pexp = jnp.exp(sc)
        pexp = pexp / jnp.sum(pexp, axis=-1, keepdims=True)
        ctx = jnp.dot(pexp, vh, preferred_element_type=jnp.float32)   # (S, Dh)
        # fold the output projection per head (avoids an in-kernel concat)
        attn = attn + jnp.dot(ctx, wo[lo:hi, :], preferred_element_type=jnp.float32)
    attn = attn + bo_ref[...]

    def layer_norm(t, g, b):
        mu = jnp.mean(t, axis=-1, keepdims=True)
        d = t - mu
        var = jnp.mean(d * d, axis=-1, keepdims=True)
        return d * jax.lax.rsqrt(var + eps) * g + b

    # ---- post-norm residual 1 ----
    y = layer_norm(x + attn, g1_ref[...], beta1_ref[...])

    # ---- feed-forward ----
    h1 = jnp.dot(y, w1_ref[...], preferred_element_type=jnp.float32) + b1_ref[...]
    h1 = jnp.maximum(h1, 0.0)
    ff = jnp.dot(h1, w2_ref[...], preferred_element_type=jnp.float32) + b2_ref[...]

    # ---- post-norm residual 2 ----
    o_ref[...] = layer_norm(y + ff, g2_ref[...], beta2_ref[...]).astype(o_ref.dtype)


def encoder_layer_pallas(x_nse, lp, *, num_heads, eps=1e-5):
    """x_nse: (N, S, E) batch-first tokens; lp: per-layer param dict."""
    n, s, e = x_nse.shape
    f = lp["W1"].shape[1]

    kernel = functools.partial(_encoder_layer_kernel, num_heads=num_heads, eps=eps)

    flops_b = (
        2 * s * e * 3 * e        # qkv projection
        + 2 * s * s * e * 2      # scores + context (all heads)
        + 2 * s * e * e          # output projection
        + 2 * s * e * f * 2      # FFN
    )
    cost = pl.CostEstimate(
        flops=n * flops_b,
        transcendentals=n * (num_heads * s * s + 2 * s),
        bytes_accessed=4 * (
            2 * n * s * e + e * 3 * e + 3 * e + e * e + e
            + 4 * e + e * f + f + f * e + e
        ),
    )

    full2d = lambda i: (0, 0)
    return pl.pallas_call(
        kernel,
        out_shape=jax.ShapeDtypeStruct((n, s, e), x_nse.dtype),
        grid_spec=pltpu.PrefetchScalarGridSpec(
            num_scalar_prefetch=0,
            grid=(n,),
            in_specs=[
                pl.BlockSpec((None, s, e), lambda i: (i, 0, 0)),   # x (per-batch)
                pl.BlockSpec((e, 3 * e), full2d),                  # Wqkv
                pl.BlockSpec((1, 3 * e), full2d),                  # bqkv
                pl.BlockSpec((e, e), full2d),                      # Wo
                pl.BlockSpec((1, e), full2d),                      # bo
                pl.BlockSpec((1, e), full2d),                      # ln1 gamma
                pl.BlockSpec((1, e), full2d),                      # ln1 beta
                pl.BlockSpec((e, f), full2d),                      # W1
                pl.BlockSpec((1, f), full2d),                      # b1
                pl.BlockSpec((f, e), full2d),                      # W2
                pl.BlockSpec((1, e), full2d),                      # b2
                pl.BlockSpec((1, e), full2d),                      # ln2 gamma
                pl.BlockSpec((1, e), full2d),                      # ln2 beta
            ],
            out_specs=pl.BlockSpec((None, s, e), lambda i: (i, 0, 0)),
        ),
        compiler_params=pltpu.CompilerParams(dimension_semantics=("parallel",)),
        cost_estimate=cost,
    )(
        x_nse, lp["Wqkv"], lp["bqkv"], lp["Wo"], lp["bo"],
        lp["g1"], lp["beta1"], lp["W1"], lp["b1"],
        lp["W2"], lp["b2"], lp["g2"], lp["beta2"],
    )


# ----------------------------------------------------------------------------
# Full module forward (Pallas path)
# ----------------------------------------------------------------------------
@functools.partial(jax.jit, static_argnames=("patch_size", "num_heads"))
def patch_transformer_encoder(x, params, *, patch_size, num_heads):
    emb = patch_embed_pallas(
        x, params["conv_w"], params["conv_b"], params["pos"], patch_size
    )  # (N, S, E)
    h = emb
    for lp in params["layers"]:
        h = encoder_layer_pallas(h, lp, num_heads=num_heads)
    # PyTorch returns (S, N, E)
    return jnp.transpose(h, (1, 0, 2))


# ----------------------------------------------------------------------------
# Pure-JAX reference (independent code path) for correctness checking
# ----------------------------------------------------------------------------
def _ref_layer(x_sne, lp, num_heads, eps=1e-5):
    s, n, e = x_sne.shape
    dh = e // num_heads
    qkv = jnp.einsum("sne,ef->snf", x_sne, lp["Wqkv"], precision="highest") + lp["bqkv"][0]
    q, k, v = qkv[..., :e], qkv[..., e:2 * e], qkv[..., 2 * e:]

    def split_heads(t):
        return jnp.transpose(t.reshape(s, n, num_heads, dh), (1, 2, 0, 3))  # (N,H,S,Dh)

    qh, kh, vh = map(split_heads, (q, k, v))
    scores = jnp.einsum("nhsd,nhtd->nhst", qh, kh, precision="highest") / math.sqrt(dh)
    p = jax.nn.softmax(scores, axis=-1)
    ctx = jnp.einsum("nhst,nhtd->nhsd", p, vh, precision="highest")
    ctx = jnp.transpose(ctx, (2, 0, 1, 3)).reshape(s, n, e)
    attn = jnp.einsum("sne,ef->snf", ctx, lp["Wo"], precision="highest") + lp["bo"][0]

    def ln(t, g, b):
        mu = jnp.mean(t, axis=-1, keepdims=True)
        var = jnp.mean((t - mu) ** 2, axis=-1, keepdims=True)
        return (t - mu) / jnp.sqrt(var + eps) * g[0] + b[0]

    y = ln(x_sne + attn, lp["g1"], lp["beta1"])
    h1 = jnp.maximum(
        jnp.einsum("sne,ef->snf", y, lp["W1"], precision="highest") + lp["b1"][0], 0.0
    )
    ff = jnp.einsum("snf,fe->sne", h1, lp["W2"], precision="highest") + lp["b2"][0]
    return ln(y + ff, lp["g2"], lp["beta2"])


def ref_forward(x, params, patch_size, num_heads):
    p = patch_size
    emb = jax.lax.conv_general_dilated(
        x, params["conv_w"], window_strides=(p, p), padding="VALID",
        dimension_numbers=("NCHW", "OIHW", "NCHW"), precision="highest",
    )
    emb = emb + params["conv_b"][None, :, None, None]
    n, e, hp, wp = emb.shape
    s = hp * wp
    emb = emb.reshape(n, e, s) + params["pos"][:s, :].T[None]
    h = jnp.transpose(emb, (2, 0, 1))  # (S, N, E)
    for lp in params["layers"]:
        h = _ref_layer(h, lp, num_heads)
    return h


# ----------------------------------------------------------------------------
# Parameter construction
# ----------------------------------------------------------------------------
def init_params(key, in_channels, patch_size, embedding_dim, ffn_dim, num_layers,
                max_len=500):
    e, f = embedding_dim, ffn_dim
    ks = jax.random.split(key, 3 + num_layers)

    def nrm(k, shape, scale):
        return scale * jax.random.normal(k, shape, jnp.float32)

    params = {
        "conv_w": nrm(ks[0], (e, in_channels, patch_size, patch_size), 0.05),
        "conv_b": nrm(ks[1], (e,), 0.02),
        "pos": jax.random.uniform(ks[2], (max_len, e), jnp.float32),
        "layers": [],
    }
    for li in range(num_layers):
        lk = jax.random.split(ks[3 + li], 8)
        params["layers"].append({
            "Wqkv": nrm(lk[0], (e, 3 * e), 0.05),
            "bqkv": nrm(lk[1], (1, 3 * e), 0.02),
            "Wo": nrm(lk[2], (e, e), 0.05),
            "bo": nrm(lk[3], (1, e), 0.02),
            "g1": jnp.ones((1, e), jnp.float32),
            "beta1": jnp.zeros((1, e), jnp.float32),
            "W1": nrm(lk[4], (e, f), 0.05),
            "b1": nrm(lk[5], (1, f), 0.02),
            "W2": nrm(lk[6], (f, e), 0.03),
            "b2": nrm(lk[7], (1, e), 0.02),
            "g2": jnp.ones((1, e), jnp.float32),
            "beta2": jnp.zeros((1, e), jnp.float32),
        })
    return params


if __name__ == "__main__":
    key = jax.random.PRNGKey(0)
    kp, kx = jax.random.split(key)

    # Small shapes consistent with the module: E=128, heads=4, FFN=1024, 4 layers.
    N, C, H, W = 2, 4, 32, 32
    PATCH = 4                      # -> 8x8 = 64 patches (sequence length)
    E, HEADS, FFN, LAYERS = 128, 4, 1024, 4
    S = (H // PATCH) * (W // PATCH)

    params = init_params(kp, C, PATCH, E, FFN, LAYERS)
    x = jax.random.normal(kx, (N, C, H, W), jnp.float32)

    out = patch_transformer_encoder(x, params, patch_size=PATCH, num_heads=HEADS)
    jax.block_until_ready(out)

    ref = ref_forward(x, params, PATCH, HEADS)
    assert out.shape == (S, N, E), f"bad shape {out.shape}"
    assert jnp.allclose(out, ref, atol=2e-2, rtol=2e-2), (
        "mismatch vs reference, max abs diff = "
        f"{float(jnp.max(jnp.abs(out - ref)))}"
    )

    # TODO(synk): add seq/hidden tiling (grid axes over S and FFN) for shapes where
    # S*E or E*FFN blocks exceed the 32 MiB scoped VMEM budget (not needed here).
    print("KERNEL_OK")
</pallas_src>

<mosaic_0001>
module attributes {stable_mosaic.version = 11 : i64} {
  func.func @_patch_embed_kernel(%arg0: i32, %arg1: memref<1x64x64xf32, #tpu.memory_space<vmem>>, %arg2: memref<64x128xf32, #tpu.memory_space<vmem>>, %arg3: memref<1x128xf32, #tpu.memory_space<vmem>>, %arg4: memref<64x128xf32, #tpu.memory_space<vmem>>, %arg5: memref<1x64x128xf32, #tpu.memory_space<vmem>>) attributes {dimension_semantics = [#tpu.dimension_semantics<parallel>], iteration_bounds = array<i64: 2>, scalar_prefetch = 0 : i64, scratch_operands = 0 : i64, tpu.core_type = #tpu.core_type<tc>, window_params = [{transform_indices = @transform_0, window_bounds = array<i64: 1, 64, 64>}, {pipeline_mode = #tpu.pipeline_mode<synchronous>, transform_indices = @transform_1, window_bounds = array<i64: 64, 128>}, {pipeline_mode = #tpu.pipeline_mode<synchronous>, transform_indices = @transform_2, window_bounds = array<i64: 1, 128>}, {pipeline_mode = #tpu.pipeline_mode<synchronous>, transform_indices = @transform_3, window_bounds = array<i64: 64, 128>}, {transform_indices = @transform_4, window_bounds = array<i64: 1, 64, 128>}]} {
    %c0 = arith.constant 0 : index
    %c0_0 = arith.constant 0 : index
    %c0_1 = arith.constant 0 : index
    %0 = vector.load %arg1[%c0, %c0_0, %c0_1] : memref<1x64x64xf32, #tpu.memory_space<vmem>>, vector<1x64x64xf32>
    %1 = vector.shape_cast %0 : vector<1x64x64xf32> to vector<64x64xf32>
    %c0_2 = arith.constant 0 : index
    %c0_3 = arith.constant 0 : index
    %2 = vector.load %arg2[%c0_2, %c0_3] : memref<64x128xf32, #tpu.memory_space<vmem>>, vector<64x128xf32>
    %cst = arith.constant dense<0.000000e+00> : vector<64x128xf32>
    %3 = tpu.matmul %1, %2, %cst {dimension_numbers = #tpu.dot_dimension_numbers<[1], [0], [0], [1], [0, 0, 1, 1], [], []>} : vector<64x64xf32>, vector<64x128xf32>, vector<64x128xf32> -> vector<64x128xf32>
    %c0_4 = arith.constant 0 : index
    %c0_5 = arith.constant 0 : index
    %4 = vector.load %arg3[%c0_4, %c0_5] : memref<1x128xf32, #tpu.memory_space<vmem>>, vector<1x128xf32>
    %5 = vector.broadcast %4 : vector<1x128xf32> to vector<64x128xf32>
    %6 = arith.addf %3, %5 : vector<64x128xf32>
    %c0_6 = arith.constant 0 : index
    %c0_7 = arith.constant 0 : index
    %7 = vector.load %arg4[%c0_6, %c0_7] : memref<64x128xf32, #tpu.memory_space<vmem>>, vector<64x128xf32>
    %8 = arith.addf %6, %7 : vector<64x128xf32>
    %c0_8 = arith.constant 0 : index
    %c0_9 = arith.constant 0 : index
    %c0_10 = arith.constant 0 : index
    %9 = vector.load %arg5[%c0_8, %c0_9, %c0_10] : memref<1x64x128xf32, #tpu.memory_space<vmem>>, vector<1x64x128xf32>
    %10 = vector.shape_cast %9 : vector<1x64x128xf32> to vector<64x128xf32>
    %11 = vector.shape_cast %8 : vector<64x128xf32> to vector<1x64x128xf32>
    tpu.vector_store %arg5[%c0_8, %c0_9, %c0_10], %11 {strides = array<i32>} : memref<1x64x128xf32, #tpu.memory_space<vmem>>, vector<1x64x128xf32>,
    return
  }
  func.func @transform_0(%arg0: i32) -> (i32, i32, i32) {
    %c0_i32 = arith.constant 0 : i32
    %c0_i32_0 = arith.constant 0 : i32
    %c0_i32_1 = arith.constant 0 : i32
    return %arg0, %c0_i32, %c0_i32_0 : i32, i32, i32
  }
  func.func @transform_1(%arg0: i32) -> (i32, i32) {
    %c0_i32 = arith.constant 0 : i32
    %c0_i32_0 = arith.constant 0 : i32
    %c0_i32_1 = arith.constant 0 : i32
    return %c0_i32, %c0_i32_0 : i32, i32
  }
  func.func @transform_2(%arg0: i32) -> (i32, i32) {
    %c0_i32 = arith.constant 0 : i32
    %c0_i32_0 = arith.constant 0 : i32
    %c0_i32_1 = arith.constant 0 : i32
    return %c0_i32, %c0_i32_0 : i32, i32
  }
  func.func @transform_3(%arg0: i32) -> (i32, i32) {
    %c0_i32 = arith.constant 0 : i32
    %c0_i32_0 = arith.constant 0 : i32
    %c0_i32_1 = arith.constant 0 : i32
    return %c0_i32, %c0_i32_0 : i32, i32
  }
  func.func @transform_4(%arg0: i32) -> (i32, i32, i32) {
    %c0_i32 = arith.constant 0 : i32
    %c0_i32_0 = arith.constant 0 : i32
    %c0_i32_1 = arith.constant 0 : i32
    return %arg0, %c0_i32, %c0_i32_0 : i32, i32, i32
  }
}

module attributes {stable_mosaic.version = 11 : i64} {
  func.func @_encoder_layer_kernel(%arg0: i32, %arg1: memref<1x64x128xf32, #tpu.memory_space<vmem>>, %arg2: memref<128x384xf32, #tpu.memory_space<vmem>>, %arg3: memref<1x384xf32, #tpu.memory_space<vmem>>, %arg4: memref<128x128xf32, #tpu.memory_space<vmem>>, %arg5: memref<1x128xf32, #tpu.memory_space<vmem>>, %arg6: memref<1x128xf32, #tpu.memory_space<vmem>>, %arg7: memref<1x128xf32, #tpu.memory_space<vmem>>, %arg8: memref<128x1024xf32, #tpu.memory_space<vmem>>, %arg9: memref<1x1024xf32, #tpu.memory_space<vmem>>, %arg10: memref<1024x128xf32, #tpu.memory_space<vmem>>, %arg11: memref<1x128xf32, #tpu.memory_space<vmem>>, %arg12: memref<1x128xf32, #tpu.memory_space<vmem>>, %arg13: memref<1x128xf32, #tpu.memory_space<vmem>>, %arg14: memref<1x64x128xf32, #tpu.memory_space<vmem>>) attributes {dimension_semantics = [#tpu.dimension_semantics<parallel>], iteration_bounds = array<i64: 2>, scalar_prefetch = 0 : i64, scratch_operands = 0 : i64, tpu.core_type = #tpu.core_type<tc>, window_params = [{transform_indices = @transform_0, window_bounds = array<i64: 1, 64, 128>}, {pipeline_mode = #tpu.pipeline_mode<synchronous>, transform_indices = @transform_1, window_bounds = array<i64: 128, 384>}, {pipeline_mode = #tpu.pipeline_mode<synchronous>, transform_indices = @transform_2, window_bounds = array<i64: 1, 384>}, {pipeline_mode = #tpu.pipeline_mode<synchronous>, transform_indices = @transform_3, window_bounds = array<i64: 128, 128>}, {pipeline_mode = #tpu.pipeline_mode<synchronous>, transform_indices = @transform_4, window_bounds = array<i64: 1, 128>}, {pipeline_mode = #tpu.pipeline_mode<synchronous>, transform_indices = @transform_5, window_bounds = array<i64: 1, 128>}, {pipeline_mode = #tpu.pipeline_mode<synchronous>, transform_indices = @transform_6, window_bounds = array<i64: 1, 128>}, {pipeline_mode = #tpu.pipeline_mode<synchronous>, transform_indices = @transform_7, window_bounds = array<i64: 128, 1024>}, {pipeline_mode = #tpu.pipeline_mode<synchronous>, transform_indices = @transform_8, window_bounds = array<i64: 1, 1024>}, {pipeline_mode = #tpu.pipeline_mode<synchronous>, transform_indices = @transform_9, window_bounds = array<i64: 1024, 128>}, {pipeline_mode = #tpu.pipeline_mode<synchronous>, transform_indices = @transform_10, window_bounds = array<i64: 1, 128>}, {pipeline_mode = #tpu.pipeline_mode<synchronous>, transform_indices = @transform_11, window_bounds = array<i64: 1, 128>}, {pipeline_mode = #tpu.pipeline_mode<synchronous>, transform_indices = @transform_12, window_bounds = array<i64: 1, 128>}, {transform_indices = @transform_13, window_bounds = array<i64: 1, 64, 128>}]} {
    %c0 = arith.constant 0 : index
    %c0_0 = arith.constant 0 : index
    %c0_1 = arith.constant 0 : index
    %0 = vector.load %arg1[%c0, %c0_0, %c0_1] : memref<1x64x128xf32, #tpu.memory_space<vmem>>, vector<1x64x128xf32>
    %1 = vector.shape_cast %0 : vector<1x64x128xf32> to vector<64x128xf32>
    %c0_2 = arith.constant 0 : index
    %c0_3 = arith.constant 0 : index
    %2 = vector.load %arg2[%c0_2, %c0_3] : memref<128x384xf32, #tpu.memory_space<vmem>>, vector<128x384xf32>
    %cst = arith.constant dense<0.000000e+00> : vector<64x384xf32>
    %3 = tpu.matmul %1, %2, %cst {dimension_numbers = #tpu.dot_dimension_numbers<[1], [0], [0], [1], [0, 0, 1, 1], [], []>} : vector<64x128xf32>, vector<128x384xf32>, vector<64x384xf32> -> vector<64x384xf32>
    %c0_4 = arith.constant 0 : index
    %c0_5 = arith.constant 0 : index
    %4 = vector.load %arg3[%c0_4, %c0_5] : memref<1x384xf32, #tpu.memory_space<vmem>>, vector<1x384xf32>
    %5 = vector.broadcast %4 : vector<1x384xf32> to vector<64x384xf32>
    %6 = arith.addf %3, %5 : vector<64x384xf32>
    %7 = vector.extract_strided_slice %6 {offsets = [0, 0], sizes = [64, 128], strides = [1, 1]} : vector<64x384xf32> to vector<64x128xf32>
    %cst_6 = arith.constant 0.176776692 : f32
    %8 = vector.broadcast %cst_6 : f32 to vector<64x128xf32>
    %9 = arith.mulf %7, %8 : vector<64x128xf32>
    %10 = vector.extract_strided_slice %6 {offsets = [0, 128], sizes = [64, 128], strides = [1, 1]} : vector<64x384xf32> to vector<64x128xf32>
    %11 = vector.extract_strided_slice %6 {offsets = [0, 256], sizes = [64, 128], strides = [1, 1]} : vector<64x384xf32> to vector<64x128xf32>
    %c0_7 = arith.constant 0 : index
    %c0_8 = arith.constant 0 : index
    %12 = vector.load %arg4[%c0_7, %c0_8] : memref<128x128xf32, #tpu.memory_space<vmem>>, vector<128x128xf32>
    %cst_9 = arith.constant 0.000000e+00 : f32
    %13 = vector.broadcast %cst_9 : f32 to vector<64x128xf32>
    %14 = vector.extract_strided_slice %9 {offsets = [0, 0], sizes = [64, 32], strides = [1, 1]} : vector<64x128xf32> to vector<64x32xf32>
    %15 = vector.extract_strided_slice %10 {offsets = [0, 0], sizes = [64, 32], strides = [1, 1]} : vector<64x128xf32> to vector<64x32xf32>
    %16 = vector.extract_strided_slice %11 {offsets = [0, 0], sizes = [64, 32], strides = [1, 1]} : vector<64x128xf32> to vector<64x32xf32>
    %cst_10 = arith.constant dense<0.000000e+00> : vector<64x64xf32>
    %17 = tpu.matmul %14, %15, %cst_10 {dimension_numbers = #tpu.dot_dimension_numbers<[1], [1], [0], [0], [0, 0, 1, 0], [], []>} : vector<64x32xf32>, vector<64x32xf32>, vector<64x64xf32> -> vector<64x64xf32>
    %cst_11 = arith.constant dense<0xFF800000> : vector<64xf32>
    %18 = vector.multi_reduction <maximumf>, %17, %cst_11 [1] : vector<64x64xf32> to vector<64xf32>
    %19 = vector.shape_cast %18 : vector<64xf32> to vector<64x1xf32>
    %20 = vector.broadcast %19 : vector<64x1xf32> to vector<64x64xf32>
    %21 = arith.subf %17, %20 : vector<64x64xf32>
    %22 = math.exp %21 : vector<64x64xf32>
    %cst_12 = arith.constant dense<0.000000e+00> : vector<64xf32>
    %23 = vector.multi_reduction <add>, %22, %cst_12 [1] : vector<64x64xf32> to vector<64xf32>
    %24 = vector.shape_cast %23 : vector<64xf32> to vector<64x1xf32>
    %25 = vector.broadcast %24 : vector<64x1xf32> to vector<64x64xf32>
    %26 = arith.divf %22, %25 : vector<64x64xf32>
    %cst_13 = arith.constant dense<0.000000e+00> : vector<64x32xf32>
    %27 = tpu.matmul %26, %16, %cst_13 {dimension_numbers = #tpu.dot_dimension_numbers<[1], [0], [0], [1], [0, 0, 1, 1], [], []>} : vector<64x64xf32>, vector<64x32xf32>, vector<64x32xf32> -> vector<64x32xf32>
    %28 = vector.extract_strided_slice %12 {offsets = [0, 0], sizes = [32, 128], strides = [1, 1]} : vector<128x128xf32> to vector<32x128xf32>
    %cst_14 = arith.constant dense<0.000000e+00> : vector<64x128xf32>
    %29 = tpu.matmul %27, %28, %cst_14 {dimension_numbers = #tpu.dot_dimension_numbers<[1], [0], [0], [1], [0, 0, 1, 1], [], []>} : vector<64x32xf32>, vector<32x128xf32>, vector<64x128xf32> -> vector<64x128xf32>
    %30 = arith.addf %13, %29 : vector<64x128xf32>
    %31 = vector.extract_strided_slice %9 {offsets = [0, 32], sizes = [64, 32], strides = [1, 1]} : vector<64x128xf32> to vector<64x32xf32>
    %32 = vector.extract_strided_slice %10 {offsets = [0, 32], sizes = [64, 32], strides = [1, 1]} : vector<64x128xf32> to vector<64x32xf32>
    %33 = vector.extract_strided_slice %11 {offsets = [0, 32], sizes = [64, 32], strides = [1, 1]} : vector<64x128xf32> to vector<64x32xf32>
    %cst_15 = arith.constant dense<0.000000e+00> : vector<64x64xf32>
    %34 = tpu.matmul %31, %32, %cst_15 {dimension_numbers = #tpu.dot_dimension_numbers<[1], [1], [0], [0], [0, 0, 1, 0], [], []>} : vector<64x32xf32>, vector<64x32xf32>, vector<64x64xf32> -> vector<64x64xf32>
    %cst_16 = arith.constant dense<0xFF800000> : vector<64xf32>
    %35 = vector.multi_reduction <maximumf>, %34, %cst_16 [1] : vector<64x64xf32> to vector<64xf32>
    %36 = vector.shape_cast %35 : vector<64xf32> to vector<64x1xf32>
    %37 = vector.broadcast %36 : vector<64x1xf32> to vector<64x64xf32>
    %38 = arith.subf %34, %37 : vector<64x64xf32>
    %39 = math.exp %38 : vector<64x64xf32>
    %cst_17 = arith.constant dense<0.000000e+00> : vector<64xf32>
    %40 = vector.multi_reduction <add>, %39, %cst_17 [1] : vector<64x64xf32> to vector<64xf32>
    %41 = vector.shape_cast %40 : vector<64xf32> to vector<64x1xf32>
    %42 = vector.broadcast %41 : vector<64x1xf32> to vector<64x64xf32>
    %43 = arith.divf %39, %42 : vector<64x64xf32>
    %cst_18 = arith.constant dense<0.000000e+00> : vector<64x32xf32>
    %44 = tpu.matmul %43, %33, %cst_18 {dimension_numbers = #tpu.dot_dimension_numbers<[1], [0], [0], [1], [0, 0, 1, 1], [], []>} : vector<64x64xf32>, vector<64x32xf32>, vector<64x32xf32> -> vector<64x32xf32>
    %45 = vector.extract_strided_slice %12 {offsets = [32, 0], sizes = [32, 128], strides = [1, 1]} : vector<128x128xf32> to vector<32x128xf32>
    %cst_19 = arith.constant dense<0.000000e+00> : vector<64x128xf32>
    %46 = tpu.matmul %44, %45, %cst_19 {dimension_numbers = #tpu.dot_dimension_numbers<[1], [0], [0], [1], [0, 0, 1, 1], [], []>} : vector<64x32xf32>, vector<32x128xf32>, vector<64x128xf32> -> vector<64x128xf32>
    %47 = arith.addf %30, %46 : vector<64x128xf32>
    %48 = vector.extract_strided_slice %9 {offsets = [0, 64], sizes = [64, 32], strides = [1, 1]} : vector<64x128xf32> to vector<64x32xf32>
    %49 = vector.extract_strided_slice %10 {offsets = [0, 64], sizes = [64, 32], strides = [1, 1]} : vector<64x128xf32> to vector<64x32xf32>
    %50 = vector.extract_strided_slice %11 {offsets = [0, 64], sizes = [64, 32], strides = [1, 1]} : vector<64x128xf32> to vector<64x32xf32>
    %cst_20 = arith.constant dense<0.000000e+00> : vector<64x64xf32>
    %51 = tpu.matmul %48, %49, %cst_20 {dimension_numbers = #tpu.dot_dimension_numbers<[1], [1], [0], [0], [0, 0, 1, 0], [], []>} : vector<64x32xf32>, vector<64x32xf32>, vector<64x64xf32> -> vector<64x64xf32>
    %cst_21 = arith.constant dense<0xFF800000> : vector<64xf32>
    %52 = vector.multi_reduction <maximumf>, %51, %cst_21 [1] : vector<64x64xf32> to vector<64xf32>
    %53 = vector.shape_cast %52 : vector<64xf32> to vector<64x1xf32>
    %54 = vector.broadcast %53 : vector<64x1xf32> to vector<64x64xf32>
    %55 = arith.subf %51, %54 : vector<64x64xf32>
    %56 = math.exp %55 : vector<64x64xf32>
    %cst_22 = arith.constant dense<0.000000e+00> : vector<64xf32>
    %57 = vector.multi_reduction <add>, %56, %cst_22 [1] : vector<64x64xf32> to vector<64xf32>
    %58 = vector.shape_cast %57 : vector<64xf32> to vector<64x1xf32>
    %59 = vector.broadcast %58 : vector<64x1xf32> to vector<64x64xf32>
    %60 = arith.divf %56, %59 : vector<64x64xf32>
    %cst_23 = arith.constant dense<0.000000e+00> : vector<64x32xf32>
    %61 = tpu.matmul %60, %50, %cst_23 {dimension_numbers = #tpu.dot_dimension_numbers<[1], [0], [0], [1], [0, 0, 1, 1], [], []>} : vector<64x64xf32>, vector<64x32xf32>, vector<64x32xf32> -> vector<64x32xf32>
    %62 = vector.extract_strided_slice %12 {offsets = [64, 0], sizes = [32, 128], strides = [1, 1]} : vector<128x128xf32> to vector<32x128xf32>
    %cst_24 = arith.constant dense<0.000000e+00> : vector<64x128xf32>
    %63 = tpu.matmul %61, %62, %cst_24 {dimension_numbers = #tpu.dot_dimension_numbers<[1], [0], [0], [1], [0, 0, 1, 1], [], []>} : vector<64x32xf32>, vector<32x128xf32>, vector<64x128xf32> -> vector<64x128xf32>
    %64 = arith.addf %47, %63 : vector<64x128xf32>
    %65 = vector.extract_strided_slice %9 {offsets = [0, 96], sizes = [64, 32], strides = [1, 1]} : vector<64x128xf32> to vector<64x32xf32>
    %66 = vector.extract_strided_slice %10 {offsets = [0, 96], sizes = [64, 32], strides = [1, 1]} : vector<64x128xf32> to vector<64x32xf32>
    %67 = vector.extract_strided_slice %11 {offsets = [0, 96], sizes = [64, 32], strides = [1, 1]} : vector<64x128xf32> to vector<64x32xf32>
    %cst_25 = arith.constant dense<0.000000e+00> : vector<64x64xf32>
    %68 = tpu.matmul %65, %66, %cst_25 {dimension_numbers = #tpu.dot_dimension_numbers<[1], [1], [0], [0], [0, 0, 1, 0], [], []>} : vector<64x32xf32>, vector<64x32xf32>, vector<64x64xf32> -> vector<64x64xf32>
    %cst_26 = arith.constant dense<0xFF800000> : vector<64xf32>
    %69 = vector.multi_reduction <maximumf>, %68, %cst_26 [1] : vector<64x64xf32> to vector<64xf32>
    %70 = vector.shape_cast %69 : vector<64xf32> to vector<64x1xf32>
    %71 = vector.broadcast %70 : vector<64x1xf32> to vector<64x64xf32>
    %72 = arith.subf %68, %71 : vector<64x64xf32>
    %73 = math.exp %72 : vector<64x64xf32>
    %cst_27 = arith.constant dense<0.000000e+00> : vector<64xf32>
    %74 = vector.multi_reduction <add>, %73, %cst_27 [1] : vector<64x64xf32> to vector<64xf32>
    %75 = vector.shape_cast %74 : vector<64xf32> to vector<64x1xf32>
    %76 = vector.broadcast %75 : vector<64x1xf32> to vector<64x64xf32>
    %77 = arith.divf %73, %76 : vector<64x64xf32>
    %cst_28 = arith.constant dense<0.000000e+00> : vector<64x32xf32>
    %78 = tpu.matmul %77, %67, %cst_28 {dimension_numbers = #tpu.dot_dimension_numbers<[1], [0], [0], [1], [0, 0, 1, 1], [], []>} : vector<64x64xf32>, vector<64x32xf32>, vector<64x32xf32> -> vector<64x32xf32>
    %79 = vector.extract_strided_slice %12 {offsets = [96, 0], sizes = [32, 128], strides = [1, 1]} : vector<128x128xf32> to vector<32x128xf32>
    %cst_29 = arith.constant dense<0.000000e+00> : vector<64x128xf32>
    %80 = tpu.matmul %78, %79, %cst_29 {dimension_numbers = #tpu.dot_dimension_numbers<[1], [0], [0], [1], [0, 0, 1, 1], [], []>} : vector<64x32xf32>, vector<32x128xf32>, vector<64x128xf32> -> vector<64x128xf32>
    %81 = arith.addf %64, %80 : vector<64x128xf32>
    %c0_30 = arith.constant 0 : index
    %c0_31 = arith.constant 0 : index
    %82 = vector.load %arg5[%c0_30, %c0_31] : memref<1x128xf32, #tpu.memory_space<vmem>>, vector<1x128xf32>
    %83 = vector.broadcast %82 : vector<1x128xf32> to vector<64x128xf32>
    %84 = arith.addf %81, %83 : vector<64x128xf32>
    %85 = arith.addf %1, %84 : vector<64x128xf32>
    %c0_32 = arith.constant 0 : index
    %c0_33 = arith.constant 0 : index
    %86 = vector.load %arg6[%c0_32, %c0_33] : memref<1x128xf32, #tpu.memory_space<vmem>>, vector<1x128xf32>
    %c0_34 = arith.constant 0 : index
    %c0_35 = arith.constant 0 : index
    %87 = vector.load %arg7[%c0_34, %c0_35] : memref<1x128xf32, #tpu.memory_space<vmem>>, vector<1x128xf32>
    %cst_36 = arith.constant dense<0.000000e+00> : vector<64xf32>
    %88 = vector.multi_reduction <add>, %85, %cst_36 [1] : vector<64x128xf32> to vector<64xf32>
    %89 = vector.shape_cast %88 : vector<64xf32> to vector<64x1xf32>
    %cst_37 = arith.constant 1.280000e+02 : f32
    %90 = vector.broadcast %cst_37 : f32 to vector<64x1xf32>
    %91 = arith.divf %89, %90 : vector<64x1xf32>
    %92 = vector.broadcast %91 : vector<64x1xf32> to vector<64x128xf32>
    %93 = arith.subf %85, %92 : vector<64x128xf32>
    %94 = arith.mulf %93, %93 : vector<64x128xf32>
    %cst_38 = arith.constant dense<0.000000e+00> : vector<64xf32>
    %95 = vector.multi_reduction <add>, %94, %cst_38 [1] : vector<64x128xf32> to vector<64xf32>
    %96 = vector.shape_cast %95 : vector<64xf32> to vector<64x1xf32>
    %cst_39 = arith.constant 1.280000e+02 : f32
    %97 = vector.broadcast %cst_39 : f32 to vector<64x1xf32>
    %98 = arith.divf %96, %97 : vector<64x1xf32>
    %cst_40 = arith.constant 9.99999974E-6 : f32
    %99 = vector.broadcast %cst_40 : f32 to vector<64x1xf32>
    %100 = arith.addf %98, %99 : vector<64x1xf32>
    %101 = math.rsqrt %100 : vector<64x1xf32>
    %102 = vector.broadcast %101 : vector<64x1xf32> to vector<64x128xf32>
    %103 = arith.mulf %93, %102 : vector<64x128xf32>
    %104 = vector.broadcast %86 : vector<1x128xf32> to vector<64x128xf32>
    %105 = arith.mulf %103, %104 : vector<64x128xf32>
    %106 = vector.broadcast %87 : vector<1x128xf32> to vector<64x128xf32>
    %107 = arith.addf %105, %106 : vector<64x128xf32>
    %c0_41 = arith.constant 0 : index
    %c0_42 = arith.constant 0 : index
    %108 = vector.load %arg8[%c0_41, %c0_42] : memref<128x1024xf32, #tpu.memory_space<vmem>>, vector<128x1024xf32>
    %cst_43 = arith.constant dense<0.000000e+00> : vector<64x1024xf32>
    %109 = tpu.matmul %107, %108, %cst_43 {dimension_numbers = #tpu.dot_dimension_numbers<[1], [0], [0], [1], [0, 0, 1, 1], [], []>} : vector<64x128xf32>, vector<128x1024xf32>, vector<64x1024xf32> -> vector<64x1024xf32>
    %c0_44 = arith.constant 0 : index
    %c0_45 = arith.constant 0 : index
    %110 = vector.load %arg9[%c0_44, %c0_45] : memref<1x1024xf32, #tpu.memory_space<vmem>>, vector<1x1024xf32>
    %111 = vector.broadcast %110 : vector<1x1024xf32> to vector<64x1024xf32>
    %112 = arith.addf %109, %111 : vector<64x1024xf32>
    %cst_46 = arith.constant 0.000000e+00 : f32
    %113 = vector.broadcast %cst_46 : f32 to vector<64x1024xf32>
    %114 = arith.maximumf %112, %113 : vector<64x1024xf32>
    %c0_47 = arith.constant 0 : index
    %c0_48 = arith.constant 0 : index
    %115 = vector.load %arg10[%c0_47, %c0_48] : memref<1024x128xf32, #tpu.memory_space<vmem>>, vector<1024x128xf32>
    %cst_49 = arith.constant dense<0.000000e+00> : vector<64x128xf32>
    %116 = tpu.matmul %114, %115, %cst_49 {dimension_numbers = #tpu.dot_dimension_numbers<[1], [0], [0], [1], [0, 0, 1, 1], [], []>} : vector<64x1024xf32>, vector<1024x128xf32>, vector<64x128xf32> -> vector<64x128xf32>
    %c0_50 = arith.constant 0 : index
    %c0_51 = arith.constant 0 : index
    %117 = vector.load %arg11[%c0_50, %c0_51] : memref<1x128xf32, #tpu.memory_space<vmem>>, vector<1x128xf32>
    %118 = vector.broadcast %117 : vector<1x128xf32> to vector<64x128xf32>
    %119 = arith.addf %116, %118 : vector<64x128xf32>
    %120 = arith.addf %107, %119 : vector<64x128xf32>
    %c0_52 = arith.constant 0 : index
    %c0_53 = arith.constant 0 : index
    %121 = vector.load %arg12[%c0_52, %c0_53] : memref<1x128xf32, #tpu.memory_space<vmem>>, vector<1x128xf32>
    %c0_54 = arith.constant 0 : index
    %c0_55 = arith.constant 0 : index
    %122 = vector.load %arg13[%c0_54, %c0_55] : memref<1x128xf32, #tpu.memory_space<vmem>>, vector<1x128xf32>
    %cst_56 = arith.constant dense<0.000000e+00> : vector<64xf32>
    %123 = vector.multi_reduction <add>, %120, %cst_56 [1] : vector<64x128xf32> to vector<64xf32>
    %124 = vector.shape_cast %123 : vector<64xf32> to vector<64x1xf32>
    %cst_57 = arith.constant 1.280000e+02 : f32
    %125 = vector.broadcast %cst_57 : f32 to vector<64x1xf32>
    %126 = arith.divf %124, %125 : vector<64x1xf32>
    %127 = vector.broadcast %126 : vector<64x1xf32> to vector<64x128xf32>
    %128 = arith.subf %120, %127 : vector<64x128xf32>
    %129 = arith.mulf %128, %128 : vector<64x128xf32>
    %cst_58 = arith.constant dense<0.000000e+00> : vector<64xf32>
    %130 = vector.multi_reduction <add>, %129, %cst_58 [1] : vector<64x128xf32> to vector<64xf32>
    %131 = vector.shape_cast %130 : vector<64xf32> to vector<64x1xf32>
    %cst_59 = arith.constant 1.280000e+02 : f32
    %132 = vector.broadcast %cst_59 : f32 to vector<64x1xf32>
    %133 = arith.divf %131, %132 : vector<64x1xf32>
    %cst_60 = arith.constant 9.99999974E-6 : f32
    %134 = vector.broadcast %cst_60 : f32 to vector<64x1xf32>
    %135 = arith.addf %133, %134 : vector<64x1xf32>
    %136 = math.rsqrt %135 : vector<64x1xf32>
    %137 = vector.broadcast %136 : vector<64x1xf32> to vector<64x128xf32>
    %138 = arith.mulf %128, %137 : vector<64x128xf32>
    %139 = vector.broadcast %121 : vector<1x128xf32> to vector<64x128xf32>
    %140 = arith.mulf %138, %139 : vector<64x128xf32>
    %141 = vector.broadcast %122 : vector<1x128xf32> to vector<64x128xf32>
    %142 = arith.addf %140, %141 : vector<64x128xf32>
    %c0_61 = arith.constant 0 : index
    %c0_62 = arith.constant 0 : index
    %c0_63 = arith.constant 0 : index
    %143 = vector.load %arg14[%c0_61, %c0_62, %c0_63] : memref<1x64x128xf32, #tpu.memory_space<vmem>>, vector<1x64x128xf32>
    %144 = vector.shape_cast %143 : vector<1x64x128xf32> to vector<64x128xf32>
    %145 = vector.shape_cast %142 : vector<64x128xf32> to vector<1x64x128xf32>
    tpu.vector_store %arg14[%c0_61, %c0_62, %c0_63], %145 {strides = array<i32>} : memref<1x64x128xf32, #tpu.memory_space<vmem>>, vector<1x64x128xf32>,
    return
  }
  func.func @transform_0(%arg0: i32) -> (i32, i32, i32) {
    %c0_i32 = arith.constant 0 : i32
    %c0_i32_0 = arith.constant 0 : i32
    %c0_i32_1 = arith.constant 0 : i32
    return %arg0, %c0_i32, %c0_i32_0 : i32, i32, i32
  }
  func.func @transform_1(%arg0: i32) -> (i32, i32) {
    %c0_i32 = arith.constant 0 : i32
    %c0_i32_0 = arith.constant 0 : i32
    %c0_i32_1 = arith.constant 0 : i32
    return %c0_i32, %c0_i32_0 : i32, i32
  }
  func.func @transform_2(%arg0: i32) -> (i32, i32) {
    %c0_i32 = arith.constant 0 : i32
    %c0_i32_0 = arith.constant 0 : i32
    %c0_i32_1 = arith.constant 0 : i32
    return %c0_i32, %c0_i32_0 : i32, i32
  }
  func.func @transform_3(%arg0: i32) -> (i32, i32) {
    %c0_i32 = arith.constant 0 : i32
    %c0_i32_0 = arith.constant 0 : i32
    %c0_i32_1 = arith.constant 0 : i32
    return %c0_i32, %c0_i32_0 : i32, i32
  }
  func.func @transform_4(%arg0: i32) -> (i32, i32) {
    %c0_i32 = arith.constant 0 : i32
    %c0_i32_0 = arith.constant 0 : i32
    %c0_i32_1 = arith.constant 0 : i32
    return %c0_i32, %c0_i32_0 : i32, i32
  }
  func.func @transform_5(%arg0: i32) -> (i32, i32) {
    %c0_i32 = arith.constant 0 : i32
    %c0_i32_0 = arith.constant 0 : i32
    %c0_i32_1 = arith.constant 0 : i32
    return %c0_i32, %c0_i32_0 : i32, i32
  }
  func.func @transform_6(%arg0: i32) -> (i32, i32) {
    %c0_i32 = arith.constant 0 : i32
    %c0_i32_0 = arith.constant 0 : i32
    %c0_i32_1 = arith.constant 0 : i32
    return %c0_i32, %c0_i32_0 : i32, i32
  }
  func.func @transform_7(%arg0: i32) -> (i32, i32) {
    %c0_i32 = arith.constant 0 : i32
    %c0_i32_0 = arith.constant 0 : i32
    %c0_i32_1 = arith.constant 0 : i32
    return %c0_i32, %c0_i32_0 : i32, i32
  }
  func.func @transform_8(%arg0: i32) -> (i32, i32) {
    %c0_i32 = arith.constant 0 : i32
    %c0_i32_0 = arith.constant 0 : i32
    %c0_i32_1 = arith.constant 0 : i32
    return %c0_i32, %c0_i32_0 : i32, i32
  }
  func.func @transform_9(%arg0: i32) -> (i32, i32) {
    %c0_i32 = arith.constant 0 : i32
    %c0_i32_0 = arith.constant 0 : i32
    %c0_i32_1 = arith.constant 0 : i32
    return %c0_i32, %c0_i32_0 : i32, i32
  }
  func.func @transform_10(%arg0: i32) -> (i32, i32) {
    %c0_i32 = arith.constant 0 : i32
    %c0_i32_0 = arith.constant 0 : i32
    %c0_i32_1 = arith.constant 0 : i32
    return %c0_i32, %c0_i32_0 : i32, i32
  }
  func.func @transform_11(%arg0: i32) -> (i32, i32) {
    %c0_i32 = arith.constant 0 : i32
    %c0_i32_0 = arith.constant 0 : i32
    %c0_i32_1 = arith.constant 0 : i32
    return %c0_i32, %c0_i32_0 : i32, i32
  }
  func.func @transform_12(%arg0: i32) -> (i32, i32) {
    %c0_i32 = arith.constant 0 : i32
    %c0_i32_0 = arith.constant 0 : i32
    %c0_i32_1 = arith.constant 0 : i32
    return %c0_i32, %c0_i32_0 : i32, i32
  }
  func.func @transform_13(%arg0: i32) -> (i32, i32, i32) {
    %c0_i32 = arith.constant 0 : i32
    %c0_i32_0 = arith.constant 0 : i32
    %c0_i32_1 = arith.constant 0 : i32
    return %arg0, %c0_i32, %c0_i32_0 : i32, i32, i32
  }
}

module attributes {stable_mosaic.version = 11 : i64} {
  func.func @_encoder_layer_kernel(%arg0: i32, %arg1: memref<1x64x128xf32, #tpu.memory_space<vmem>>, %arg2: memref<128x384xf32, #tpu.memory_space<vmem>>, %arg3: memref<1x384xf32, #tpu.memory_space<vmem>>, %arg4: memref<128x128xf32, #tpu.memory_space<vmem>>, %arg5: memref<1x128xf32, #tpu.memory_space<vmem>>, %arg6: memref<1x128xf32, #tpu.memory_space<vmem>>, %arg7: memref<1x128xf32, #tpu.memory_space<vmem>>, %arg8: memref<128x1024xf32, #tpu.memory_space<vmem>>, %arg9: memref<1x1024xf32, #tpu.memory_space<vmem>>, %arg10: memref<1024x128xf32, #tpu.memory_space<vmem>>, %arg11: memref<1x128xf32, #tpu.memory_space<vmem>>, %arg12: memref<1x128xf32, #tpu.memory_space<vmem>>, %arg13: memref<1x128xf32, #tpu.memory_space<vmem>>, %arg14: memref<1x64x128xf32, #tpu.memory_space<vmem>>) attributes {dimension_semantics = [#tpu.dimension_semantics<parallel>], iteration_bounds = array<i64: 2>, scalar_prefetch = 0 : i64, scratch_operands = 0 : i64, tpu.core_type = #tpu.core_type<tc>, window_params = [{transform_indices = @transform_0, window_bounds = array<i64: 1, 64, 128>}, {pipeline_mode = #tpu.pipeline_mode<synchronous>, transform_indices = @transform_1, window_bounds = array<i64: 128, 384>}, {pipeline_mode = #tpu.pipeline_mode<synchronous>, transform_indices = @transform_2, window_bounds = array<i64: 1, 384>}, {pipeline_mode = #tpu.pipeline_mode<synchronous>, transform_indices = @transform_3, window_bounds = array<i64: 128, 128>}, {pipeline_mode = #tpu.pipeline_mode<synchronous>, transform_indices = @transform_4, window_bounds = array<i64: 1, 128>}, {pipeline_mode = #tpu.pipeline_mode<synchronous>, transform_indices = @transform_5, window_bounds = array<i64: 1, 128>}, {pipeline_mode = #tpu.pipeline_mode<synchronous>, transform_indices = @transform_6, window_bounds = array<i64: 1, 128>}, {pipeline_mode = #tpu.pipeline_mode<synchronous>, transform_indices = @transform_7, window_bounds = array<i64: 128, 1024>}, {pipeline_mode = #tpu.pipeline_mode<synchronous>, transform_indices = @transform_8, window_bounds = array<i64: 1, 1024>}, {pipeline_mode = #tpu.pipeline_mode<synchronous>, transform_indices = @transform_9, window_bounds = array<i64: 1024, 128>}, {pipeline_mode = #tpu.pipeline_mode<synchronous>, transform_indices = @transform_10, window_bounds = array<i64: 1, 128>}, {pipeline_mode = #tpu.pipeline_mode<synchronous>, transform_indices = @transform_11, window_bounds = array<i64: 1, 128>}, {pipeline_mode = #tpu.pipeline_mode<synchronous>, transform_indices = @transform_12, window_bounds = array<i64: 1, 128>}, {transform_indices = @transform_13, window_bounds = array<i64: 1, 64, 128>}]} {
    %c0 = arith.constant 0 : index
    %c0_0 = arith.constant 0 : index
    %c0_1 = arith.constant 0 : index
    %0 = vector.load %arg1[%c0, %c0_0, %c0_1] : memref<1x64x128xf32, #tpu.memory_space<vmem>>, vector<1x64x128xf32>
    %1 = vector.shape_cast %0 : vector<1x64x128xf32> to vector<64x128xf32>
    %c0_2 = arith.constant 0 : index
    %c0_3 = arith.constant 0 : index
    %2 = vector.load %arg2[%c0_2, %c0_3] : memref<128x384xf32, #tpu.memory_space<vmem>>, vector<128x384xf32>
    %cst = arith.constant dense<0.000000e+00> : vector<64x384xf32>
    %3 = tpu.matmul %1, %2, %cst {dimension_numbers = #tpu.dot_dimension_numbers<[1], [0], [0], [1], [0, 0, 1, 1], [], []>} : vector<64x128xf32>, vector<128x384xf32>, vector<64x384xf32> -> vector<64x384xf32>
    %c0_4 = arith.constant 0 : index
    %c0_5 = arith.constant 0 : index
    %4 = vector.load %arg3[%c0_4, %c0_5] : memref<1x384xf32, #tpu.memory_space<vmem>>, vector<1x384xf32>
    %5 = vector.broadcast %4 : vector<1x384xf32> to vector<64x384xf32>
    %6 = arith.addf %3, %5 : vector<64x384xf32>
    %7 = vector.extract_strided_slice %6 {offsets = [0, 0], sizes = [64, 128], strides = [1, 1]} : vector<64x384xf32> to vector<64x128xf32>
    %cst_6 = arith.constant 0.176776692 : f32
    %8 = vector.broadcast %cst_6 : f32 to vector<64x128xf32>
    %9 = arith.mulf %7, %8 : vector<64x128xf32>
    %10 = vector.extract_strided_slice %6 {offsets = [0, 128], sizes = [64, 128], strides = [1, 1]} : vector<64x384xf32> to vector<64x128xf32>
    %11 = vector.extract_strided_slice %6 {offsets = [0, 256], sizes = [64, 128], strides = [1, 1]} : vector<64x384xf32> to vector<64x128xf32>
    %c0_7 = arith.constant 0 : index
    %c0_8 = arith.constant 0 : index
    %12 = vector.load %arg4[%c0_7, %c0_8] : memref<128x128xf32, #tpu.memory_space<vmem>>, vector<128x128xf32>
    %cst_9 = arith.constant 0.000000e+00 : f32
    %13 = vector.broadcast %cst_9 : f32 to vector<64x128xf32>
    %14 = vector.extract_strided_slice %9 {offsets = [0, 0], sizes = [64, 32], strides = [1, 1]} : vector<64x128xf32> to vector<64x32xf32>
    %15 = vector.extract_strided_slice %10 {offsets = [0, 0], sizes = [64, 32], strides = [1, 1]} : vector<64x128xf32> to vector<64x32xf32>
    %16 = vector.extract_strided_slice %11 {offsets = [0, 0], sizes = [64, 32], strides = [1, 1]} : vector<64x128xf32> to vector<64x32xf32>
    %cst_10 = arith.constant dense<0.000000e+00> : vector<64x64xf32>
    %17 = tpu.matmul %14, %15, %cst_10 {dimension_numbers = #tpu.dot_dimension_numbers<[1], [1], [0], [0], [0, 0, 1, 0], [], []>} : vector<64x32xf32>, vector<64x32xf32>, vector<64x64xf32> -> vector<64x64xf32>
    %cst_11 = arith.constant dense<0xFF800000> : vector<64xf32>
    %18 = vector.multi_reduction <maximumf>, %17, %cst_11 [1] : vector<64x64xf32> to vector<64xf32>
    %19 = vector.shape_cast %18 : vector<64xf32> to vector<64x1xf32>
    %20 = vector.broadcast %19 : vector<64x1xf32> to vector<64x64xf32>
    %21 = arith.subf %17, %20 : vector<64x64xf32>
    %22 = math.exp %21 : vector<64x64xf32>
    %cst_12 = arith.constant dense<0.000000e+00> : vector<64xf32>
    %23 = vector.multi_reduction <add>, %22, %cst_12 [1] : vector<64x64xf32> to vector<64xf32>
    %24 = vector.shape_cast %23 : vector<64xf32> to vector<64x1xf32>
    %25 = vector.broadcast %24 : vector<64x1xf32> to vector<64x64xf32>
    %26 = arith.divf %22, %25 : vector<64x64xf32>
    %cst_13 = arith.constant dense<0.000000e+00> : vector<64x32xf32>
    %27 = tpu.matmul %26, %16, %cst_13 {dimension_numbers = #tpu.dot_dimension_numbers<[1], [0], [0], [1], [0, 0, 1, 1], [], []>} : vector<64x64xf32>, vector<64x32xf32>, vector<64x32xf32> -> vector<64x32xf32>
    %28 = vector.extract_strided_slice %12 {offsets = [0, 0], sizes = [32, 128], strides = [1, 1]} : vector<128x128xf32> to vector<32x128xf32>
    %cst_14 = arith.constant dense<0.000000e+00> : vector<64x128xf32>
    %29 = tpu.matmul %27, %28, %cst_14 {dimension_numbers = #tpu.dot_dimension_numbers<[1], [0], [0], [1], [0, 0, 1, 1], [], []>} : vector<64x32xf32>, vector<32x128xf32>, vector<64x128xf32> -> vector<64x128xf32>
    %30 = arith.addf %13, %29 : vector<64x128xf32>
    %31 = vector.extract_strided_slice %9 {offsets = [0, 32], sizes = [64, 32], strides = [1, 1]} : vector<64x128xf32> to vector<64x32xf32>
    %32 = vector.extract_strided_slice %10 {offsets = [0, 32], sizes = [64, 32], strides = [1, 1]} : vector<64x128xf32> to vector<64x32xf32>
    %33 = vector.extract_strided_slice %11 {offsets = [0, 32], sizes = [64, 32], strides = [1, 1]} : vector<64x128xf32> to vector<64x32xf32>
    %cst_15 = arith.constant dense<0.000000e+00> : vector<64x64xf32>
    %34 = tpu.matmul %31, %32, %cst_15 {dimension_numbers = #tpu.dot_dimension_numbers<[1], [1], [0], [0], [0, 0, 1, 0], [], []>} : vector<64x32xf32>, vector<64x32xf32>, vector<64x64xf32> -> vector<64x64xf32>
    %cst_16 = arith.constant dense<0xFF800000> : vector<64xf32>
    %35 = vector.multi_reduction <maximumf>, %34, %cst_16 [1] : vector<64x64xf32> to vector<64xf32>
    %36 = vector.shape_cast %35 : vector<64xf32> to vector<64x1xf32>
    %37 = vector.broadcast %36 : vector<64x1xf32> to vector<64x64xf32>
    %38 = arith.subf %34, %37 : vector<64x64xf32>
    %39 = math.exp %38 : vector<64x64xf32>
    %cst_17 = arith.constant dense<0.000000e+00> : vector<64xf32>
    %40 = vector.multi_reduction <add>, %39, %cst_17 [1] : vector<64x64xf32> to vector<64xf32>
    %41 = vector.shape_cast %40 : vector<64xf32> to vector<64x1xf32>
    %42 = vector.broadcast %41 : vector<64x1xf32> to vector<64x64xf32>
    %43 = arith.divf %39, %42 : vector<64x64xf32>
    %cst_18 = arith.constant dense<0.000000e+00> : vector<64x32xf32>
    %44 = tpu.matmul %43, %33, %cst_18 {dimension_numbers = #tpu.dot_dimension_numbers<[1], [0], [0], [1], [0, 0, 1, 1], [], []>} : vector<64x64xf32>, vector<64x32xf32>, vector<64x32xf32> -> vector<64x32xf32>
    %45 = vector.extract_strided_slice %12 {offsets = [32, 0], sizes = [32, 128], strides = [1, 1]} : vector<128x128xf32> to vector<32x128xf32>
    %cst_19 = arith.constant dense<0.000000e+00> : vector<64x128xf32>
    %46 = tpu.matmul %44, %45, %cst_19 {dimension_numbers = #tpu.dot_dimension_numbers<[1], [0], [0], [1], [0, 0, 1, 1], [], []>} : vector<64x32xf32>, vector<32x128xf32>, vector<64x128xf32> -> vector<64x128xf32>
    %47 = arith.addf %30, %46 : vector<64x128xf32>
    %48 = vector.extract_strided_slice %9 {offsets = [0, 64], sizes = [64, 32], strides = [1, 1]} : vector<64x128xf32> to vector<64x32xf32>
    %49 = vector.extract_strided_slice %10 {offsets = [0, 64], sizes = [64, 32], strides = [1, 1]} : vector<64x128xf32> to vector<64x32xf32>
    %50 = vector.extract_strided_slice %11 {offsets = [0, 64], sizes = [64, 32], strides = [1, 1]} : vector<64x128xf32> to vector<64x32xf32>
    %cst_20 = arith.constant dense<0.000000e+00> : vector<64x64xf32>
    %51 = tpu.matmul %48, %49, %cst_20 {dimension_numbers = #tpu.dot_dimension_numbers<[1], [1], [0], [0], [0, 0, 1, 0], [], []>} : vector<64x32xf32>, vector<64x32xf32>, vector<64x64xf32> -> vector<64x64xf32>
    %cst_21 = arith.constant dense<0xFF800000> : vector<64xf32>
    %52 = vector.multi_reduction <maximumf>, %51, %cst_21 [1] : vector<64x64xf32> to vector<64xf32>
    %53 = vector.shape_cast %52 : vector<64xf32> to vector<64x1xf32>
    %54 = vector.broadcast %53 : vector<64x1xf32> to vector<64x64xf32>
    %55 = arith.subf %51, %54 : vector<64x64xf32>
    %56 = math.exp %55 : vector<64x64xf32>
    %cst_22 = arith.constant dense<0.000000e+00> : vector<64xf32>
    %57 = vector.multi_reduction <add>, %56, %cst_22 [1] : vector<64x64xf32> to vector<64xf32>
    %58 = vector.shape_cast %57 : vector<64xf32> to vector<64x1xf32>
    %59 = vector.broadcast %58 : vector<64x1xf32> to vector<64x64xf32>
    %60 = arith.divf %56, %59 : vector<64x64xf32>
    %cst_23 = arith.constant dense<0.000000e+00> : vector<64x32xf32>
    %61 = tpu.matmul %60, %50, %cst_23 {dimension_numbers = #tpu.dot_dimension_numbers<[1], [0], [0], [1], [0, 0, 1, 1], [], []>} : vector<64x64xf32>, vector<64x32xf32>, vector<64x32xf32> -> vector<64x32xf32>
    %62 = vector.extract_strided_slice %12 {offsets = [64, 0], sizes = [32, 128], strides = [1, 1]} : vector<128x128xf32> to vector<32x128xf32>
    %cst_24 = arith.constant dense<0.000000e+00> : vector<64x128xf32>
    %63 = tpu.matmul %61, %62, %cst_24 {dimension_numbers = #tpu.dot_dimension_numbers<[1], [0], [0], [1], [0, 0, 1, 1], [], []>} : vector<64x32xf32>, vector<32x128xf32>, vector<64x128xf32> -> vector<64x128xf32>
    %64 = arith.addf %47, %63 : vector<64x128xf32>
    %65 = vector.extract_strided_slice %9 {offsets = [0, 96], sizes = [64, 32], strides = [1, 1]} : vector<64x128xf32> to vector<64x32xf32>
    %66 = vector.extract_strided_slice %10 {offsets = [0, 96], sizes = [64, 32], strides = [1, 1]} : vector<64x128xf32> to vector<64x32xf32>
    %67 = vector.extract_strided_slice %11 {offsets = [0, 96], sizes = [64, 32], strides = [1, 1]} : vector<64x128xf32> to vector<64x32xf32>
    %cst_25 = arith.constant dense<0.000000e+00> : vector<64x64xf32>
    %68 = tpu.matmul %65, %66, %cst_25 {dimension_numbers = #tpu.dot_dimension_numbers<[1], [1], [0], [0], [0, 0, 1, 0], [], []>} : vector<64x32xf32>, vector<64x32xf32>, vector<64x64xf32> -> vector<64x64xf32>
    %cst_26 = arith.constant dense<0xFF800000> : vector<64xf32>
    %69 = vector.multi_reduction <maximumf>, %68, %cst_26 [1] : vector<64x64xf32> to vector<64xf32>
    %70 = vector.shape_cast %69 : vector<64xf32> to vector<64x1xf32>
    %71 = vector.broadcast %70 : vector<64x1xf32> to vector<64x64xf32>
    %72 = arith.subf %68, %71 : vector<64x64xf32>
    %73 = math.exp %72 : vector<64x64xf32>
    %cst_27 = arith.constant dense<0.000000e+00> : vector<64xf32>
    %74 = vector.multi_reduction <add>, %73, %cst_27 [1] : vector<64x64xf32> to vector<64xf32>
    %75 = vector.shape_cast %74 : vector<64xf32> to vector<64x1xf32>
    %76 = vector.broadcast %75 : vector<64x1xf32> to vector<64x64xf32>
    %77 = arith.divf %73, %76 : vector<64x64xf32>
    %cst_28 = arith.constant dense<0.000000e+00> : vector<64x32xf32>
    %78 = tpu.matmul %77, %67, %cst_28 {dimension_numbers = #tpu.dot_dimension_numbers<[1], [0], [0], [1], [0, 0, 1, 1], [], []>} : vector<64x64xf32>, vector<64x32xf32>, vector<64x32xf32> -> vector<64x32xf32>
    %79 = vector.extract_strided_slice %12 {offsets = [96, 0], sizes = [32, 128], strides = [1, 1]} : vector<128x128xf32> to vector<32x128xf32>
    %cst_29 = arith.constant dense<0.000000e+00> : vector<64x128xf32>
    %80 = tpu.matmul %78, %79, %cst_29 {dimension_numbers = #tpu.dot_dimension_numbers<[1], [0], [0], [1], [0, 0, 1, 1], [], []>} : vector<64x32xf32>, vector<32x128xf32>, vector<64x128xf32> -> vector<64x128xf32>
    %81 = arith.addf %64, %80 : vector<64x128xf32>
    %c0_30 = arith.constant 0 : index
    %c0_31 = arith.constant 0 : index
    %82 = vector.load %arg5[%c0_30, %c0_31] : memref<1x128xf32, #tpu.memory_space<vmem>>, vector<1x128xf32>
    %83 = vector.broadcast %82 : vector<1x128xf32> to vector<64x128xf32>
    %84 = arith.addf %81, %83 : vector<64x128xf32>
    %85 = arith.addf %1, %84 : vector<64x128xf32>
    %c0_32 = arith.constant 0 : index
    %c0_33 = arith.constant 0 : index
    %86 = vector.load %arg6[%c0_32, %c0_33] : memref<1x128xf32, #tpu.memory_space<vmem>>, vector<1x128xf32>
    %c0_34 = arith.constant 0 : index
    %c0_35 = arith.constant 0 : index
    %87 = vector.load %arg7[%c0_34, %c0_35] : memref<1x128xf32, #tpu.memory_space<vmem>>, vector<1x128xf32>
    %cst_36 = arith.constant dense<0.000000e+00> : vector<64xf32>
    %88 = vector.multi_reduction <add>, %85, %cst_36 [1] : vector<64x128xf32> to vector<64xf32>
    %89 = vector.shape_cast %88 : vector<64xf32> to vector<64x1xf32>
    %cst_37 = arith.constant 1.280000e+02 : f32
    %90 = vector.broadcast %cst_37 : f32 to vector<64x1xf32>
    %91 = arith.divf %89, %90 : vector<64x1xf32>
    %92 = vector.broadcast %91 : vector<64x1xf32> to vector<64x128xf32>
    %93 = arith.subf %85, %92 : vector<64x128xf32>
    %94 = arith.mulf %93, %93 : vector<64x128xf32>
    %cst_38 = arith.constant dense<0.000000e+00> : vector<64xf32>
    %95 = vector.multi_reduction <add>, %94, %cst_38 [1] : vector<64x128xf32> to vector<64xf32>
    %96 = vector.shape_cast %95 : vector<64xf32> to vector<64x1xf32>
    %cst_39 = arith.constant 1.280000e+02 : f32
    %97 = vector.broadcast %cst_39 : f32 to vector<64x1xf32>
    %98 = arith.divf %96, %97 : vector<64x1xf32>
    %cst_40 = arith.constant 9.99999974E-6 : f32
    %99 = vector.broadcast %cst_40 : f32 to vector<64x1xf32>
    %100 = arith.addf %98, %99 : vector<64x1xf32>
    %101 = math.rsqrt %100 : vector<64x1xf32>
    %102 = vector.broadcast %101 : vector<64x1xf32> to vector<64x128xf32>
    %103 = arith.mulf %93, %102 : vector<64x128xf32>
    %104 = vector.broadcast %86 : vector<1x128xf32> to vector<64x128xf32>
    %105 = arith.mulf %103, %104 : vector<64x128xf32>
    %106 = vector.broadcast %87 : vector<1x128xf32> to vector<64x128xf32>
    %107 = arith.addf %105, %106 : vector<64x128xf32>
    %c0_41 = arith.constant 0 : index
    %c0_42 = arith.constant 0 : index
    %108 = vector.load %arg8[%c0_41, %c0_42] : memref<128x1024xf32, #tpu.memory_space<vmem>>, vector<128x1024xf32>
    %cst_43 = arith.constant dense<0.000000e+00> : vector<64x1024xf32>
    %109 = tpu.matmul %107, %108, %cst_43 {dimension_numbers = #tpu.dot_dimension_numbers<[1], [0], [0], [1], [0, 0, 1, 1], [], []>} : vector<64x128xf32>, vector<128x1024xf32>, vector<64x1024xf32> -> vector<64x1024xf32>
    %c0_44 = arith.constant 0 : index
    %c0_45 = arith.constant 0 : index
    %110 = vector.load %arg9[%c0_44, %c0_45] : memref<1x1024xf32, #tpu.memory_space<vmem>>, vector<1x1024xf32>
    %111 = vector.broadcast %110 : vector<1x1024xf32> to vector<64x1024xf32>
    %112 = arith.addf %109, %111 : vector<64x1024xf32>
    %cst_46 = arith.constant 0.000000e+00 : f32
    %113 = vector.broadcast %cst_46 : f32 to vector<64x1024xf32>
    %114 = arith.maximumf %112, %113 : vector<64x1024xf32>
    %c0_47 = arith.constant 0 : index
    %c0_48 = arith.constant 0 : index
    %115 = vector.load %arg10[%c0_47, %c0_48] : memref<1024x128xf32, #tpu.memory_space<vmem>>, vector<1024x128xf32>
    %cst_49 = arith.constant dense<0.000000e+00> : vector<64x128xf32>
    %116 = tpu.matmul %114, %115, %cst_49 {dimension_numbers = #tpu.dot_dimension_numbers<[1], [0], [0], [1], [0, 0, 1, 1], [], []>} : vector<64x1024xf32>, vector<1024x128xf32>, vector<64x128xf32> -> vector<64x128xf32>
    %c0_50 = arith.constant 0 : index
    %c0_51 = arith.constant 0 : index
    %117 = vector.load %arg11[%c0_50, %c0_51] : memref<1x128xf32, #tpu.memory_space<vmem>>, vector<1x128xf32>
    %118 = vector.broadcast %117 : vector<1x128xf32> to vector<64x128xf32>
    %119 = arith.addf %116, %118 : vector<64x128xf32>
    %120 = arith.addf %107, %119 : vector<64x128xf32>
    %c0_52 = arith.constant 0 : index
    %c0_53 = arith.constant 0 : index
    %121 = vector.load %arg12[%c0_52, %c0_53] : memref<1x128xf32, #tpu.memory_space<vmem>>, vector<1x128xf32>
    %c0_54 = arith.constant 0 : index
    %c0_55 = arith.constant 0 : index
    %122 = vector.load %arg13[%c0_54, %c0_55] : memref<1x128xf32, #tpu.memory_space<vmem>>, vector<1x128xf32>
    %cst_56 = arith.constant dense<0.000000e+00> : vector<64xf32>
    %123 = vector.multi_reduction <add>, %120, %cst_56 [1] : vector<64x128xf32> to vector<64xf32>
    %124 = vector.shape_cast %123 : vector<64xf32> to vector<64x1xf32>
    %cst_57 = arith.constant 1.280000e+02 : f32
    %125 = vector.broadcast %cst_57 : f32 to vector<64x1xf32>
    %126 = arith.divf %124, %125 : vector<64x1xf32>
    %127 = vector.broadcast %126 : vector<64x1xf32> to vector<64x128xf32>
    %128 = arith.subf %120, %127 : vector<64x128xf32>
    %129 = arith.mulf %128, %128 : vector<64x128xf32>
    %cst_58 = arith.constant dense<0.000000e+00> : vector<64xf32>
    %130 = vector.multi_reduction <add>, %129, %cst_58 [1] : vector<64x128xf32> to vector<64xf32>
    %131 = vector.shape_cast %130 : vector<64xf32> to vector<64x1xf32>
    %cst_59 = arith.constant 1.280000e+02 : f32
    %132 = vector.broadcast %cst_59 : f32 to vector<64x1xf32>
    %133 = arith.divf %131, %132 : vector<64x1xf32>
    %cst_60 = arith.constant 9.99999974E-6 : f32
    %134 = vector.broadcast %cst_60 : f32 to vector<64x1xf32>
    %135 = arith.addf %133, %134 : vector<64x1xf32>
    %136 = math.rsqrt %135 : vector<64x1xf32>
    %137 = vector.broadcast %136 : vector<64x1xf32> to vector<64x128xf32>
    %138 = arith.mulf %128, %137 : vector<64x128xf32>
    %139 = vector.broadcast %121 : vector<1x128xf32> to vector<64x128xf32>
    %140 = arith.mulf %138, %139 : vector<64x128xf32>
    %141 = vector.broadcast %122 : vector<1x128xf32> to vector<64x128xf32>
    %142 = arith.addf %140, %141 : vector<64x128xf32>
    %c0_61 = arith.constant 0 : index
    %c0_62 = arith.constant 0 : index
    %c0_63 = arith.constant 0 : index
    %143 = vector.load %arg14[%c0_61, %c0_62, %c0_63] : memref<1x64x128xf32, #tpu.memory_space<vmem>>, vector<1x64x128xf32>
    %144 = vector.shape_cast %143 : vector<1x64x128xf32> to vector<64x128xf32>
    %145 = vector.shape_cast %142 : vector<64x128xf32> to vector<1x64x128xf32>
    tpu.vector_store %arg14[%c0_61, %c0_62, %c0_63], %145 {strides = array<i32>} : memref<1x64x128xf32, #tpu.memory_space<vmem>>, vector<1x64x128xf32>,
    return
  }
  func.func @transform_0(%arg0: i32) -> (i32, i32, i32) {
    %c0_i32 = arith.constant 0 : i32
    %c0_i32_0 = arith.constant 0 : i32
    %c0_i32_1 = arith.constant 0 : i32
    return %arg0, %c0_i32, %c0_i32_0 : i32, i32, i32
  }
  func.func @transform_1(%arg0: i32) -> (i32, i32) {
    %c0_i32 = arith.constant 0 : i32
    %c0_i32_0 = arith.constant 0 : i32
    %c0_i32_1 = arith.constant 0 : i32
    return %c0_i32, %c0_i32_0 : i32, i32
  }
  func.func @transform_2(%arg0: i32) -> (i32, i32) {
    %c0_i32 = arith.constant 0 : i32
    %c0_i32_0 = arith.constant 0 : i32
    %c0_i32_1 = arith.constant 0 : i32
    return %c0_i32, %c0_i32_0 : i32, i32
  }
  func.func @transform_3(%arg0: i32) -> (i32, i32) {
    %c0_i32 = arith.constant 0 : i32
    %c0_i32_0 = arith.constant 0 : i32
    %c0_i32_1 = arith.constant 0 : i32
    return %c0_i32, %c0_i32_0 : i32, i32
  }
  func.func @transform_4(%arg0: i32) -> (i32, i32) {
    %c0_i32 = arith.constant 0 : i32
    %c0_i32_0 = arith.constant 0 : i32
    %c0_i32_1 = arith.constant 0 : i32
    return %c0_i32, %c0_i32_0 : i32, i32
  }
  func.func @transform_5(%arg0: i32) -> (i32, i32) {
    %c0_i32 = arith.constant 0 : i32
    %c0_i32_0 = arith.constant 0 : i32
    %c0_i32_1 = arith.constant 0 : i32
    return %c0_i32, %c0_i32_0 : i32, i32
  }
  func.func @transform_6(%arg0: i32) -> (i32, i32) {
    %c0_i32 = arith.constant 0 : i32
    %c0_i32_0 = arith.constant 0 : i32
    %c0_i32_1 = arith.constant 0 : i32
    return %c0_i32, %c0_i32_0 : i32, i32
  }
  func.func @transform_7(%arg0: i32) -> (i32, i32) {
    %c0_i32 = arith.constant 0 : i32
    %c0_i32_0 = arith.constant 0 : i32
    %c0_i32_1 = arith.constant 0 : i32
    return %c0_i32, %c0_i32_0 : i32, i32
  }
  func.func @transform_8(%arg0: i32) -> (i32, i32) {
    %c0_i32 = arith.constant 0 : i32
    %c0_i32_0 = arith.constant 0 : i32
    %c0_i32_1 = arith.constant 0 : i32
    return %c0_i32, %c0_i32_0 : i32, i32
  }
  func.func @transform_9(%arg0: i32) -> (i32, i32) {
    %c0_i32 = arith.constant 0 : i32
    %c0_i32_0 = arith.constant 0 : i32
    %c0_i32_1 = arith.constant 0 : i32
    return %c0_i32, %c0_i32_0 : i32, i32
  }
  func.func @transform_10(%arg0: i32) -> (i32, i32) {
    %c0_i32 = arith.constant 0 : i32
    %c0_i32_0 = arith.constant 0 : i32
    %c0_i32_1 = arith.constant 0 : i32
    return %c0_i32, %c0_i32_0 : i32, i32
  }
  func.func @transform_11(%arg0: i32) -> (i32, i32) {
    %c0_i32 = arith.constant 0 : i32
    %c0_i32_0 = arith.constant 0 : i32
    %c0_i32_1 = arith.constant 0 : i32
    return %c0_i32, %c0_i32_0 : i32, i32
  }
  func.func @transform_12(%arg0: i32) -> (i32, i32) {
    %c0_i32 = arith.constant 0 : i32
    %c0_i32_0 = arith.constant 0 : i32
    %c0_i32_1 = arith.constant 0 : i32
    return %c0_i32, %c0_i32_0 : i32, i32
  }
  func.func @transform_13(%arg0: i32) -> (i32, i32, i32) {
    %c0_i32 = arith.constant 0 : i32
    %c0_i32_0 = arith.constant 0 : i32
    %c0_i32_1 = arith.constant 0 : i32
    return %arg0, %c0_i32, %c0_i32_0 : i32, i32, i32
  }
}

</mosaic_0001>

<llo_original>
// kernel: patch_transformer_encoder.5
$region0: #{patch_transformer_encoder.5}
  #allocation0 [shape = 'u32[]', space=smem, size = 0x4, offset = 0x4, fixed_abs, tag = 'smem constant byte address 0x4 - core index']
  #allocation1 [shape = 'u32[144,128]{1,0:T(1,128)}', space=vmem, size = 0x12000, scoped, tag = 'internal scratch']
  %s0 = inlined_call_operand.vmem [shape: f32[2,64,64], index: 0, kind: input, shape index: {}]
  %s1 = inlined_call_operand.vmem [shape: f32[64,128], index: 1, kind: input, shape index: {}]
  %s2 = inlined_call_operand.vmem [shape: f32[1,128], index: 2, kind: input, shape index: {}]
  %s3 = inlined_call_operand.vmem [shape: f32[64,128], index: 3, kind: input, shape index: {}]
  %s4 = inlined_call_operand.vmem [shape: f32[2,64,128], index: 4, kind: output, shape index: {}]
  %s5 = sld [smem:[#allocation0]]
  $region49: #{patch_transformer_encoder.5} parent=0
    _
  %s7 = ssub.s32 1, %s5
  %s8 = scalar_select 0, %s7, %s5
  loop: start=0, step=1, limit=4
  $region2: #{patch_transformer_encoder.5} parent=0 // loop_pre_header
    _
  $region3: #{patch_transformer_encoder.5} parent=0 // loop_header
    %s10 = sphi 0, %s14
    %p11 = scmp.ge.s32.totalorder %s10, 4
    %s20 = sphi 0, %s22
    %s23 = sphi 0, %s20
    %s24 = sphi 0, %s23
    %s40 = sphi 0, %s24
    %s44 = sphi 0, %s44
    %s46 = sphi 0, %s44
    %s47 = sphi 0, %s46
    %s61 = sphi 0, %s47
    %s65 = sphi 0, %s65
    %s67 = sphi 0, %s65
    %s68 = sphi 0, %s67
    %s82 = sphi 0, %s68
    %s86 = sphi 0, %s86
    %s88 = sphi 0, %s86
    %s89 = sphi 0, %s88
    %s103 = sphi 0, %s89
    %s109 = sphi 0, %s111
    %s112 = sphi 0, %s109
    %s113 = sphi 0, %s112
    %s129 = sphi 0, %s113
  $region4: #{patch_transformer_encoder.5} parent=0 // loop_header_branch
    %13 = sbr.rel (%p11) target = $region8
  $region5: #{patch_transformer_encoder.5} parent=0 // loop_body
    %s15 = ssub.s32 %s10, 1
    %s16 = ssub.s32 %s10, 2
    %s17 = sadd.s32 %s10, 1
    %s18 = ssub.s32 %s10, %s17
    %p19 = scmp.eq.s32.totalorder %s18, 0
    %s21 = sadd.s32 %s20, 1
    %s22 = scalar_select %p19, %s20, %s21
    %p25 = pneg %p19
    %p26 = scmp.eq.s32.totalorder %s10, 1
    %p27 = por %p25, %p26
    %p28 = scmp.ne.s32.totalorder %s20, %s23
    %p29 = scmp.eq.s32.totalorder %s10, 0
    %p30 = por %p28, %p29
    %p31 = scmp.ne.s32.totalorder %s20, %s23
    %p32 = scmp.eq.s32.totalorder %s15, 1
    %p33 = por %p31, %p32
    %p34 = scmp.ne.s32.totalorder %s23, %s24
    %p35 = scmp.eq.s32.totalorder %s15, 0
    %p36 = por %p34, %p35
    %p37 = scmp.ne.s32.totalorder %s23, %s24
    %p38 = scmp.eq.s32.totalorder %s16, 1
    %p39 = por %p37, %p38
    %p41 = scmp.ne.s32.totalorder %s24, %s40
    %p42 = scmp.eq.s32.totalorder %s16, 0
    %p43 = por %p41, %p42
    %s45 = sadd.s32 %s44, 1
    %p48 = scmp.eq.s32.totalorder %s10, 1
    %p49 = scmp.ne.s32.totalorder %s44, %s46
    %p50 = scmp.eq.s32.totalorder %s10, 0
    %p51 = por %p49, %p50
    %p52 = scmp.ne.s32.totalorder %s44, %s46
    %p53 = scmp.eq.s32.totalorder %s15, 1
    %p54 = por %p52, %p53
    %p55 = scmp.ne.s32.totalorder %s46, %s47
    %p56 = scmp.eq.s32.totalorder %s15, 0
    %p57 = por %p55, %p56
    %p58 = scmp.ne.s32.totalorder %s46, %s47
    %p59 = scmp.eq.s32.totalorder %s16, 1
    %p60 = por %p58, %p59
    %p62 = scmp.ne.s32.totalorder %s47, %s61
    %p63 = scmp.eq.s32.totalorder %s16, 0
    %p64 = por %p62, %p63
    %s66 = sadd.s32 %s65, 1
    %p69 = scmp.eq.s32.totalorder %s10, 1
    %p70 = scmp.ne.s32.totalorder %s65, %s67
    %p71 = scmp.eq.s32.totalorder %s10, 0
    %p72 = por %p70, %p71
    %p73 = scmp.ne.s32.totalorder %s65, %s67
    %p74 = scmp.eq.s32.totalorder %s15, 1
    %p75 = por %p73, %p74
    %p76 = scmp.ne.s32.totalorder %s67, %s68
    %p77 = scmp.eq.s32.totalorder %s15, 0
    %p78 = por %p76, %p77
    %p79 = scmp.ne.s32.totalorder %s67, %s68
    %p80 = scmp.eq.s32.totalorder %s16, 1
    %p81 = por %p79, %p80
    %p83 = scmp.ne.s32.totalorder %s68, %s82
    %p84 = scmp.eq.s32.totalorder %s16, 0
    %p85 = por %p83, %p84
    %s87 = sadd.s32 %s86, 1
    %p90 = scmp.eq.s32.totalorder %s10, 1
    %p91 = scmp.ne.s32.totalorder %s86, %s88
    %p92 = scmp.eq.s32.totalorder %s10, 0
    %p93 = por %p91, %p92
    %p94 = scmp.ne.s32.totalorder %s86, %s88
    %p95 = scmp.eq.s32.totalorder %s15, 1
    %p96 = por %p94, %p95
    %p97 = scmp.ne.s32.totalorder %s88, %s89
    %p98 = scmp.eq.s32.totalorder %s15, 0
    %p99 = por %p97, %p98
    %p100 = scmp.ne.s32.totalorder %s88, %s89
    %p101 = scmp.eq.s32.totalorder %s16, 1
    %p102 = por %p100, %p101
    %p104 = scmp.ne.s32.totalorder %s89, %s103
    %p105 = scmp.eq.s32.totalorder %s16, 0
    %p106 = por %p104, %p105
    %s107 = ssub.s32 %s10, %s17
    %p108 = scmp.eq.s32.totalorder %s107, 0
    %s110 = sadd.s32 %s109, 1
    %s111 = scalar_select %p108, %s109, %s110
    %p114 = pneg %p108
    %p115 = scmp.eq.s32.totalorder %s10, 1
    %p116 = por %p114, %p115
    %p117 = scmp.ne.s32.totalorder %s109, %s112
    %p118 = scmp.eq.s32.totalorder %s10, 0
    %p119 = por %p117, %p118
    %p120 = scmp.ne.s32.totalorder %s109, %s112
    %p121 = scmp.eq.s32.totalorder %s15, 1
    %p122 = por %p120, %p121
    %p123 = scmp.ne.s32.totalorder %s112, %s113
    %p124 = scmp.eq.s32.totalorder %s15, 0
    %p125 = por %p123, %p124
    %p126 = scmp.ne.s32.totalorder %s112, %s113
    %p127 = scmp.eq.s32.totalorder %s16, 1
    %p128 = por %p126, %p127
    %p130 = scmp.ne.s32.totalorder %s113, %s129
    %p131 = scmp.eq.s32.totalorder %s16, 0
    %p132 = por %p130, %p131
    %p133 = scmp.le.s32.totalorder 1, %s10
    %p134 = scmp.lt.s32.totalorder %s10, 3
    %p135 = pnand %p133, %p134
    %p136 = pneg %p135
    // Predicated region
    $region9: #{patch_transformer_encoder.5} parent=5 // pred_check
      _
    $region10: #{patch_transformer_encoder.5} parent=5 // pred_check_branch
      %138 = sbr.rel (%p135) target = $region12
    $region11: #{patch_transformer_encoder.5} parent=5 // pred_region
      %s139 = ssub.s32 %s10, 1
      // Predicated region
      $region13: #{patch_transformer_encoder.5} parent=11 // pred_check
        %p140 = pneg %p57
      $region14: #{patch_transformer_encoder.5} parent=11 // pred_check_branch
        %142 = sbr.rel (%p140) target = $region16
      $region15: #{patch_transformer_encoder.5} parent=11 // pred_region
        _
      $region16: #{patch_transformer_encoder.5} parent=11 // pred_fallthru
        _
      // Predicated region
      $region17: #{patch_transformer_encoder.5} parent=11 // pred_check
        %p143 = pneg %p78
      $region18: #{patch_transformer_encoder.5} parent=11 // pred_check_branch
        %145 = sbr.rel (%p143) target = $region20
      $region19: #{patch_transformer_encoder.5} parent=11 // pred_region
        _
      $region20: #{patch_transformer_encoder.5} parent=11 // pred_fallthru
        _
      // Predicated region
      $region21: #{patch_transformer_encoder.5} parent=11 // pred_check
        %p146 = pneg %p99
      $region22: #{patch_transformer_encoder.5} parent=11 // pred_check_branch
        %148 = sbr.rel (%p146) target = $region24
      $region23: #{patch_transformer_encoder.5} parent=11 // pred_region
        _
      $region24: #{patch_transformer_encoder.5} parent=11 // pred_fallthru
        _
    $region12: #{patch_transformer_encoder.5} parent=5 // pred_fallthru
      _
    %p149 = scmp.lt.s32.totalorder %s10, 2
    // Predicated region
    $region25: #{patch_transformer_encoder.5} parent=5 // pred_check
      %p150 = pneg %p149
    $region26: #{patch_transformer_encoder.5} parent=5 // pred_check_branch
      %152 = sbr.rel (%p150) target = $region28
    $region27: #{patch_transformer_encoder.5} parent=5 // pred_region
      // Predicated region
      $region29: #{patch_transformer_encoder.5} parent=27 // pred_check
        %p153 = pneg %p30
      $region30: #{patch_transformer_encoder.5} parent=27 // pred_check_branch
        %155 = sbr.rel (%p153) target = $region32
      $region31: #{patch_transformer_encoder.5} parent=27 // pred_region
        %p156 = scmp.lt.s32.totalorder %s10, 1
        %s157 = scalar_select %p156, %s10, 1
        %s158 = smul.addr %s157, 8
        %s159 = smul.addr %s158, 8
        %s160 = scalar_lea.vmem %s0, %s159
      $region32: #{patch_transformer_encoder.5} parent=27 // pred_fallthru
        _
    $region28: #{patch_transformer_encoder.5} parent=5 // pred_fallthru
      _
    %p161 = scmp.le.s32.totalorder 1, %s10
    %p162 = scmp.lt.s32.totalorder %s10, 3
    %p163 = pnand %p161, %p162
    %p164 = pneg %p163
    // Predicated region
    $region33: #{patch_transformer_encoder.5} parent=5 // pred_check
      _
    $region34: #{patch_transformer_encoder.5} parent=5 // pred_check_branch
      %166 = sbr.rel (%p163) target = $region36
    $region35: #{patch_transformer_encoder.5} parent=5 // pred_region
      %s167 = ssub.s32 %s10, 1
      %p168 = scmp.lt.s32.totalorder %s15, 1
      %s169 = scalar_select %p168, %s15, 1
      %s170 = smul.addr %s169, 8
      %s171 = smul.addr %s170, 8
      %s172 = scalar_lea.vmem %s0, %s171
      %p173 = pneg %p36
      %p174 = pneg %p33
      %p175 = pneg %p57
      %p176 = pneg %p54
      %p177 = pneg %p78
      %p178 = pneg %p75
      %p179 = pneg %p99
      %p180 = pneg %p96
      %p181 = pneg %p125
      %p182 = pneg %p122
      %p183 = scmp.lt.s32.totalorder %s15, 1
      %s184 = scalar_select %p183, %s15, 1
      %s185 = smul.addr %s184, 8
      %s186 = smul.addr %s185, 8
      %s187 = scalar_lea.vmem %s4, %s186
      %p188 = scmp.lt.s32.totalorder %s15, 1
      %s189 = scalar_select %p188, %s15, 1
      %s190 = smul.addr %s189, 8
      %s191 = smul.addr %s190, 8
      %s192 = scalar_lea.vmem %s0, %s191
      %p193 = scmp.lt.s32.totalorder %s15, 1
      %s194 = scalar_select %p193, %s15, 1
      %s195 = smul.addr %s194, 8
      %s196 = smul.addr %s195, 8
      %s197 = scalar_lea.vmem %s4, %s196
      %v198 = vld [vmem:[%s192] sm:$0xff]
      %v199 = vld [vmem:[%s192 + $0x8] sm:$0xff]
      %v200 = vld [vmem:[%s192 + $0x10] sm:$0xff]
      %v201 = vld [vmem:[%s192 + $0x18] sm:$0xff]
      %v202 = vld [vmem:[%s192 + $0x20] sm:$0xff]
      %v203 = vld [vmem:[%s192 + $0x28] sm:$0xff]
      %v204 = vld [vmem:[%s192 + $0x30] sm:$0xff]
      %v205 = vld [vmem:[%s192 + $0x38] sm:$0xff]
      %v206 = vld [vmem:[%s1] sm:$0xff]
      %v207 = vld [vmem:[%s1 + $0x8] sm:$0xff]
      %v208 = vld [vmem:[%s1 + $0x10] sm:$0xff]
      %v209 = vld [vmem:[%s1 + $0x18] sm:$0xff]
      %v210 = vld [vmem:[%s1 + $0x20] sm:$0xff]
      %v211 = vld [vmem:[%s1 + $0x28] sm:$0xff]
      %v212 = vld [vmem:[%s1 + $0x30] sm:$0xff]
      %v213 = vld [vmem:[%s1 + $0x38] sm:$0xff]
      %v214 = vld [vmem:[%s2] sm:$0x1]
      %v216 = vlaneseq
      %v217 = vshrl.u32 %v216, 7
      %v218 = vsub.s32 0, %v217
      %v219 = vrot.slane %v214, %v218
      %vm221 = vcmask 523264
      %v223 = vsel %vm221, %v198, 0
      %v226 = vsel %vm221, %v199, 0
      %v229 = vsel %vm221, %v200, 0
      %v232 = vsel %vm221, %v201, 0
      %v235 = vsel %vm221, %v202, 0
      %v238 = vsel %vm221, %v203, 0
      %v241 = vsel %vm221, %v204, 0
      %v244 = vsel %vm221, %v205, 0
      %246 = vmatprep.subr.mxu0 0.0
      %247 = vmatpush1.msra.mxu0 0.0
      %248 = vmatprep.subr.mxu0 0.0
      %249 = vmatpush1.msra.mxu0 0.0
      %250 = vmatprep.subr.mxu0 0.0
      %251 = vmatpush1.msra.mxu0 0.0
      %252 = vmatprep.subr.mxu0 0.0
      %253 = vmatpush1.msra.mxu0 0.0
      %254 = vmatprep.subr.mxu0 0.0
      %255 = vmatpush1.msra.mxu0 0.0
      %256 = vmatprep.subr.mxu0 0.0
      %257 = vmatpush1.msra.mxu0 0.0
      %258 = vmatprep.subr.mxu0 0.0
      %259 = vmatpush1.msra.mxu0 0.0
      %260 = vmatprep.subr.mxu0 0.0
      %261 = vmatpush1.msra.mxu0 0.0
      %262 = vmatprep.subr.mxu0 0.0
      %263 = vmatpush1.msra.mxu0 %v213
      %264 = vmatprep.subr.mxu0 0.0
      %265 = vmatpush1.msra.mxu0 %v212
      %266 = vmatprep.subr.mxu0 0.0
      %267 = vmatpush1.msra.mxu0 %v211
      %268 = vmatprep.subr.mxu0 0.0
      %269 = vmatpush1.msra.mxu0 %v210
      %270 = vmatprep.subr.mxu0 0.0
      %271 = vmatpush1.msra.mxu0 %v209
      %272 = vmatprep.subr.mxu0 0.0
      %273 = vmatpush1.msra.mxu0 %v208
      %274 = vmatprep.subr.mxu0 0.0
      %275 = vmatpush1.msra.mxu0 %v207
      %276 = vmatprep.subr.mxu0 0.0
      %277 = vmatpush1.msra.mxu0 %v206
      %278 = vmatprep.subr.mxu0 0.0
      %279 = vmatpush2.msra.mxu0 0.0
      %280 = vmatprep.subr.mxu0 0.0
      %281 = vmatpush2.msra.mxu0 0.0
      %282 = vmatprep.subr.mxu0 0.0
      %283 = vmatpush2.msra.mxu0 0.0
      %284 = vmatprep.subr.mxu0 0.0
      %285 = vmatpush2.msra.mxu0 0.0
      %286 = vmatprep.subr.mxu0 0.0
      %287 = vmatpush2.msra.mxu0 0.0
      %288 = vmatprep.subr.mxu0 0.0
      %289 = vmatpush2.msra.mxu0 0.0
      %290 = vmatprep.subr.mxu0 0.0
      %291 = vmatpush2.msra.mxu0 0.0
      %292 = vmatprep.subr.mxu0 0.0
      %293 = vmatpush2.msra.mxu0 0.0
      %294 = vmatprep.subr.mxu0 0.0
      %295 = vmatpush2.msra.mxu0 0.0
      %296 = vmatprep.subr.mxu0 0.0
      %297 = vmatpush2.msra.mxu0 0.0
      %298 = vmatprep.subr.mxu0 0.0
      %299 = vmatpush2.msra.mxu0 0.0
      %300 = vmatprep.subr.mxu0 0.0
      %301 = vmatpush2.msra.mxu0 0.0
      %302 = vmatprep.subr.mxu0 0.0
      %303 = vmatpush2.msra.mxu0 0.0
      %304 = vmatprep.subr.mxu0 0.0
      %305 = vmatpush2.msra.mxu0 0.0
      %306 = vmatprep.subr.mxu0 0.0
      %307 = vmatpush2.msra.mxu0 0.0
      %308 = vmatprep.subr.mxu0 0.0
      %309 = vmatpush2.msra.mxu0 0.0
      %310 = vmatprep.mubr.f32.mxu0 0.0
      %311 = vmatmul.mubr.f32.gmra.mxu0 %v223
      %v312 = vpop.f32.mrf.mxu0
      %v313 = vadd.f32 %v219, %v312
      %v314 = vpop.f32.mrf.mxu0
      %315 = vmatprep.mubr.f32.mxu0 0.0
      %316 = vmatmul.mubr.f32.gmra.mxu0 %v226
      %v317 = vpop.f32.mrf.mxu0
      %v318 = vadd.f32 %v219, %v317
      %v319 = vpop.f32.mrf.mxu0
      %320 = vmatprep.mubr.f32.mxu0 0.0
      %321 = vmatmul.mubr.f32.gmra.mxu0 %v229
      %v322 = vpop.f32.mrf.mxu0
      %v323 = vadd.f32 %v219, %v322
      %v324 = vpop.f32.mrf.mxu0
      %325 = vmatprep.mubr.f32.mxu0 0.0
      %326 = vmatmul.mubr.f32.gmra.mxu0 %v232
      %v327 = vpop.f32.mrf.mxu0
      %v328 = vadd.f32 %v219, %v327
      %v329 = vpop.f32.mrf.mxu0
      %330 = vmatprep.mubr.f32.mxu0 0.0
      %331 = vmatmul.mubr.f32.gmra.mxu0 %v235
      %v332 = vpop.f32.mrf.mxu0
      %v333 = vadd.f32 %v219, %v332
      %v334 = vpop.f32.mrf.mxu0
      %335 = vmatprep.mubr.f32.mxu0 0.0
      %336 = vmatmul.mubr.f32.gmra.mxu0 %v238
      %v337 = vpop.f32.mrf.mxu0
      %v338 = vadd.f32 %v219, %v337
      %v339 = vpop.f32.mrf.mxu0
      %340 = vmatprep.mubr.f32.mxu0 0.0
      %341 = vmatmul.mubr.f32.gmra.mxu0 %v241
      %v342 = vpop.f32.mrf.mxu0
      %v343 = vadd.f32 %v219, %v342
      %v344 = vpop.f32.mrf.mxu0
      %345 = vmatprep.mubr.f32.mxu0 0.0
      %346 = vmatmul.mubr.f32.gmra.mxu0 %v244
      %v347 = vpop.f32.mrf.mxu0
      %v348 = vadd.f32 %v219, %v347
      %v349 = vpop.f32.mrf.mxu0
      %350 = vdwg.mxu0
      %v351 = vld [vmem:[%s3] sm:$0xff]
      %v352 = vld [vmem:[%s3 + $0x8] sm:$0xff]
      %v353 = vld [vmem:[%s3 + $0x10] sm:$0xff]
      %v354 = vld [vmem:[%s3 + $0x18] sm:$0xff]
      %v355 = vld [vmem:[%s3 + $0x20] sm:$0xff]
      %v356 = vld [vmem:[%s3 + $0x28] sm:$0xff]
      %v357 = vld [vmem:[%s3 + $0x30] sm:$0xff]
      %v358 = vld [vmem:[%s3 + $0x38] sm:$0xff]
      %v359 = vadd.f32 %v313, %v351
      %v360 = vadd.f32 %v318, %v352
      %v361 = vadd.f32 %v323, %v353
      %v362 = vadd.f32 %v328, %v354
      %v363 = vadd.f32 %v333, %v355
      %v364 = vadd.f32 %v338, %v356
      %v365 = vadd.f32 %v343, %v357
      %v366 = vadd.f32 %v348, %v358
      %367 = vst [vmem:[%s197] sm:$0xff] %v359
      %368 = vst [vmem:[%s197 + $0x8] sm:$0xff] %v360
      %369 = vst [vmem:[%s197 + $0x10] sm:$0xff] %v361
      %370 = vst [vmem:[%s197 + $0x18] sm:$0xff] %v362
      %371 = vst [vmem:[%s197 + $0x20] sm:$0xff] %v363
      %372 = vst [vmem:[%s197 + $0x28] sm:$0xff] %v364
      %373 = vst [vmem:[%s197 + $0x30] sm:$0xff] %v365
      %374 = vst [vmem:[%s197 + $0x38] sm:$0xff] %v366
      %p375 = scmp.lt.s32.totalorder %s15, 1
      %s376 = scalar_select %p375, %s15, 1
      %s377 = smul.addr %s376, 8
      %s378 = smul.addr %s377, 8
      %s379 = scalar_lea.vmem %s4, %s378
      // Predicated region
      $region37: #{patch_transformer_encoder.5} parent=35 // pred_check
        %p380 = pneg %p122
      $region38: #{patch_transformer_encoder.5} parent=35 // pred_check_branch
        %382 = sbr.rel (%p380) target = $region40
      $region39: #{patch_transformer_encoder.5} parent=35 // pred_region
        _
      $region40: #{patch_transformer_encoder.5} parent=35 // pred_fallthru
        _
    $region36: #{patch_transformer_encoder.5} parent=5 // pred_fallthru
      _
    %p383 = scmp.le.s32.totalorder 2, %s10
    // Predicated region
    $region41: #{patch_transformer_encoder.5} parent=5 // pred_check
      %p384 = pneg %p383
    $region42: #{patch_transformer_encoder.5} parent=5 // pred_check_branch
      %386 = sbr.rel (%p384) target = $region44
    $region43: #{patch_transformer_encoder.5} parent=5 // pred_region
      %s387 = ssub.s32 %s10, 2
      // Predicated region
      $region45: #{patch_transformer_encoder.5} parent=43 // pred_check
        %p388 = pneg %p128
      $region46: #{patch_transformer_encoder.5} parent=43 // pred_check_branch
        %390 = sbr.rel (%p388) target = $region48
      $region47: #{patch_transformer_encoder.5} parent=43 // pred_region
        %p391 = scmp.lt.s32.totalorder %s16, 1
        %s392 = scalar_select %p391, %s16, 1
        %s393 = smul.addr %s392, 8
        %s394 = smul.addr %s393, 8
        %s395 = scalar_lea.vmem %s4, %s394
      $region48: #{patch_transformer_encoder.5} parent=43 // pred_fallthru
        _
    $region44: #{patch_transformer_encoder.5} parent=5 // pred_fallthru
      _
  $region6: #{patch_transformer_encoder.5} parent=0 // loop_footer
    %s14 = sadd.s32 1, %s10
  $region7: #{patch_transformer_encoder.5} parent=0 // loop_footer_branch
    %9 = sbr.rel target = $region3
  $region8: #{patch_transformer_encoder.5} parent=0 // loop_exit
    _

// kernel: patch_transformer_encoder.8
$region0: #{patch_transformer_encoder.8}
  #allocation0 [shape = 'u32[]', space=smem, size = 0x4, offset = 0x4, fixed_abs, tag = 'smem constant byte address 0x4 - core index']
  #allocation1 [shape = 'u32[144,128]{1,0:T(1,128)}', space=vmem, size = 0x12000, scoped, tag = 'internal scratch']
  %s0 = inlined_call_operand.vmem [shape: f32[2,64,128], index: 0, kind: input, shape index: {}]
  %s1 = inlined_call_operand.vmem [shape: f32[128,384], index: 1, kind: input, shape index: {}]
  %s2 = inlined_call_operand.vmem [shape: f32[1,384], index: 2, kind: input, shape index: {}]
  %s3 = inlined_call_operand.vmem [shape: f32[128,128], index: 3, kind: input, shape index: {}]
  %s4 = inlined_call_operand.vmem [shape: f32[1,128], index: 4, kind: input, shape index: {}]
  %s5 = inlined_call_operand.vmem [shape: f32[1,128], index: 5, kind: input, shape index: {}]
  %s6 = inlined_call_operand.vmem [shape: f32[1,128], index: 6, kind: input, shape index: {}]
  %s7 = inlined_call_operand.vmem [shape: f32[128,1024], index: 7, kind: input, shape index: {}]
  %s8 = inlined_call_operand.vmem [shape: f32[1,1024], index: 8, kind: input, shape index: {}]
  %s9 = inlined_call_operand.vmem [shape: f32[1024,128], index: 9, kind: input, shape index: {}]
  %s10 = inlined_call_operand.vmem [shape: f32[1,128], index: 10, kind: input, shape index: {}]
  %s11 = inlined_call_operand.hbm [shape: f32[1,128], index: 11, kind: input, shape index: {}]
  %s12 = inlined_call_operand.hbm [shape: f32[1,128], index: 12, kind: input, shape index: {}]
  %s13 = inlined_call_operand.vmem [shape: f32[2,64,128], index: 13, kind: output, shape index: {}]
  %s14 = sld [smem:[#allocation0]]
  $region93: #{patch_transformer_encoder.8} parent=0
    _
  %s16 = ssub.s32 1, %s14
  %s17 = scalar_select 0, %s16, %s14
  $region1: #{patch_transformer_encoder.8} parent=0
    #allocation2 [shape = 'u8[512]{0}', space=vmem, size = 0x400, scoped, tag = 'input window, operand 11, single buffered']
    #allocation3 [shape = 's32[2]{0}', space=sflag, size = 0x8, scoped, tag = 'scoped memory for patch_transformer_encoder.8']
    #allocation4 [shape = 'u8[512]{0}', space=vmem, size = 0x400, scoped, tag = 'input window, operand 12, single buffered']
    #allocation5 [shape = 's32[1]{0}', space=sflag, size = 0x4, scoped, tag = 'scoped memory for patch_transformer_encoder.8']
    %18 = vsyncpa [#allocation3], 0
    %19 = vsyncpa [#allocation5], 0
    loop: start=0, step=1, limit=4
    $region2: #{patch_transformer_encoder.8} parent=1 // loop_pre_header
      _
    $region3: #{patch_transformer_encoder.8} parent=1 // loop_header
      %s21 = sphi 0, %s25
      %p22 = scmp.ge.s32.totalorder %s21, 4
      %s31 = sphi 0, %s33
      %s34 = sphi 0, %s31
      %s35 = sphi 0, %s34
      %s51 = sphi 0, %s35
      %s55 = sphi 0, %s55
      %s57 = sphi 0, %s55
      %s58 = sphi 0, %s57
      %s72 = sphi 0, %s58
      %s76 = sphi 0, %s76
      %s78 = sphi 0, %s76
      %s79 = sphi 0, %s78
      %s93 = sphi 0, %s79
      %s97 = sphi 0, %s97
      %s99 = sphi 0, %s97
      %s100 = sphi 0, %s99
      %s114 = sphi 0, %s100
      %s118 = sphi 0, %s118
      %s120 = sphi 0, %s118
      %s121 = sphi 0, %s120
      %s135 = sphi 0, %s121
      %s139 = sphi 0, %s139
      %s141 = sphi 0, %s139
      %s142 = sphi 0, %s141
      %s156 = sphi 0, %s142
      %s160 = sphi 0, %s160
      %s162 = sphi 0, %s160
      %s163 = sphi 0, %s162
      %s177 = sphi 0, %s163
      %s181 = sphi 0, %s181
      %s183 = sphi 0, %s181
      %s184 = sphi 0, %s183
      %s198 = sphi 0, %s184
      %s202 = sphi 0, %s202
      %s204 = sphi 0, %s202
      %s205 = sphi 0, %s204
      %s219 = sphi 0, %s205
      %s223 = sphi 0, %s223
      %s225 = sphi 0, %s223
      %s226 = sphi 0, %s225
      %s240 = sphi 0, %s226
      %s244 = sphi 0, %s244
      %s246 = sphi 0, %s244
      %s247 = sphi 0, %s246
      %s261 = sphi 0, %s247
      %s265 = sphi 0, %s265
      %s267 = sphi 0, %s265
      %s268 = sphi 0, %s267
      %s282 = sphi 0, %s268
      %s286 = sphi 0, %s286
      %s288 = sphi 0, %s286
      %s289 = sphi 0, %s288
      %s303 = sphi 0, %s289
      %s309 = sphi 0, %s311
      %s312 = sphi 0, %s309
      %s313 = sphi 0, %s312
      %s329 = sphi 0, %s313
    $region4: #{patch_transformer_encoder.8} parent=1 // loop_header_branch
      %24 = sbr.rel (%p22) target = $region8
    $region5: #{patch_transformer_encoder.8} parent=1 // loop_body
      %s26 = ssub.s32 %s21, 1
      %s27 = ssub.s32 %s21, 2
      %s28 = sadd.s32 %s21, 1
      %s29 = ssub.s32 %s21, %s28
      %p30 = scmp.eq.s32.totalorder %s29, 0
      %s32 = sadd.s32 %s31, 1
      %s33 = scalar_select %p30, %s31, %s32
      %p36 = pneg %p30
      %p37 = scmp.eq.s32.totalorder %s21, 1
      %p38 = por %p36, %p37
      %p39 = scmp.ne.s32.totalorder %s31, %s34
      %p40 = scmp.eq.s32.totalorder %s21, 0
      %p41 = por %p39, %p40
      %p42 = scmp.ne.s32.totalorder %s31, %s34
      %p43 = scmp.eq.s32.totalorder %s26, 1
      %p44 = por %p42, %p43
      %p45 = scmp.ne.s32.totalorder %s34, %s35
      %p46 = scmp.eq.s32.totalorder %s26, 0
      %p47 = por %p45, %p46
      %p48 = scmp.ne.s32.totalorder %s34, %s35
      %p49 = scmp.eq.s32.totalorder %s27, 1
      %p50 = por %p48, %p49
      %p52 = scmp.ne.s32.totalorder %s35, %s51
      %p53 = scmp.eq.s32.totalorder %s27, 0
      %p54 = por %p52, %p53
      %s56 = sadd.s32 %s55, 1
      %p59 = scmp.eq.s32.totalorder %s21, 1
      %p60 = scmp.ne.s32.totalorder %s55, %s57
      %p61 = scmp.eq.s32.totalorder %s21, 0
      %p62 = por %p60, %p61
      %p63 = scmp.ne.s32.totalorder %s55, %s57
      %p64 = scmp.eq.s32.totalorder %s26, 1
      %p65 = por %p63, %p64
      %p66 = scmp.ne.s32.totalorder %s57, %s58
      %p67 = scmp.eq.s32.totalorder %s26, 0
      %p68 = por %p66, %p67
      %p69 = scmp.ne.s32.totalorder %s57, %s58
      %p70 = scmp.eq.s32.totalorder %s27, 1
      %p71 = por %p69, %p70
      %p73 = scmp.ne.s32.totalorder %s58, %s72
      %p74 = scmp.eq.s32.totalorder %s27, 0
      %p75 = por %p73, %p74
      %s77 = sadd.s32 %s76, 1
      %p80 = scmp.eq.s32.totalorder %s21, 1
      %p81 = scmp.ne.s32.totalorder %s76, %s78
      %p82 = scmp.eq.s32.totalorder %s21, 0
      %p83 = por %p81, %p82
      %p84 = scmp.ne.s32.totalorder %s76, %s78
      %p85 = scmp.eq.s32.totalorder %s26, 1
      %p86 = por %p84, %p85
      %p87 = scmp.ne.s32.totalorder %s78, %s79
      %p88 = scmp.eq.s32.totalorder %s26, 0
      %p89 = por %p87, %p88
      %p90 = scmp.ne.s32.totalorder %s78, %s79
      %p91 = scmp.eq.s32.totalorder %s27, 1
      %p92 = por %p90, %p91
      %p94 = scmp.ne.s32.totalorder %s79, %s93
      %p95 = scmp.eq.s32.totalorder %s27, 0
      %p96 = por %p94, %p95
      %s98 = sadd.s32 %s97, 1
      %p101 = scmp.eq.s32.totalorder %s21, 1
      %p102 = scmp.ne.s32.totalorder %s97, %s99
      %p103 = scmp.eq.s32.totalorder %s21, 0
      %p104 = por %p102, %p103
      %p105 = scmp.ne.s32.totalorder %s97, %s99
      %p106 = scmp.eq.s32.totalorder %s26, 1
      %p107 = por %p105, %p106
      %p108 = scmp.ne.s32.totalorder %s99, %s100
      %p109 = scmp.eq.s32.totalorder %s26, 0
      %p110 = por %p108, %p109
      %p111 = scmp.ne.s32.totalorder %s99, %s100
      %p112 = scmp.eq.s32.totalorder %s27, 1
      %p113 = por %p111, %p112
      %p115 = scmp.ne.s32.totalorder %s100, %s114
      %p116 = scmp.eq.s32.totalorder %s27, 0
      %p117 = por %p115, %p116
      %s119 = sadd.s32 %s118, 1
      %p122 = scmp.eq.s32.totalorder %s21, 1
      %p123 = scmp.ne.s32.totalorder %s118, %s120
      %p124 = scmp.eq.s32.totalorder %s21, 0
      %p125 = por %p123, %p124
      %p126 = scmp.ne.s32.totalorder %s118, %s120
      %p127 = scmp.eq.s32.totalorder %s26, 1
      %p128 = por %p126, %p127
      %p129 = scmp.ne.s32.totalorder %s120, %s121
      %p130 = scmp.eq.s32.totalorder %s26, 0
      %p131 = por %p129, %p130
      %p132 = scmp.ne.s32.totalorder %s120, %s121
      %p133 = scmp.eq.s32.totalorder %s27, 1
      %p134 = por %p132, %p133
      %p136 = scmp.ne.s32.totalorder %s121, %s135
      %p137 = scmp.eq.s32.totalorder %s27, 0
      %p138 = por %p136, %p137
      %s140 = sadd.s32 %s139, 1
      %p143 = scmp.eq.s32.totalorder %s21, 1
      %p144 = scmp.ne.s32.totalorder %s139, %s141
      %p145 = scmp.eq.s32.totalorder %s21, 0
      %p146 = por %p144, %p145
      %p147 = scmp.ne.s32.totalorder %s139, %s141
      %p148 = scmp.eq.s32.totalorder %s26, 1
      %p149 = por %p147, %p148
      %p150 = scmp.ne.s32.totalorder %s141, %s142
      %p151 = scmp.eq.s32.totalorder %s26, 0
      %p152 = por %p150, %p151
      %p153 = scmp.ne.s32.totalorder %s141, %s142
      %p154 = scmp.eq.s32.totalorder %s27, 1
      %p155 = por %p153, %p154
      %p157 = scmp.ne.s32.totalorder %s142, %s156
      %p158 = scmp.eq.s32.totalorder %s27, 0
      %p159 = por %p157, %p158
      %s161 = sadd.s32 %s160, 1
      %p164 = scmp.eq.s32.totalorder %s21, 1
      %p165 = scmp.ne.s32.totalorder %s160, %s162
      %p166 = scmp.eq.s32.totalorder %s21, 0
      %p167 = por %p165, %p166
      %p168 = scmp.ne.s32.totalorder %s160, %s162
      %p169 = scmp.eq.s32.totalorder %s26, 1
      %p170 = por %p168, %p169
      %p171 = scmp.ne.s32.totalorder %s162, %s163
      %p172 = scmp.eq.s32.totalorder %s26, 0
      %p173 = por %p171, %p172
      %p174 = scmp.ne.s32.totalorder %s162, %s163
      %p175 = scmp.eq.s32.totalorder %s27, 1
      %p176 = por %p174, %p175
      %p178 = scmp.ne.s32.totalorder %s163, %s177
      %p179 = scmp.eq.s32.totalorder %s27, 0
      %p180 = por %p178, %p179
      %s182 = sadd.s32 %s181, 1
      %p185 = scmp.eq.s32.totalorder %s21, 1
      %p186 = scmp.ne.s32.totalorder %s181, %s183
      %p187 = scmp.eq.s32.totalorder %s21, 0
      %p188 = por %p186, %p187
      %p189 = scmp.ne.s32.totalorder %s181, %s183
      %p190 = scmp.eq.s32.totalorder %s26, 1
      %p191 = por %p189, %p190
      %p192 = scmp.ne.s32.totalorder %s183, %s184
      %p193 = scmp.eq.s32.totalorder %s26, 0
      %p194 = por %p192, %p193
      %p195 = scmp.ne.s32.totalorder %s183, %s184
      %p196 = scmp.eq.s32.totalorder %s27, 1
      %p197 = por %p195, %p196
      %p199 = scmp.ne.s32.totalorder %s184, %s198
      %p200 = scmp.eq.s32.totalorder %s27, 0
      %p201 = por %p199, %p200
      %s203 = sadd.s32 %s202, 1
      %p206 = scmp.eq.s32.totalorder %s21, 1
      %p207 = scmp.ne.s32.totalorder %s202, %s204
      %p208 = scmp.eq.s32.totalorder %s21, 0
      %p209 = por %p207, %p208
      %p210 = scmp.ne.s32.totalorder %s202, %s204
      %p211 = scmp.eq.s32.totalorder %s26, 1
      %p212 = por %p210, %p211
      %p213 = scmp.ne.s32.totalorder %s204, %s205
      %p214 = scmp.eq.s32.totalorder %s26, 0
      %p215 = por %p213, %p214
      %p216 = scmp.ne.s32.totalorder %s204, %s205
      %p217 = scmp.eq.s32.totalorder %s27, 1
      %p218 = por %p216, %p217
      %p220 = scmp.ne.s32.totalorder %s205, %s219
      %p221 = scmp.eq.s32.totalorder %s27, 0
      %p222 = por %p220, %p221
      %s224 = sadd.s32 %s223, 1
      %p227 = scmp.eq.s32.totalorder %s21, 1
      %p228 = scmp.ne.s32.totalorder %s223, %s225
      %p229 = scmp.eq.s32.totalorder %s21, 0
      %p230 = por %p228, %p229
      %p231 = scmp.ne.s32.totalorder %s223, %s225
      %p232 = scmp.eq.s32.totalorder %s26, 1
      %p233 = por %p231, %p232
      %p234 = scmp.ne.s32.totalorder %s225, %s226
      %p235 = scmp.eq.s32.totalorder %s26, 0
      %p236 = por %p234, %p235
      %p237 = scmp.ne.s32.totalorder %s225, %s226
      %p238 = scmp.eq.s32.totalorder %s27, 1
      %p239 = por %p237, %p238
      %p241 = scmp.ne.s32.totalorder %s226, %s240
      %p242 = scmp.eq.s32.totalorder %s27, 0
      %p243 = por %p241, %p242
      %s245 = sadd.s32 %s244, 1
      %p248 = scmp.eq.s32.totalorder %s21, 1
      %p249 = scmp.ne.s32.totalorder %s244, %s246
      %p250 = scmp.eq.s32.totalorder %s21, 0
      %p251 = por %p249, %p250
      %p252 = scmp.ne.s32.totalorder %s244, %s246
      %p253 = scmp.eq.s32.totalorder %s26, 1
      %p254 = por %p252, %p253
      %p255 = scmp.ne.s32.totalorder %s246, %s247
      %p256 = scmp.eq.s32.totalorder %s26, 0
      %p257 = por %p255, %p256
      %p258 = scmp.ne.s32.totalorder %s246, %s247
      %p259 = scmp.eq.s32.totalorder %s27, 1
      %p260 = por %p258, %p259
      %p262 = scmp.ne.s32.totalorder %s247, %s261
      %p263 = scmp.eq.s32.totalorder %s27, 0
      %p264 = por %p262, %p263
      %s266 = sadd.s32 %s265, 1
      %p269 = scmp.eq.s32.totalorder %s21, 1
      %p270 = scmp.ne.s32.totalorder %s265, %s267
      %p271 = scmp.eq.s32.totalorder %s21, 0
      %p272 = por %p270, %p271
      %p273 = scmp.ne.s32.totalorder %s265, %s267
      %p274 = scmp.eq.s32.totalorder %s26, 1
      %p275 = por %p273, %p274
      %p276 = scmp.ne.s32.totalorder %s267, %s268
      %p277 = scmp.eq.s32.totalorder %s26, 0
      %p278 = por %p276, %p277
      %p279 = scmp.ne.s32.totalorder %s267, %s268
      %p280 = scmp.eq.s32.totalorder %s27, 1
      %p281 = por %p279, %p280
      %p283 = scmp.ne.s32.totalorder %s268, %s282
      %p284 = scmp.eq.s32.totalorder %s27, 0
      %p285 = por %p283, %p284
      %s287 = sadd.s32 %s286, 1
      %p290 = scmp.eq.s32.totalorder %s21, 1
      %p291 = scmp.ne.s32.totalorder %s286, %s288
      %p292 = scmp.eq.s32.totalorder %s21, 0
      %p293 = por %p291, %p292
      %p294 = scmp.ne.s32.totalorder %s286, %s288
      %p295 = scmp.eq.s32.totalorder %s26, 1
      %p296 = por %p294, %p295
      %p297 = scmp.ne.s32.totalorder %s288, %s289
      %p298 = scmp.eq.s32.totalorder %s26, 0
      %p299 = por %p297, %p298
      %p300 = scmp.ne.s32.totalorder %s288, %s289
      %p301 = scmp.eq.s32.totalorder %s27, 1
      %p302 = por %p300, %p301
      %p304 = scmp.ne.s32.totalorder %s289, %s303
      %p305 = scmp.eq.s32.totalorder %s27, 0
      %p306 = por %p304, %p305
      %s307 = ssub.s32 %s21, %s28
      %p308 = scmp.eq.s32.totalorder %s307, 0
      %s310 = sadd.s32 %s309, 1
      %s311 = scalar_select %p308, %s309, %s310
      %p314 = pneg %p308
      %p315 = scmp.eq.s32.totalorder %s21, 1
      %p316 = por %p314, %p315
      %p317 = scmp.ne.s32.totalorder %s309, %s312
      %p318 = scmp.eq.s32.totalorder %s21, 0
      %p319 = por %p317, %p318
      %p320 = scmp.ne.s32.totalorder %s309, %s312
      %p321 = scmp.eq.s32.totalorder %s26, 1
      %p322 = por %p320, %p321
      %p323 = scmp.ne.s32.totalorder %s312, %s313
      %p324 = scmp.eq.s32.totalorder %s26, 0
      %p325 = por %p323, %p324
      %p326 = scmp.ne.s32.totalorder %s312, %s313
      %p327 = scmp.eq.s32.totalorder %s27, 1
      %p328 = por %p326, %p327
      %p330 = scmp.ne.s32.totalorder %s313, %s329
      %p331 = scmp.eq.s32.totalorder %s27, 0
      %p332 = por %p330, %p331
      %p333 = scmp.le.s32.totalorder 1, %s21
      %p334 = scmp.lt.s32.totalorder %s21, 3
      %p335 = pnand %p333, %p334
      %p336 = pneg %p335
      // Predicated region
      $region9: #{patch_transformer_encoder.8} parent=5 // pred_check
        _
      $region10: #{patch_transformer_encoder.8} parent=5 // pred_check_branch
        %338 = sbr.rel (%p335) target = $region12
      $region11: #{patch_transformer_encoder.8} parent=5 // pred_region
        %s339 = ssub.s32 %s21, 1
        // Predicated region
        $region13: #{patch_transformer_encoder.8} parent=11 // pred_check
          %p340 = pneg %p68
        $region14: #{patch_transformer_encoder.8} parent=11 // pred_check_branch
          %342 = sbr.rel (%p340) target = $region16
        $region15: #{patch_transformer_encoder.8} parent=11 // pred_region
          _
        $region16: #{patch_transformer_encoder.8} parent=11 // pred_fallthru
          _
        // Predicated region
        $region17: #{patch_transformer_encoder.8} parent=11 // pred_check
          %p343 = pneg %p89
        $region18: #{patch_transformer_encoder.8} parent=11 // pred_check_branch
          %345 = sbr.rel (%p343) target = $region20
        $region19: #{patch_transformer_encoder.8} parent=11 // pred_region
          _
        $region20: #{patch_transformer_encoder.8} parent=11 // pred_fallthru
          _
        // Predicated region
        $region21: #{patch_transformer_encoder.8} parent=11 // pred_check
          %p346 = pneg %p110
        $region22: #{patch_transformer_encoder.8} parent=11 // pred_check_branch
          %348 = sbr.rel (%p346) target = $region24
        $region23: #{patch_transformer_encoder.8} parent=11 // pred_region
          _
        $region24: #{patch_transformer_encoder.8} parent=11 // pred_fallthru
          _
        // Predicated region
        $region25: #{patch_transformer_encoder.8} parent=11 // pred_check
          %p349 = pneg %p131
        $region26: #{patch_transformer_encoder.8} parent=11 // pred_check_branch
          %351 = sbr.rel (%p349) target = $region28
        $region27: #{patch_transformer_encoder.8} parent=11 // pred_region
          _
        $region28: #{patch_transformer_encoder.8} parent=11 // pred_fallthru
          _
        // Predicated region
        $region29: #{patch_transformer_encoder.8} parent=11 // pred_check
          %p352 = pneg %p152
        $region30: #{patch_transformer_encoder.8} parent=11 // pred_check_branch
          %354 = sbr.rel (%p352) target = $region32
        $region31: #{patch_transformer_encoder.8} parent=11 // pred_region
          _
        $region32: #{patch_transformer_encoder.8} parent=11 // pred_fallthru
          _
        // Predicated region
        $region33: #{patch_transformer_encoder.8} parent=11 // pred_check
          %p355 = pneg %p173
        $region34: #{patch_transformer_encoder.8} parent=11 // pred_check_branch
          %357 = sbr.rel (%p355) target = $region36
        $region35: #{patch_transformer_encoder.8} parent=11 // pred_region
          _
        $region36: #{patch_transformer_encoder.8} parent=11 // pred_fallthru
          _
        // Predicated region
        $region37: #{patch_transformer_encoder.8} parent=11 // pred_check
          %p358 = pneg %p194
        $region38: #{patch_transformer_encoder.8} parent=11 // pred_check_branch
          %360 = sbr.rel (%p358) target = $region40
        $region39: #{patch_transformer_encoder.8} parent=11 // pred_region
          _
        $region40: #{patch_transformer_encoder.8} parent=11 // pred_fallthru
          _
        // Predicated region
        $region41: #{patch_transformer_encoder.8} parent=11 // pred_check
          %p361 = pneg %p215
        $region42: #{patch_transformer_encoder.8} parent=11 // pred_check_branch
          %363 = sbr.rel (%p361) target = $region44
        $region43: #{patch_transformer_encoder.8} parent=11 // pred_region
          _
        $region44: #{patch_transformer_encoder.8} parent=11 // pred_fallthru
          _
        // Predicated region
        $region45: #{patch_transformer_encoder.8} parent=11 // pred_check
          %p364 = pneg %p236
        $region46: #{patch_transformer_encoder.8} parent=11 // pred_check_branch
          %366 = sbr.rel (%p364) target = $region48
        $region47: #{patch_transformer_encoder.8} parent=11 // pred_region
          _
        $region48: #{patch_transformer_encoder.8} parent=11 // pred_fallthru
          _
        // Predicated region
        $region49: #{patch_transformer_encoder.8} parent=11 // pred_check
          %p367 = pneg %p257
        $region50: #{patch_transformer_encoder.8} parent=11 // pred_check_branch
          %369 = sbr.rel (%p367) target = $region52
        $region51: #{patch_transformer_encoder.8} parent=11 // pred_region
          _
        $region52: #{patch_transformer_encoder.8} parent=11 // pred_fallthru
          _
        // Predicated region
        $region53: #{patch_transformer_encoder.8} parent=11 // pred_check
          %p370 = pneg %p278
        $region54: #{patch_transformer_encoder.8} parent=11 // pred_check_branch
          %372 = sbr.rel (%p370) target = $region56
        $region55: #{patch_transformer_encoder.8} parent=11 // pred_region
          %s374 = ssub.s32 16, 16
          %375 = vsyncadd [#allocation3], %s374
          %s377 = sshll.u32 [#allocation2], 4
          %s378 = int_to_ptr.vmem [resolvable:$true] %s377
          %380 = dma.hbm_to_vmem [thread:$0]  %s11, 16, %s378, [#allocation3]
        $region56: #{patch_transformer_encoder.8} parent=11 // pred_fallthru
          _
        // Predicated region
        $region57: #{patch_transformer_encoder.8} parent=11 // pred_check
          %p381 = pneg %p299
        $region58: #{patch_transformer_encoder.8} parent=11 // pred_check_branch
          %383 = sbr.rel (%p381) target = $region60
        $region59: #{patch_transformer_encoder.8} parent=11 // pred_region
          %s385 = ssub.s32 16, 16
          %386 = vsyncadd [#allocation5], %s385
          %s388 = sshll.u32 [#allocation4], 4
          %s389 = int_to_ptr.vmem [resolvable:$true] %s388
          %391 = dma.hbm_to_vmem [thread:$0]  %s12, 16, %s389, [#allocation5]
        $region60: #{patch_transformer_encoder.8} parent=11 // pred_fallthru
          _
      $region12: #{patch_transformer_encoder.8} parent=5 // pred_fallthru
        _
      %p392 = scmp.lt.s32.totalorder %s21, 2
      // Predicated region
      $region61: #{patch_transformer_encoder.8} parent=5 // pred_check
        %p393 = pneg %p392
      $region62: #{patch_transformer_encoder.8} parent=5 // pred_check_branch
        %395 = sbr.rel (%p393) target = $region64
      $region63: #{patch_transformer_encoder.8} parent=5 // pred_region
        // Predicated region
        $region65: #{patch_transformer_encoder.8} parent=63 // pred_check
          %p396 = pneg %p41
        $region66: #{patch_transformer_encoder.8} parent=63 // pred_check_branch
          %398 = sbr.rel (%p396) target = $region68
        $region67: #{patch_transformer_encoder.8} parent=63 // pred_region
          %p399 = scmp.lt.s32.totalorder %s21, 1
          %s400 = scalar_select %p399, %s21, 1
          %s401 = smul.addr %s400, 8
          %s402 = smul.addr %s401, 8
          %s403 = scalar_lea.vmem %s0, %s402
        $region68: #{patch_transformer_encoder.8} parent=63 // pred_fallthru
          _
      $region64: #{patch_transformer_encoder.8} parent=5 // pred_fallthru
        _
      %p404 = scmp.le.s32.totalorder 1, %s21
      %p405 = scmp.lt.s32.totalorder %s21, 3
      %p406 = pnand %p404, %p405
      %p407 = pneg %p406
      // Predicated region
      $region69: #{patch_transformer_encoder.8} parent=5 // pred_check
        _
      $region70: #{patch_transformer_encoder.8} parent=5 // pred_check_branch
        %409 = sbr.rel (%p406) target = $region72
      $region71: #{patch_transformer_encoder.8} parent=5 // pred_region
        %s410 = ssub.s32 %s21, 1
        // Predicated region
        $region73: #{patch_transformer_encoder.8} parent=71 // pred_check
          %p411 = pneg %p278
        $region74: #{patch_transformer_encoder.8} parent=71 // pred_check_branch
          %413 = sbr.rel (%p411) target = $region76
        $region75: #{patch_transformer_encoder.8} parent=71 // pred_region
          %414 = dma.done [#allocation3], 16
        $region76: #{patch_transformer_encoder.8} parent=71 // pred_fallthru
          _
        // Predicated region
        $region77: #{patch_transformer_encoder.8} parent=71 // pred_check
          %p415 = pneg %p299
        $region78: #{patch_transformer_encoder.8} parent=71 // pred_check_branch
          %417 = sbr.rel (%p415) target = $region80
        $region79: #{patch_transformer_encoder.8} parent=71 // pred_region
          %418 = dma.done [#allocation5], 16
        $region80: #{patch_transformer_encoder.8} parent=71 // pred_fallthru
          _
        %p419 = scmp.lt.s32.totalorder %s26, 1
        %s420 = scalar_select %p419, %s26, 1
        %s421 = smul.addr %s420, 8
        %s422 = smul.addr %s421, 8
        %s423 = scalar_lea.vmem %s0, %s422
        %p424 = pneg %p47
        %p425 = pneg %p44
        %p426 = pneg %p68
        %p427 = pneg %p65
        %p428 = pneg %p89
        %p429 = pneg %p86
        %p430 = pneg %p110
        %p431 = pneg %p107
        %p432 = pneg %p131
        %p433 = pneg %p128
        %p434 = pneg %p152
        %p435 = pneg %p149
        %p436 = pneg %p173
        %p437 = pneg %p170
        %p438 = pneg %p194
        %p439 = pneg %p191
        %p440 = pneg %p215
        %p441 = pneg %p212
        %p442 = pneg %p236
        %p443 = pneg %p233
        %p444 = pneg %p257
        %p445 = pneg %p254
        %p446 = pneg %p278
        %p447 = pneg %p275
        %p448 = pneg %p299
        %p449 = pneg %p296
        %p450 = pneg %p325
        %p451 = pneg %p322
        %p452 = scmp.lt.s32.totalorder %s26, 1
        %s453 = scalar_select %p452, %s26, 1
        %s454 = smul.addr %s453, 8
        %s455 = smul.addr %s454, 8
        %s456 = scalar_lea.vmem %s13, %s455
        %p457 = scmp.lt.s32.totalorder %s26, 1
        %s458 = scalar_select %p457, %s26, 1
        %s459 = smul.addr %s458, 8
        %s460 = smul.addr %s459, 8
        %s461 = scalar_lea.vmem %s0, %s460
        %p462 = scmp.lt.s32.totalorder %s26, 1
        %s463 = scalar_select %p462, %s26, 1
        %s464 = smul.addr %s463, 8
        %s465 = smul.addr %s464, 8
        %s466 = scalar_lea.vmem %s13, %s465
        %v467 = vld [vmem:[%s461] sm:$0xff]
        %v468 = vld [vmem:[%s461 + $0x8] sm:$0xff]
        %v469 = vld [vmem:[%s461 + $0x10] sm:$0xff]
        %v470 = vld [vmem:[%s461 + $0x18] sm:$0xff]
        %v471 = vld [vmem:[%s461 + $0x20] sm:$0xff]
        %v472 = vld [vmem:[%s461 + $0x28] sm:$0xff]
        %v473 = vld [vmem:[%s461 + $0x30] sm:$0xff]
        %v474 = vld [vmem:[%s461 + $0x38] sm:$0xff]
        %v475 = vld [vmem:[%s1] sm:$0xff]
        %v476 = vld [vmem:[%s1 + $0x8] sm:$0xff]
        %v477 = vld [vmem:[%s1 + $0x10] sm:$0xff]
        %v478 = vld [vmem:[%s1 + $0x18] sm:$0xff]
        %v479 = vld [vmem:[%s1 + $0x20] sm:$0xff]
        %v480 = vld [vmem:[%s1 + $0x28] sm:$0xff]
        %v481 = vld [vmem:[%s1 + $0x30] sm:$0xff]
        %v482 = vld [vmem:[%s1 + $0x38] sm:$0xff]
        %v483 = vld [vmem:[%s1 + $0x40] sm:$0xff]
        %v484 = vld [vmem:[%s1 + $0x48] sm:$0xff]
        %v485 = vld [vmem:[%s1 + $0x50] sm:$0xff]
        %v486 = vld [vmem:[%s1 + $0x58] sm:$0xff]
        %v487 = vld [vmem:[%s1 + $0x60] sm:$0xff]
        %v488 = vld [vmem:[%s1 + $0x68] sm:$0xff]
        %v489 = vld [vmem:[%s1 + $0x70] sm:$0xff]
        %v490 = vld [vmem:[%s1 + $0x78] sm:$0xff]
        %v491 = vld [vmem:[%s1 + $0x80] sm:$0xff]
        %v492 = vld [vmem:[%s1 + $0x88] sm:$0xff]
        %v493 = vld [vmem:[%s1 + $0x90] sm:$0xff]
        %v494 = vld [vmem:[%s1 + $0x98] sm:$0xff]
        %v495 = vld [vmem:[%s1 + $0xa0] sm:$0xff]
        %v496 = vld [vmem:[%s1 + $0xa8] sm:$0xff]
        %v497 = vld [vmem:[%s1 + $0xb0] sm:$0xff]
        %v498 = vld [vmem:[%s1 + $0xb8] sm:$0xff]
        %v499 = vld [vmem:[%s1 + $0xc0] sm:$0xff]
        %v500 = vld [vmem:[%s1 + $0xc8] sm:$0xff]
        %v501 = vld [vmem:[%s1 + $0xd0] sm:$0xff]
        %v502 = vld [vmem:[%s1 + $0xd8] sm:$0xff]
        %v503 = vld [vmem:[%s1 + $0xe0] sm:$0xff]
        %v504 = vld [vmem:[%s1 + $0xe8] sm:$0xff]
        %v505 = vld [vmem:[%s1 + $0xf0] sm:$0xff]
        %v506 = vld [vmem:[%s1 + $0xf8] sm:$0xff]
        %v507 = vld [vmem:[%s1 + $0x100] sm:$0xff]
        %v508 = vld [vmem:[%s1 + $0x108] sm:$0xff]
        %v509 = vld [vmem:[%s1 + $0x110] sm:$0xff]
        %v510 = vld [vmem:[%s1 + $0x118] sm:$0xff]
        %v511 = vld [vmem:[%s1 + $0x120] sm:$0xff]
        %v512 = vld [vmem:[%s1 + $0x128] sm:$0xff]
        %v513 = vld [vmem:[%s1 + $0x130] sm:$0xff]
        %v514 = vld [vmem:[%s1 + $0x138] sm:$0xff]
        %v515 = vld [vmem:[%s1 + $0x140] sm:$0xff]
        %v516 = vld [vmem:[%s1 + $0x148] sm:$0xff]
        %v517 = vld [vmem:[%s1 + $0x150] sm:$0xff]
        %v518 = vld [vmem:[%s1 + $0x158] sm:$0xff]
        %v519 = vld [vmem:[%s1 + $0x160] sm:$0xff]
        %v520 = vld [vmem:[%s1 + $0x168] sm:$0xff]
        %v521 = vld [vmem:[%s1 + $0x170] sm:$0xff]
        %v522 = vld [vmem:[%s1 + $0x178] sm:$0xff]
        %v523 = vld [vmem:[%s2] sm:$0x7]
        %v525 = vlaneseq
        %v526 = vshrl.u32 %v525, 7
        %v527 = vsub.s32 0, %v526
        %v528 = vrot.slane %v523, %v527
        %v529 = vlaneseq
        %v530 = vshrl.u32 %v529, 7
        %v531 = vsub.s32 1, %v530
        %v532 = vrot.slane %v523, %v531
        %v533 = vlaneseq
        %v534 = vshrl.u32 %v533, 7
        %v535 = vsub.s32 2, %v534
        %v536 = vrot.slane %v523, %v535
        %540 = vmatprep.subr.mxu0 %v521
        %541 = vmatpush1.msra.mxu0 %v520
        %542 = vmatprep.subr.mxu0 %v518
        %543 = vmatpush1.msra.mxu0 %v517
        %544 = vmatprep.subr.mxu0 %v515
        %545 = vmatpush1.msra.mxu0 %v514
        %546 = vmatprep.subr.mxu0 %v512
        %547 = vmatpush1.msra.mxu0 %v511
        %548 = vmatprep.subr.mxu0 %v509
        %549 = vmatpush1.msra.mxu0 %v508
        %550 = vmatprep.subr.mxu0 %v506
        %551 = vmatpush1.msra.mxu0 %v505
        %552 = vmatprep.subr.mxu0 %v503
        %553 = vmatpush1.msra.mxu0 %v502
        %554 = vmatprep.subr.mxu0 %v500
        %555 = vmatpush1.msra.mxu0 %v499
        %556 = vmatprep.subr.mxu0 %v497
        %557 = vmatpush1.msra.mxu0 %v496
        %558 = vmatprep.subr.mxu0 %v494
        %559 = vmatpush1.msra.mxu0 %v493
        %560 = vmatprep.subr.mxu0 %v491
        %561 = vmatpush1.msra.mxu0 %v490
        %562 = vmatprep.subr.mxu0 %v488
        %563 = vmatpush1.msra.mxu0 %v487
        %564 = vmatprep.subr.mxu0 %v485
        %565 = vmatpush1.msra.mxu0 %v484
        %566 = vmatprep.subr.mxu0 %v482
        %567 = vmatpush1.msra.mxu0 %v481
        %568 = vmatprep.subr.mxu0 %v479
        %569 = vmatpush1.msra.mxu0 %v478
        %570 = vmatprep.subr.mxu0 %v476
        %571 = vmatpush1.msra.mxu0 %v475
        %572 = vmatprep.subr.mxu0 0.0
        %573 = vmatpush2.msra.mxu0 0.0
        %574 = vmatprep.subr.mxu0 0.0
        %575 = vmatpush2.msra.mxu0 0.0
        %576 = vmatprep.subr.mxu0 0.0
        %577 = vmatpush2.msra.mxu0 0.0
        %578 = vmatprep.subr.mxu0 0.0
        %579 = vmatpush2.msra.mxu0 0.0
        %580 = vmatprep.subr.mxu0 0.0
        %581 = vmatpush2.msra.mxu0 0.0
        %582 = vmatprep.subr.mxu0 0.0
        %583 = vmatpush2.msra.mxu0 0.0
        %584 = vmatprep.subr.mxu0 0.0
        %585 = vmatpush2.msra.mxu0 0.0
        %586 = vmatprep.subr.mxu0 0.0
        %587 = vmatpush2.msra.mxu0 0.0
        %588 = vmatprep.subr.mxu0 0.0
        %589 = vmatpush2.msra.mxu0 0.0
        %590 = vmatprep.subr.mxu0 0.0
        %591 = vmatpush2.msra.mxu0 0.0
        %592 = vmatprep.subr.mxu0 0.0
        %593 = vmatpush2.msra.mxu0 0.0
        %594 = vmatprep.subr.mxu0 0.0
        %595 = vmatpush2.msra.mxu0 0.0
        %596 = vmatprep.subr.mxu0 0.0
        %597 = vmatpush2.msra.mxu0 0.0
        %598 = vmatprep.subr.mxu0 0.0
        %599 = vmatpush2.msra.mxu0 0.0
        %600 = vmatprep.subr.mxu0 0.0
        %601 = vmatpush2.msra.mxu0 0.0
        %602 = vmatprep.subr.mxu0 0.0
        %603 = vmatpush2.msra.mxu0 0.0
        %604 = vmatprep.mubr.f32.mxu0 0.0
        %605 = vmatmul.mubr.f32.gmra.mxu0 %v467
        %v606 = vpop.f32.mrf.mxu0
        %v607 = vadd.f32 %v528, %v606
        %v608 = vpop.f32.mrf.mxu0
        %v609 = vadd.f32 %v532, %v608
        %610 = vmatprep.mubr.f32.mxu0 0.0
        %611 = vmatmul.mubr.f32.gmra.mxu0 %v468
        %v612 = vpop.f32.mrf.mxu0
        %v613 = vadd.f32 %v528, %v612
        %v614 = vpop.f32.mrf.mxu0
        %v615 = vadd.f32 %v532, %v614
        %616 = vmatprep.mubr.f32.mxu0 0.0
        %617 = vmatmul.mubr.f32.gmra.mxu0 %v469
        %v618 = vpop.f32.mrf.mxu0
        %v619 = vadd.f32 %v528, %v618
        %v620 = vpop.f32.mrf.mxu0
        %v621 = vadd.f32 %v532, %v620
        %622 = vmatprep.mubr.f32.mxu0 0.0
        %623 = vmatmul.mubr.f32.gmra.mxu0 %v470
        %v624 = vpop.f32.mrf.mxu0
        %v625 = vadd.f32 %v528, %v624
        %v626 = vpop.f32.mrf.mxu0
        %v627 = vadd.f32 %v532, %v626
        %628 = vmatprep.mubr.f32.mxu0 0.0
        %629 = vmatmul.mubr.f32.gmra.mxu0 %v471
        %v630 = vpop.f32.mrf.mxu0
        %v631 = vadd.f32 %v528, %v630
        %v632 = vpop.f32.mrf.mxu0
        %v633 = vadd.f32 %v532, %v632
        %634 = vmatprep.mubr.f32.mxu0 0.0
        %635 = vmatmul.mubr.f32.gmra.mxu0 %v472
        %v636 = vpop.f32.mrf.mxu0
        %v637 = vadd.f32 %v528, %v636
        %v638 = vpop.f32.mrf.mxu0
        %v639 = vadd.f32 %v532, %v638
        %640 = vmatprep.mubr.f32.mxu0 0.0
        %641 = vmatmul.mubr.f32.gmra.mxu0 %v473
        %v642 = vpop.f32.mrf.mxu0
        %v643 = vadd.f32 %v528, %v642
        %v644 = vpop.f32.mrf.mxu0
        %v645 = vadd.f32 %v532, %v644
        %646 = vmatprep.mubr.f32.mxu0 0.0
        %647 = vmatmul.mubr.f32.gmra.mxu0 %v474
        %v648 = vpop.f32.mrf.mxu0
        %v649 = vadd.f32 %v528, %v648
        %v650 = vpop.f32.mrf.mxu0
        %v651 = vadd.f32 %v532, %v650
        %652 = vdwg.mxu0
        %653 = vmatprep.subr.mxu0 0.0
        %654 = vmatpush1.msra.mxu0 %v522
        %655 = vmatprep.subr.mxu0 0.0
        %656 = vmatpush1.msra.mxu0 %v519
        %657 = vmatprep.subr.mxu0 0.0
        %658 = vmatpush1.msra.mxu0 %v516
        %659 = vmatprep.subr.mxu0 0.0
        %660 = vmatpush1.msra.mxu0 %v513
        %661 = vmatprep.subr.mxu0 0.0
        %662 = vmatpush1.msra.mxu0 %v510
        %663 = vmatprep.subr.mxu0 0.0
        %664 = vmatpush1.msra.mxu0 %v507
        %665 = vmatprep.subr.mxu0 0.0
        %666 = vmatpush1.msra.mxu0 %v504
        %667 = vmatprep.subr.mxu0 0.0
        %668 = vmatpush1.msra.mxu0 %v501
        %669 = vmatprep.subr.mxu0 0.0
        %670 = vmatpush1.msra.mxu0 %v498
        %671 = vmatprep.subr.mxu0 0.0
        %672 = vmatpush1.msra.mxu0 %v495
        %673 = vmatprep.subr.mxu0 0.0
        %674 = vmatpush1.msra.mxu0 %v492
        %675 = vmatprep.subr.mxu0 0.0
        %676 = vmatpush1.msra.mxu0 %v489
        %677 = vmatprep.subr.mxu0 0.0
        %678 = vmatpush1.msra.mxu0 %v486
        %679 = vmatprep.subr.mxu0 0.0
        %680 = vmatpush1.msra.mxu0 %v483
        %681 = vmatprep.subr.mxu0 0.0
        %682 = vmatpush1.msra.mxu0 %v480
        %683 = vmatprep.subr.mxu0 0.0
        %684 = vmatpush1.msra.mxu0 %v477
        %685 = vmatprep.subr.mxu0 0.0
        %686 = vmatpush2.msra.mxu0 0.0
        %687 = vmatprep.subr.mxu0 0.0
        %688 = vmatpush2.msra.mxu0 0.0
        %689 = vmatprep.subr.mxu0 0.0
        %690 = vmatpush2.msra.mxu0 0.0
        %691 = vmatprep.subr.mxu0 0.0
        %692 = vmatpush2.msra.mxu0 0.0
        %693 = vmatprep.subr.mxu0 0.0
        %694 = vmatpush2.msra.mxu0 0.0
        %695 = vmatprep.subr.mxu0 0.0
        %696 = vmatpush2.msra.mxu0 0.0
        %697 = vmatprep.subr.mxu0 0.0
        %698 = vmatpush2.msra.mxu0 0.0
        %699 = vmatprep.subr.mxu0 0.0
        %700 = vmatpush2.msra.mxu0 0.0
        %701 = vmatprep.subr.mxu0 0.0
        %702 = vmatpush2.msra.mxu0 0.0
        %703 = vmatprep.subr.mxu0 0.0
        %704 = vmatpush2.msra.mxu0 0.0
        %705 = vmatprep.subr.mxu0 0.0
        %706 = vmatpush2.msra.mxu0 0.0
        %707 = vmatprep.subr.mxu0 0.0
        %708 = vmatpush2.msra.mxu0 0.0
        %709 = vmatprep.subr.mxu0 0.0
        %710 = vmatpush2.msra.mxu0 0.0
        %711 = vmatprep.subr.mxu0 0.0
        %712 = vmatpush2.msra.mxu0 0.0
        %713 = vmatprep.subr.mxu0 0.0
        %714 = vmatpush2.msra.mxu0 0.0
        %715 = vmatprep.subr.mxu0 0.0
        %716 = vmatpush2.msra.mxu0 0.0
        %717 = vmatprep.mubr.f32.mxu0 0.0
        %718 = vmatmul.mubr.f32.gmra.mxu0 %v467
        %v719 = vpop.f32.mrf.mxu0
        %v720 = vadd.f32 %v536, %v719
        %v721 = vpop.f32.mrf.mxu0
        %722 = vmatprep.mubr.f32.mxu0 0.0
        %723 = vmatmul.mubr.f32.gmra.mxu0 %v468
        %v724 = vpop.f32.mrf.mxu0
        %v725 = vadd.f32 %v536, %v724
        %v726 = vpop.f32.mrf.mxu0
        %727 = vmatprep.mubr.f32.mxu0 0.0
        %728 = vmatmul.mubr.f32.gmra.mxu0 %v469
        %v729 = vpop.f32.mrf.mxu0
        %v730 = vadd.f32 %v536, %v729
        %v731 = vpop.f32.mrf.mxu0
        %732 = vmatprep.mubr.f32.mxu0 0.0
        %733 = vmatmul.mubr.f32.gmra.mxu0 %v470
        %v734 = vpop.f32.mrf.mxu0
        %v735 = vadd.f32 %v536, %v734
        %v736 = vpop.f32.mrf.mxu0
        %737 = vmatprep.mubr.f32.mxu0 0.0
        %738 = vmatmul.mubr.f32.gmra.mxu0 %v471
        %v739 = vpop.f32.mrf.mxu0
        %v740 = vadd.f32 %v536, %v739
        %v741 = vpop.f32.mrf.mxu0
        %742 = vmatprep.mubr.f32.mxu0 0.0
        %743 = vmatmul.mubr.f32.gmra.mxu0 %v472
        %v744 = vpop.f32.mrf.mxu0
        %v745 = vadd.f32 %v536, %v744
        %v746 = vpop.f32.mrf.mxu0
        %747 = vmatprep.mubr.f32.mxu0 0.0
        %748 = vmatmul.mubr.f32.gmra.mxu0 %v473
        %v749 = vpop.f32.mrf.mxu0
        %v750 = vadd.f32 %v536, %v749
        %v751 = vpop.f32.mrf.mxu0
        %752 = vmatprep.mubr.f32.mxu0 0.0
        %753 = vmatmul.mubr.f32.gmra.mxu0 %v474
        %v754 = vpop.f32.mrf.mxu0
        %v755 = vadd.f32 %v536, %v754
        %v756 = vpop.f32.mrf.mxu0
        %757 = vdwg.mxu0
        %v758 = vmul.f32 %v607, 0.17677669
        %v759 = vmul.f32 %v613, 0.17677669
        %v760 = vmul.f32 %v619, 0.17677669
        %v761 = vmul.f32 %v625, 0.17677669
        %v762 = vmul.f32 %v631, 0.17677669
        %v763 = vmul.f32 %v637, 0.17677669
        %v764 = vmul.f32 %v643, 0.17677669
        %v765 = vmul.f32 %v649, 0.17677669
        %v766 = vld [vmem:[%s3] sm:$0xff]
        %v767 = vld [vmem:[%s3 + $0x8] sm:$0xff]
        %v768 = vld [vmem:[%s3 + $0x10] sm:$0xff]
        %v769 = vld [vmem:[%s3 + $0x18] sm:$0xff]
        %v770 = vld [vmem:[%s3 + $0x20] sm:$0xff]
        %v771 = vld [vmem:[%s3 + $0x28] sm:$0xff]
        %v772 = vld [vmem:[%s3 + $0x30] sm:$0xff]
        %v773 = vld [vmem:[%s3 + $0x38] sm:$0xff]
        %v774 = vld [vmem:[%s3 + $0x40] sm:$0xff]
        %v775 = vld [vmem:[%s3 + $0x48] sm:$0xff]
        %v776 = vld [vmem:[%s3 + $0x50] sm:$0xff]
        %v777 = vld [vmem:[%s3 + $0x58] sm:$0xff]
        %v778 = vld [vmem:[%s3 + $0x60] sm:$0xff]
        %v779 = vld [vmem:[%s3 + $0x68] sm:$0xff]
        %v780 = vld [vmem:[%s3 + $0x70] sm:$0xff]
        %v781 = vld [vmem:[%s3 + $0x78] sm:$0xff]
        %vm782 = vcmask 261120
        %v784 = vsel %vm782, %v758, 0
        %v787 = vsel %vm782, %v759, 0
        %v790 = vsel %vm782, %v760, 0
        %v793 = vsel %vm782, %v761, 0
        %v796 = vsel %vm782, %v762, 0
        %v799 = vsel %vm782, %v763, 0
        %v802 = vsel %vm782, %v764, 0
        %v805 = vsel %vm782, %v765, 0
        %v808 = vsel %vm782, %v609, 0
        %v811 = vsel %vm782, %v615, 0
        %v814 = vsel %vm782, %v621, 0
        %v817 = vsel %vm782, %v627, 0
        %v820 = vsel %vm782, %v633, 0
        %v823 = vsel %vm782, %v639, 0
        %v826 = vsel %vm782, %v645, 0
        %v829 = vsel %vm782, %v651, 0
        %831 = vmatprep.subr.mxu0 0.0
        %832 = vmatpush1.xpose.msra.mxu0 0.0
        %833 = vmatprep.subr.mxu0 0.0
        %834 = vmatpush1.xpose.msra.mxu0 0.0
        %835 = vmatprep.subr.mxu0 0.0
        %836 = vmatpush1.xpose.msra.mxu0 0.0
        %837 = vmatprep.subr.mxu0 0.0
        %838 = vmatpush1.xpose.msra.mxu0 0.0
        %839 = vmatprep.subr.mxu0 0.0
        %840 = vmatpush1.xpose.msra.mxu0 0.0
        %841 = vmatprep.subr.mxu0 0.0
        %842 = vmatpush1.xpose.msra.mxu0 0.0
        %843 = vmatprep.subr.mxu0 0.0
        %844 = vmatpush1.xpose.msra.mxu0 0.0
        %845 = vmatprep.subr.mxu0 0.0
        %846 = vmatpush1.xpose.msra.mxu0 0.0
        %847 = vmatprep.subr.mxu0 0.0
        %848 = vmatpush1.xpose.msra.mxu0 %v829
        %849 = vmatprep.subr.mxu0 0.0
        %850 = vmatpush1.xpose.msra.mxu0 %v826
        %851 = vmatprep.subr.mxu0 0.0
        %852 = vmatpush1.xpose.msra.mxu0 %v823
        %853 = vmatprep.subr.mxu0 0.0
        %854 = vmatpush1.xpose.msra.mxu0 %v820
        %855 = vmatprep.subr.mxu0 0.0
        %856 = vmatpush1.xpose.msra.mxu0 %v817
        %857 = vmatprep.subr.mxu0 0.0
        %858 = vmatpush1.xpose.msra.mxu0 %v814
        %859 = vmatprep.subr.mxu0 0.0
        %860 = vmatpush1.xpose.msra.mxu0 %v811
        %861 = vmatprep.subr.mxu0 0.0
        %862 = vmatpush1.xpose.msra.mxu0 %v808
        %863 = vmatprep.subr.mxu0 0.0
        %864 = vmatpush2.xpose.msra.mxu0 0.0
        %865 = vmatprep.subr.mxu0 0.0
        %866 = vmatpush2.xpose.msra.mxu0 0.0
        %867 = vmatprep.subr.mxu0 0.0
        %868 = vmatpush2.xpose.msra.mxu0 0.0
        %869 = vmatprep.subr.mxu0 0.0
        %870 = vmatpush2.xpose.msra.mxu0 0.0
        %871 = vmatprep.subr.mxu0 0.0
        %872 = vmatpush2.xpose.msra.mxu0 0.0
        %873 = vmatprep.subr.mxu0 0.0
        %874 = vmatpush2.xpose.msra.mxu0 0.0
        %875 = vmatprep.subr.mxu0 0.0
        %876 = vmatpush2.xpose.msra.mxu0 0.0
        %877 = vmatprep.subr.mxu0 0.0
        %878 = vmatpush2.xpose.msra.mxu0 0.0
        %879 = vmatprep.subr.mxu0 0.0
        %880 = vmatpush2.xpose.msra.mxu0 0.0
        %881 = vmatprep.subr.mxu0 0.0
        %882 = vmatpush2.xpose.msra.mxu0 0.0
        %883 = vmatprep.subr.mxu0 0.0
        %884 = vmatpush2.xpose.msra.mxu0 0.0
        %885 = vmatprep.subr.mxu0 0.0
        %886 = vmatpush2.xpose.msra.mxu0 0.0
        %887 = vmatprep.subr.mxu0 0.0
        %888 = vmatpush2.xpose.msra.mxu0 0.0
        %889 = vmatprep.subr.mxu0 0.0
        %890 = vmatpush2.xpose.msra.mxu0 0.0
        %891 = vmatprep.subr.mxu0 0.0
        %892 = vmatpush2.xpose.msra.mxu0 0.0
        %893 = vmatprep.subr.mxu0 0.0
        %894 = vmatpush2.xpose.msra.mxu0 0.0
        %895 = vmatprep.mubr.f32.mxu0 0.0
        %896 = vmatmul.mubr.f32.gmra.mxu0 %v784
        %v897 = vpop.f32.mrf.mxu0
        %v898 = vadd.f32 0.0, %v897
        %v899 = vpop.f32.mrf.mxu0
        %900 = vmatprep.mubr.f32.mxu0 0.0
        %901 = vmatmul.mubr.f32.gmra.mxu0 %v787
        %v902 = vpop.f32.mrf.mxu0
        %v903 = vadd.f32 0.0, %v902
        %v904 = vpop.f32.mrf.mxu0
        %905 = vmatprep.mubr.f32.mxu0 0.0
        %906 = vmatmul.mubr.f32.gmra.mxu0 %v790
        %v907 = vpop.f32.mrf.mxu0
        %v908 = vadd.f32 0.0, %v907
        %v909 = vpop.f32.mrf.mxu0
        %910 = vmatprep.mubr.f32.mxu0 0.0
        %911 = vmatmul.mubr.f32.gmra.mxu0 %v793
        %v912 = vpop.f32.mrf.mxu0
        %v913 = vadd.f32 0.0, %v912
        %v914 = vpop.f32.mrf.mxu0
        %915 = vmatprep.mubr.f32.mxu0 0.0
        %916 = vmatmul.mubr.f32.gmra.mxu0 %v796
        %v917 = vpop.f32.mrf.mxu0
        %v918 = vadd.f32 0.0, %v917
        %v919 = vpop.f32.mrf.mxu0
        %920 = vmatprep.mubr.f32.mxu0 0.0
        %921 = vmatmul.mubr.f32.gmra.mxu0 %v799
        %v922 = vpop.f32.mrf.mxu0
        %v923 = vadd.f32 0.0, %v922
        %v924 = vpop.f32.mrf.mxu0
        %925 = vmatprep.mubr.f32.mxu0 0.0
        %926 = vmatmul.mubr.f32.gmra.mxu0 %v802
        %v927 = vpop.f32.mrf.mxu0
        %v928 = vadd.f32 0.0, %v927
        %v929 = vpop.f32.mrf.mxu0
        %930 = vmatprep.mubr.f32.mxu0 0.0
        %931 = vmatmul.mubr.f32.gmra.mxu0 %v805
        %v932 = vpop.f32.mrf.mxu0
        %v933 = vadd.f32 0.0, %v932
        %v934 = vpop.f32.mrf.mxu0
        %935 = vdwg.mxu0
        %vm936 = vcmask 523264
        %v937 = vsel %vm936, %v898, -inf
        %938 = vmax.xlane.f32.xlu0 %v937
        %v939 = vpop.xlane.xlu0 %938
        %v940 = vsel %vm936, %v903, -inf
        %941 = vmax.xlane.f32.xlu0 %v940
        %v942 = vpop.xlane.xlu0 %941
        %v943 = vsel %vm936, %v908, -inf
        %944 = vmax.xlane.f32.xlu0 %v943
        %v945 = vpop.xlane.xlu0 %944
        %v946 = vsel %vm936, %v913, -inf
        %947 = vmax.xlane.f32.xlu0 %v946
        %v948 = vpop.xlane.xlu0 %947
        %v949 = vsel %vm936, %v918, -inf
        %950 = vmax.xlane.f32.xlu0 %v949
        %v951 = vpop.xlane.xlu0 %950
        %v952 = vsel %vm936, %v923, -inf
        %953 = vmax.xlane.f32.xlu0 %v952
        %v954 = vpop.xlane.xlu0 %953
        %v955 = vsel %vm936, %v928, -inf
        %956 = vmax.xlane.f32.xlu0 %v955
        %v957 = vpop.xlane.xlu0 %956
        %v958 = vsel %vm936, %v933, -inf
        %959 = vmax.xlane.f32.xlu0 %v958
        %v960 = vpop.xlane.xlu0 %959
        %v961 = vsub.f32 %v898, %v939
        %v962 = vsub.f32 %v903, %v942
        %v963 = vsub.f32 %v908, %v945
        %v964 = vsub.f32 %v913, %v948
        %v965 = vsub.f32 %v918, %v951
        %v966 = vsub.f32 %v923, %v954
        %v967 = vsub.f32 %v928, %v957
        %v968 = vsub.f32 %v933, %v960
        %v969 = vmul.f32 %v961, 1.442695
        %v970 = vpow.pop %v969
        %v971 = vmul.f32 %v962, 1.442695
        %v972 = vpow.pop %v971
        %v973 = vmul.f32 %v963, 1.442695
        %v974 = vpow.pop %v973
        %v975 = vmul.f32 %v964, 1.442695
        %v976 = vpow.pop %v975
        %v977 = vmul.f32 %v965, 1.442695
        %v978 = vpow.pop %v977
        %v979 = vmul.f32 %v966, 1.442695
        %v980 = vpow.pop %v979
        %v981 = vmul.f32 %v967, 1.442695
        %v982 = vpow.pop %v981
        %v983 = vmul.f32 %v968, 1.442695
        %v984 = vpow.pop %v983
        %v985 = vsel %vm936, %v970, 0.0
        %986 = vadd.xlane.f32.xlu0 %v985
        %v987 = vpop.xlane.xlu0 %986
        %v988 = vsel %vm936, %v972, 0.0
        %989 = vadd.xlane.f32.xlu0 %v988
        %v990 = vpop.xlane.xlu0 %989
        %v991 = vsel %vm936, %v974, 0.0
        %992 = vadd.xlane.f32.xlu0 %v991
        %v993 = vpop.xlane.xlu0 %992
        %v994 = vsel %vm936, %v976, 0.0
        %995 = vadd.xlane.f32.xlu0 %v994
        %v996 = vpop.xlane.xlu0 %995
        %v997 = vsel %vm936, %v978, 0.0
        %998 = vadd.xlane.f32.xlu0 %v997
        %v999 = vpop.xlane.xlu0 %998
        %v1000 = vsel %vm936, %v980, 0.0
        %1001 = vadd.xlane.f32.xlu0 %v1000
        %v1002 = vpop.xlane.xlu0 %1001
        %v1003 = vsel %vm936, %v982, 0.0
        %1004 = vadd.xlane.f32.xlu0 %v1003
        %v1005 = vpop.xlane.xlu0 %1004
        %v1006 = vsel %vm936, %v984, 0.0
        %1007 = vadd.xlane.f32.xlu0 %v1006
        %v1008 = vpop.xlane.xlu0 %1007
        %v1009 = vrcp.pop %v987
        %v1010 = vmul.f32 %v970, %v1009
        %v1011 = vrcp.pop %v990
        %v1012 = vmul.f32 %v972, %v1011
        %v1013 = vrcp.pop %v993
        %v1014 = vmul.f32 %v974, %v1013
        %v1015 = vrcp.pop %v996
        %v1016 = vmul.f32 %v976, %v1015
        %v1017 = vrcp.pop %v999
        %v1018 = vmul.f32 %v978, %v1017
        %v1019 = vrcp.pop %v1002
        %v1020 = vmul.f32 %v980, %v1019
        %v1021 = vrcp.pop %v1005
        %v1022 = vmul.f32 %v982, %v1021
        %v1023 = vrcp.pop %v1008
        %v1024 = vmul.f32 %v984, %v1023
        %v1026 = vsel %vm936, %v1010, 0
        %v1029 = vsel %vm936, %v1012, 0
        %v1032 = vsel %vm936, %v1014, 0
        %v1035 = vsel %vm936, %v1016, 0
        %v1038 = vsel %vm936, %v1018, 0
        %v1041 = vsel %vm936, %v1020, 0
        %v1044 = vsel %vm936, %v1022, 0
        %v1047 = vsel %vm936, %v1024, 0
        %1049 = vmatprep.subr.mxu0 0.0
        %1050 = vmatpush1.msra.mxu0 0.0
        %1051 = vmatprep.subr.mxu0 0.0
        %1052 = vmatpush1.msra.mxu0 0.0
        %1053 = vmatprep.subr.mxu0 0.0
        %1054 = vmatpush1.msra.mxu0 0.0
        %1055 = vmatprep.subr.mxu0 0.0
        %1056 = vmatpush1.msra.mxu0 0.0
        %1057 = vmatprep.subr.mxu0 0.0
        %1058 = vmatpush1.msra.mxu0 0.0
        %1059 = vmatprep.subr.mxu0 0.0
        %1060 = vmatpush1.msra.mxu0 0.0
        %1061 = vmatprep.subr.mxu0 0.0
        %1062 = vmatpush1.msra.mxu0 0.0
        %1063 = vmatprep.subr.mxu0 0.0
        %1064 = vmatpush1.msra.mxu0 0.0
        %1065 = vmatprep.subr.mxu0 0.0
        %1066 = vmatpush1.msra.mxu0 %v755
        %1067 = vmatprep.subr.mxu0 0.0
        %1068 = vmatpush1.msra.mxu0 %v750
        %1069 = vmatprep.subr.mxu0 0.0
        %1070 = vmatpush1.msra.mxu0 %v745
        %1071 = vmatprep.subr.mxu0 0.0
        %1072 = vmatpush1.msra.mxu0 %v740
        %1073 = vmatprep.subr.mxu0 0.0
        %1074 = vmatpush1.msra.mxu0 %v735
        %1075 = vmatprep.subr.mxu0 0.0
        %1076 = vmatpush1.msra.mxu0 %v730
        %1077 = vmatprep.subr.mxu0 0.0
        %1078 = vmatpush1.msra.mxu0 %v725
        %1079 = vmatprep.subr.mxu0 0.0
        %1080 = vmatpush1.msra.mxu0 %v720
        %1081 = vmatprep.subr.mxu0 0.0
        %1082 = vmatpush2.msra.mxu0 0.0
        %1083 = vmatprep.subr.mxu0 0.0
        %1084 = vmatpush2.msra.mxu0 0.0
        %1085 = vmatprep.subr.mxu0 0.0
        %1086 = vmatpush2.msra.mxu0 0.0
        %1087 = vmatprep.subr.mxu0 0.0
        %1088 = vmatpush2.msra.mxu0 0.0
        %1089 = vmatprep.subr.mxu0 0.0
        %1090 = vmatpush2.msra.mxu0 0.0
        %1091 = vmatprep.subr.mxu0 0.0
        %1092 = vmatpush2.msra.mxu0 0.0
        %1093 = vmatprep.subr.mxu0 0.0
        %1094 = vmatpush2.msra.mxu0 0.0
        %1095 = vmatprep.subr.mxu0 0.0
        %1096 = vmatpush2.msra.mxu0 0.0
        %1097 = vmatprep.subr.mxu0 0.0
        %1098 = vmatpush2.msra.mxu0 0.0
        %1099 = vmatprep.subr.mxu0 0.0
        %1100 = vmatpush2.msra.mxu0 0.0
        %1101 = vmatprep.subr.mxu0 0.0
        %1102 = vmatpush2.msra.mxu0 0.0
        %1103 = vmatprep.subr.mxu0 0.0
        %1104 = vmatpush2.msra.mxu0 0.0
        %1105 = vmatprep.subr.mxu0 0.0
        %1106 = vmatpush2.msra.mxu0 0.0
        %1107 = vmatprep.subr.mxu0 0.0
        %1108 = vmatpush2.msra.mxu0 0.0
        %1109 = vmatprep.subr.mxu0 0.0
        %1110 = vmatpush2.msra.mxu0 0.0
        %1111 = vmatprep.subr.mxu0 0.0
        %1112 = vmatpush2.msra.mxu0 0.0
        %1113 = vmatprep.mubr.f32.mxu0 0.0
        %1114 = vmatmul.mubr.f32.gmra.mxu0 %v1026
        %v1115 = vpop.f32.mrf.mxu0
        %v1116 = vadd.f32 0.0, %v1115
        %v1117 = vpop.f32.mrf.mxu0
        %1118 = vmatprep.mubr.f32.mxu0 0.0
        %1119 = vmatmul.mubr.f32.gmra.mxu0 %v1029
        %v1120 = vpop.f32.mrf.mxu0
        %v1121 = vadd.f32 0.0, %v1120
        %v1122 = vpop.f32.mrf.mxu0
        %1123 = vmatprep.mubr.f32.mxu0 0.0
        %1124 = vmatmul.mubr.f32.gmra.mxu0 %v1032
        %v1125 = vpop.f32.mrf.mxu0
        %v1126 = vadd.f32 0.0, %v1125
        %v1127 = vpop.f32.mrf.mxu0
        %1128 = vmatprep.mubr.f32.mxu0 0.0
        %1129 = vmatmul.mubr.f32.gmra.mxu0 %v1035
        %v1130 = vpop.f32.mrf.mxu0
        %v1131 = vadd.f32 0.0, %v1130
        %v1132 = vpop.f32.mrf.mxu0
        %1133 = vmatprep.mubr.f32.mxu0 0.0
        %1134 = vmatmul.mubr.f32.gmra.mxu0 %v1038
        %v1135 = vpop.f32.mrf.mxu0
        %v1136 = vadd.f32 0.0, %v1135
        %v1137 = vpop.f32.mrf.mxu0
        %1138 = vmatprep.mubr.f32.mxu0 0.0
        %1139 = vmatmul.mubr.f32.gmra.mxu0 %v1041
        %v1140 = vpop.f32.mrf.mxu0
        %v1141 = vadd.f32 0.0, %v1140
        %v1142 = vpop.f32.mrf.mxu0
        %1143 = vmatprep.mubr.f32.mxu0 0.0
        %1144 = vmatmul.mubr.f32.gmra.mxu0 %v1044
        %v1145 = vpop.f32.mrf.mxu0
        %v1146 = vadd.f32 0.0, %v1145
        %v1147 = vpop.f32.mrf.mxu0
        %1148 = vmatprep.mubr.f32.mxu0 0.0
        %1149 = vmatmul.mubr.f32.gmra.mxu0 %v1047
        %v1150 = vpop.f32.mrf.mxu0
        %v1151 = vadd.f32 0.0, %v1150
        %v1152 = vpop.f32.mrf.mxu0
        %1153 = vdwg.mxu0
        %1154 = vrot.lane.b32.xlu0 %v758, 96
        %v1155 = vpop.permute.xlu0 %1154
        %1156 = vrot.lane.b32.xlu0 %v759, 96
        %v1157 = vpop.permute.xlu0 %1156
        %1158 = vrot.lane.b32.xlu0 %v760, 96
        %v1159 = vpop.permute.xlu0 %1158
        %1160 = vrot.lane.b32.xlu0 %v761, 96
        %v1161 = vpop.permute.xlu0 %1160
        %1162 = vrot.lane.b32.xlu0 %v762, 96
        %v1163 = vpop.permute.xlu0 %1162
        %1164 = vrot.lane.b32.xlu0 %v763, 96
        %v1165 = vpop.permute.xlu0 %1164
        %1166 = vrot.lane.b32.xlu0 %v764, 96
        %v1167 = vpop.permute.xlu0 %1166
        %1168 = vrot.lane.b32.xlu0 %v765, 96
        %v1169 = vpop.permute.xlu0 %1168
        %1170 = vrot.lane.b32.xlu0 %v609, 96
        %v1171 = vpop.permute.xlu0 %1170
        %1172 = vrot.lane.b32.xlu0 %v615, 96
        %v1173 = vpop.permute.xlu0 %1172
        %1174 = vrot.lane.b32.xlu0 %v621, 96
        %v1175 = vpop.permute.xlu0 %1174
        %1176 = vrot.lane.b32.xlu0 %v627, 96
        %v1177 = vpop.permute.xlu0 %1176
        %1178 = vrot.lane.b32.xlu0 %v633, 96
        %v1179 = vpop.permute.xlu0 %1178
        %1180 = vrot.lane.b32.xlu0 %v639, 96
        %v1181 = vpop.permute.xlu0 %1180
        %1182 = vrot.lane.b32.xlu0 %v645, 96
        %v1183 = vpop.permute.xlu0 %1182
        %1184 = vrot.lane.b32.xlu0 %v651, 96
        %v1185 = vpop.permute.xlu0 %1184
        %v1186 = vsel %vm782, %v1155, 0
        %v1188 = vsel %vm782, %v1157, 0
        %v1190 = vsel %vm782, %v1159, 0
        %v1192 = vsel %vm782, %v1161, 0
        %v1194 = vsel %vm782, %v1163, 0
        %v1196 = vsel %vm782, %v1165, 0
        %v1198 = vsel %vm782, %v1167, 0
        %v1200 = vsel %vm782, %v1169, 0
        %v1202 = vsel %vm782, %v1171, 0
        %v1204 = vsel %vm782, %v1173, 0
        %v1206 = vsel %vm782, %v1175, 0
        %v1208 = vsel %vm782, %v1177, 0
        %v1210 = vsel %vm782, %v1179, 0
        %v1212 = vsel %vm782, %v1181, 0
        %v1214 = vsel %vm782, %v1183, 0
        %v1216 = vsel %vm782, %v1185, 0
        %1218 = vmatprep.subr.mxu0 0.0
        %1219 = vmatpush1.xpose.msra.mxu0 0.0
        %1220 = vmatprep.subr.mxu0 0.0
        %1221 = vmatpush1.xpose.msra.mxu0 0.0
        %1222 = vmatprep.subr.mxu0 0.0
        %1223 = vmatpush1.xpose.msra.mxu0 0.0
        %1224 = vmatprep.subr.mxu0 0.0
        %1225 = vmatpush1.xpose.msra.mxu0 0.0
        %1226 = vmatprep.subr.mxu0 0.0
        %1227 = vmatpush1.xpose.msra.mxu0 0.0
        %1228 = vmatprep.subr.mxu0 0.0
        %1229 = vmatpush1.xpose.msra.mxu0 0.0
        %1230 = vmatprep.subr.mxu0 0.0
        %1231 = vmatpush1.xpose.msra.mxu0 0.0
        %1232 = vmatprep.subr.mxu0 0.0
        %1233 = vmatpush1.xpose.msra.mxu0 0.0
        %1234 = vmatprep.subr.mxu0 0.0
        %1235 = vmatpush1.xpose.msra.mxu0 %v1216
        %1236 = vmatprep.subr.mxu0 0.0
        %1237 = vmatpush1.xpose.msra.mxu0 %v1214
        %1238 = vmatprep.subr.mxu0 0.0
        %1239 = vmatpush1.xpose.msra.mxu0 %v1212
        %1240 = vmatprep.subr.mxu0 0.0
        %1241 = vmatpush1.xpose.msra.mxu0 %v1210
        %1242 = vmatprep.subr.mxu0 0.0
        %1243 = vmatpush1.xpose.msra.mxu0 %v1208
        %1244 = vmatprep.subr.mxu0 0.0
        %1245 = vmatpush1.xpose.msra.mxu0 %v1206
        %1246 = vmatprep.subr.mxu0 0.0
        %1247 = vmatpush1.xpose.msra.mxu0 %v1204
        %1248 = vmatprep.subr.mxu0 0.0
        %1249 = vmatpush1.xpose.msra.mxu0 %v1202
        %1250 = vmatprep.subr.mxu0 0.0
        %1251 = vmatpush2.xpose.msra.mxu0 0.0
        %1252 = vmatprep.subr.mxu0 0.0
        %1253 = vmatpush2.xpose.msra.mxu0 0.0
        %1254 = vmatprep.subr.mxu0 0.0
        %1255 = vmatpush2.xpose.msra.mxu0 0.0
        %1256 = vmatprep.subr.mxu0 0.0
        %1257 = vmatpush2.xpose.msra.mxu0 0.0
        %1258 = vmatprep.subr.mxu0 0.0
        %1259 = vmatpush2.xpose.msra.mxu0 0.0
        %1260 = vmatprep.subr.mxu0 0.0
        %1261 = vmatpush2.xpose.msra.mxu0 0.0
        %1262 = vmatprep.subr.mxu0 0.0
        %1263 = vmatpush2.xpose.msra.mxu0 0.0
        %1264 = vmatprep.subr.mxu0 0.0
        %1265 = vmatpush2.xpose.msra.mxu0 0.0
        %1266 = vmatprep.subr.mxu0 0.0
        %1267 = vmatpush2.xpose.msra.mxu0 0.0
        %1268 = vmatprep.subr.mxu0 0.0
        %1269 = vmatpush2.xpose.msra.mxu0 0.0
        %1270 = vmatprep.subr.mxu0 0.0
        %1271 = vmatpush2.xpose.msra.mxu0 0.0
        %1272 = vmatprep.subr.mxu0 0.0
        %1273 = vmatpush2.xpose.msra.mxu0 0.0
        %1274 = vmatprep.subr.mxu0 0.0
        %1275 = vmatpush2.xpose.msra.mxu0 0.0
        %1276 = vmatprep.subr.mxu0 0.0
        %1277 = vmatpush2.xpose.msra.mxu0 0.0
        %1278 = vmatprep.subr.mxu0 0.0
        %1279 = vmatpush2.xpose.msra.mxu0 0.0
        %1280 = vmatprep.subr.mxu0 0.0
        %1281 = vmatpush2.xpose.msra.mxu0 0.0
        %1282 = vmatprep.mubr.f32.mxu0 0.0
        %1283 = vmatmul.mubr.f32.gmra.mxu0 %v1186
        %v1284 = vpop.f32.mrf.mxu0
        %v1285 = vadd.f32 0.0, %v1284
        %v1286 = vpop.f32.mrf.mxu0
        %1287 = vmatprep.mubr.f32.mxu0 0.0
        %1288 = vmatmul.mubr.f32.gmra.mxu0 %v1188
        %v1289 = vpop.f32.mrf.mxu0
        %v1290 = vadd.f32 0.0, %v1289
        %v1291 = vpop.f32.mrf.mxu0
        %1292 = vmatprep.mubr.f32.mxu0 0.0
        %1293 = vmatmul.mubr.f32.gmra.mxu0 %v1190
        %v1294 = vpop.f32.mrf.mxu0
        %v1295 = vadd.f32 0.0, %v1294
        %v1296 = vpop.f32.mrf.mxu0
        %1297 = vmatprep.mubr.f32.mxu0 0.0
        %1298 = vmatmul.mubr.f32.gmra.mxu0 %v1192
        %v1299 = vpop.f32.mrf.mxu0
        %v1300 = vadd.f32 0.0, %v1299
        %v1301 = vpop.f32.mrf.mxu0
        %1302 = vmatprep.mubr.f32.mxu0 0.0
        %1303 = vmatmul.mubr.f32.gmra.mxu0 %v1194
        %v1304 = vpop.f32.mrf.mxu0
        %v1305 = vadd.f32 0.0, %v1304
        %v1306 = vpop.f32.mrf.mxu0
        %1307 = vmatprep.mubr.f32.mxu0 0.0
        %1308 = vmatmul.mubr.f32.gmra.mxu0 %v1196
        %v1309 = vpop.f32.mrf.mxu0
        %v1310 = vadd.f32 0.0, %v1309
        %v1311 = vpop.f32.mrf.mxu0
        %1312 = vmatprep.mubr.f32.mxu0 0.0
        %1313 = vmatmul.mubr.f32.gmra.mxu0 %v1198
        %v1314 = vpop.f32.mrf.mxu0
        %v1315 = vadd.f32 0.0, %v1314
        %v1316 = vpop.f32.mrf.mxu0
        %1317 = vmatprep.mubr.f32.mxu0 0.0
        %1318 = vmatmul.mubr.f32.gmra.mxu0 %v1200
        %v1319 = vpop.f32.mrf.mxu0
        %v1320 = vadd.f32 0.0, %v1319
        %v1321 = vpop.f32.mrf.mxu0
        %1322 = vdwg.mxu0
        %v1323 = vsel %vm936, %v1285, -inf
        %1324 = vmax.xlane.f32.xlu0 %v1323
        %v1325 = vpop.xlane.xlu0 %1324
        %v1326 = vsel %vm936, %v1290, -inf
        %1327 = vmax.xlane.f32.xlu0 %v1326
        %v1328 = vpop.xlane.xlu0 %1327
        %v1329 = vsel %vm936, %v1295, -inf
        %1330 = vmax.xlane.f32.xlu0 %v1329
        %v1331 = vpop.xlane.xlu0 %1330
        %v1332 = vsel %vm936, %v1300, -inf
        %1333 = vmax.xlane.f32.xlu0 %v1332
        %v1334 = vpop.xlane.xlu0 %1333
        %v1335 = vsel %vm936, %v1305, -inf
        %1336 = vmax.xlane.f32.xlu0 %v1335
        %v1337 = vpop.xlane.xlu0 %1336
        %v1338 = vsel %vm936, %v1310, -inf
        %1339 = vmax.xlane.f32.xlu0 %v1338
        %v1340 = vpop.xlane.xlu0 %1339
        %v1341 = vsel %vm936, %v1315, -inf
        %1342 = vmax.xlane.f32.xlu0 %v1341
        %v1343 = vpop.xlane.xlu0 %1342
        %v1344 = vsel %vm936, %v1320, -inf
        %1345 = vmax.xlane.f32.xlu0 %v1344
        %v1346 = vpop.xlane.xlu0 %1345
        %v1347 = vsub.f32 %v1285, %v1325
        %v1348 = vsub.f32 %v1290, %v1328
        %v1349 = vsub.f32 %v1295, %v1331
        %v1350 = vsub.f32 %v1300, %v1334
        %v1351 = vsub.f32 %v1305, %v1337
        %v1352 = vsub.f32 %v1310, %v1340
        %v1353 = vsub.f32 %v1315, %v1343
        %v1354 = vsub.f32 %v1320, %v1346
        %v1355 = vmul.f32 %v1347, 1.442695
        %v1356 = vpow.pop %v1355
        %v1357 = vmul.f32 %v1348, 1.442695
        %v1358 = vpow.pop %v1357
        %v1359 = vmul.f32 %v1349, 1.442695
        %v1360 = vpow.pop %v1359
        %v1361 = vmul.f32 %v1350, 1.442695
        %v1362 = vpow.pop %v1361
        %v1363 = vmul.f32 %v1351, 1.442695
        %v1364 = vpow.pop %v1363
        %v1365 = vmul.f32 %v1352, 1.442695
        %v1366 = vpow.pop %v1365
        %v1367 = vmul.f32 %v1353, 1.442695
        %v1368 = vpow.pop %v1367
        %v1369 = vmul.f32 %v1354, 1.442695
        %v1370 = vpow.pop %v1369
        %v1371 = vsel %vm936, %v1356, 0.0
        %1372 = vadd.xlane.f32.xlu0 %v1371
        %v1373 = vpop.xlane.xlu0 %1372
        %v1374 = vsel %vm936, %v1358, 0.0
        %1375 = vadd.xlane.f32.xlu0 %v1374
        %v1376 = vpop.xlane.xlu0 %1375
        %v1377 = vsel %vm936, %v1360, 0.0
        %1378 = vadd.xlane.f32.xlu0 %v1377
        %v1379 = vpop.xlane.xlu0 %1378
        %v1380 = vsel %vm936, %v1362, 0.0
        %1381 = vadd.xlane.f32.xlu0 %v1380
        %v1382 = vpop.xlane.xlu0 %1381
        %v1383 = vsel %vm936, %v1364, 0.0
        %1384 = vadd.xlane.f32.xlu0 %v1383
        %v1385 = vpop.xlane.xlu0 %1384
        %v1386 = vsel %vm936, %v1366, 0.0
        %1387 = vadd.xlane.f32.xlu0 %v1386
        %v1388 = vpop.xlane.xlu0 %1387
        %v1389 = vsel %vm936, %v1368, 0.0
        %1390 = vadd.xlane.f32.xlu0 %v1389
        %v1391 = vpop.xlane.xlu0 %1390
        %v1392 = vsel %vm936, %v1370, 0.0
        %1393 = vadd.xlane.f32.xlu0 %v1392
        %v1394 = vpop.xlane.xlu0 %1393
        %v1395 = vrcp.pop %v1373
        %v1396 = vmul.f32 %v1356, %v1395
        %v1397 = vrcp.pop %v1376
        %v1398 = vmul.f32 %v1358, %v1397
        %v1399 = vrcp.pop %v1379
        %v1400 = vmul.f32 %v1360, %v1399
        %v1401 = vrcp.pop %v1382
        %v1402 = vmul.f32 %v1362, %v1401
        %v1403 = vrcp.pop %v1385
        %v1404 = vmul.f32 %v1364, %v1403
        %v1405 = vrcp.pop %v1388
        %v1406 = vmul.f32 %v1366, %v1405
        %v1407 = vrcp.pop %v1391
        %v1408 = vmul.f32 %v1368, %v1407
        %v1409 = vrcp.pop %v1394
        %v1410 = vmul.f32 %v1370, %v1409
        %1419 = vrot.lane.b32.xlu0 %v720, 96
        %v1420 = vpop.permute.xlu0 %1419
        %1421 = vrot.lane.b32.xlu0 %v725, 96
        %v1422 = vpop.permute.xlu0 %1421
        %1423 = vrot.lane.b32.xlu0 %v730, 96
        %v1424 = vpop.permute.xlu0 %1423
        %1425 = vrot.lane.b32.xlu0 %v735, 96
        %v1426 = vpop.permute.xlu0 %1425
        %1427 = vrot.lane.b32.xlu0 %v740, 96
        %v1428 = vpop.permute.xlu0 %1427
        %1429 = vrot.lane.b32.xlu0 %v745, 96
        %v1430 = vpop.permute.xlu0 %1429
        %1431 = vrot.lane.b32.xlu0 %v750, 96
        %v1432 = vpop.permute.xlu0 %1431
        %1433 = vrot.lane.b32.xlu0 %v755, 96
        %v1434 = vpop.permute.xlu0 %1433
        %v1444 = vsel %vm936, %v1396, 0
        %v1447 = vsel %vm936, %v1398, 0
        %v1450 = vsel %vm936, %v1400, 0
        %v1453 = vsel %vm936, %v1402, 0
        %v1456 = vsel %vm936, %v1404, 0
        %v1459 = vsel %vm936, %v1406, 0
        %v1462 = vsel %vm936, %v1408, 0
        %v1465 = vsel %vm936, %v1410, 0
        %1467 = vmatprep.subr.mxu0 0.0
        %1468 = vmatpush1.msra.mxu0 0.0
        %1469 = vmatprep.subr.mxu0 0.0
        %1470 = vmatpush1.msra.mxu0 0.0
        %1471 = vmatprep.subr.mxu0 0.0
        %1472 = vmatpush1.msra.mxu0 0.0
        %1473 = vmatprep.subr.mxu0 0.0
        %1474 = vmatpush1.msra.mxu0 0.0
        %1475 = vmatprep.subr.mxu0 0.0
        %1476 = vmatpush1.msra.mxu0 0.0
        %1477 = vmatprep.subr.mxu0 0.0
        %1478 = vmatpush1.msra.mxu0 0.0
        %1479 = vmatprep.subr.mxu0 0.0
        %1480 = vmatpush1.msra.mxu0 0.0
        %1481 = vmatprep.subr.mxu0 0.0
        %1482 = vmatpush1.msra.mxu0 0.0
        %1483 = vmatprep.subr.mxu0 0.0
        %1484 = vmatpush1.msra.mxu0 %v1434
        %1485 = vmatprep.subr.mxu0 0.0
        %1486 = vmatpush1.msra.mxu0 %v1432
        %1487 = vmatprep.subr.mxu0 0.0
        %1488 = vmatpush1.msra.mxu0 %v1430
        %1489 = vmatprep.subr.mxu0 0.0
        %1490 = vmatpush1.msra.mxu0 %v1428
        %1491 = vmatprep.subr.mxu0 0.0
        %1492 = vmatpush1.msra.mxu0 %v1426
        %1493 = vmatprep.subr.mxu0 0.0
        %1494 = vmatpush1.msra.mxu0 %v1424
        %1495 = vmatprep.subr.mxu0 0.0
        %1496 = vmatpush1.msra.mxu0 %v1422
        %1497 = vmatprep.subr.mxu0 0.0
        %1498 = vmatpush1.msra.mxu0 %v1420
        %1499 = vmatprep.subr.mxu0 0.0
        %1500 = vmatpush2.msra.mxu0 0.0
        %1501 = vmatprep.subr.mxu0 0.0
        %1502 = vmatpush2.msra.mxu0 0.0
        %1503 = vmatprep.subr.mxu0 0.0
        %1504 = vmatpush2.msra.mxu0 0.0
        %1505 = vmatprep.subr.mxu0 0.0
        %1506 = vmatpush2.msra.mxu0 0.0
        %1507 = vmatprep.subr.mxu0 0.0
        %1508 = vmatpush2.msra.mxu0 0.0
        %1509 = vmatprep.subr.mxu0 0.0
        %1510 = vmatpush2.msra.mxu0 0.0
        %1511 = vmatprep.subr.mxu0 0.0
        %1512 = vmatpush2.msra.mxu0 0.0
        %1513 = vmatprep.subr.mxu0 0.0
        %1514 = vmatpush2.msra.mxu0 0.0
        %1515 = vmatprep.subr.mxu0 0.0
        %1516 = vmatpush2.msra.mxu0 0.0
        %1517 = vmatprep.subr.mxu0 0.0
        %1518 = vmatpush2.msra.mxu0 0.0
        %1519 = vmatprep.subr.mxu0 0.0
        %1520 = vmatpush2.msra.mxu0 0.0
        %1521 = vmatprep.subr.mxu0 0.0
        %1522 = vmatpush2.msra.mxu0 0.0
        %1523 = vmatprep.subr.mxu0 0.0
        %1524 = vmatpush2.msra.mxu0 0.0
        %1525 = vmatprep.subr.mxu0 0.0
        %1526 = vmatpush2.msra.mxu0 0.0
        %1527 = vmatprep.subr.mxu0 0.0
        %1528 = vmatpush2.msra.mxu0 0.0
        %1529 = vmatprep.subr.mxu0 0.0
        %1530 = vmatpush2.msra.mxu0 0.0
        %1531 = vmatprep.mubr.f32.mxu0 0.0
        %1532 = vmatmul.mubr.f32.gmra.mxu0 %v1444
        %v1533 = vpop.f32.mrf.mxu0
        %v1534 = vadd.f32 0.0, %v1533
        %v1535 = vpop.f32.mrf.mxu0
        %1536 = vmatprep.mubr.f32.mxu0 0.0
        %1537 = vmatmul.mubr.f32.gmra.mxu0 %v1447
        %v1538 = vpop.f32.mrf.mxu0
        %v1539 = vadd.f32 0.0, %v1538
        %v1540 = vpop.f32.mrf.mxu0
        %1541 = vmatprep.mubr.f32.mxu0 0.0
        %1542 = vmatmul.mubr.f32.gmra.mxu0 %v1450
        %v1543 = vpop.f32.mrf.mxu0
        %v1544 = vadd.f32 0.0, %v1543
        %v1545 = vpop.f32.mrf.mxu0
        %1546 = vmatprep.mubr.f32.mxu0 0.0
        %1547 = vmatmul.mubr.f32.gmra.mxu0 %v1453
        %v1548 = vpop.f32.mrf.mxu0
        %v1549 = vadd.f32 0.0, %v1548
        %v1550 = vpop.f32.mrf.mxu0
        %1551 = vmatprep.mubr.f32.mxu0 0.0
        %1552 = vmatmul.mubr.f32.gmra.mxu0 %v1456
        %v1553 = vpop.f32.mrf.mxu0
        %v1554 = vadd.f32 0.0, %v1553
        %v1555 = vpop.f32.mrf.mxu0
        %1556 = vmatprep.mubr.f32.mxu0 0.0
        %1557 = vmatmul.mubr.f32.gmra.mxu0 %v1459
        %v1558 = vpop.f32.mrf.mxu0
        %v1559 = vadd.f32 0.0, %v1558
        %v1560 = vpop.f32.mrf.mxu0
        %1561 = vmatprep.mubr.f32.mxu0 0.0
        %1562 = vmatmul.mubr.f32.gmra.mxu0 %v1462
        %v1563 = vpop.f32.mrf.mxu0
        %v1564 = vadd.f32 0.0, %v1563
        %v1565 = vpop.f32.mrf.mxu0
        %1566 = vmatprep.mubr.f32.mxu0 0.0
        %1567 = vmatmul.mubr.f32.gmra.mxu0 %v1465
        %v1568 = vpop.f32.mrf.mxu0
        %v1569 = vadd.f32 0.0, %v1568
        %v1570 = vpop.f32.mrf.mxu0
        %1571 = vdwg.mxu0
        %v1573 = vsel %vm782, %v1534, 0
        %v1576 = vsel %vm782, %v1539, 0
        %v1579 = vsel %vm782, %v1544, 0
        %v1582 = vsel %vm782, %v1549, 0
        %v1585 = vsel %vm782, %v1554, 0
        %v1588 = vsel %vm782, %v1559, 0
        %v1591 = vsel %vm782, %v1564, 0
        %v1594 = vsel %vm782, %v1569, 0
        %1596 = vmatprep.subr.mxu0 0.0
        %1597 = vmatpush1.msra.mxu0 0.0
        %1598 = vmatprep.subr.mxu0 0.0
        %1599 = vmatpush1.msra.mxu0 0.0
        %1600 = vmatprep.subr.mxu0 0.0
        %1601 = vmatpush1.msra.mxu0 0.0
        %1602 = vmatprep.subr.mxu0 0.0
        %1603 = vmatpush1.msra.mxu0 0.0
        %1604 = vmatprep.subr.mxu0 0.0
        %1605 = vmatpush1.msra.mxu0 0.0
        %1606 = vmatprep.subr.mxu0 0.0
        %1607 = vmatpush1.msra.mxu0 0.0
        %1608 = vmatprep.subr.mxu0 0.0
        %1609 = vmatpush1.msra.mxu0 0.0
        %1610 = vmatprep.subr.mxu0 0.0
        %1611 = vmatpush1.msra.mxu0 0.0
        %1612 = vmatprep.subr.mxu0 0.0
        %1613 = vmatpush1.msra.mxu0 0.0
        %1614 = vmatprep.subr.mxu0 0.0
        %1615 = vmatpush1.msra.mxu0 0.0
        %1616 = vmatprep.subr.mxu0 0.0
        %1617 = vmatpush1.msra.mxu0 0.0
        %1618 = vmatprep.subr.mxu0 0.0
        %1619 = vmatpush1.msra.mxu0 0.0
        %1620 = vmatprep.subr.mxu0 0.0
        %1621 = vmatpush1.msra.mxu0 %v773
        %1622 = vmatprep.subr.mxu0 0.0
        %1623 = vmatpush1.msra.mxu0 %v772
        %1624 = vmatprep.subr.mxu0 0.0
        %1625 = vmatpush1.msra.mxu0 %v771
        %1626 = vmatprep.subr.mxu0 0.0
        %1627 = vmatpush1.msra.mxu0 %v770
        %1628 = vmatprep.subr.mxu0 0.0
        %1629 = vmatpush2.msra.mxu0 0.0
        %1630 = vmatprep.subr.mxu0 0.0
        %1631 = vmatpush2.msra.mxu0 0.0
        %1632 = vmatprep.subr.mxu0 0.0
        %1633 = vmatpush2.msra.mxu0 0.0
        %1634 = vmatprep.subr.mxu0 0.0
        %1635 = vmatpush2.msra.mxu0 0.0
        %1636 = vmatprep.subr.mxu0 0.0
        %1637 = vmatpush2.msra.mxu0 0.0
        %1638 = vmatprep.subr.mxu0 0.0
        %1639 = vmatpush2.msra.mxu0 0.0
        %1640 = vmatprep.subr.mxu0 0.0
        %1641 = vmatpush2.msra.mxu0 0.0
        %1642 = vmatprep.subr.mxu0 0.0
        %1643 = vmatpush2.msra.mxu0 0.0
        %1644 = vmatprep.subr.mxu0 0.0
        %1645 = vmatpush2.msra.mxu0 0.0
        %1646 = vmatprep.subr.mxu0 0.0
        %1647 = vmatpush2.msra.mxu0 0.0
        %1648 = vmatprep.subr.mxu0 0.0
        %1649 = vmatpush2.msra.mxu0 0.0
        %1650 = vmatprep.subr.mxu0 0.0
        %1651 = vmatpush2.msra.mxu0 0.0
        %1652 = vmatprep.subr.mxu0 0.0
        %1653 = vmatpush2.msra.mxu0 0.0
        %1654 = vmatprep.subr.mxu0 0.0
        %1655 = vmatpush2.msra.mxu0 0.0
        %1656 = vmatprep.subr.mxu0 0.0
        %1657 = vmatpush2.msra.mxu0 0.0
        %1658 = vmatprep.subr.mxu0 0.0
        %1659 = vmatpush2.msra.mxu0 0.0
        %1660 = vmatprep.mubr.f32.mxu0 0.0
        %1661 = vmatmul.mubr.f32.gmra.mxu0 %v1573
        %v1662 = vpop.f32.mrf.mxu0
        %v1663 = vadd.f32 0.0, %v1662
        %v1664 = vpop.f32.mrf.mxu0
        %1665 = vmatprep.mubr.f32.mxu0 0.0
        %1666 = vmatmul.mubr.f32.gmra.mxu0 %v1576
        %v1667 = vpop.f32.mrf.mxu0
        %v1668 = vadd.f32 0.0, %v1667
        %v1669 = vpop.f32.mrf.mxu0
        %1670 = vmatprep.mubr.f32.mxu0 0.0
        %1671 = vmatmul.mubr.f32.gmra.mxu0 %v1579
        %v1672 = vpop.f32.mrf.mxu0
        %v1673 = vadd.f32 0.0, %v1672
        %v1674 = vpop.f32.mrf.mxu0
        %1675 = vmatprep.mubr.f32.mxu0 0.0
        %1676 = vmatmul.mubr.f32.gmra.mxu0 %v1582
        %v1677 = vpop.f32.mrf.mxu0
        %v1678 = vadd.f32 0.0, %v1677
        %v1679 = vpop.f32.mrf.mxu0
        %1680 = vmatprep.mubr.f32.mxu0 0.0
        %1681 = vmatmul.mubr.f32.gmra.mxu0 %v1585
        %v1682 = vpop.f32.mrf.mxu0
        %v1683 = vadd.f32 0.0, %v1682
        %v1684 = vpop.f32.mrf.mxu0
        %1685 = vmatprep.mubr.f32.mxu0 0.0
        %1686 = vmatmul.mubr.f32.gmra.mxu0 %v1588
        %v1687 = vpop.f32.mrf.mxu0
        %v1688 = vadd.f32 0.0, %v1687
        %v1689 = vpop.f32.mrf.mxu0
        %1690 = vmatprep.mubr.f32.mxu0 0.0
        %1691 = vmatmul.mubr.f32.gmra.mxu0 %v1591
        %v1692 = vpop.f32.mrf.mxu0
        %v1693 = vadd.f32 0.0, %v1692
        %v1694 = vpop.f32.mrf.mxu0
        %1695 = vmatprep.mubr.f32.mxu0 0.0
        %1696 = vmatmul.mubr.f32.gmra.mxu0 %v1594
        %v1697 = vpop.f32.mrf.mxu0
        %v1698 = vadd.f32 0.0, %v1697
        %v1699 = vpop.f32.mrf.mxu0
        %1700 = vdwg.mxu0
        %v1702 = vsel %vm782, %v1116, 0
        %v1705 = vsel %vm782, %v1121, 0
        %v1708 = vsel %vm782, %v1126, 0
        %v1711 = vsel %vm782, %v1131, 0
        %v1714 = vsel %vm782, %v1136, 0
        %v1717 = vsel %vm782, %v1141, 0
        %v1720 = vsel %vm782, %v1146, 0
        %v1723 = vsel %vm782, %v1151, 0
        %1725 = vmatprep.subr.mxu0 0.0
        %1726 = vmatpush1.msra.mxu0 0.0
        %1727 = vmatprep.subr.mxu0 0.0
        %1728 = vmatpush1.msra.mxu0 0.0
        %1729 = vmatprep.subr.mxu0 0.0
        %1730 = vmatpush1.msra.mxu0 0.0
        %1731 = vmatprep.subr.mxu0 0.0
        %1732 = vmatpush1.msra.mxu0 0.0
        %1733 = vmatprep.subr.mxu0 0.0
        %1734 = vmatpush1.msra.mxu0 0.0
        %1735 = vmatprep.subr.mxu0 0.0
        %1736 = vmatpush1.msra.mxu0 0.0
        %1737 = vmatprep.subr.mxu0 0.0
        %1738 = vmatpush1.msra.mxu0 0.0
        %1739 = vmatprep.subr.mxu0 0.0
        %1740 = vmatpush1.msra.mxu0 0.0
        %1741 = vmatprep.subr.mxu0 0.0
        %1742 = vmatpush1.msra.mxu0 0.0
        %1743 = vmatprep.subr.mxu0 0.0
        %1744 = vmatpush1.msra.mxu0 0.0
        %1745 = vmatprep.subr.mxu0 0.0
        %1746 = vmatpush1.msra.mxu0 0.0
        %1747 = vmatprep.subr.mxu0 0.0
        %1748 = vmatpush1.msra.mxu0 0.0
        %1749 = vmatprep.subr.mxu0 0.0
        %1750 = vmatpush1.msra.mxu0 %v769
        %1751 = vmatprep.subr.mxu0 0.0
        %1752 = vmatpush1.msra.mxu0 %v768
        %1753 = vmatprep.subr.mxu0 0.0
        %1754 = vmatpush1.msra.mxu0 %v767
        %1755 = vmatprep.subr.mxu0 0.0
        %1756 = vmatpush1.msra.mxu0 %v766
        %1757 = vmatprep.subr.mxu0 0.0
        %1758 = vmatpush2.msra.mxu0 0.0
        %1759 = vmatprep.subr.mxu0 0.0
        %1760 = vmatpush2.msra.mxu0 0.0
        %1761 = vmatprep.subr.mxu0 0.0
        %1762 = vmatpush2.msra.mxu0 0.0
        %1763 = vmatprep.subr.mxu0 0.0
        %1764 = vmatpush2.msra.mxu0 0.0
        %1765 = vmatprep.subr.mxu0 0.0
        %1766 = vmatpush2.msra.mxu0 0.0
        %1767 = vmatprep.subr.mxu0 0.0
        %1768 = vmatpush2.msra.mxu0 0.0
        %1769 = vmatprep.subr.mxu0 0.0
        %1770 = vmatpush2.msra.mxu0 0.0
        %1771 = vmatprep.subr.mxu0 0.0
        %1772 = vmatpush2.msra.mxu0 0.0
        %1773 = vmatprep.subr.mxu0 0.0
        %1774 = vmatpush2.msra.mxu0 0.0
        %1775 = vmatprep.subr.mxu0 0.0
        %1776 = vmatpush2.msra.mxu0 0.0
        %1777 = vmatprep.subr.mxu0 0.0
        %1778 = vmatpush2.msra.mxu0 0.0
        %1779 = vmatprep.subr.mxu0 0.0
        %1780 = vmatpush2.msra.mxu0 0.0
        %1781 = vmatprep.subr.mxu0 0.0
        %1782 = vmatpush2.msra.mxu0 0.0
        %1783 = vmatprep.subr.mxu0 0.0
        %1784 = vmatpush2.msra.mxu0 0.0
        %1785 = vmatprep.subr.mxu0 0.0
        %1786 = vmatpush2.msra.mxu0 0.0
        %1787 = vmatprep.subr.mxu0 0.0
        %1788 = vmatpush2.msra.mxu0 0.0
        %1789 = vmatprep.mubr.f32.mxu0 0.0
        %1790 = vmatmul.mubr.f32.gmra.mxu0 %v1702
        %v1791 = vpop.f32.mrf.mxu0
        %v1792 = vadd.f32 %v1663, %v1791
        %v1793 = vpop.f32.mrf.mxu0
        %1794 = vmatprep.mubr.f32.mxu0 0.0
        %1795 = vmatmul.mubr.f32.gmra.mxu0 %v1705
        %v1796 = vpop.f32.mrf.mxu0
        %v1797 = vadd.f32 %v1668, %v1796
        %v1798 = vpop.f32.mrf.mxu0
        %1799 = vmatprep.mubr.f32.mxu0 0.0
        %1800 = vmatmul.mubr.f32.gmra.mxu0 %v1708
        %v1801 = vpop.f32.mrf.mxu0
        %v1802 = vadd.f32 %v1673, %v1801
        %v1803 = vpop.f32.mrf.mxu0
        %1804 = vmatprep.mubr.f32.mxu0 0.0
        %1805 = vmatmul.mubr.f32.gmra.mxu0 %v1711
        %v1806 = vpop.f32.mrf.mxu0
        %v1807 = vadd.f32 %v1678, %v1806
        %v1808 = vpop.f32.mrf.mxu0
        %1809 = vmatprep.mubr.f32.mxu0 0.0
        %1810 = vmatmul.mubr.f32.gmra.mxu0 %v1714
        %v1811 = vpop.f32.mrf.mxu0
        %v1812 = vadd.f32 %v1683, %v1811
        %v1813 = vpop.f32.mrf.mxu0
        %1814 = vmatprep.mubr.f32.mxu0 0.0
        %1815 = vmatmul.mubr.f32.gmra.mxu0 %v1717
        %v1816 = vpop.f32.mrf.mxu0
        %v1817 = vadd.f32 %v1688, %v1816
        %v1818 = vpop.f32.mrf.mxu0
        %1819 = vmatprep.mubr.f32.mxu0 0.0
        %1820 = vmatmul.mubr.f32.gmra.mxu0 %v1720
        %v1821 = vpop.f32.mrf.mxu0
        %v1822 = vadd.f32 %v1693, %v1821
        %v1823 = vpop.f32.mrf.mxu0
        %1824 = vmatprep.mubr.f32.mxu0 0.0
        %1825 = vmatmul.mubr.f32.gmra.mxu0 %v1723
        %v1826 = vpop.f32.mrf.mxu0
        %v1827 = vadd.f32 %v1698, %v1826
        %v1828 = vpop.f32.mrf.mxu0
        %1829 = vdwg.mxu0
        %1830 = vrot.lane.b32.xlu0 %v758, 64
        %v1831 = vpop.permute.xlu0 %1830
        %1832 = vrot.lane.b32.xlu0 %v759, 64
        %v1833 = vpop.permute.xlu0 %1832
        %1834 = vrot.lane.b32.xlu0 %v760, 64
        %v1835 = vpop.permute.xlu0 %1834
        %1836 = vrot.lane.b32.xlu0 %v761, 64
        %v1837 = vpop.permute.xlu0 %1836
        %1838 = vrot.lane.b32.xlu0 %v762, 64
        %v1839 = vpop.permute.xlu0 %1838
        %1840 = vrot.lane.b32.xlu0 %v763, 64
        %v1841 = vpop.permute.xlu0 %1840
        %1842 = vrot.lane.b32.xlu0 %v764, 64
        %v1843 = vpop.permute.xlu0 %1842
        %1844 = vrot.lane.b32.xlu0 %v765, 64
        %v1845 = vpop.permute.xlu0 %1844
        %1846 = vrot.lane.b32.xlu0 %v609, 64
        %v1847 = vpop.permute.xlu0 %1846
        %1848 = vrot.lane.b32.xlu0 %v615, 64
        %v1849 = vpop.permute.xlu0 %1848
        %1850 = vrot.lane.b32.xlu0 %v621, 64
        %v1851 = vpop.permute.xlu0 %1850
        %1852 = vrot.lane.b32.xlu0 %v627, 64
        %v1853 = vpop.permute.xlu0 %1852
        %1854 = vrot.lane.b32.xlu0 %v633, 64
        %v1855 = vpop.permute.xlu0 %1854
        %1856 = vrot.lane.b32.xlu0 %v639, 64
        %v1857 = vpop.permute.xlu0 %1856
        %1858 = vrot.lane.b32.xlu0 %v645, 64
        %v1859 = vpop.permute.xlu0 %1858
        %1860 = vrot.lane.b32.xlu0 %v651, 64
        %v1861 = vpop.permute.xlu0 %1860
        %v1862 = vsel %vm782, %v1831, 0
        %v1864 = vsel %vm782, %v1833, 0
        %v1866 = vsel %vm782, %v1835, 0
        %v1868 = vsel %vm782, %v1837, 0
        %v1870 = vsel %vm782, %v1839, 0
        %v1872 = vsel %vm782, %v1841, 0
        %v1874 = vsel %vm782, %v1843, 0
        %v1876 = vsel %vm782, %v1845, 0
        %v1878 = vsel %vm782, %v1847, 0
        %v1880 = vsel %vm782, %v1849, 0
        %v1882 = vsel %vm782, %v1851, 0
        %v1884 = vsel %vm782, %v1853, 0
        %v1886 = vsel %vm782, %v1855, 0
        %v1888 = vsel %vm782, %v1857, 0
        %v1890 = vsel %vm782, %v1859, 0
        %v1892 = vsel %vm782, %v1861, 0
        %1894 = vmatprep.subr.mxu0 0.0
        %1895 = vmatpush1.xpose.msra.mxu0 0.0
        %1896 = vmatprep.subr.mxu0 0.0
        %1897 = vmatpush1.xpose.msra.mxu0 0.0
        %1898 = vmatprep.subr.mxu0 0.0
        %1899 = vmatpush1.xpose.msra.mxu0 0.0
        %1900 = vmatprep.subr.mxu0 0.0
        %1901 = vmatpush1.xpose.msra.mxu0 0.0
        %1902 = vmatprep.subr.mxu0 0.0
        %1903 = vmatpush1.xpose.msra.mxu0 0.0
        %1904 = vmatprep.subr.mxu0 0.0
        %1905 = vmatpush1.xpose.msra.mxu0 0.0
        %1906 = vmatprep.subr.mxu0 0.0
        %1907 = vmatpush1.xpose.msra.mxu0 0.0
        %1908 = vmatprep.subr.mxu0 0.0
        %1909 = vmatpush1.xpose.msra.mxu0 0.0
        %1910 = vmatprep.subr.mxu0 0.0
        %1911 = vmatpush1.xpose.msra.mxu0 %v1892
        %1912 = vmatprep.subr.mxu0 0.0
        %1913 = vmatpush1.xpose.msra.mxu0 %v1890
        %1914 = vmatprep.subr.mxu0 0.0
        %1915 = vmatpush1.xpose.msra.mxu0 %v1888
        %1916 = vmatprep.subr.mxu0 0.0
        %1917 = vmatpush1.xpose.msra.mxu0 %v1886
        %1918 = vmatprep.subr.mxu0 0.0
        %1919 = vmatpush1.xpose.msra.mxu0 %v1884
        %1920 = vmatprep.subr.mxu0 0.0
        %1921 = vmatpush1.xpose.msra.mxu0 %v1882
        %1922 = vmatprep.subr.mxu0 0.0
        %1923 = vmatpush1.xpose.msra.mxu0 %v1880
        %1924 = vmatprep.subr.mxu0 0.0
        %1925 = vmatpush1.xpose.msra.mxu0 %v1878
        %1926 = vmatprep.subr.mxu0 0.0
        %1927 = vmatpush2.xpose.msra.mxu0 0.0
        %1928 = vmatprep.subr.mxu0 0.0
        %1929 = vmatpush2.xpose.msra.mxu0 0.0
        %1930 = vmatprep.subr.mxu0 0.0
        %1931 = vmatpush2.xpose.msra.mxu0 0.0
        %1932 = vmatprep.subr.mxu0 0.0
        %1933 = vmatpush2.xpose.msra.mxu0 0.0
        %1934 = vmatprep.subr.mxu0 0.0
        %1935 = vmatpush2.xpose.msra.mxu0 0.0
        %1936 = vmatprep.subr.mxu0 0.0
        %1937 = vmatpush2.xpose.msra.mxu0 0.0
        %1938 = vmatprep.subr.mxu0 0.0
        %1939 = vmatpush2.xpose.msra.mxu0 0.0
        %1940 = vmatprep.subr.mxu0 0.0
        %1941 = vmatpush2.xpose.msra.mxu0 0.0
        %1942 = vmatprep.subr.mxu0 0.0
        %1943 = vmatpush2.xpose.msra.mxu0 0.0
        %1944 = vmatprep.subr.mxu0 0.0
        %1945 = vmatpush2.xpose.msra.mxu0 0.0
        %1946 = vmatprep.subr.mxu0 0.0
        %1947 = vmatpush2.xpose.msra.mxu0 0.0
        %1948 = vmatprep.subr.mxu0 0.0
        %1949 = vmatpush2.xpose.msra.mxu0 0.0
        %1950 = vmatprep.subr.mxu0 0.0
        %1951 = vmatpush2.xpose.msra.mxu0 0.0
        %1952 = vmatprep.subr.mxu0 0.0
        %1953 = vmatpush2.xpose.msra.mxu0 0.0
        %1954 = vmatprep.subr.mxu0 0.0
        %1955 = vmatpush2.xpose.msra.mxu0 0.0
        %1956 = vmatprep.subr.mxu0 0.0
        %1957 = vmatpush2.xpose.msra.mxu0 0.0
        %1958 = vmatprep.mubr.f32.mxu0 0.0
        %1959 = vmatmul.mubr.f32.gmra.mxu0 %v1862
        %v1960 = vpop.f32.mrf.mxu0
        %v1961 = vadd.f32 0.0, %v1960
        %v1962 = vpop.f32.mrf.mxu0
        %1963 = vmatprep.mubr.f32.mxu0 0.0
        %1964 = vmatmul.mubr.f32.gmra.mxu0 %v1864
        %v1965 = vpop.f32.mrf.mxu0
        %v1966 = vadd.f32 0.0, %v1965
        %v1967 = vpop.f32.mrf.mxu0
        %1968 = vmatprep.mubr.f32.mxu0 0.0
        %1969 = vmatmul.mubr.f32.gmra.mxu0 %v1866
        %v1970 = vpop.f32.mrf.mxu0
        %v1971 = vadd.f32 0.0, %v1970
        %v1972 = vpop.f32.mrf.mxu0
        %1973 = vmatprep.mubr.f32.mxu0 0.0
        %1974 = vmatmul.mubr.f32.gmra.mxu0 %v1868
        %v1975 = vpop.f32.mrf.mxu0
        %v1976 = vadd.f32 0.0, %v1975
        %v1977 = vpop.f32.mrf.mxu0
        %1978 = vmatprep.mubr.f32.mxu0 0.0
        %1979 = vmatmul.mubr.f32.gmra.mxu0 %v1870
        %v1980 = vpop.f32.mrf.mxu0
        %v1981 = vadd.f32 0.0, %v1980
        %v1982 = vpop.f32.mrf.mxu0
        %1983 = vmatprep.mubr.f32.mxu0 0.0
        %1984 = vmatmul.mubr.f32.gmra.mxu0 %v1872
        %v1985 = vpop.f32.mrf.mxu0
        %v1986 = vadd.f32 0.0, %v1985
        %v1987 = vpop.f32.mrf.mxu0
        %1988 = vmatprep.mubr.f32.mxu0 0.0
        %1989 = vmatmul.mubr.f32.gmra.mxu0 %v1874
        %v1990 = vpop.f32.mrf.mxu0
        %v1991 = vadd.f32 0.0, %v1990
        %v1992 = vpop.f32.mrf.mxu0
        %1993 = vmatprep.mubr.f32.mxu0 0.0
        %1994 = vmatmul.mubr.f32.gmra.mxu0 %v1876
        %v1995 = vpop.f32.mrf.mxu0
        %v1996 = vadd.f32 0.0, %v1995
        %v1997 = vpop.f32.mrf.mxu0
        %1998 = vdwg.mxu0
        %v1999 = vsel %vm936, %v1961, -inf
        %2000 = vmax.xlane.f32.xlu0 %v1999
        %v2001 = vpop.xlane.xlu0 %2000
        %v2002 = vsel %vm936, %v1966, -inf
        %2003 = vmax.xlane.f32.xlu0 %v2002
        %v2004 = vpop.xlane.xlu0 %2003
        %v2005 = vsel %vm936, %v1971, -inf
        %2006 = vmax.xlane.f32.xlu0 %v2005
        %v2007 = vpop.xlane.xlu0 %2006
        %v2008 = vsel %vm936, %v1976, -inf
        %2009 = vmax.xlane.f32.xlu0 %v2008
        %v2010 = vpop.xlane.xlu0 %2009
        %v2011 = vsel %vm936, %v1981, -inf
        %2012 = vmax.xlane.f32.xlu0 %v2011
        %v2013 = vpop.xlane.xlu0 %2012
        %v2014 = vsel %vm936, %v1986, -inf
        %2015 = vmax.xlane.f32.xlu0 %v2014
        %v2016 = vpop.xlane.xlu0 %2015
        %v2017 = vsel %vm936, %v1991, -inf
        %2018 = vmax.xlane.f32.xlu0 %v2017
        %v2019 = vpop.xlane.xlu0 %2018
        %v2020 = vsel %vm936, %v1996, -inf
        %2021 = vmax.xlane.f32.xlu0 %v2020
        %v2022 = vpop.xlane.xlu0 %2021
        %v2023 = vsub.f32 %v1961, %v2001
        %v2024 = vsub.f32 %v1966, %v2004
        %v2025 = vsub.f32 %v1971, %v2007
        %v2026 = vsub.f32 %v1976, %v2010
        %v2027 = vsub.f32 %v1981, %v2013
        %v2028 = vsub.f32 %v1986, %v2016
        %v2029 = vsub.f32 %v1991, %v2019
        %v2030 = vsub.f32 %v1996, %v2022
        %v2031 = vmul.f32 %v2023, 1.442695
        %v2032 = vpow.pop %v2031
        %v2033 = vmul.f32 %v2024, 1.442695
        %v2034 = vpow.pop %v2033
        %v2035 = vmul.f32 %v2025, 1.442695
        %v2036 = vpow.pop %v2035
        %v2037 = vmul.f32 %v2026, 1.442695
        %v2038 = vpow.pop %v2037
        %v2039 = vmul.f32 %v2027, 1.442695
        %v2040 = vpow.pop %v2039
        %v2041 = vmul.f32 %v2028, 1.442695
        %v2042 = vpow.pop %v2041
        %v2043 = vmul.f32 %v2029, 1.442695
        %v2044 = vpow.pop %v2043
        %v2045 = vmul.f32 %v2030, 1.442695
        %v2046 = vpow.pop %v2045
        %v2047 = vsel %vm936, %v2032, 0.0
        %2048 = vadd.xlane.f32.xlu0 %v2047
        %v2049 = vpop.xlane.xlu0 %2048
        %v2050 = vsel %vm936, %v2034, 0.0
        %2051 = vadd.xlane.f32.xlu0 %v2050
        %v2052 = vpop.xlane.xlu0 %2051
        %v2053 = vsel %vm936, %v2036, 0.0
        %2054 = vadd.xlane.f32.xlu0 %v2053
        %v2055 = vpop.xlane.xlu0 %2054
        %v2056 = vsel %vm936, %v2038, 0.0
        %2057 = vadd.xlane.f32.xlu0 %v2056
        %v2058 = vpop.xlane.xlu0 %2057
        %v2059 = vsel %vm936, %v2040, 0.0
        %2060 = vadd.xlane.f32.xlu0 %v2059
        %v2061 = vpop.xlane.xlu0 %2060
        %v2062 = vsel %vm936, %v2042, 0.0
        %2063 = vadd.xlane.f32.xlu0 %v2062
        %v2064 = vpop.xlane.xlu0 %2063
        %v2065 = vsel %vm936, %v2044, 0.0
        %2066 = vadd.xlane.f32.xlu0 %v2065
        %v2067 = vpop.xlane.xlu0 %2066
        %v2068 = vsel %vm936, %v2046, 0.0
        %2069 = vadd.xlane.f32.xlu0 %v2068
        %v2070 = vpop.xlane.xlu0 %2069
        %v2071 = vrcp.pop %v2049
        %v2072 = vmul.f32 %v2032, %v2071
        %v2073 = vrcp.pop %v2052
        %v2074 = vmul.f32 %v2034, %v2073
        %v2075 = vrcp.pop %v2055
        %v2076 = vmul.f32 %v2036, %v2075
        %v2077 = vrcp.pop %v2058
        %v2078 = vmul.f32 %v2038, %v2077
        %v2079 = vrcp.pop %v2061
        %v2080 = vmul.f32 %v2040, %v2079
        %v2081 = vrcp.pop %v2064
        %v2082 = vmul.f32 %v2042, %v2081
        %v2083 = vrcp.pop %v2067
        %v2084 = vmul.f32 %v2044, %v2083
        %v2085 = vrcp.pop %v2070
        %v2086 = vmul.f32 %v2046, %v2085
        %2087 = vrot.lane.b32.xlu0 %v720, 64
        %v2088 = vpop.permute.xlu0 %2087
        %2089 = vrot.lane.b32.xlu0 %v725, 64
        %v2090 = vpop.permute.xlu0 %2089
        %2091 = vrot.lane.b32.xlu0 %v730, 64
        %v2092 = vpop.permute.xlu0 %2091
        %2093 = vrot.lane.b32.xlu0 %v735, 64
        %v2094 = vpop.permute.xlu0 %2093
        %2095 = vrot.lane.b32.xlu0 %v740, 64
        %v2096 = vpop.permute.xlu0 %2095
        %2097 = vrot.lane.b32.xlu0 %v745, 64
        %v2098 = vpop.permute.xlu0 %2097
        %2099 = vrot.lane.b32.xlu0 %v750, 64
        %v2100 = vpop.permute.xlu0 %2099
        %2101 = vrot.lane.b32.xlu0 %v755, 64
        %v2102 = vpop.permute.xlu0 %2101
        %v2112 = vsel %vm936, %v2072, 0
        %v2115 = vsel %vm936, %v2074, 0
        %v2118 = vsel %vm936, %v2076, 0
        %v2121 = vsel %vm936, %v2078, 0
        %v2124 = vsel %vm936, %v2080, 0
        %v2127 = vsel %vm936, %v2082, 0
        %v2130 = vsel %vm936, %v2084, 0
        %v2133 = vsel %vm936, %v2086, 0
        %2135 = vmatprep.subr.mxu0 0.0
        %2136 = vmatpush1.msra.mxu0 0.0
        %2137 = vmatprep.subr.mxu0 0.0
        %2138 = vmatpush1.msra.mxu0 0.0
        %2139 = vmatprep.subr.mxu0 0.0
        %2140 = vmatpush1.msra.mxu0 0.0
        %2141 = vmatprep.subr.mxu0 0.0
        %2142 = vmatpush1.msra.mxu0 0.0
        %2143 = vmatprep.subr.mxu0 0.0
        %2144 = vmatpush1.msra.mxu0 0.0
        %2145 = vmatprep.subr.mxu0 0.0
        %2146 = vmatpush1.msra.mxu0 0.0
        %2147 = vmatprep.subr.mxu0 0.0
        %2148 = vmatpush1.msra.mxu0 0.0
        %2149 = vmatprep.subr.mxu0 0.0
        %2150 = vmatpush1.msra.mxu0 0.0
        %2151 = vmatprep.subr.mxu0 0.0
        %2152 = vmatpush1.msra.mxu0 %v2102
        %2153 = vmatprep.subr.mxu0 0.0
        %2154 = vmatpush1.msra.mxu0 %v2100
        %2155 = vmatprep.subr.mxu0 0.0
        %2156 = vmatpush1.msra.mxu0 %v2098
        %2157 = vmatprep.subr.mxu0 0.0
        %2158 = vmatpush1.msra.mxu0 %v2096
        %2159 = vmatprep.subr.mxu0 0.0
        %2160 = vmatpush1.msra.mxu0 %v2094
        %2161 = vmatprep.subr.mxu0 0.0
        %2162 = vmatpush1.msra.mxu0 %v2092
        %2163 = vmatprep.subr.mxu0 0.0
        %2164 = vmatpush1.msra.mxu0 %v2090
        %2165 = vmatprep.subr.mxu0 0.0
        %2166 = vmatpush1.msra.mxu0 %v2088
        %2167 = vmatprep.subr.mxu0 0.0
        %2168 = vmatpush2.msra.mxu0 0.0
        %2169 = vmatprep.subr.mxu0 0.0
        %2170 = vmatpush2.msra.mxu0 0.0
        %2171 = vmatprep.subr.mxu0 0.0
        %2172 = vmatpush2.msra.mxu0 0.0
        %2173 = vmatprep.subr.mxu0 0.0
        %2174 = vmatpush2.msra.mxu0 0.0
        %2175 = vmatprep.subr.mxu0 0.0
        %2176 = vmatpush2.msra.mxu0 0.0
        %2177 = vmatprep.subr.mxu0 0.0
        %2178 = vmatpush2.msra.mxu0 0.0
        %2179 = vmatprep.subr.mxu0 0.0
        %2180 = vmatpush2.msra.mxu0 0.0
        %2181 = vmatprep.subr.mxu0 0.0
        %2182 = vmatpush2.msra.mxu0 0.0
        %2183 = vmatprep.subr.mxu0 0.0
        %2184 = vmatpush2.msra.mxu0 0.0
        %2185 = vmatprep.subr.mxu0 0.0
        %2186 = vmatpush2.msra.mxu0 0.0
        %2187 = vmatprep.subr.mxu0 0.0
        %2188 = vmatpush2.msra.mxu0 0.0
        %2189 = vmatprep.subr.mxu0 0.0
        %2190 = vmatpush2.msra.mxu0 0.0
        %2191 = vmatprep.subr.mxu0 0.0
        %2192 = vmatpush2.msra.mxu0 0.0
        %2193 = vmatprep.subr.mxu0 0.0
        %2194 = vmatpush2.msra.mxu0 0.0
        %2195 = vmatprep.subr.mxu0 0.0
        %2196 = vmatpush2.msra.mxu0 0.0
        %2197 = vmatprep.subr.mxu0 0.0
        %2198 = vmatpush2.msra.mxu0 0.0
        %2199 = vmatprep.mubr.f32.mxu0 0.0
        %2200 = vmatmul.mubr.f32.gmra.mxu0 %v2112
        %v2201 = vpop.f32.mrf.mxu0
        %v2202 = vadd.f32 0.0, %v2201
        %v2203 = vpop.f32.mrf.mxu0
        %2204 = vmatprep.mubr.f32.mxu0 0.0
        %2205 = vmatmul.mubr.f32.gmra.mxu0 %v2115
        %v2206 = vpop.f32.mrf.mxu0
        %v2207 = vadd.f32 0.0, %v2206
        %v2208 = vpop.f32.mrf.mxu0
        %2209 = vmatprep.mubr.f32.mxu0 0.0
        %2210 = vmatmul.mubr.f32.gmra.mxu0 %v2118
        %v2211 = vpop.f32.mrf.mxu0
        %v2212 = vadd.f32 0.0, %v2211
        %v2213 = vpop.f32.mrf.mxu0
        %2214 = vmatprep.mubr.f32.mxu0 0.0
        %2215 = vmatmul.mubr.f32.gmra.mxu0 %v2121
        %v2216 = vpop.f32.mrf.mxu0
        %v2217 = vadd.f32 0.0, %v2216
        %v2218 = vpop.f32.mrf.mxu0
        %2219 = vmatprep.mubr.f32.mxu0 0.0
        %2220 = vmatmul.mubr.f32.gmra.mxu0 %v2124
        %v2221 = vpop.f32.mrf.mxu0
        %v2222 = vadd.f32 0.0, %v2221
        %v2223 = vpop.f32.mrf.mxu0
        %2224 = vmatprep.mubr.f32.mxu0 0.0
        %2225 = vmatmul.mubr.f32.gmra.mxu0 %v2127
        %v2226 = vpop.f32.mrf.mxu0
        %v2227 = vadd.f32 0.0, %v2226
        %v2228 = vpop.f32.mrf.mxu0
        %2229 = vmatprep.mubr.f32.mxu0 0.0
        %2230 = vmatmul.mubr.f32.gmra.mxu0 %v2130
        %v2231 = vpop.f32.mrf.mxu0
        %v2232 = vadd.f32 0.0, %v2231
        %v2233 = vpop.f32.mrf.mxu0
        %2234 = vmatprep.mubr.f32.mxu0 0.0
        %2235 = vmatmul.mubr.f32.gmra.mxu0 %v2133
        %v2236 = vpop.f32.mrf.mxu0
        %v2237 = vadd.f32 0.0, %v2236
        %v2238 = vpop.f32.mrf.mxu0
        %2239 = vdwg.mxu0
        %v2241 = vsel %vm782, %v2202, 0
        %v2244 = vsel %vm782, %v2207, 0
        %v2247 = vsel %vm782, %v2212, 0
        %v2250 = vsel %vm782, %v2217, 0
        %v2253 = vsel %vm782, %v2222, 0
        %v2256 = vsel %vm782, %v2227, 0
        %v2259 = vsel %vm782, %v2232, 0
        %v2262 = vsel %vm782, %v2237, 0
        %2264 = vmatprep.subr.mxu0 0.0
        %2265 = vmatpush1.msra.mxu0 0.0
        %2266 = vmatprep.subr.mxu0 0.0
        %2267 = vmatpush1.msra.mxu0 0.0
        %2268 = vmatprep.subr.mxu0 0.0
        %2269 = vmatpush1.msra.mxu0 0.0
        %2270 = vmatprep.subr.mxu0 0.0
        %2271 = vmatpush1.msra.mxu0 0.0
        %2272 = vmatprep.subr.mxu0 0.0
        %2273 = vmatpush1.msra.mxu0 0.0
        %2274 = vmatprep.subr.mxu0 0.0
        %2275 = vmatpush1.msra.mxu0 0.0
        %2276 = vmatprep.subr.mxu0 0.0
        %2277 = vmatpush1.msra.mxu0 0.0
        %2278 = vmatprep.subr.mxu0 0.0
        %2279 = vmatpush1.msra.mxu0 0.0
        %2280 = vmatprep.subr.mxu0 0.0
        %2281 = vmatpush1.msra.mxu0 0.0
        %2282 = vmatprep.subr.mxu0 0.0
        %2283 = vmatpush1.msra.mxu0 0.0
        %2284 = vmatprep.subr.mxu0 0.0
        %2285 = vmatpush1.msra.mxu0 0.0
        %2286 = vmatprep.subr.mxu0 0.0
        %2287 = vmatpush1.msra.mxu0 0.0
        %2288 = vmatprep.subr.mxu0 0.0
        %2289 = vmatpush1.msra.mxu0 %v777
        %2290 = vmatprep.subr.mxu0 0.0
        %2291 = vmatpush1.msra.mxu0 %v776
        %2292 = vmatprep.subr.mxu0 0.0
        %2293 = vmatpush1.msra.mxu0 %v775
        %2294 = vmatprep.subr.mxu0 0.0
        %2295 = vmatpush1.msra.mxu0 %v774
        %2296 = vmatprep.subr.mxu0 0.0
        %2297 = vmatpush2.msra.mxu0 0.0
        %2298 = vmatprep.subr.mxu0 0.0
        %2299 = vmatpush2.msra.mxu0 0.0
        %2300 = vmatprep.subr.mxu0 0.0
        %2301 = vmatpush2.msra.mxu0 0.0
        %2302 = vmatprep.subr.mxu0 0.0
        %2303 = vmatpush2.msra.mxu0 0.0
        %2304 = vmatprep.subr.mxu0 0.0
        %2305 = vmatpush2.msra.mxu0 0.0
        %2306 = vmatprep.subr.mxu0 0.0
        %2307 = vmatpush2.msra.mxu0 0.0
        %2308 = vmatprep.subr.mxu0 0.0
        %2309 = vmatpush2.msra.mxu0 0.0
        %2310 = vmatprep.subr.mxu0 0.0
        %2311 = vmatpush2.msra.mxu0 0.0
        %2312 = vmatprep.subr.mxu0 0.0
        %2313 = vmatpush2.msra.mxu0 0.0
        %2314 = vmatprep.subr.mxu0 0.0
        %2315 = vmatpush2.msra.mxu0 0.0
        %2316 = vmatprep.subr.mxu0 0.0
        %2317 = vmatpush2.msra.mxu0 0.0
        %2318 = vmatprep.subr.mxu0 0.0
        %2319 = vmatpush2.msra.mxu0 0.0
        %2320 = vmatprep.subr.mxu0 0.0
        %2321 = vmatpush2.msra.mxu0 0.0
        %2322 = vmatprep.subr.mxu0 0.0
        %2323 = vmatpush2.msra.mxu0 0.0
        %2324 = vmatprep.subr.mxu0 0.0
        %2325 = vmatpush2.msra.mxu0 0.0
        %2326 = vmatprep.subr.mxu0 0.0
        %2327 = vmatpush2.msra.mxu0 0.0
        %2328 = vmatprep.mubr.f32.mxu0 0.0
        %2329 = vmatmul.mubr.f32.gmra.mxu0 %v2241
        %v2330 = vpop.f32.mrf.mxu0
        %v2331 = vadd.f32 0.0, %v2330
        %v2332 = vpop.f32.mrf.mxu0
        %2333 = vmatprep.mubr.f32.mxu0 0.0
        %2334 = vmatmul.mubr.f32.gmra.mxu0 %v2244
        %v2335 = vpop.f32.mrf.mxu0
        %v2336 = vadd.f32 0.0, %v2335
        %v2337 = vpop.f32.mrf.mxu0
        %2338 = vmatprep.mubr.f32.mxu0 0.0
        %2339 = vmatmul.mubr.f32.gmra.mxu0 %v2247
        %v2340 = vpop.f32.mrf.mxu0
        %v2341 = vadd.f32 0.0, %v2340
        %v2342 = vpop.f32.mrf.mxu0
        %2343 = vmatprep.mubr.f32.mxu0 0.0
        %2344 = vmatmul.mubr.f32.gmra.mxu0 %v2250
        %v2345 = vpop.f32.mrf.mxu0
        %v2346 = vadd.f32 0.0, %v2345
        %v2347 = vpop.f32.mrf.mxu0
        %2348 = vmatprep.mubr.f32.mxu0 0.0
        %2349 = vmatmul.mubr.f32.gmra.mxu0 %v2253
        %v2350 = vpop.f32.mrf.mxu0
        %v2351 = vadd.f32 0.0, %v2350
        %v2352 = vpop.f32.mrf.mxu0
        %2353 = vmatprep.mubr.f32.mxu0 0.0
        %2354 = vmatmul.mubr.f32.gmra.mxu0 %v2256
        %v2355 = vpop.f32.mrf.mxu0
        %v2356 = vadd.f32 0.0, %v2355
        %v2357 = vpop.f32.mrf.mxu0
        %2358 = vmatprep.mubr.f32.mxu0 0.0
        %2359 = vmatmul.mubr.f32.gmra.mxu0 %v2259
        %v2360 = vpop.f32.mrf.mxu0
        %v2361 = vadd.f32 0.0, %v2360
        %v2362 = vpop.f32.mrf.mxu0
        %2363 = vmatprep.mubr.f32.mxu0 0.0
        %2364 = vmatmul.mubr.f32.gmra.mxu0 %v2262
        %v2365 = vpop.f32.mrf.mxu0
        %v2366 = vadd.f32 0.0, %v2365
        %v2367 = vpop.f32.mrf.mxu0
        %2368 = vdwg.mxu0
        %v2369 = vadd.f32 %v1792, %v2331
        %v2370 = vadd.f32 %v1797, %v2336
        %v2371 = vadd.f32 %v1802, %v2341
        %v2372 = vadd.f32 %v1807, %v2346
        %v2373 = vadd.f32 %v1812, %v2351
        %v2374 = vadd.f32 %v1817, %v2356
        %v2375 = vadd.f32 %v1822, %v2361
        %v2376 = vadd.f32 %v1827, %v2366
        %2377 = vrot.lane.b32.xlu0 %v758, 32
        %v2378 = vpop.permute.xlu0 %2377
        %2379 = vrot.lane.b32.xlu0 %v759, 32
        %v2380 = vpop.permute.xlu0 %2379
        %2381 = vrot.lane.b32.xlu0 %v760, 32
        %v2382 = vpop.permute.xlu0 %2381
        %2383 = vrot.lane.b32.xlu0 %v761, 32
        %v2384 = vpop.permute.xlu0 %2383
        %2385 = vrot.lane.b32.xlu0 %v762, 32
        %v2386 = vpop.permute.xlu0 %2385
        %2387 = vrot.lane.b32.xlu0 %v763, 32
        %v2388 = vpop.permute.xlu0 %2387
        %2389 = vrot.lane.b32.xlu0 %v764, 32
        %v2390 = vpop.permute.xlu0 %2389
        %2391 = vrot.lane.b32.xlu0 %v765, 32
        %v2392 = vpop.permute.xlu0 %2391
        %2393 = vrot.lane.b32.xlu0 %v609, 32
        %v2394 = vpop.permute.xlu0 %2393
        %2395 = vrot.lane.b32.xlu0 %v615, 32
        %v2396 = vpop.permute.xlu0 %2395
        %2397 = vrot.lane.b32.xlu0 %v621, 32
        %v2398 = vpop.permute.xlu0 %2397
        %2399 = vrot.lane.b32.xlu0 %v627, 32
        %v2400 = vpop.permute.xlu0 %2399
        %2401 = vrot.lane.b32.xlu0 %v633, 32
        %v2402 = vpop.permute.xlu0 %2401
        %2403 = vrot.lane.b32.xlu0 %v639, 32
        %v2404 = vpop.permute.xlu0 %2403
        %2405 = vrot.lane.b32.xlu0 %v645, 32
        %v2406 = vpop.permute.xlu0 %2405
        %2407 = vrot.lane.b32.xlu0 %v651, 32
        %v2408 = vpop.permute.xlu0 %2407
        %v2409 = vsel %vm782, %v2378, 0
        %v2411 = vsel %vm782, %v2380, 0
        %v2413 = vsel %vm782, %v2382, 0
        %v2415 = vsel %vm782, %v2384, 0
        %v2417 = vsel %vm782, %v2386, 0
        %v2419 = vsel %vm782, %v2388, 0
        %v2421 = vsel %vm782, %v2390, 0
        %v2423 = vsel %vm782, %v2392, 0
        %v2425 = vsel %vm782, %v2394, 0
        %v2427 = vsel %vm782, %v2396, 0
        %v2429 = vsel %vm782, %v2398, 0
        %v2431 = vsel %vm782, %v2400, 0
        %v2433 = vsel %vm782, %v2402, 0
        %v2435 = vsel %vm782, %v2404, 0
        %v2437 = vsel %vm782, %v2406, 0
        %v2439 = vsel %vm782, %v2408, 0
        %2441 = vmatprep.subr.mxu0 0.0
        %2442 = vmatpush1.xpose.msra.mxu0 0.0
        %2443 = vmatprep.subr.mxu0 0.0
        %2444 = vmatpush1.xpose.msra.mxu0 0.0
        %2445 = vmatprep.subr.mxu0 0.0
        %2446 = vmatpush1.xpose.msra.mxu0 0.0
        %2447 = vmatprep.subr.mxu0 0.0
        %2448 = vmatpush1.xpose.msra.mxu0 0.0
        %2449 = vmatprep.subr.mxu0 0.0
        %2450 = vmatpush1.xpose.msra.mxu0 0.0
        %2451 = vmatprep.subr.mxu0 0.0
        %2452 = vmatpush1.xpose.msra.mxu0 0.0
        %2453 = vmatprep.subr.mxu0 0.0
        %2454 = vmatpush1.xpose.msra.mxu0 0.0
        %2455 = vmatprep.subr.mxu0 0.0
        %2456 = vmatpush1.xpose.msra.mxu0 0.0
        %2457 = vmatprep.subr.mxu0 0.0
        %2458 = vmatpush1.xpose.msra.mxu0 %v2439
        %2459 = vmatprep.subr.mxu0 0.0
        %2460 = vmatpush1.xpose.msra.mxu0 %v2437
        %2461 = vmatprep.subr.mxu0 0.0
        %2462 = vmatpush1.xpose.msra.mxu0 %v2435
        %2463 = vmatprep.subr.mxu0 0.0
        %2464 = vmatpush1.xpose.msra.mxu0 %v2433
        %2465 = vmatprep.subr.mxu0 0.0
        %2466 = vmatpush1.xpose.msra.mxu0 %v2431
        %2467 = vmatprep.subr.mxu0 0.0
        %2468 = vmatpush1.xpose.msra.mxu0 %v2429
        %2469 = vmatprep.subr.mxu0 0.0
        %2470 = vmatpush1.xpose.msra.mxu0 %v2427
        %2471 = vmatprep.subr.mxu0 0.0
        %2472 = vmatpush1.xpose.msra.mxu0 %v2425
        %2473 = vmatprep.subr.mxu0 0.0
        %2474 = vmatpush2.xpose.msra.mxu0 0.0
        %2475 = vmatprep.subr.mxu0 0.0
        %2476 = vmatpush2.xpose.msra.mxu0 0.0
        %2477 = vmatprep.subr.mxu0 0.0
        %2478 = vmatpush2.xpose.msra.mxu0 0.0
        %2479 = vmatprep.subr.mxu0 0.0
        %2480 = vmatpush2.xpose.msra.mxu0 0.0
        %2481 = vmatprep.subr.mxu0 0.0
        %2482 = vmatpush2.xpose.msra.mxu0 0.0
        %2483 = vmatprep.subr.mxu0 0.0
        %2484 = vmatpush2.xpose.msra.mxu0 0.0
        %2485 = vmatprep.subr.mxu0 0.0
        %2486 = vmatpush2.xpose.msra.mxu0 0.0
        %2487 = vmatprep.subr.mxu0 0.0
        %2488 = vmatpush2.xpose.msra.mxu0 0.0
        %2489 = vmatprep.subr.mxu0 0.0
        %2490 = vmatpush2.xpose.msra.mxu0 0.0
        %2491 = vmatprep.subr.mxu0 0.0
        %2492 = vmatpush2.xpose.msra.mxu0 0.0
        %2493 = vmatprep.subr.mxu0 0.0
        %2494 = vmatpush2.xpose.msra.mxu0 0.0
        %2495 = vmatprep.subr.mxu0 0.0
        %2496 = vmatpush2.xpose.msra.mxu0 0.0
        %2497 = vmatprep.subr.mxu0 0.0
        %2498 = vmatpush2.xpose.msra.mxu0 0.0
        %2499 = vmatprep.subr.mxu0 0.0
        %2500 = vmatpush2.xpose.msra.mxu0 0.0
        %2501 = vmatprep.subr.mxu0 0.0
        %2502 = vmatpush2.xpose.msra.mxu0 0.0
        %2503 = vmatprep.subr.mxu0 0.0
        %2504 = vmatpush2.xpose.msra.mxu0 0.0
        %2505 = vmatprep.mubr.f32.mxu0 0.0
        %2506 = vmatmul.mubr.f32.gmra.mxu0 %v2409
        %v2507 = vpop.f32.mrf.mxu0
        %v2508 = vadd.f32 0.0, %v2507
        %v2509 = vpop.f32.mrf.mxu0
        %2510 = vmatprep.mubr.f32.mxu0 0.0
        %2511 = vmatmul.mubr.f32.gmra.mxu0 %v2411
        %v2512 = vpop.f32.mrf.mxu0
        %v2513 = vadd.f32 0.0, %v2512
        %v2514 = vpop.f32.mrf.mxu0
        %2515 = vmatprep.mubr.f32.mxu0 0.0
        %2516 = vmatmul.mubr.f32.gmra.mxu0 %v2413
        %v2517 = vpop.f32.mrf.mxu0
        %v2518 = vadd.f32 0.0, %v2517
        %v2519 = vpop.f32.mrf.mxu0
        %2520 = vmatprep.mubr.f32.mxu0 0.0
        %2521 = vmatmul.mubr.f32.gmra.mxu0 %v2415
        %v2522 = vpop.f32.mrf.mxu0
        %v2523 = vadd.f32 0.0, %v2522
        %v2524 = vpop.f32.mrf.mxu0
        %2525 = vmatprep.mubr.f32.mxu0 0.0
        %2526 = vmatmul.mubr.f32.gmra.mxu0 %v2417
        %v2527 = vpop.f32.mrf.mxu0
        %v2528 = vadd.f32 0.0, %v2527
        %v2529 = vpop.f32.mrf.mxu0
        %2530 = vmatprep.mubr.f32.mxu0 0.0
        %2531 = vmatmul.mubr.f32.gmra.mxu0 %v2419
        %v2532 = vpop.f32.mrf.mxu0
        %v2533 = vadd.f32 0.0, %v2532
        %v2534 = vpop.f32.mrf.mxu0
        %2535 = vmatprep.mubr.f32.mxu0 0.0
        %2536 = vmatmul.mubr.f32.gmra.mxu0 %v2421
        %v2537 = vpop.f32.mrf.mxu0
        %v2538 = vadd.f32 0.0, %v2537
        %v2539 = vpop.f32.mrf.mxu0
        %2540 = vmatprep.mubr.f32.mxu0 0.0
        %2541 = vmatmul.mubr.f32.gmra.mxu0 %v2423
        %v2542 = vpop.f32.mrf.mxu0
        %v2543 = vadd.f32 0.0, %v2542
        %v2544 = vpop.f32.mrf.mxu0
        %2545 = vdwg.mxu0
        %v2546 = vsel %vm936, %v2508, -inf
        %2547 = vmax.xlane.f32.xlu0 %v2546
        %v2548 = vpop.xlane.xlu0 %2547
        %v2549 = vsel %vm936, %v2513, -inf
        %2550 = vmax.xlane.f32.xlu0 %v2549
        %v2551 = vpop.xlane.xlu0 %2550
        %v2552 = vsel %vm936, %v2518, -inf
        %2553 = vmax.xlane.f32.xlu0 %v2552
        %v2554 = vpop.xlane.xlu0 %2553
        %v2555 = vsel %vm936, %v2523, -inf
        %2556 = vmax.xlane.f32.xlu0 %v2555
        %v2557 = vpop.xlane.xlu0 %2556
        %v2558 = vsel %vm936, %v2528, -inf
        %2559 = vmax.xlane.f32.xlu0 %v2558
        %v2560 = vpop.xlane.xlu0 %2559
        %v2561 = vsel %vm936, %v2533, -inf
        %2562 = vmax.xlane.f32.xlu0 %v2561
        %v2563 = vpop.xlane.xlu0 %2562
        %v2564 = vsel %vm936, %v2538, -inf
        %2565 = vmax.xlane.f32.xlu0 %v2564
        %v2566 = vpop.xlane.xlu0 %2565
        %v2567 = vsel %vm936, %v2543, -inf
        %2568 = vmax.xlane.f32.xlu0 %v2567
        %v2569 = vpop.xlane.xlu0 %2568
        %v2570 = vsub.f32 %v2508, %v2548
        %v2571 = vsub.f32 %v2513, %v2551
        %v2572 = vsub.f32 %v2518, %v2554
        %v2573 = vsub.f32 %v2523, %v2557
        %v2574 = vsub.f32 %v2528, %v2560
        %v2575 = vsub.f32 %v2533, %v2563
        %v2576 = vsub.f32 %v2538, %v2566
        %v2577 = vsub.f32 %v2543, %v2569
        %v2578 = vmul.f32 %v2570, 1.442695
        %v2579 = vpow.pop %v2578
        %v2580 = vmul.f32 %v2571, 1.442695
        %v2581 = vpow.pop %v2580
        %v2582 = vmul.f32 %v2572, 1.442695
        %v2583 = vpow.pop %v2582
        %v2584 = vmul.f32 %v2573, 1.442695
        %v2585 = vpow.pop %v2584
        %v2586 = vmul.f32 %v2574, 1.442695
        %v2587 = vpow.pop %v2586
        %v2588 = vmul.f32 %v2575, 1.442695
        %v2589 = vpow.pop %v2588
        %v2590 = vmul.f32 %v2576, 1.442695
        %v2591 = vpow.pop %v2590
        %v2592 = vmul.f32 %v2577, 1.442695
        %v2593 = vpow.pop %v2592
        %v2594 = vsel %vm936, %v2579, 0.0
        %2595 = vadd.xlane.f32.xlu0 %v2594
        %v2596 = vpop.xlane.xlu0 %2595
        %v2597 = vsel %vm936, %v2581, 0.0
        %2598 = vadd.xlane.f32.xlu0 %v2597
        %v2599 = vpop.xlane.xlu0 %2598
        %v2600 = vsel %vm936, %v2583, 0.0
        %2601 = vadd.xlane.f32.xlu0 %v2600
        %v2602 = vpop.xlane.xlu0 %2601
        %v2603 = vsel %vm936, %v2585, 0.0
        %2604 = vadd.xlane.f32.xlu0 %v2603
        %v2605 = vpop.xlane.xlu0 %2604
        %v2606 = vsel %vm936, %v2587, 0.0
        %2607 = vadd.xlane.f32.xlu0 %v2606
        %v2608 = vpop.xlane.xlu0 %2607
        %v2609 = vsel %vm936, %v2589, 0.0
        %2610 = vadd.xlane.f32.xlu0 %v2609
        %v2611 = vpop.xlane.xlu0 %2610
        %v2612 = vsel %vm936, %v2591, 0.0
        %2613 = vadd.xlane.f32.xlu0 %v2612
        %v2614 = vpop.xlane.xlu0 %2613
        %v2615 = vsel %vm936, %v2593, 0.0
        %2616 = vadd.xlane.f32.xlu0 %v2615
        %v2617 = vpop.xlane.xlu0 %2616
        %v2618 = vrcp.pop %v2596
        %v2619 = vmul.f32 %v2579, %v2618
        %v2620 = vrcp.pop %v2599
        %v2621 = vmul.f32 %v2581, %v2620
        %v2622 = vrcp.pop %v2602
        %v2623 = vmul.f32 %v2583, %v2622
        %v2624 = vrcp.pop %v2605
        %v2625 = vmul.f32 %v2585, %v2624
        %v2626 = vrcp.pop %v2608
        %v2627 = vmul.f32 %v2587, %v2626
        %v2628 = vrcp.pop %v2611
        %v2629 = vmul.f32 %v2589, %v2628
        %v2630 = vrcp.pop %v2614
        %v2631 = vmul.f32 %v2591, %v2630
        %v2632 = vrcp.pop %v2617
        %v2633 = vmul.f32 %v2593, %v2632
        %2634 = vrot.lane.b32.xlu0 %v720, 32
        %v2635 = vpop.permute.xlu0 %2634
        %2636 = vrot.lane.b32.xlu0 %v725, 32
        %v2637 = vpop.permute.xlu0 %2636
        %2638 = vrot.lane.b32.xlu0 %v730, 32
        %v2639 = vpop.permute.xlu0 %2638
        %2640 = vrot.lane.b32.xlu0 %v735, 32
        %v2641 = vpop.permute.xlu0 %2640
        %2642 = vrot.lane.b32.xlu0 %v740, 32
        %v2643 = vpop.permute.xlu0 %2642
        %2644 = vrot.lane.b32.xlu0 %v745, 32
        %v2645 = vpop.permute.xlu0 %2644
        %2646 = vrot.lane.b32.xlu0 %v750, 32
        %v2647 = vpop.permute.xlu0 %2646
        %2648 = vrot.lane.b32.xlu0 %v755, 32
        %v2649 = vpop.permute.xlu0 %2648
        %v2659 = vsel %vm936, %v2619, 0
        %v2662 = vsel %vm936, %v2621, 0
        %v2665 = vsel %vm936, %v2623, 0
        %v2668 = vsel %vm936, %v2625, 0
        %v2671 = vsel %vm936, %v2627, 0
        %v2674 = vsel %vm936, %v2629, 0
        %v2677 = vsel %vm936, %v2631, 0
        %v2680 = vsel %vm936, %v2633, 0
        %2682 = vmatprep.subr.mxu0 0.0
        %2683 = vmatpush1.msra.mxu0 0.0
        %2684 = vmatprep.subr.mxu0 0.0
        %2685 = vmatpush1.msra.mxu0 0.0
        %2686 = vmatprep.subr.mxu0 0.0
        %2687 = vmatpush1.msra.mxu0 0.0
        %2688 = vmatprep.subr.mxu0 0.0
        %2689 = vmatpush1.msra.mxu0 0.0
        %2690 = vmatprep.subr.mxu0 0.0
        %2691 = vmatpush1.msra.mxu0 0.0
        %2692 = vmatprep.subr.mxu0 0.0
        %2693 = vmatpush1.msra.mxu0 0.0
        %2694 = vmatprep.subr.mxu0 0.0
        %2695 = vmatpush1.msra.mxu0 0.0
        %2696 = vmatprep.subr.mxu0 0.0
        %2697 = vmatpush1.msra.mxu0 0.0
        %2698 = vmatprep.subr.mxu0 0.0
        %2699 = vmatpush1.msra.mxu0 %v2649
        %2700 = vmatprep.subr.mxu0 0.0
        %2701 = vmatpush1.msra.mxu0 %v2647
        %2702 = vmatprep.subr.mxu0 0.0
        %2703 = vmatpush1.msra.mxu0 %v2645
        %2704 = vmatprep.subr.mxu0 0.0
        %2705 = vmatpush1.msra.mxu0 %v2643
        %2706 = vmatprep.subr.mxu0 0.0
        %2707 = vmatpush1.msra.mxu0 %v2641
        %2708 = vmatprep.subr.mxu0 0.0
        %2709 = vmatpush1.msra.mxu0 %v2639
        %2710 = vmatprep.subr.mxu0 0.0
        %2711 = vmatpush1.msra.mxu0 %v2637
        %2712 = vmatprep.subr.mxu0 0.0
        %2713 = vmatpush1.msra.mxu0 %v2635
        %2714 = vmatprep.subr.mxu0 0.0
        %2715 = vmatpush2.msra.mxu0 0.0
        %2716 = vmatprep.subr.mxu0 0.0
        %2717 = vmatpush2.msra.mxu0 0.0
        %2718 = vmatprep.subr.mxu0 0.0
        %2719 = vmatpush2.msra.mxu0 0.0
        %2720 = vmatprep.subr.mxu0 0.0
        %2721 = vmatpush2.msra.mxu0 0.0
        %2722 = vmatprep.subr.mxu0 0.0
        %2723 = vmatpush2.msra.mxu0 0.0
        %2724 = vmatprep.subr.mxu0 0.0
        %2725 = vmatpush2.msra.mxu0 0.0
        %2726 = vmatprep.subr.mxu0 0.0
        %2727 = vmatpush2.msra.mxu0 0.0
        %2728 = vmatprep.subr.mxu0 0.0
        %2729 = vmatpush2.msra.mxu0 0.0
        %2730 = vmatprep.subr.mxu0 0.0
        %2731 = vmatpush2.msra.mxu0 0.0
        %2732 = vmatprep.subr.mxu0 0.0
        %2733 = vmatpush2.msra.mxu0 0.0
        %2734 = vmatprep.subr.mxu0 0.0
        %2735 = vmatpush2.msra.mxu0 0.0
        %2736 = vmatprep.subr.mxu0 0.0
        %2737 = vmatpush2.msra.mxu0 0.0
        %2738 = vmatprep.subr.mxu0 0.0
        %2739 = vmatpush2.msra.mxu0 0.0
        %2740 = vmatprep.subr.mxu0 0.0
        %2741 = vmatpush2.msra.mxu0 0.0
        %2742 = vmatprep.subr.mxu0 0.0
        %2743 = vmatpush2.msra.mxu0 0.0
        %2744 = vmatprep.subr.mxu0 0.0
        %2745 = vmatpush2.msra.mxu0 0.0
        %2746 = vmatprep.mubr.f32.mxu0 0.0
        %2747 = vmatmul.mubr.f32.gmra.mxu0 %v2659
        %v2748 = vpop.f32.mrf.mxu0
        %v2749 = vadd.f32 0.0, %v2748
        %v2750 = vpop.f32.mrf.mxu0
        %2751 = vmatprep.mubr.f32.mxu0 0.0
        %2752 = vmatmul.mubr.f32.gmra.mxu0 %v2662
        %v2753 = vpop.f32.mrf.mxu0
        %v2754 = vadd.f32 0.0, %v2753
        %v2755 = vpop.f32.mrf.mxu0
        %2756 = vmatprep.mubr.f32.mxu0 0.0
        %2757 = vmatmul.mubr.f32.gmra.mxu0 %v2665
        %v2758 = vpop.f32.mrf.mxu0
        %v2759 = vadd.f32 0.0, %v2758
        %v2760 = vpop.f32.mrf.mxu0
        %2761 = vmatprep.mubr.f32.mxu0 0.0
        %2762 = vmatmul.mubr.f32.gmra.mxu0 %v2668
        %v2763 = vpop.f32.mrf.mxu0
        %v2764 = vadd.f32 0.0, %v2763
        %v2765 = vpop.f32.mrf.mxu0
        %2766 = vmatprep.mubr.f32.mxu0 0.0
        %2767 = vmatmul.mubr.f32.gmra.mxu0 %v2671
        %v2768 = vpop.f32.mrf.mxu0
        %v2769 = vadd.f32 0.0, %v2768
        %v2770 = vpop.f32.mrf.mxu0
        %2771 = vmatprep.mubr.f32.mxu0 0.0
        %2772 = vmatmul.mubr.f32.gmra.mxu0 %v2674
        %v2773 = vpop.f32.mrf.mxu0
        %v2774 = vadd.f32 0.0, %v2773
        %v2775 = vpop.f32.mrf.mxu0
        %2776 = vmatprep.mubr.f32.mxu0 0.0
        %2777 = vmatmul.mubr.f32.gmra.mxu0 %v2677
        %v2778 = vpop.f32.mrf.mxu0
        %v2779 = vadd.f32 0.0, %v2778
        %v2780 = vpop.f32.mrf.mxu0
        %2781 = vmatprep.mubr.f32.mxu0 0.0
        %2782 = vmatmul.mubr.f32.gmra.mxu0 %v2680
        %v2783 = vpop.f32.mrf.mxu0
        %v2784 = vadd.f32 0.0, %v2783
        %v2785 = vpop.f32.mrf.mxu0
        %2786 = vdwg.mxu0
        %v2788 = vsel %vm782, %v2749, 0
        %v2791 = vsel %vm782, %v2754, 0
        %v2794 = vsel %vm782, %v2759, 0
        %v2797 = vsel %vm782, %v2764, 0
        %v2800 = vsel %vm782, %v2769, 0
        %v2803 = vsel %vm782, %v2774, 0
        %v2806 = vsel %vm782, %v2779, 0
        %v2809 = vsel %vm782, %v2784, 0
        %2811 = vmatprep.subr.mxu0 0.0
        %2812 = vmatpush1.msra.mxu0 0.0
        %2813 = vmatprep.subr.mxu0 0.0
        %2814 = vmatpush1.msra.mxu0 0.0
        %2815 = vmatprep.subr.mxu0 0.0
        %2816 = vmatpush1.msra.mxu0 0.0
        %2817 = vmatprep.subr.mxu0 0.0
        %2818 = vmatpush1.msra.mxu0 0.0
        %2819 = vmatprep.subr.mxu0 0.0
        %2820 = vmatpush1.msra.mxu0 0.0
        %2821 = vmatprep.subr.mxu0 0.0
        %2822 = vmatpush1.msra.mxu0 0.0
        %2823 = vmatprep.subr.mxu0 0.0
        %2824 = vmatpush1.msra.mxu0 0.0
        %2825 = vmatprep.subr.mxu0 0.0
        %2826 = vmatpush1.msra.mxu0 0.0
        %2827 = vmatprep.subr.mxu0 0.0
        %2828 = vmatpush1.msra.mxu0 0.0
        %2829 = vmatprep.subr.mxu0 0.0
        %2830 = vmatpush1.msra.mxu0 0.0
        %2831 = vmatprep.subr.mxu0 0.0
        %2832 = vmatpush1.msra.mxu0 0.0
        %2833 = vmatprep.subr.mxu0 0.0
        %2834 = vmatpush1.msra.mxu0 0.0
        %2835 = vmatprep.subr.mxu0 0.0
        %2836 = vmatpush1.msra.mxu0 %v781
        %2837 = vmatprep.subr.mxu0 0.0
        %2838 = vmatpush1.msra.mxu0 %v780
        %2839 = vmatprep.subr.mxu0 0.0
        %2840 = vmatpush1.msra.mxu0 %v779
        %2841 = vmatprep.subr.mxu0 0.0
        %2842 = vmatpush1.msra.mxu0 %v778
        %2843 = vmatprep.subr.mxu0 0.0
        %2844 = vmatpush2.msra.mxu0 0.0
        %2845 = vmatprep.subr.mxu0 0.0
        %2846 = vmatpush2.msra.mxu0 0.0
        %2847 = vmatprep.subr.mxu0 0.0
        %2848 = vmatpush2.msra.mxu0 0.0
        %2849 = vmatprep.subr.mxu0 0.0
        %2850 = vmatpush2.msra.mxu0 0.0
        %2851 = vmatprep.subr.mxu0 0.0
        %2852 = vmatpush2.msra.mxu0 0.0
        %2853 = vmatprep.subr.mxu0 0.0
        %2854 = vmatpush2.msra.mxu0 0.0
        %2855 = vmatprep.subr.mxu0 0.0
        %2856 = vmatpush2.msra.mxu0 0.0
        %2857 = vmatprep.subr.mxu0 0.0
        %2858 = vmatpush2.msra.mxu0 0.0
        %2859 = vmatprep.subr.mxu0 0.0
        %2860 = vmatpush2.msra.mxu0 0.0
        %2861 = vmatprep.subr.mxu0 0.0
        %2862 = vmatpush2.msra.mxu0 0.0
        %2863 = vmatprep.subr.mxu0 0.0
        %2864 = vmatpush2.msra.mxu0 0.0
        %2865 = vmatprep.subr.mxu0 0.0
        %2866 = vmatpush2.msra.mxu0 0.0
        %2867 = vmatprep.subr.mxu0 0.0
        %2868 = vmatpush2.msra.mxu0 0.0
        %2869 = vmatprep.subr.mxu0 0.0
        %2870 = vmatpush2.msra.mxu0 0.0
        %2871 = vmatprep.subr.mxu0 0.0
        %2872 = vmatpush2.msra.mxu0 0.0
        %2873 = vmatprep.subr.mxu0 0.0
        %2874 = vmatpush2.msra.mxu0 0.0
        %2875 = vmatprep.mubr.f32.mxu0 0.0
        %2876 = vmatmul.mubr.f32.gmra.mxu0 %v2788
        %v2877 = vpop.f32.mrf.mxu0
        %v2878 = vadd.f32 0.0, %v2877
        %v2879 = vpop.f32.mrf.mxu0
        %2880 = vmatprep.mubr.f32.mxu0 0.0
        %2881 = vmatmul.mubr.f32.gmra.mxu0 %v2791
        %v2882 = vpop.f32.mrf.mxu0
        %v2883 = vadd.f32 0.0, %v2882
        %v2884 = vpop.f32.mrf.mxu0
        %2885 = vmatprep.mubr.f32.mxu0 0.0
        %2886 = vmatmul.mubr.f32.gmra.mxu0 %v2794
        %v2887 = vpop.f32.mrf.mxu0
        %v2888 = vadd.f32 0.0, %v2887
        %v2889 = vpop.f32.mrf.mxu0
        %2890 = vmatprep.mubr.f32.mxu0 0.0
        %2891 = vmatmul.mubr.f32.gmra.mxu0 %v2797
        %v2892 = vpop.f32.mrf.mxu0
        %v2893 = vadd.f32 0.0, %v2892
        %v2894 = vpop.f32.mrf.mxu0
        %2895 = vmatprep.mubr.f32.mxu0 0.0
        %2896 = vmatmul.mubr.f32.gmra.mxu0 %v2800
        %v2897 = vpop.f32.mrf.mxu0
        %v2898 = vadd.f32 0.0, %v2897
        %v2899 = vpop.f32.mrf.mxu0
        %2900 = vmatprep.mubr.f32.mxu0 0.0
        %2901 = vmatmul.mubr.f32.gmra.mxu0 %v2803
        %v2902 = vpop.f32.mrf.mxu0
        %v2903 = vadd.f32 0.0, %v2902
        %v2904 = vpop.f32.mrf.mxu0
        %2905 = vmatprep.mubr.f32.mxu0 0.0
        %2906 = vmatmul.mubr.f32.gmra.mxu0 %v2806
        %v2907 = vpop.f32.mrf.mxu0
        %v2908 = vadd.f32 0.0, %v2907
        %v2909 = vpop.f32.mrf.mxu0
        %2910 = vmatprep.mubr.f32.mxu0 0.0
        %2911 = vmatmul.mubr.f32.gmra.mxu0 %v2809
        %v2912 = vpop.f32.mrf.mxu0
        %v2913 = vadd.f32 0.0, %v2912
        %v2914 = vpop.f32.mrf.mxu0
        %2915 = vdwg.mxu0
        %v2916 = vadd.f32 %v2369, %v2878
        %v2917 = vadd.f32 %v2370, %v2883
        %v2918 = vadd.f32 %v2371, %v2888
        %v2919 = vadd.f32 %v2372, %v2893
        %v2920 = vadd.f32 %v2373, %v2898
        %v2921 = vadd.f32 %v2374, %v2903
        %v2922 = vadd.f32 %v2375, %v2908
        %v2923 = vadd.f32 %v2376, %v2913
        %v2924 = vld [vmem:[%s4] sm:$0x1]
        %v2926 = vlaneseq
        %v2927 = vshrl.u32 %v2926, 7
        %v2928 = vsub.s32 0, %v2927
        %v2929 = vrot.slane %v2924, %v2928
        %v2931 = vadd.f32 %v2916, %v2929
        %v2932 = vadd.f32 %v2917, %v2929
        %v2933 = vadd.f32 %v2918, %v2929
        %v2934 = vadd.f32 %v2919, %v2929
        %v2935 = vadd.f32 %v2920, %v2929
        %v2936 = vadd.f32 %v2921, %v2929
        %v2937 = vadd.f32 %v2922, %v2929
        %v2938 = vadd.f32 %v2923, %v2929
        %v2939 = vadd.f32 %v467, %v2931
        %v2940 = vadd.f32 %v468, %v2932
        %v2941 = vadd.f32 %v469, %v2933
        %v2942 = vadd.f32 %v470, %v2934
        %v2943 = vadd.f32 %v471, %v2935
        %v2944 = vadd.f32 %v472, %v2936
        %v2945 = vadd.f32 %v473, %v2937
        %v2946 = vadd.f32 %v474, %v2938
        %v2947 = vld [vmem:[%s5] sm:$0x1]
        %v2948 = vld [vmem:[%s6] sm:$0x1]
        %2949 = vadd.xlane.f32.xlu0 %v2939
        %v2950 = vpop.xlane.xlu0 %2949
        %2951 = vadd.xlane.f32.xlu0 %v2940
        %v2952 = vpop.xlane.xlu0 %2951
        %2953 = vadd.xlane.f32.xlu0 %v2941
        %v2954 = vpop.xlane.xlu0 %2953
        %2955 = vadd.xlane.f32.xlu0 %v2942
        %v2956 = vpop.xlane.xlu0 %2955
        %2957 = vadd.xlane.f32.xlu0 %v2943
        %v2958 = vpop.xlane.xlu0 %2957
        %2959 = vadd.xlane.f32.xlu0 %v2944
        %v2960 = vpop.xlane.xlu0 %2959
        %2961 = vadd.xlane.f32.xlu0 %v2945
        %v2962 = vpop.xlane.xlu0 %2961
        %2963 = vadd.xlane.f32.xlu0 %v2946
        %v2964 = vpop.xlane.xlu0 %2963
        %v2965 = vrcp.pop 128.0
        %v2966 = vmul.f32 %v2950, %v2965
        %v2967 = vmul.f32 %v2952, %v2965
        %v2968 = vmul.f32 %v2954, %v2965
        %v2969 = vmul.f32 %v2956, %v2965
        %v2970 = vmul.f32 %v2958, %v2965
        %v2971 = vmul.f32 %v2960, %v2965
        %v2972 = vmul.f32 %v2962, %v2965
        %v2973 = vmul.f32 %v2964, %v2965
        %v2974 = vsub.f32 %v2939, %v2966
        %v2975 = vsub.f32 %v2940, %v2967
        %v2976 = vsub.f32 %v2941, %v2968
        %v2977 = vsub.f32 %v2942, %v2969
        %v2978 = vsub.f32 %v2943, %v2970
        %v2979 = vsub.f32 %v2944, %v2971
        %v2980 = vsub.f32 %v2945, %v2972
        %v2981 = vsub.f32 %v2946, %v2973
        %v2982 = vmul.f32 %v2974, %v2974
        %v2983 = vmul.f32 %v2975, %v2975
        %v2984 = vmul.f32 %v2976, %v2976
        %v2985 = vmul.f32 %v2977, %v2977
        %v2986 = vmul.f32 %v2978, %v2978
        %v2987 = vmul.f32 %v2979, %v2979
        %v2988 = vmul.f32 %v2980, %v2980
        %v2989 = vmul.f32 %v2981, %v2981
        %2990 = vadd.xlane.f32.xlu0 %v2982
        %v2991 = vpop.xlane.xlu0 %2990
        %2992 = vadd.xlane.f32.xlu0 %v2983
        %v2993 = vpop.xlane.xlu0 %2992
        %2994 = vadd.xlane.f32.xlu0 %v2984
        %v2995 = vpop.xlane.xlu0 %2994
        %2996 = vadd.xlane.f32.xlu0 %v2985
        %v2997 = vpop.xlane.xlu0 %2996
        %2998 = vadd.xlane.f32.xlu0 %v2986
        %v2999 = vpop.xlane.xlu0 %2998
        %3000 = vadd.xlane.f32.xlu0 %v2987
        %v3001 = vpop.xlane.xlu0 %3000
        %3002 = vadd.xlane.f32.xlu0 %v2988
        %v3003 = vpop.xlane.xlu0 %3002
        %3004 = vadd.xlane.f32.xlu0 %v2989
        %v3005 = vpop.xlane.xlu0 %3004
        %v3006 = vmul.f32 %v2991, %v2965
        %v3007 = vmul.f32 %v2993, %v2965
        %v3008 = vmul.f32 %v2995, %v2965
        %v3009 = vmul.f32 %v2997, %v2965
        %v3010 = vmul.f32 %v2999, %v2965
        %v3011 = vmul.f32 %v3001, %v2965
        %v3012 = vmul.f32 %v3003, %v2965
        %v3013 = vmul.f32 %v3005, %v2965
        %v3014 = vadd.f32 %v3006, 1e-05
        %v3015 = vadd.f32 %v3007, 1e-05
        %v3016 = vadd.f32 %v3008, 1e-05
        %v3017 = vadd.f32 %v3009, 1e-05
        %v3018 = vadd.f32 %v3010, 1e-05
        %v3019 = vadd.f32 %v3011, 1e-05
        %v3020 = vadd.f32 %v3012, 1e-05
        %v3021 = vadd.f32 %v3013, 1e-05
        %v3022 = vrsqrt.pop %v3014
        %v3023 = vrsqrt.pop %v3015
        %v3024 = vrsqrt.pop %v3016
        %v3025 = vrsqrt.pop %v3017
        %v3026 = vrsqrt.pop %v3018
        %v3027 = vrsqrt.pop %v3019
        %v3028 = vrsqrt.pop %v3020
        %v3029 = vrsqrt.pop %v3021
        %v3030 = vmul.f32 %v2974, %v3022
        %v3031 = vmul.f32 %v2975, %v3023
        %v3032 = vmul.f32 %v2976, %v3024
        %v3033 = vmul.f32 %v2977, %v3025
        %v3034 = vmul.f32 %v2978, %v3026
        %v3035 = vmul.f32 %v2979, %v3027
        %v3036 = vmul.f32 %v2980, %v3028
        %v3037 = vmul.f32 %v2981, %v3029
        %v3039 = vlaneseq
        %v3040 = vshrl.u32 %v3039, 7
        %v3041 = vsub.s32 0, %v3040
        %v3042 = vrot.slane %v2947, %v3041
        %v3044 = vmul.f32 %v3030, %v3042
        %v3045 = vmul.f32 %v3031, %v3042
        %v3046 = vmul.f32 %v3032, %v3042
        %v3047 = vmul.f32 %v3033, %v3042
        %v3048 = vmul.f32 %v3034, %v3042
        %v3049 = vmul.f32 %v3035, %v3042
        %v3050 = vmul.f32 %v3036, %v3042
        %v3051 = vmul.f32 %v3037, %v3042
        %v3053 = vlaneseq
        %v3054 = vshrl.u32 %v3053, 7
        %v3055 = vsub.s32 0, %v3054
        %v3056 = vrot.slane %v2948, %v3055
        %v3058 = vadd.f32 %v3044, %v3056
        %v3059 = vadd.f32 %v3045, %v3056
        %v3060 = vadd.f32 %v3046, %v3056
        %v3061 = vadd.f32 %v3047, %v3056
        %v3062 = vadd.f32 %v3048, %v3056
        %v3063 = vadd.f32 %v3049, %v3056
        %v3064 = vadd.f32 %v3050, %v3056
        %v3065 = vadd.f32 %v3051, %v3056
        %v3066 = vld [vmem:[%s7] sm:$0xff]
        %v3067 = vld [vmem:[%s7 + $0x8] sm:$0xff]
        %v3068 = vld [vmem:[%s7 + $0x10] sm:$0xff]
        %v3069 = vld [vmem:[%s7 + $0x18] sm:$0xff]
        %v3070 = vld [vmem:[%s7 + $0x20] sm:$0xff]
        %v3071 = vld [vmem:[%s7 + $0x28] sm:$0xff]
        %v3072 = vld [vmem:[%s7 + $0x30] sm:$0xff]
        %v3073 = vld [vmem:[%s7 + $0x38] sm:$0xff]
        %v3074 = vld [vmem:[%s7 + $0x40] sm:$0xff]
        %v3075 = vld [vmem:[%s7 + $0x48] sm:$0xff]
        %v3076 = vld [vmem:[%s7 + $0x50] sm:$0xff]
        %v3077 = vld [vmem:[%s7 + $0x58] sm:$0xff]
        %v3078 = vld [vmem:[%s7 + $0x60] sm:$0xff]
        %v3079 = vld [vmem:[%s7 + $0x68] sm:$0xff]
        %v3080 = vld [vmem:[%s7 + $0x70] sm:$0xff]
        %v3081 = vld [vmem:[%s7 + $0x78] sm:$0xff]
        %v3082 = vld [vmem:[%s7 + $0x80] sm:$0xff]
        %v3083 = vld [vmem:[%s7 + $0x88] sm:$0xff]
        %v3084 = vld [vmem:[%s7 + $0x90] sm:$0xff]
        %v3085 = vld [vmem:[%s7 + $0x98] sm:$0xff]
        %v3086 = vld [vmem:[%s7 + $0xa0] sm:$0xff]
        %v3087 = vld [vmem:[%s7 + $0xa8] sm:$0xff]
        %v3088 = vld [vmem:[%s7 + $0xb0] sm:$0xff]
        %v3089 = vld [vmem:[%s7 + $0xb8] sm:$0xff]
        %v3090 = vld [vmem:[%s7 + $0xc0] sm:$0xff]
        %v3091 = vld [vmem:[%s7 + $0xc8] sm:$0xff]
        %v3092 = vld [vmem:[%s7 + $0xd0] sm:$0xff]
        %v3093 = vld [vmem:[%s7 + $0xd8] sm:$0xff]
        %v3094 = vld [vmem:[%s7 + $0xe0] sm:$0xff]
        %v3095 = vld [vmem:[%s7 + $0xe8] sm:$0xff]
        %v3096 = vld [vmem:[%s7 + $0xf0] sm:$0xff]
        %v3097 = vld [vmem:[%s7 + $0xf8] sm:$0xff]
        %v3098 = vld [vmem:[%s7 + $0x100] sm:$0xff]
        %v3099 = vld [vmem:[%s7 + $0x108] sm:$0xff]
        %v3100 = vld [vmem:[%s7 + $0x110] sm:$0xff]
        %v3101 = vld [vmem:[%s7 + $0x118] sm:$0xff]
        %v3102 = vld [vmem:[%s7 + $0x120] sm:$0xff]
        %v3103 = vld [vmem:[%s7 + $0x128] sm:$0xff]
        %v3104 = vld [vmem:[%s7 + $0x130] sm:$0xff]
        %v3105 = vld [vmem:[%s7 + $0x138] sm:$0xff]
        %v3106 = vld [vmem:[%s7 + $0x140] sm:$0xff]
        %v3107 = vld [vmem:[%s7 + $0x148] sm:$0xff]
        %v3108 = vld [vmem:[%s7 + $0x150] sm:$0xff]
        %v3109 = vld [vmem:[%s7 + $0x158] sm:$0xff]
        %v3110 = vld [vmem:[%s7 + $0x160] sm:$0xff]
        %v3111 = vld [vmem:[%s7 + $0x168] sm:$0xff]
        %v3112 = vld [vmem:[%s7 + $0x170] sm:$0xff]
        %v3113 = vld [vmem:[%s7 + $0x178] sm:$0xff]
        %v3114 = vld [vmem:[%s7 + $0x180] sm:$0xff]
        %v3115 = vld [vmem:[%s7 + $0x188] sm:$0xff]
        %v3116 = vld [vmem:[%s7 + $0x190] sm:$0xff]
        %v3117 = vld [vmem:[%s7 + $0x198] sm:$0xff]
        %v3118 = vld [vmem:[%s7 + $0x1a0] sm:$0xff]
        %v3119 = vld [vmem:[%s7 + $0x1a8] sm:$0xff]
        %v3120 = vld [vmem:[%s7 + $0x1b0] sm:$0xff]
        %v3121 = vld [vmem:[%s7 + $0x1b8] sm:$0xff]
        %v3122 = vld [vmem:[%s7 + $0x1c0] sm:$0xff]
        %v3123 = vld [vmem:[%s7 + $0x1c8] sm:$0xff]
        %v3124 = vld [vmem:[%s7 + $0x1d0] sm:$0xff]
        %v3125 = vld [vmem:[%s7 + $0x1d8] sm:$0xff]
        %v3126 = vld [vmem:[%s7 + $0x1e0] sm:$0xff]
        %v3127 = vld [vmem:[%s7 + $0x1e8] sm:$0xff]
        %v3128 = vld [vmem:[%s7 + $0x1f0] sm:$0xff]
        %v3129 = vld [vmem:[%s7 + $0x1f8] sm:$0xff]
        %v3130 = vld [vmem:[%s7 + $0x200] sm:$0xff]
        %v3131 = vld [vmem:[%s7 + $0x208] sm:$0xff]
        %v3132 = vld [vmem:[%s7 + $0x210] sm:$0xff]
        %v3133 = vld [vmem:[%s7 + $0x218] sm:$0xff]
        %v3134 = vld [vmem:[%s7 + $0x220] sm:$0xff]
        %v3135 = vld [vmem:[%s7 + $0x228] sm:$0xff]
        %v3136 = vld [vmem:[%s7 + $0x230] sm:$0xff]
        %v3137 = vld [vmem:[%s7 + $0x238] sm:$0xff]
        %v3138 = vld [vmem:[%s7 + $0x240] sm:$0xff]
        %v3139 = vld [vmem:[%s7 + $0x248] sm:$0xff]
        %v3140 = vld [vmem:[%s7 + $0x250] sm:$0xff]
        %v3141 = vld [vmem:[%s7 + $0x258] sm:$0xff]
        %v3142 = vld [vmem:[%s7 + $0x260] sm:$0xff]
        %v3143 = vld [vmem:[%s7 + $0x268] sm:$0xff]
        %v3144 = vld [vmem:[%s7 + $0x270] sm:$0xff]
        %v3145 = vld [vmem:[%s7 + $0x278] sm:$0xff]
        %v3146 = vld [vmem:[%s7 + $0x280] sm:$0xff]
        %v3147 = vld [vmem:[%s7 + $0x288] sm:$0xff]
        %v3148 = vld [vmem:[%s7 + $0x290] sm:$0xff]
        %v3149 = vld [vmem:[%s7 + $0x298] sm:$0xff]
        %v3150 = vld [vmem:[%s7 + $0x2a0] sm:$0xff]
        %v3151 = vld [vmem:[%s7 + $0x2a8] sm:$0xff]
        %v3152 = vld [vmem:[%s7 + $0x2b0] sm:$0xff]
        %v3153 = vld [vmem:[%s7 + $0x2b8] sm:$0xff]
        %v3154 = vld [vmem:[%s7 + $0x2c0] sm:$0xff]
        %v3155 = vld [vmem:[%s7 + $0x2c8] sm:$0xff]
        %v3156 = vld [vmem:[%s7 + $0x2d0] sm:$0xff]
        %v3157 = vld [vmem:[%s7 + $0x2d8] sm:$0xff]
        %v3158 = vld [vmem:[%s7 + $0x2e0] sm:$0xff]
        %v3159 = vld [vmem:[%s7 + $0x2e8] sm:$0xff]
        %v3160 = vld [vmem:[%s7 + $0x2f0] sm:$0xff]
        %v3161 = vld [vmem:[%s7 + $0x2f8] sm:$0xff]
        %v3162 = vld [vmem:[%s7 + $0x300] sm:$0xff]
        %v3163 = vld [vmem:[%s7 + $0x308] sm:$0xff]
        %v3164 = vld [vmem:[%s7 + $0x310] sm:$0xff]
        %v3165 = vld [vmem:[%s7 + $0x318] sm:$0xff]
        %v3166 = vld [vmem:[%s7 + $0x320] sm:$0xff]
        %v3167 = vld [vmem:[%s7 + $0x328] sm:$0xff]
        %v3168 = vld [vmem:[%s7 + $0x330] sm:$0xff]
        %v3169 = vld [vmem:[%s7 + $0x338] sm:$0xff]
        %v3170 = vld [vmem:[%s7 + $0x340] sm:$0xff]
        %v3171 = vld [vmem:[%s7 + $0x348] sm:$0xff]
        %v3172 = vld [vmem:[%s7 + $0x350] sm:$0xff]
        %v3173 = vld [vmem:[%s7 + $0x358] sm:$0xff]
        %v3174 = vld [vmem:[%s7 + $0x360] sm:$0xff]
        %v3175 = vld [vmem:[%s7 + $0x368] sm:$0xff]
        %v3176 = vld [vmem:[%s7 + $0x370] sm:$0xff]
        %v3177 = vld [vmem:[%s7 + $0x378] sm:$0xff]
        %v3178 = vld [vmem:[%s7 + $0x380] sm:$0xff]
        %v3179 = vld [vmem:[%s7 + $0x388] sm:$0xff]
        %v3180 = vld [vmem:[%s7 + $0x390] sm:$0xff]
        %v3181 = vld [vmem:[%s7 + $0x398] sm:$0xff]
        %v3182 = vld [vmem:[%s7 + $0x3a0] sm:$0xff]
        %v3183 = vld [vmem:[%s7 + $0x3a8] sm:$0xff]
        %v3184 = vld [vmem:[%s7 + $0x3b0] sm:$0xff]
        %v3185 = vld [vmem:[%s7 + $0x3b8] sm:$0xff]
        %v3186 = vld [vmem:[%s7 + $0x3c0] sm:$0xff]
        %v3187 = vld [vmem:[%s7 + $0x3c8] sm:$0xff]
        %v3188 = vld [vmem:[%s7 + $0x3d0] sm:$0xff]
        %v3189 = vld [vmem:[%s7 + $0x3d8] sm:$0xff]
        %v3190 = vld [vmem:[%s7 + $0x3e0] sm:$0xff]
        %v3191 = vld [vmem:[%s7 + $0x3e8] sm:$0xff]
        %v3192 = vld [vmem:[%s7 + $0x3f0] sm:$0xff]
        %v3193 = vld [vmem:[%s7 + $0x3f8] sm:$0xff]
        %v3194 = vld [vmem:[%s8] sm:$0xff]
        %v3196 = vlaneseq
        %v3197 = vshrl.u32 %v3196, 7
        %v3198 = vsub.s32 0, %v3197
        %v3199 = vrot.slane %v3194, %v3198
        %v3200 = vlaneseq
        %v3201 = vshrl.u32 %v3200, 7
        %v3202 = vsub.s32 1, %v3201
        %v3203 = vrot.slane %v3194, %v3202
        %v3204 = vlaneseq
        %v3205 = vshrl.u32 %v3204, 7
        %v3206 = vsub.s32 2, %v3205
        %v3207 = vrot.slane %v3194, %v3206
        %v3208 = vlaneseq
        %v3209 = vshrl.u32 %v3208, 7
        %v3210 = vsub.s32 3, %v3209
        %v3211 = vrot.slane %v3194, %v3210
        %v3212 = vlaneseq
        %v3213 = vshrl.u32 %v3212, 7
        %v3214 = vsub.s32 4, %v3213
        %v3215 = vrot.slane %v3194, %v3214
        %v3216 = vlaneseq
        %v3217 = vshrl.u32 %v3216, 7
        %v3218 = vsub.s32 5, %v3217
        %v3219 = vrot.slane %v3194, %v3218
        %v3220 = vlaneseq
        %v3221 = vshrl.u32 %v3220, 7
        %v3222 = vsub.s32 6, %v3221
        %v3223 = vrot.slane %v3194, %v3222
        %v3224 = vlaneseq
        %v3225 = vshrl.u32 %v3224, 7
        %v3226 = vsub.s32 7, %v3225
        %v3227 = vrot.slane %v3194, %v3226
        %3236 = vmatprep.subr.mxu0 %v3187
        %3237 = vmatpush1.msra.mxu0 %v3186
        %3238 = vmatprep.subr.mxu0 %v3179
        %3239 = vmatpush1.msra.mxu0 %v3178
        %3240 = vmatprep.subr.mxu0 %v3171
        %3241 = vmatpush1.msra.mxu0 %v3170
        %3242 = vmatprep.subr.mxu0 %v3163
        %3243 = vmatpush1.msra.mxu0 %v3162
        %3244 = vmatprep.subr.mxu0 %v3155
        %3245 = vmatpush1.msra.mxu0 %v3154
        %3246 = vmatprep.subr.mxu0 %v3147
        %3247 = vmatpush1.msra.mxu0 %v3146
        %3248 = vmatprep.subr.mxu0 %v3139
        %3249 = vmatpush1.msra.mxu0 %v3138
        %3250 = vmatprep.subr.mxu0 %v3131
        %3251 = vmatpush1.msra.mxu0 %v3130
        %3252 = vmatprep.subr.mxu0 %v3123
        %3253 = vmatpush1.msra.mxu0 %v3122
        %3254 = vmatprep.subr.mxu0 %v3115
        %3255 = vmatpush1.msra.mxu0 %v3114
        %3256 = vmatprep.subr.mxu0 %v3107
        %3257 = vmatpush1.msra.mxu0 %v3106
        %3258 = vmatprep.subr.mxu0 %v3099
        %3259 = vmatpush1.msra.mxu0 %v3098
        %3260 = vmatprep.subr.mxu0 %v3091
        %3261 = vmatpush1.msra.mxu0 %v3090
        %3262 = vmatprep.subr.mxu0 %v3083
        %3263 = vmatpush1.msra.mxu0 %v3082
        %3264 = vmatprep.subr.mxu0 %v3075
        %3265 = vmatpush1.msra.mxu0 %v3074
        %3266 = vmatprep.subr.mxu0 %v3067
        %3267 = vmatpush1.msra.mxu0 %v3066
        %3268 = vmatprep.subr.mxu0 0.0
        %3269 = vmatpush2.msra.mxu0 0.0
        %3270 = vmatprep.subr.mxu0 0.0
        %3271 = vmatpush2.msra.mxu0 0.0
        %3272 = vmatprep.subr.mxu0 0.0
        %3273 = vmatpush2.msra.mxu0 0.0
        %3274 = vmatprep.subr.mxu0 0.0
        %3275 = vmatpush2.msra.mxu0 0.0
        %3276 = vmatprep.subr.mxu0 0.0
        %3277 = vmatpush2.msra.mxu0 0.0
        %3278 = vmatprep.subr.mxu0 0.0
        %3279 = vmatpush2.msra.mxu0 0.0
        %3280 = vmatprep.subr.mxu0 0.0
        %3281 = vmatpush2.msra.mxu0 0.0
        %3282 = vmatprep.subr.mxu0 0.0
        %3283 = vmatpush2.msra.mxu0 0.0
        %3284 = vmatprep.subr.mxu0 0.0
        %3285 = vmatpush2.msra.mxu0 0.0
        %3286 = vmatprep.subr.mxu0 0.0
        %3287 = vmatpush2.msra.mxu0 0.0
        %3288 = vmatprep.subr.mxu0 0.0
        %3289 = vmatpush2.msra.mxu0 0.0
        %3290 = vmatprep.subr.mxu0 0.0
        %3291 = vmatpush2.msra.mxu0 0.0
        %3292 = vmatprep.subr.mxu0 0.0
        %3293 = vmatpush2.msra.mxu0 0.0
        %3294 = vmatprep.subr.mxu0 0.0
        %3295 = vmatpush2.msra.mxu0 0.0
        %3296 = vmatprep.subr.mxu0 0.0
        %3297 = vmatpush2.msra.mxu0 0.0
        %3298 = vmatprep.subr.mxu0 0.0
        %3299 = vmatpush2.msra.mxu0 0.0
        %3300 = vmatprep.mubr.f32.mxu0 0.0
        %3301 = vmatmul.mubr.f32.gmra.mxu0 %v3058
        %v3302 = vpop.f32.mrf.mxu0
        %v3303 = vadd.f32 %v3199, %v3302
        %v3304 = vpop.f32.mrf.mxu0
        %v3305 = vadd.f32 %v3203, %v3304
        %3306 = vmatprep.mubr.f32.mxu0 0.0
        %3307 = vmatmul.mubr.f32.gmra.mxu0 %v3059
        %v3308 = vpop.f32.mrf.mxu0
        %v3309 = vadd.f32 %v3199, %v3308
        %v3310 = vpop.f32.mrf.mxu0
        %v3311 = vadd.f32 %v3203, %v3310
        %3312 = vmatprep.mubr.f32.mxu0 0.0
        %3313 = vmatmul.mubr.f32.gmra.mxu0 %v3060
        %v3314 = vpop.f32.mrf.mxu0
        %v3315 = vadd.f32 %v3199, %v3314
        %v3316 = vpop.f32.mrf.mxu0
        %v3317 = vadd.f32 %v3203, %v3316
        %3318 = vmatprep.mubr.f32.mxu0 0.0
        %3319 = vmatmul.mubr.f32.gmra.mxu0 %v3061
        %v3320 = vpop.f32.mrf.mxu0
        %v3321 = vadd.f32 %v3199, %v3320
        %v3322 = vpop.f32.mrf.mxu0
        %v3323 = vadd.f32 %v3203, %v3322
        %3324 = vmatprep.mubr.f32.mxu0 0.0
        %3325 = vmatmul.mubr.f32.gmra.mxu0 %v3062
        %v3326 = vpop.f32.mrf.mxu0
        %v3327 = vadd.f32 %v3199, %v3326
        %v3328 = vpop.f32.mrf.mxu0
        %v3329 = vadd.f32 %v3203, %v3328
        %3330 = vmatprep.mubr.f32.mxu0 0.0
        %3331 = vmatmul.mubr.f32.gmra.mxu0 %v3063
        %v3332 = vpop.f32.mrf.mxu0
        %v3333 = vadd.f32 %v3199, %v3332
        %v3334 = vpop.f32.mrf.mxu0
        %v3335 = vadd.f32 %v3203, %v3334
        %3336 = vmatprep.mubr.f32.mxu0 0.0
        %3337 = vmatmul.mubr.f32.gmra.mxu0 %v3064
        %v3338 = vpop.f32.mrf.mxu0
        %v3339 = vadd.f32 %v3199, %v3338
        %v3340 = vpop.f32.mrf.mxu0
        %v3341 = vadd.f32 %v3203, %v3340
        %3342 = vmatprep.mubr.f32.mxu0 0.0
        %3343 = vmatmul.mubr.f32.gmra.mxu0 %v3065
        %v3344 = vpop.f32.mrf.mxu0
        %v3345 = vadd.f32 %v3199, %v3344
        %v3346 = vpop.f32.mrf.mxu0
        %v3347 = vadd.f32 %v3203, %v3346
        %3348 = vdwg.mxu0
        %3349 = vmatprep.subr.mxu0 %v3189
        %3350 = vmatpush1.msra.mxu0 %v3188
        %3351 = vmatprep.subr.mxu0 %v3181
        %3352 = vmatpush1.msra.mxu0 %v3180
        %3353 = vmatprep.subr.mxu0 %v3173
        %3354 = vmatpush1.msra.mxu0 %v3172
        %3355 = vmatprep.subr.mxu0 %v3165
        %3356 = vmatpush1.msra.mxu0 %v3164
        %3357 = vmatprep.subr.mxu0 %v3157
        %3358 = vmatpush1.msra.mxu0 %v3156
        %3359 = vmatprep.subr.mxu0 %v3149
        %3360 = vmatpush1.msra.mxu0 %v3148
        %3361 = vmatprep.subr.mxu0 %v3141
        %3362 = vmatpush1.msra.mxu0 %v3140
        %3363 = vmatprep.subr.mxu0 %v3133
        %3364 = vmatpush1.msra.mxu0 %v3132
        %3365 = vmatprep.subr.mxu0 %v3125
        %3366 = vmatpush1.msra.mxu0 %v3124
        %3367 = vmatprep.subr.mxu0 %v3117
        %3368 = vmatpush1.msra.mxu0 %v3116
        %3369 = vmatprep.subr.mxu0 %v3109
        %3370 = vmatpush1.msra.mxu0 %v3108
        %3371 = vmatprep.subr.mxu0 %v3101
        %3372 = vmatpush1.msra.mxu0 %v3100
        %3373 = vmatprep.subr.mxu0 %v3093
        %3374 = vmatpush1.msra.mxu0 %v3092
        %3375 = vmatprep.subr.mxu0 %v3085
        %3376 = vmatpush1.msra.mxu0 %v3084
        %3377 = vmatprep.subr.mxu0 %v3077
        %3378 = vmatpush1.msra.mxu0 %v3076
        %3379 = vmatprep.subr.mxu0 %v3069
        %3380 = vmatpush1.msra.mxu0 %v3068
        %3381 = vmatprep.subr.mxu0 0.0
        %3382 = vmatpush2.msra.mxu0 0.0
        %3383 = vmatprep.subr.mxu0 0.0
        %3384 = vmatpush2.msra.mxu0 0.0
        %3385 = vmatprep.subr.mxu0 0.0
        %3386 = vmatpush2.msra.mxu0 0.0
        %3387 = vmatprep.subr.mxu0 0.0
        %3388 = vmatpush2.msra.mxu0 0.0
        %3389 = vmatprep.subr.mxu0 0.0
        %3390 = vmatpush2.msra.mxu0 0.0
        %3391 = vmatprep.subr.mxu0 0.0
        %3392 = vmatpush2.msra.mxu0 0.0
        %3393 = vmatprep.subr.mxu0 0.0
        %3394 = vmatpush2.msra.mxu0 0.0
        %3395 = vmatprep.subr.mxu0 0.0
        %3396 = vmatpush2.msra.mxu0 0.0
        %3397 = vmatprep.subr.mxu0 0.0
        %3398 = vmatpush2.msra.mxu0 0.0
        %3399 = vmatprep.subr.mxu0 0.0
        %3400 = vmatpush2.msra.mxu0 0.0
        %3401 = vmatprep.subr.mxu0 0.0
        %3402 = vmatpush2.msra.mxu0 0.0
        %3403 = vmatprep.subr.mxu0 0.0
        %3404 = vmatpush2.msra.mxu0 0.0
        %3405 = vmatprep.subr.mxu0 0.0
        %3406 = vmatpush2.msra.mxu0 0.0
        %3407 = vmatprep.subr.mxu0 0.0
        %3408 = vmatpush2.msra.mxu0 0.0
        %3409 = vmatprep.subr.mxu0 0.0
        %3410 = vmatpush2.msra.mxu0 0.0
        %3411 = vmatprep.subr.mxu0 0.0
        %3412 = vmatpush2.msra.mxu0 0.0
        %3413 = vmatprep.mubr.f32.mxu0 0.0
        %3414 = vmatmul.mubr.f32.gmra.mxu0 %v3058
        %v3415 = vpop.f32.mrf.mxu0
        %v3416 = vadd.f32 %v3207, %v3415
        %v3417 = vpop.f32.mrf.mxu0
        %v3418 = vadd.f32 %v3211, %v3417
        %3419 = vmatprep.mubr.f32.mxu0 0.0
        %3420 = vmatmul.mubr.f32.gmra.mxu0 %v3059
        %v3421 = vpop.f32.mrf.mxu0
        %v3422 = vadd.f32 %v3207, %v3421
        %v3423 = vpop.f32.mrf.mxu0
        %v3424 = vadd.f32 %v3211, %v3423
        %3425 = vmatprep.mubr.f32.mxu0 0.0
        %3426 = vmatmul.mubr.f32.gmra.mxu0 %v3060
        %v3427 = vpop.f32.mrf.mxu0
        %v3428 = vadd.f32 %v3207, %v3427
        %v3429 = vpop.f32.mrf.mxu0
        %v3430 = vadd.f32 %v3211, %v3429
        %3431 = vmatprep.mubr.f32.mxu0 0.0
        %3432 = vmatmul.mubr.f32.gmra.mxu0 %v3061
        %v3433 = vpop.f32.mrf.mxu0
        %v3434 = vadd.f32 %v3207, %v3433
        %v3435 = vpop.f32.mrf.mxu0
        %v3436 = vadd.f32 %v3211, %v3435
        %3437 = vmatprep.mubr.f32.mxu0 0.0
        %3438 = vmatmul.mubr.f32.gmra.mxu0 %v3062
        %v3439 = vpop.f32.mrf.mxu0
        %v3440 = vadd.f32 %v3207, %v3439
        %v3441 = vpop.f32.mrf.mxu0
        %v3442 = vadd.f32 %v3211, %v3441
        %3443 = vmatprep.mubr.f32.mxu0 0.0
        %3444 = vmatmul.mubr.f32.gmra.mxu0 %v3063
        %v3445 = vpop.f32.mrf.mxu0
        %v3446 = vadd.f32 %v3207, %v3445
        %v3447 = vpop.f32.mrf.mxu0
        %v3448 = vadd.f32 %v3211, %v3447
        %3449 = vmatprep.mubr.f32.mxu0 0.0
        %3450 = vmatmul.mubr.f32.gmra.mxu0 %v3064
        %v3451 = vpop.f32.mrf.mxu0
        %v3452 = vadd.f32 %v3207, %v3451
        %v3453 = vpop.f32.mrf.mxu0
        %v3454 = vadd.f32 %v3211, %v3453
        %3455 = vmatprep.mubr.f32.mxu0 0.0
        %3456 = vmatmul.mubr.f32.gmra.mxu0 %v3065
        %v3457 = vpop.f32.mrf.mxu0
        %v3458 = vadd.f32 %v3207, %v3457
        %v3459 = vpop.f32.mrf.mxu0
        %v3460 = vadd.f32 %v3211, %v3459
        %3461 = vdwg.mxu0
        %3462 = vmatprep.subr.mxu0 %v3191
        %3463 = vmatpush1.msra.mxu0 %v3190
        %3464 = vmatprep.subr.mxu0 %v3183
        %3465 = vmatpush1.msra.mxu0 %v3182
        %3466 = vmatprep.subr.mxu0 %v3175
        %3467 = vmatpush1.msra.mxu0 %v3174
        %3468 = vmatprep.subr.mxu0 %v3167
        %3469 = vmatpush1.msra.mxu0 %v3166
        %3470 = vmatprep.subr.mxu0 %v3159
        %3471 = vmatpush1.msra.mxu0 %v3158
        %3472 = vmatprep.subr.mxu0 %v3151
        %3473 = vmatpush1.msra.mxu0 %v3150
        %3474 = vmatprep.subr.mxu0 %v3143
        %3475 = vmatpush1.msra.mxu0 %v3142
        %3476 = vmatprep.subr.mxu0 %v3135
        %3477 = vmatpush1.msra.mxu0 %v3134
        %3478 = vmatprep.subr.mxu0 %v3127
        %3479 = vmatpush1.msra.mxu0 %v3126
        %3480 = vmatprep.subr.mxu0 %v3119
        %3481 = vmatpush1.msra.mxu0 %v3118
        %3482 = vmatprep.subr.mxu0 %v3111
        %3483 = vmatpush1.msra.mxu0 %v3110
        %3484 = vmatprep.subr.mxu0 %v3103
        %3485 = vmatpush1.msra.mxu0 %v3102
        %3486 = vmatprep.subr.mxu0 %v3095
        %3487 = vmatpush1.msra.mxu0 %v3094
        %3488 = vmatprep.subr.mxu0 %v3087
        %3489 = vmatpush1.msra.mxu0 %v3086
        %3490 = vmatprep.subr.mxu0 %v3079
        %3491 = vmatpush1.msra.mxu0 %v3078
        %3492 = vmatprep.subr.mxu0 %v3071
        %3493 = vmatpush1.msra.mxu0 %v3070
        %3494 = vmatprep.subr.mxu0 0.0
        %3495 = vmatpush2.msra.mxu0 0.0
        %3496 = vmatprep.subr.mxu0 0.0
        %3497 = vmatpush2.msra.mxu0 0.0
        %3498 = vmatprep.subr.mxu0 0.0
        %3499 = vmatpush2.msra.mxu0 0.0
        %3500 = vmatprep.subr.mxu0 0.0
        %3501 = vmatpush2.msra.mxu0 0.0
        %3502 = vmatprep.subr.mxu0 0.0
        %3503 = vmatpush2.msra.mxu0 0.0
        %3504 = vmatprep.subr.mxu0 0.0
        %3505 = vmatpush2.msra.mxu0 0.0
        %3506 = vmatprep.subr.mxu0 0.0
        %3507 = vmatpush2.msra.mxu0 0.0
        %3508 = vmatprep.subr.mxu0 0.0
        %3509 = vmatpush2.msra.mxu0 0.0
        %3510 = vmatprep.subr.mxu0 0.0
        %3511 = vmatpush2.msra.mxu0 0.0
        %3512 = vmatprep.subr.mxu0 0.0
        %3513 = vmatpush2.msra.mxu0 0.0
        %3514 = vmatprep.subr.mxu0 0.0
        %3515 = vmatpush2.msra.mxu0 0.0
        %3516 = vmatprep.subr.mxu0 0.0
        %3517 = vmatpush2.msra.mxu0 0.0
        %3518 = vmatprep.subr.mxu0 0.0
        %3519 = vmatpush2.msra.mxu0 0.0
        %3520 = vmatprep.subr.mxu0 0.0
        %3521 = vmatpush2.msra.mxu0 0.0
        %3522 = vmatprep.subr.mxu0 0.0
        %3523 = vmatpush2.msra.mxu0 0.0
        %3524 = vmatprep.subr.mxu0 0.0
        %3525 = vmatpush2.msra.mxu0 0.0
        %3526 = vmatprep.mubr.f32.mxu0 0.0
        %3527 = vmatmul.mubr.f32.gmra.mxu0 %v3058
        %v3528 = vpop.f32.mrf.mxu0
        %v3529 = vadd.f32 %v3215, %v3528
        %v3530 = vpop.f32.mrf.mxu0
        %v3531 = vadd.f32 %v3219, %v3530
        %3532 = vmatprep.mubr.f32.mxu0 0.0
        %3533 = vmatmul.mubr.f32.gmra.mxu0 %v3059
        %v3534 = vpop.f32.mrf.mxu0
        %v3535 = vadd.f32 %v3215, %v3534
        %v3536 = vpop.f32.mrf.mxu0
        %v3537 = vadd.f32 %v3219, %v3536
        %3538 = vmatprep.mubr.f32.mxu0 0.0
        %3539 = vmatmul.mubr.f32.gmra.mxu0 %v3060
        %v3540 = vpop.f32.mrf.mxu0
        %v3541 = vadd.f32 %v3215, %v3540
        %v3542 = vpop.f32.mrf.mxu0
        %v3543 = vadd.f32 %v3219, %v3542
        %3544 = vmatprep.mubr.f32.mxu0 0.0
        %3545 = vmatmul.mubr.f32.gmra.mxu0 %v3061
        %v3546 = vpop.f32.mrf.mxu0
        %v3547 = vadd.f32 %v3215, %v3546
        %v3548 = vpop.f32.mrf.mxu0
        %v3549 = vadd.f32 %v3219, %v3548
        %3550 = vmatprep.mubr.f32.mxu0 0.0
        %3551 = vmatmul.mubr.f32.gmra.mxu0 %v3062
        %v3552 = vpop.f32.mrf.mxu0
        %v3553 = vadd.f32 %v3215, %v3552
        %v3554 = vpop.f32.mrf.mxu0
        %v3555 = vadd.f32 %v3219, %v3554
        %3556 = vmatprep.mubr.f32.mxu0 0.0
        %3557 = vmatmul.mubr.f32.gmra.mxu0 %v3063
        %v3558 = vpop.f32.mrf.mxu0
        %v3559 = vadd.f32 %v3215, %v3558
        %v3560 = vpop.f32.mrf.mxu0
        %v3561 = vadd.f32 %v3219, %v3560
        %3562 = vmatprep.mubr.f32.mxu0 0.0
        %3563 = vmatmul.mubr.f32.gmra.mxu0 %v3064
        %v3564 = vpop.f32.mrf.mxu0
        %v3565 = vadd.f32 %v3215, %v3564
        %v3566 = vpop.f32.mrf.mxu0
        %v3567 = vadd.f32 %v3219, %v3566
        %3568 = vmatprep.mubr.f32.mxu0 0.0
        %3569 = vmatmul.mubr.f32.gmra.mxu0 %v3065
        %v3570 = vpop.f32.mrf.mxu0
        %v3571 = vadd.f32 %v3215, %v3570
        %v3572 = vpop.f32.mrf.mxu0
        %v3573 = vadd.f32 %v3219, %v3572
        %3574 = vdwg.mxu0
        %3575 = vmatprep.subr.mxu0 %v3193
        %3576 = vmatpush1.msra.mxu0 %v3192
        %3577 = vmatprep.subr.mxu0 %v3185
        %3578 = vmatpush1.msra.mxu0 %v3184
        %3579 = vmatprep.subr.mxu0 %v3177
        %3580 = vmatpush1.msra.mxu0 %v3176
        %3581 = vmatprep.subr.mxu0 %v3169
        %3582 = vmatpush1.msra.mxu0 %v3168
        %3583 = vmatprep.subr.mxu0 %v3161
        %3584 = vmatpush1.msra.mxu0 %v3160
        %3585 = vmatprep.subr.mxu0 %v3153
        %3586 = vmatpush1.msra.mxu0 %v3152
        %3587 = vmatprep.subr.mxu0 %v3145
        %3588 = vmatpush1.msra.mxu0 %v3144
        %3589 = vmatprep.subr.mxu0 %v3137
        %3590 = vmatpush1.msra.mxu0 %v3136
        %3591 = vmatprep.subr.mxu0 %v3129
        %3592 = vmatpush1.msra.mxu0 %v3128
        %3593 = vmatprep.subr.mxu0 %v3121
        %3594 = vmatpush1.msra.mxu0 %v3120
        %3595 = vmatprep.subr.mxu0 %v3113
        %3596 = vmatpush1.msra.mxu0 %v3112
        %3597 = vmatprep.subr.mxu0 %v3105
        %3598 = vmatpush1.msra.mxu0 %v3104
        %3599 = vmatprep.subr.mxu0 %v3097
        %3600 = vmatpush1.msra.mxu0 %v3096
        %3601 = vmatprep.subr.mxu0 %v3089
        %3602 = vmatpush1.msra.mxu0 %v3088
        %3603 = vmatprep.subr.mxu0 %v3081
        %3604 = vmatpush1.msra.mxu0 %v3080
        %3605 = vmatprep.subr.mxu0 %v3073
        %3606 = vmatpush1.msra.mxu0 %v3072
        %3607 = vmatprep.subr.mxu0 0.0
        %3608 = vmatpush2.msra.mxu0 0.0
        %3609 = vmatprep.subr.mxu0 0.0
        %3610 = vmatpush2.msra.mxu0 0.0
        %3611 = vmatprep.subr.mxu0 0.0
        %3612 = vmatpush2.msra.mxu0 0.0
        %3613 = vmatprep.subr.mxu0 0.0
        %3614 = vmatpush2.msra.mxu0 0.0
        %3615 = vmatprep.subr.mxu0 0.0
        %3616 = vmatpush2.msra.mxu0 0.0
        %3617 = vmatprep.subr.mxu0 0.0
        %3618 = vmatpush2.msra.mxu0 0.0
        %3619 = vmatprep.subr.mxu0 0.0
        %3620 = vmatpush2.msra.mxu0 0.0
        %3621 = vmatprep.subr.mxu0 0.0
        %3622 = vmatpush2.msra.mxu0 0.0
        %3623 = vmatprep.subr.mxu0 0.0
        %3624 = vmatpush2.msra.mxu0 0.0
        %3625 = vmatprep.subr.mxu0 0.0
        %3626 = vmatpush2.msra.mxu0 0.0
        %3627 = vmatprep.subr.mxu0 0.0
        %3628 = vmatpush2.msra.mxu0 0.0
        %3629 = vmatprep.subr.mxu0 0.0
        %3630 = vmatpush2.msra.mxu0 0.0
        %3631 = vmatprep.subr.mxu0 0.0
        %3632 = vmatpush2.msra.mxu0 0.0
        %3633 = vmatprep.subr.mxu0 0.0
        %3634 = vmatpush2.msra.mxu0 0.0
        %3635 = vmatprep.subr.mxu0 0.0
        %3636 = vmatpush2.msra.mxu0 0.0
        %3637 = vmatprep.subr.mxu0 0.0
        %3638 = vmatpush2.msra.mxu0 0.0
        %3639 = vmatprep.mubr.f32.mxu0 0.0
        %3640 = vmatmul.mubr.f32.gmra.mxu0 %v3058
        %v3641 = vpop.f32.mrf.mxu0
        %v3642 = vadd.f32 %v3223, %v3641
        %v3643 = vpop.f32.mrf.mxu0
        %v3644 = vadd.f32 %v3227, %v3643
        %3645 = vmatprep.mubr.f32.mxu0 0.0
        %3646 = vmatmul.mubr.f32.gmra.mxu0 %v3059
        %v3647 = vpop.f32.mrf.mxu0
        %v3648 = vadd.f32 %v3223, %v3647
        %v3649 = vpop.f32.mrf.mxu0
        %v3650 = vadd.f32 %v3227, %v3649
        %3651 = vmatprep.mubr.f32.mxu0 0.0
        %3652 = vmatmul.mubr.f32.gmra.mxu0 %v3060
        %v3653 = vpop.f32.mrf.mxu0
        %v3654 = vadd.f32 %v3223, %v3653
        %v3655 = vpop.f32.mrf.mxu0
        %v3656 = vadd.f32 %v3227, %v3655
        %3657 = vmatprep.mubr.f32.mxu0 0.0
        %3658 = vmatmul.mubr.f32.gmra.mxu0 %v3061
        %v3659 = vpop.f32.mrf.mxu0
        %v3660 = vadd.f32 %v3223, %v3659
        %v3661 = vpop.f32.mrf.mxu0
        %v3662 = vadd.f32 %v3227, %v3661
        %3663 = vmatprep.mubr.f32.mxu0 0.0
        %3664 = vmatmul.mubr.f32.gmra.mxu0 %v3062
        %v3665 = vpop.f32.mrf.mxu0
        %v3666 = vadd.f32 %v3223, %v3665
        %v3667 = vpop.f32.mrf.mxu0
        %v3668 = vadd.f32 %v3227, %v3667
        %3669 = vmatprep.mubr.f32.mxu0 0.0
        %3670 = vmatmul.mubr.f32.gmra.mxu0 %v3063
        %v3671 = vpop.f32.mrf.mxu0
        %v3672 = vadd.f32 %v3223, %v3671
        %v3673 = vpop.f32.mrf.mxu0
        %v3674 = vadd.f32 %v3227, %v3673
        %3675 = vmatprep.mubr.f32.mxu0 0.0
        %3676 = vmatmul.mubr.f32.gmra.mxu0 %v3064
        %v3677 = vpop.f32.mrf.mxu0
        %v3678 = vadd.f32 %v3223, %v3677
        %v3679 = vpop.f32.mrf.mxu0
        %v3680 = vadd.f32 %v3227, %v3679
        %3681 = vmatprep.mubr.f32.mxu0 0.0
        %3682 = vmatmul.mubr.f32.gmra.mxu0 %v3065
        %v3683 = vpop.f32.mrf.mxu0
        %v3684 = vadd.f32 %v3223, %v3683
        %v3685 = vpop.f32.mrf.mxu0
        %v3686 = vadd.f32 %v3227, %v3685
        %3687 = vdwg.mxu0
        %v3688 = vmax.f32 %v3303, 0.0
        %v3689 = vmax.f32 %v3305, 0.0
        %v3690 = vmax.f32 %v3416, 0.0
        %v3691 = vmax.f32 %v3418, 0.0
        %v3692 = vmax.f32 %v3529, 0.0
        %v3693 = vmax.f32 %v3531, 0.0
        %v3694 = vmax.f32 %v3642, 0.0
        %v3695 = vmax.f32 %v3644, 0.0
        %v3696 = vmax.f32 %v3309, 0.0
        %v3697 = vmax.f32 %v3311, 0.0
        %v3698 = vmax.f32 %v3422, 0.0
        %v3699 = vmax.f32 %v3424, 0.0
        %v3700 = vmax.f32 %v3535, 0.0
        %v3701 = vmax.f32 %v3537, 0.0
        %v3702 = vmax.f32 %v3648, 0.0
        %v3703 = vmax.f32 %v3650, 0.0
        %v3704 = vmax.f32 %v3315, 0.0
        %v3705 = vmax.f32 %v3317, 0.0
        %v3706 = vmax.f32 %v3428, 0.0
        %v3707 = vmax.f32 %v3430, 0.0
        %v3708 = vmax.f32 %v3541, 0.0
        %v3709 = vmax.f32 %v3543, 0.0
        %v3710 = vmax.f32 %v3654, 0.0
        %v3711 = vmax.f32 %v3656, 0.0
        %v3712 = vmax.f32 %v3321, 0.0
        %v3713 = vmax.f32 %v3323, 0.0
        %v3714 = vmax.f32 %v3434, 0.0
        %v3715 = vmax.f32 %v3436, 0.0
        %v3716 = vmax.f32 %v3547, 0.0
        %v3717 = vmax.f32 %v3549, 0.0
        %v3718 = vmax.f32 %v3660, 0.0
        %v3719 = vmax.f32 %v3662, 0.0
        %v3720 = vmax.f32 %v3327, 0.0
        %v3721 = vmax.f32 %v3329, 0.0
        %v3722 = vmax.f32 %v3440, 0.0
        %v3723 = vmax.f32 %v3442, 0.0
        %v3724 = vmax.f32 %v3553, 0.0
        %v3725 = vmax.f32 %v3555, 0.0
        %v3726 = vmax.f32 %v3666, 0.0
        %v3727 = vmax.f32 %v3668, 0.0
        %v3728 = vmax.f32 %v3333, 0.0
        %v3729 = vmax.f32 %v3335, 0.0
        %v3730 = vmax.f32 %v3446, 0.0
        %v3731 = vmax.f32 %v3448, 0.0
        %v3732 = vmax.f32 %v3559, 0.0
        %v3733 = vmax.f32 %v3561, 0.0
        %v3734 = vmax.f32 %v3672, 0.0
        %v3735 = vmax.f32 %v3674, 0.0
        %v3736 = vmax.f32 %v3339, 0.0
        %v3737 = vmax.f32 %v3341, 0.0
        %v3738 = vmax.f32 %v3452, 0.0
        %v3739 = vmax.f32 %v3454, 0.0
        %v3740 = vmax.f32 %v3565, 0.0
        %v3741 = vmax.f32 %v3567, 0.0
        %v3742 = vmax.f32 %v3678, 0.0
        %v3743 = vmax.f32 %v3680, 0.0
        %v3744 = vmax.f32 %v3345, 0.0
        %v3745 = vmax.f32 %v3347, 0.0
        %v3746 = vmax.f32 %v3458, 0.0
        %v3747 = vmax.f32 %v3460, 0.0
        %v3748 = vmax.f32 %v3571, 0.0
        %v3749 = vmax.f32 %v3573, 0.0
        %v3750 = vmax.f32 %v3684, 0.0
        %v3751 = vmax.f32 %v3686, 0.0
        %v3752 = vld [vmem:[%s9] sm:$0xff]
        %v3753 = vld [vmem:[%s9 + $0x8] sm:$0xff]
        %v3754 = vld [vmem:[%s9 + $0x10] sm:$0xff]
        %v3755 = vld [vmem:[%s9 + $0x18] sm:$0xff]
        %v3756 = vld [vmem:[%s9 + $0x20] sm:$0xff]
        %v3757 = vld [vmem:[%s9 + $0x28] sm:$0xff]
        %v3758 = vld [vmem:[%s9 + $0x30] sm:$0xff]
        %v3759 = vld [vmem:[%s9 + $0x38] sm:$0xff]
        %v3760 = vld [vmem:[%s9 + $0x40] sm:$0xff]
        %v3761 = vld [vmem:[%s9 + $0x48] sm:$0xff]
        %v3762 = vld [vmem:[%s9 + $0x50] sm:$0xff]
        %v3763 = vld [vmem:[%s9 + $0x58] sm:$0xff]
        %v3764 = vld [vmem:[%s9 + $0x60] sm:$0xff]
        %v3765 = vld [vmem:[%s9 + $0x68] sm:$0xff]
        %v3766 = vld [vmem:[%s9 + $0x70] sm:$0xff]
        %v3767 = vld [vmem:[%s9 + $0x78] sm:$0xff]
        %v3768 = vld [vmem:[%s9 + $0x80] sm:$0xff]
        %v3769 = vld [vmem:[%s9 + $0x88] sm:$0xff]
        %v3770 = vld [vmem:[%s9 + $0x90] sm:$0xff]
        %v3771 = vld [vmem:[%s9 + $0x98] sm:$0xff]
        %v3772 = vld [vmem:[%s9 + $0xa0] sm:$0xff]
        %v3773 = vld [vmem:[%s9 + $0xa8] sm:$0xff]
        %v3774 = vld [vmem:[%s9 + $0xb0] sm:$0xff]
        %v3775 = vld [vmem:[%s9 + $0xb8] sm:$0xff]
        %v3776 = vld [vmem:[%s9 + $0xc0] sm:$0xff]
        %v3777 = vld [vmem:[%s9 + $0xc8] sm:$0xff]
        %v3778 = vld [vmem:[%s9 + $0xd0] sm:$0xff]
        %v3779 = vld [vmem:[%s9 + $0xd8] sm:$0xff]
        %v3780 = vld [vmem:[%s9 + $0xe0] sm:$0xff]
        %v3781 = vld [vmem:[%s9 + $0xe8] sm:$0xff]
        %v3782 = vld [vmem:[%s9 + $0xf0] sm:$0xff]
        %v3783 = vld [vmem:[%s9 + $0xf8] sm:$0xff]
        %v3784 = vld [vmem:[%s9 + $0x100] sm:$0xff]
        %v3785 = vld [vmem:[%s9 + $0x108] sm:$0xff]
        %v3786 = vld [vmem:[%s9 + $0x110] sm:$0xff]
        %v3787 = vld [vmem:[%s9 + $0x118] sm:$0xff]
        %v3788 = vld [vmem:[%s9 + $0x120] sm:$0xff]
        %v3789 = vld [vmem:[%s9 + $0x128] sm:$0xff]
        %v3790 = vld [vmem:[%s9 + $0x130] sm:$0xff]
        %v3791 = vld [vmem:[%s9 + $0x138] sm:$0xff]
        %v3792 = vld [vmem:[%s9 + $0x140] sm:$0xff]
        %v3793 = vld [vmem:[%s9 + $0x148] sm:$0xff]
        %v3794 = vld [vmem:[%s9 + $0x150] sm:$0xff]
        %v3795 = vld [vmem:[%s9 + $0x158] sm:$0xff]
        %v3796 = vld [vmem:[%s9 + $0x160] sm:$0xff]
        %v3797 = vld [vmem:[%s9 + $0x168] sm:$0xff]
        %v3798 = vld [vmem:[%s9 + $0x170] sm:$0xff]
        %v3799 = vld [vmem:[%s9 + $0x178] sm:$0xff]
        %v3800 = vld [vmem:[%s9 + $0x180] sm:$0xff]
        %v3801 = vld [vmem:[%s9 + $0x188] sm:$0xff]
        %v3802 = vld [vmem:[%s9 + $0x190] sm:$0xff]
        %v3803 = vld [vmem:[%s9 + $0x198] sm:$0xff]
        %v3804 = vld [vmem:[%s9 + $0x1a0] sm:$0xff]
        %v3805 = vld [vmem:[%s9 + $0x1a8] sm:$0xff]
        %v3806 = vld [vmem:[%s9 + $0x1b0] sm:$0xff]
        %v3807 = vld [vmem:[%s9 + $0x1b8] sm:$0xff]
        %v3808 = vld [vmem:[%s9 + $0x1c0] sm:$0xff]
        %v3809 = vld [vmem:[%s9 + $0x1c8] sm:$0xff]
        %v3810 = vld [vmem:[%s9 + $0x1d0] sm:$0xff]
        %v3811 = vld [vmem:[%s9 + $0x1d8] sm:$0xff]
        %v3812 = vld [vmem:[%s9 + $0x1e0] sm:$0xff]
        %v3813 = vld [vmem:[%s9 + $0x1e8] sm:$0xff]
        %v3814 = vld [vmem:[%s9 + $0x1f0] sm:$0xff]
        %v3815 = vld [vmem:[%s9 + $0x1f8] sm:$0xff]
        %v3816 = vld [vmem:[%s9 + $0x200] sm:$0xff]
        %v3817 = vld [vmem:[%s9 + $0x208] sm:$0xff]
        %v3818 = vld [vmem:[%s9 + $0x210] sm:$0xff]
        %v3819 = vld [vmem:[%s9 + $0x218] sm:$0xff]
        %v3820 = vld [vmem:[%s9 + $0x220] sm:$0xff]
        %v3821 = vld [vmem:[%s9 + $0x228] sm:$0xff]
        %v3822 = vld [vmem:[%s9 + $0x230] sm:$0xff]
        %v3823 = vld [vmem:[%s9 + $0x238] sm:$0xff]
        %v3824 = vld [vmem:[%s9 + $0x240] sm:$0xff]
        %v3825 = vld [vmem:[%s9 + $0x248] sm:$0xff]
        %v3826 = vld [vmem:[%s9 + $0x250] sm:$0xff]
        %v3827 = vld [vmem:[%s9 + $0x258] sm:$0xff]
        %v3828 = vld [vmem:[%s9 + $0x260] sm:$0xff]
        %v3829 = vld [vmem:[%s9 + $0x268] sm:$0xff]
        %v3830 = vld [vmem:[%s9 + $0x270] sm:$0xff]
        %v3831 = vld [vmem:[%s9 + $0x278] sm:$0xff]
        %v3832 = vld [vmem:[%s9 + $0x280] sm:$0xff]
        %v3833 = vld [vmem:[%s9 + $0x288] sm:$0xff]
        %v3834 = vld [vmem:[%s9 + $0x290] sm:$0xff]
        %v3835 = vld [vmem:[%s9 + $0x298] sm:$0xff]
        %v3836 = vld [vmem:[%s9 + $0x2a0] sm:$0xff]
        %v3837 = vld [vmem:[%s9 + $0x2a8] sm:$0xff]
        %v3838 = vld [vmem:[%s9 + $0x2b0] sm:$0xff]
        %v3839 = vld [vmem:[%s9 + $0x2b8] sm:$0xff]
        %v3840 = vld [vmem:[%s9 + $0x2c0] sm:$0xff]
        %v3841 = vld [vmem:[%s9 + $0x2c8] sm:$0xff]
        %v3842 = vld [vmem:[%s9 + $0x2d0] sm:$0xff]
        %v3843 = vld [vmem:[%s9 + $0x2d8] sm:$0xff]
        %v3844 = vld [vmem:[%s9 + $0x2e0] sm:$0xff]
        %v3845 = vld [vmem:[%s9 + $0x2e8] sm:$0xff]
        %v3846 = vld [vmem:[%s9 + $0x2f0] sm:$0xff]
        %v3847 = vld [vmem:[%s9 + $0x2f8] sm:$0xff]
        %v3848 = vld [vmem:[%s9 + $0x300] sm:$0xff]
        %v3849 = vld [vmem:[%s9 + $0x308] sm:$0xff]
        %v3850 = vld [vmem:[%s9 + $0x310] sm:$0xff]
        %v3851 = vld [vmem:[%s9 + $0x318] sm:$0xff]
        %v3852 = vld [vmem:[%s9 + $0x320] sm:$0xff]
        %v3853 = vld [vmem:[%s9 + $0x328] sm:$0xff]
        %v3854 = vld [vmem:[%s9 + $0x330] sm:$0xff]
        %v3855 = vld [vmem:[%s9 + $0x338] sm:$0xff]
        %v3856 = vld [vmem:[%s9 + $0x340] sm:$0xff]
        %v3857 = vld [vmem:[%s9 + $0x348] sm:$0xff]
        %v3858 = vld [vmem:[%s9 + $0x350] sm:$0xff]
        %v3859 = vld [vmem:[%s9 + $0x358] sm:$0xff]
        %v3860 = vld [vmem:[%s9 + $0x360] sm:$0xff]
        %v3861 = vld [vmem:[%s9 + $0x368] sm:$0xff]
        %v3862 = vld [vmem:[%s9 + $0x370] sm:$0xff]
        %v3863 = vld [vmem:[%s9 + $0x378] sm:$0xff]
        %v3864 = vld [vmem:[%s9 + $0x380] sm:$0xff]
        %v3865 = vld [vmem:[%s9 + $0x388] sm:$0xff]
        %v3866 = vld [vmem:[%s9 + $0x390] sm:$0xff]
        %v3867 = vld [vmem:[%s9 + $0x398] sm:$0xff]
        %v3868 = vld [vmem:[%s9 + $0x3a0] sm:$0xff]
        %v3869 = vld [vmem:[%s9 + $0x3a8] sm:$0xff]
        %v3870 = vld [vmem:[%s9 + $0x3b0] sm:$0xff]
        %v3871 = vld [vmem:[%s9 + $0x3b8] sm:$0xff]
        %v3872 = vld [vmem:[%s9 + $0x3c0] sm:$0xff]
        %v3873 = vld [vmem:[%s9 + $0x3c8] sm:$0xff]
        %v3874 = vld [vmem:[%s9 + $0x3d0] sm:$0xff]
        %v3875 = vld [vmem:[%s9 + $0x3d8] sm:$0xff]
        %v3876 = vld [vmem:[%s9 + $0x3e0] sm:$0xff]
        %v3877 = vld [vmem:[%s9 + $0x3e8] sm:$0xff]
        %v3878 = vld [vmem:[%s9 + $0x3f0] sm:$0xff]
        %v3879 = vld [vmem:[%s9 + $0x3f8] sm:$0xff]
        %v3880 = vld [vmem:[%s10] sm:$0x1]
        %v3882 = vlaneseq
        %v3883 = vshrl.u32 %v3882, 7
        %v3884 = vsub.s32 0, %v3883
        %v3885 = vrot.slane %v3880, %v3884
        %3887 = vmatprep.subr.mxu0 0.0
        %3888 = vmatpush1.msra.mxu0 %v3767
        %3889 = vmatprep.subr.mxu0 0.0
        %3890 = vmatpush1.msra.mxu0 %v3766
        %3891 = vmatprep.subr.mxu0 0.0
        %3892 = vmatpush1.msra.mxu0 %v3765
        %3893 = vmatprep.subr.mxu0 0.0
        %3894 = vmatpush1.msra.mxu0 %v3764
        %3895 = vmatprep.subr.mxu0 0.0
        %3896 = vmatpush1.msra.mxu0 %v3763
        %3897 = vmatprep.subr.mxu0 0.0
        %3898 = vmatpush1.msra.mxu0 %v3762
        %3899 = vmatprep.subr.mxu0 0.0
        %3900 = vmatpush1.msra.mxu0 %v3761
        %3901 = vmatprep.subr.mxu0 0.0
        %3902 = vmatpush1.msra.mxu0 %v3760
        %3903 = vmatprep.subr.mxu0 0.0
        %3904 = vmatpush1.msra.mxu0 %v3759
        %3905 = vmatprep.subr.mxu0 0.0
        %3906 = vmatpush1.msra.mxu0 %v3758
        %3907 = vmatprep.subr.mxu0 0.0
        %3908 = vmatpush1.msra.mxu0 %v3757
        %3909 = vmatprep.subr.mxu0 0.0
        %3910 = vmatpush1.msra.mxu0 %v3756
        %3911 = vmatprep.subr.mxu0 0.0
        %3912 = vmatpush1.msra.mxu0 %v3755
        %3913 = vmatprep.subr.mxu0 0.0
        %3914 = vmatpush1.msra.mxu0 %v3754
        %3915 = vmatprep.subr.mxu0 0.0
        %3916 = vmatpush1.msra.mxu0 %v3753
        %3917 = vmatprep.subr.mxu0 0.0
        %3918 = vmatpush1.msra.mxu0 %v3752
        %3919 = vmatprep.subr.mxu0 0.0
        %3920 = vmatpush2.msra.mxu0 %v3783
        %3921 = vmatprep.subr.mxu0 0.0
        %3922 = vmatpush2.msra.mxu0 %v3782
        %3923 = vmatprep.subr.mxu0 0.0
        %3924 = vmatpush2.msra.mxu0 %v3781
        %3925 = vmatprep.subr.mxu0 0.0
        %3926 = vmatpush2.msra.mxu0 %v3780
        %3927 = vmatprep.subr.mxu0 0.0
        %3928 = vmatpush2.msra.mxu0 %v3779
        %3929 = vmatprep.subr.mxu0 0.0
        %3930 = vmatpush2.msra.mxu0 %v3778
        %3931 = vmatprep.subr.mxu0 0.0
        %3932 = vmatpush2.msra.mxu0 %v3777
        %3933 = vmatprep.subr.mxu0 0.0
        %3934 = vmatpush2.msra.mxu0 %v3776
        %3935 = vmatprep.subr.mxu0 0.0
        %3936 = vmatpush2.msra.mxu0 %v3775
        %3937 = vmatprep.subr.mxu0 0.0
        %3938 = vmatpush2.msra.mxu0 %v3774
        %3939 = vmatprep.subr.mxu0 0.0
        %3940 = vmatpush2.msra.mxu0 %v3773
        %3941 = vmatprep.subr.mxu0 0.0
        %3942 = vmatpush2.msra.mxu0 %v3772
        %3943 = vmatprep.subr.mxu0 0.0
        %3944 = vmatpush2.msra.mxu0 %v3771
        %3945 = vmatprep.subr.mxu0 0.0
        %3946 = vmatpush2.msra.mxu0 %v3770
        %3947 = vmatprep.subr.mxu0 0.0
        %3948 = vmatpush2.msra.mxu0 %v3769
        %3949 = vmatprep.subr.mxu0 0.0
        %3950 = vmatpush2.msra.mxu0 %v3768
        %3951 = vmatprep.mubr.f32.mxu0 %v3689
        %3952 = vmatmul.mubr.f32.gmra.mxu0 %v3688
        %v3953 = vpop.f32.mrf.mxu0
        %v3954 = vadd.f32 %v3885, %v3953
        %v3955 = vpop.f32.mrf.mxu0
        %3956 = vmatprep.mubr.f32.mxu0 %v3697
        %3957 = vmatmul.mubr.f32.gmra.mxu0 %v3696
        %v3958 = vpop.f32.mrf.mxu0
        %v3959 = vadd.f32 %v3885, %v3958
        %v3960 = vpop.f32.mrf.mxu0
        %3961 = vmatprep.mubr.f32.mxu0 %v3705
        %3962 = vmatmul.mubr.f32.gmra.mxu0 %v3704
        %v3963 = vpop.f32.mrf.mxu0
        %v3964 = vadd.f32 %v3885, %v3963
        %v3965 = vpop.f32.mrf.mxu0
        %3966 = vmatprep.mubr.f32.mxu0 %v3713
        %3967 = vmatmul.mubr.f32.gmra.mxu0 %v3712
        %v3968 = vpop.f32.mrf.mxu0
        %v3969 = vadd.f32 %v3885, %v3968
        %v3970 = vpop.f32.mrf.mxu0
        %3971 = vmatprep.mubr.f32.mxu0 %v3721
        %3972 = vmatmul.mubr.f32.gmra.mxu0 %v3720
        %v3973 = vpop.f32.mrf.mxu0
        %v3974 = vadd.f32 %v3885, %v3973
        %v3975 = vpop.f32.mrf.mxu0
        %3976 = vmatprep.mubr.f32.mxu0 %v3729
        %3977 = vmatmul.mubr.f32.gmra.mxu0 %v3728
        %v3978 = vpop.f32.mrf.mxu0
        %v3979 = vadd.f32 %v3885, %v3978
        %v3980 = vpop.f32.mrf.mxu0
        %3981 = vmatprep.mubr.f32.mxu0 %v3737
        %3982 = vmatmul.mubr.f32.gmra.mxu0 %v3736
        %v3983 = vpop.f32.mrf.mxu0
        %v3984 = vadd.f32 %v3885, %v3983
        %v3985 = vpop.f32.mrf.mxu0
        %3986 = vmatprep.mubr.f32.mxu0 %v3745
        %3987 = vmatmul.mubr.f32.gmra.mxu0 %v3744
        %v3988 = vpop.f32.mrf.mxu0
        %v3989 = vadd.f32 %v3885, %v3988
        %v3990 = vpop.f32.mrf.mxu0
        %3991 = vdwg.mxu0
        %3992 = vmatprep.subr.mxu0 0.0
        %3993 = vmatpush1.msra.mxu0 %v3799
        %3994 = vmatprep.subr.mxu0 0.0
        %3995 = vmatpush1.msra.mxu0 %v3798
        %3996 = vmatprep.subr.mxu0 0.0
        %3997 = vmatpush1.msra.mxu0 %v3797
        %3998 = vmatprep.subr.mxu0 0.0
        %3999 = vmatpush1.msra.mxu0 %v3796
        %4000 = vmatprep.subr.mxu0 0.0
        %4001 = vmatpush1.msra.mxu0 %v3795
        %4002 = vmatprep.subr.mxu0 0.0
        %4003 = vmatpush1.msra.mxu0 %v3794
        %4004 = vmatprep.subr.mxu0 0.0
        %4005 = vmatpush1.msra.mxu0 %v3793
        %4006 = vmatprep.subr.mxu0 0.0
        %4007 = vmatpush1.msra.mxu0 %v3792
        %4008 = vmatprep.subr.mxu0 0.0
        %4009 = vmatpush1.msra.mxu0 %v3791
        %4010 = vmatprep.subr.mxu0 0.0
        %4011 = vmatpush1.msra.mxu0 %v3790
        %4012 = vmatprep.subr.mxu0 0.0
        %4013 = vmatpush1.msra.mxu0 %v3789
        %4014 = vmatprep.subr.mxu0 0.0
        %4015 = vmatpush1.msra.mxu0 %v3788
        %4016 = vmatprep.subr.mxu0 0.0
        %4017 = vmatpush1.msra.mxu0 %v3787
        %4018 = vmatprep.subr.mxu0 0.0
        %4019 = vmatpush1.msra.mxu0 %v3786
        %4020 = vmatprep.subr.mxu0 0.0
        %4021 = vmatpush1.msra.mxu0 %v3785
        %4022 = vmatprep.subr.mxu0 0.0
        %4023 = vmatpush1.msra.mxu0 %v3784
        %4024 = vmatprep.subr.mxu0 0.0
        %4025 = vmatpush2.msra.mxu0 %v3815
        %4026 = vmatprep.subr.mxu0 0.0
        %4027 = vmatpush2.msra.mxu0 %v3814
        %4028 = vmatprep.subr.mxu0 0.0
        %4029 = vmatpush2.msra.mxu0 %v3813
        %4030 = vmatprep.subr.mxu0 0.0
        %4031 = vmatpush2.msra.mxu0 %v3812
        %4032 = vmatprep.subr.mxu0 0.0
        %4033 = vmatpush2.msra.mxu0 %v3811
        %4034 = vmatprep.subr.mxu0 0.0
        %4035 = vmatpush2.msra.mxu0 %v3810
        %4036 = vmatprep.subr.mxu0 0.0
        %4037 = vmatpush2.msra.mxu0 %v3809
        %4038 = vmatprep.subr.mxu0 0.0
        %4039 = vmatpush2.msra.mxu0 %v3808
        %4040 = vmatprep.subr.mxu0 0.0
        %4041 = vmatpush2.msra.mxu0 %v3807
        %4042 = vmatprep.subr.mxu0 0.0
        %4043 = vmatpush2.msra.mxu0 %v3806
        %4044 = vmatprep.subr.mxu0 0.0
        %4045 = vmatpush2.msra.mxu0 %v3805
        %4046 = vmatprep.subr.mxu0 0.0
        %4047 = vmatpush2.msra.mxu0 %v3804
        %4048 = vmatprep.subr.mxu0 0.0
        %4049 = vmatpush2.msra.mxu0 %v3803
        %4050 = vmatprep.subr.mxu0 0.0
        %4051 = vmatpush2.msra.mxu0 %v3802
        %4052 = vmatprep.subr.mxu0 0.0
        %4053 = vmatpush2.msra.mxu0 %v3801
        %4054 = vmatprep.subr.mxu0 0.0
        %4055 = vmatpush2.msra.mxu0 %v3800
        %4056 = vmatprep.mubr.f32.mxu0 %v3691
        %4057 = vmatmul.mubr.f32.gmra.mxu0 %v3690
        %v4058 = vpop.f32.mrf.mxu0
        %v4059 = vadd.f32 %v3954, %v4058
        %v4060 = vpop.f32.mrf.mxu0
        %4061 = vmatprep.mubr.f32.mxu0 %v3699
        %4062 = vmatmul.mubr.f32.gmra.mxu0 %v3698
        %v4063 = vpop.f32.mrf.mxu0
        %v4064 = vadd.f32 %v3959, %v4063
        %v4065 = vpop.f32.mrf.mxu0
        %4066 = vmatprep.mubr.f32.mxu0 %v3707
        %4067 = vmatmul.mubr.f32.gmra.mxu0 %v3706
        %v4068 = vpop.f32.mrf.mxu0
        %v4069 = vadd.f32 %v3964, %v4068
        %v4070 = vpop.f32.mrf.mxu0
        %4071 = vmatprep.mubr.f32.mxu0 %v3715
        %4072 = vmatmul.mubr.f32.gmra.mxu0 %v3714
        %v4073 = vpop.f32.mrf.mxu0
        %v4074 = vadd.f32 %v3969, %v4073
        %v4075 = vpop.f32.mrf.mxu0
        %4076 = vmatprep.mubr.f32.mxu0 %v3723
        %4077 = vmatmul.mubr.f32.gmra.mxu0 %v3722
        %v4078 = vpop.f32.mrf.mxu0
        %v4079 = vadd.f32 %v3974, %v4078
        %v4080 = vpop.f32.mrf.mxu0
        %4081 = vmatprep.mubr.f32.mxu0 %v3731
        %4082 = vmatmul.mubr.f32.gmra.mxu0 %v3730
        %v4083 = vpop.f32.mrf.mxu0
        %v4084 = vadd.f32 %v3979, %v4083
        %v4085 = vpop.f32.mrf.mxu0
        %4086 = vmatprep.mubr.f32.mxu0 %v3739
        %4087 = vmatmul.mubr.f32.gmra.mxu0 %v3738
        %v4088 = vpop.f32.mrf.mxu0
        %v4089 = vadd.f32 %v3984, %v4088
        %v4090 = vpop.f32.mrf.mxu0
        %4091 = vmatprep.mubr.f32.mxu0 %v3747
        %4092 = vmatmul.mubr.f32.gmra.mxu0 %v3746
        %v4093 = vpop.f32.mrf.mxu0
        %v4094 = vadd.f32 %v3989, %v4093
        %v4095 = vpop.f32.mrf.mxu0
        %4096 = vdwg.mxu0
        %4097 = vmatprep.subr.mxu0 0.0
        %4098 = vmatpush1.msra.mxu0 %v3831
        %4099 = vmatprep.subr.mxu0 0.0
        %4100 = vmatpush1.msra.mxu0 %v3830
        %4101 = vmatprep.subr.mxu0 0.0
        %4102 = vmatpush1.msra.mxu0 %v3829
        %4103 = vmatprep.subr.mxu0 0.0
        %4104 = vmatpush1.msra.mxu0 %v3828
        %4105 = vmatprep.subr.mxu0 0.0
        %4106 = vmatpush1.msra.mxu0 %v3827
        %4107 = vmatprep.subr.mxu0 0.0
        %4108 = vmatpush1.msra.mxu0 %v3826
        %4109 = vmatprep.subr.mxu0 0.0
        %4110 = vmatpush1.msra.mxu0 %v3825
        %4111 = vmatprep.subr.mxu0 0.0
        %4112 = vmatpush1.msra.mxu0 %v3824
        %4113 = vmatprep.subr.mxu0 0.0
        %4114 = vmatpush1.msra.mxu0 %v3823
        %4115 = vmatprep.subr.mxu0 0.0
        %4116 = vmatpush1.msra.mxu0 %v3822
        %4117 = vmatprep.subr.mxu0 0.0
        %4118 = vmatpush1.msra.mxu0 %v3821
        %4119 = vmatprep.subr.mxu0 0.0
        %4120 = vmatpush1.msra.mxu0 %v3820
        %4121 = vmatprep.subr.mxu0 0.0
        %4122 = vmatpush1.msra.mxu0 %v3819
        %4123 = vmatprep.subr.mxu0 0.0
        %4124 = vmatpush1.msra.mxu0 %v3818
        %4125 = vmatprep.subr.mxu0 0.0
        %4126 = vmatpush1.msra.mxu0 %v3817
        %4127 = vmatprep.subr.mxu0 0.0
        %4128 = vmatpush1.msra.mxu0 %v3816
        %4129 = vmatprep.subr.mxu0 0.0
        %4130 = vmatpush2.msra.mxu0 %v3847
        %4131 = vmatprep.subr.mxu0 0.0
        %4132 = vmatpush2.msra.mxu0 %v3846
        %4133 = vmatprep.subr.mxu0 0.0
        %4134 = vmatpush2.msra.mxu0 %v3845
        %4135 = vmatprep.subr.mxu0 0.0
        %4136 = vmatpush2.msra.mxu0 %v3844
        %4137 = vmatprep.subr.mxu0 0.0
        %4138 = vmatpush2.msra.mxu0 %v3843
        %4139 = vmatprep.subr.mxu0 0.0
        %4140 = vmatpush2.msra.mxu0 %v3842
        %4141 = vmatprep.subr.mxu0 0.0
        %4142 = vmatpush2.msra.mxu0 %v3841
        %4143 = vmatprep.subr.mxu0 0.0
        %4144 = vmatpush2.msra.mxu0 %v3840
        %4145 = vmatprep.subr.mxu0 0.0
        %4146 = vmatpush2.msra.mxu0 %v3839
        %4147 = vmatprep.subr.mxu0 0.0
        %4148 = vmatpush2.msra.mxu0 %v3838
        %4149 = vmatprep.subr.mxu0 0.0
        %4150 = vmatpush2.msra.mxu0 %v3837
        %4151 = vmatprep.subr.mxu0 0.0
        %4152 = vmatpush2.msra.mxu0 %v3836
        %4153 = vmatprep.subr.mxu0 0.0
        %4154 = vmatpush2.msra.mxu0 %v3835
        %4155 = vmatprep.subr.mxu0 0.0
        %4156 = vmatpush2.msra.mxu0 %v3834
        %4157 = vmatprep.subr.mxu0 0.0
        %4158 = vmatpush2.msra.mxu0 %v3833
        %4159 = vmatprep.subr.mxu0 0.0
        %4160 = vmatpush2.msra.mxu0 %v3832
        %4161 = vmatprep.mubr.f32.mxu0 %v3693
        %4162 = vmatmul.mubr.f32.gmra.mxu0 %v3692
        %v4163 = vpop.f32.mrf.mxu0
        %v4164 = vadd.f32 %v4059, %v4163
        %v4165 = vpop.f32.mrf.mxu0
        %4166 = vmatprep.mubr.f32.mxu0 %v3701
        %4167 = vmatmul.mubr.f32.gmra.mxu0 %v3700
        %v4168 = vpop.f32.mrf.mxu0
        %v4169 = vadd.f32 %v4064, %v4168
        %v4170 = vpop.f32.mrf.mxu0
        %4171 = vmatprep.mubr.f32.mxu0 %v3709
        %4172 = vmatmul.mubr.f32.gmra.mxu0 %v3708
        %v4173 = vpop.f32.mrf.mxu0
        %v4174 = vadd.f32 %v4069, %v4173
        %v4175 = vpop.f32.mrf.mxu0
        %4176 = vmatprep.mubr.f32.mxu0 %v3717
        %4177 = vmatmul.mubr.f32.gmra.mxu0 %v3716
        %v4178 = vpop.f32.mrf.mxu0
        %v4179 = vadd.f32 %v4074, %v4178
        %v4180 = vpop.f32.mrf.mxu0
        %4181 = vmatprep.mubr.f32.mxu0 %v3725
        %4182 = vmatmul.mubr.f32.gmra.mxu0 %v3724
        %v4183 = vpop.f32.mrf.mxu0
        %v4184 = vadd.f32 %v4079, %v4183
        %v4185 = vpop.f32.mrf.mxu0
        %4186 = vmatprep.mubr.f32.mxu0 %v3733
        %4187 = vmatmul.mubr.f32.gmra.mxu0 %v3732
        %v4188 = vpop.f32.mrf.mxu0
        %v4189 = vadd.f32 %v4084, %v4188
        %v4190 = vpop.f32.mrf.mxu0
        %4191 = vmatprep.mubr.f32.mxu0 %v3741
        %4192 = vmatmul.mubr.f32.gmra.mxu0 %v3740
        %v4193 = vpop.f32.mrf.mxu0
        %v4194 = vadd.f32 %v4089, %v4193
        %v4195 = vpop.f32.mrf.mxu0
        %4196 = vmatprep.mubr.f32.mxu0 %v3749
        %4197 = vmatmul.mubr.f32.gmra.mxu0 %v3748
        %v4198 = vpop.f32.mrf.mxu0
        %v4199 = vadd.f32 %v4094, %v4198
        %v4200 = vpop.f32.mrf.mxu0
        %4201 = vdwg.mxu0
        %4202 = vmatprep.subr.mxu0 0.0
        %4203 = vmatpush1.msra.mxu0 %v3863
        %4204 = vmatprep.subr.mxu0 0.0
        %4205 = vmatpush1.msra.mxu0 %v3862
        %4206 = vmatprep.subr.mxu0 0.0
        %4207 = vmatpush1.msra.mxu0 %v3861
        %4208 = vmatprep.subr.mxu0 0.0
        %4209 = vmatpush1.msra.mxu0 %v3860
        %4210 = vmatprep.subr.mxu0 0.0
        %4211 = vmatpush1.msra.mxu0 %v3859
        %4212 = vmatprep.subr.mxu0 0.0
        %4213 = vmatpush1.msra.mxu0 %v3858
        %4214 = vmatprep.subr.mxu0 0.0
        %4215 = vmatpush1.msra.mxu0 %v3857
        %4216 = vmatprep.subr.mxu0 0.0
        %4217 = vmatpush1.msra.mxu0 %v3856
        %4218 = vmatprep.subr.mxu0 0.0
        %4219 = vmatpush1.msra.mxu0 %v3855
        %4220 = vmatprep.subr.mxu0 0.0
        %4221 = vmatpush1.msra.mxu0 %v3854
        %4222 = vmatprep.subr.mxu0 0.0
        %4223 = vmatpush1.msra.mxu0 %v3853
        %4224 = vmatprep.subr.mxu0 0.0
        %4225 = vmatpush1.msra.mxu0 %v3852
        %4226 = vmatprep.subr.mxu0 0.0
        %4227 = vmatpush1.msra.mxu0 %v3851
        %4228 = vmatprep.subr.mxu0 0.0
        %4229 = vmatpush1.msra.mxu0 %v3850
        %4230 = vmatprep.subr.mxu0 0.0
        %4231 = vmatpush1.msra.mxu0 %v3849
        %4232 = vmatprep.subr.mxu0 0.0
        %4233 = vmatpush1.msra.mxu0 %v3848
        %4234 = vmatprep.subr.mxu0 0.0
        %4235 = vmatpush2.msra.mxu0 %v3879
        %4236 = vmatprep.subr.mxu0 0.0
        %4237 = vmatpush2.msra.mxu0 %v3878
        %4238 = vmatprep.subr.mxu0 0.0
        %4239 = vmatpush2.msra.mxu0 %v3877
        %4240 = vmatprep.subr.mxu0 0.0
        %4241 = vmatpush2.msra.mxu0 %v3876
        %4242 = vmatprep.subr.mxu0 0.0
        %4243 = vmatpush2.msra.mxu0 %v3875
        %4244 = vmatprep.subr.mxu0 0.0
        %4245 = vmatpush2.msra.mxu0 %v3874
        %4246 = vmatprep.subr.mxu0 0.0
        %4247 = vmatpush2.msra.mxu0 %v3873
        %4248 = vmatprep.subr.mxu0 0.0
        %4249 = vmatpush2.msra.mxu0 %v3872
        %4250 = vmatprep.subr.mxu0 0.0
        %4251 = vmatpush2.msra.mxu0 %v3871
        %4252 = vmatprep.subr.mxu0 0.0
        %4253 = vmatpush2.msra.mxu0 %v3870
        %4254 = vmatprep.subr.mxu0 0.0
        %4255 = vmatpush2.msra.mxu0 %v3869
        %4256 = vmatprep.subr.mxu0 0.0
        %4257 = vmatpush2.msra.mxu0 %v3868
        %4258 = vmatprep.subr.mxu0 0.0
        %4259 = vmatpush2.msra.mxu0 %v3867
        %4260 = vmatprep.subr.mxu0 0.0
        %4261 = vmatpush2.msra.mxu0 %v3866
        %4262 = vmatprep.subr.mxu0 0.0
        %4263 = vmatpush2.msra.mxu0 %v3865
        %4264 = vmatprep.subr.mxu0 0.0
        %4265 = vmatpush2.msra.mxu0 %v3864
        %4266 = vmatprep.mubr.f32.mxu0 %v3695
        %4267 = vmatmul.mubr.f32.gmra.mxu0 %v3694
        %v4268 = vpop.f32.mrf.mxu0
        %v4269 = vadd.f32 %v4164, %v4268
        %v4270 = vpop.f32.mrf.mxu0
        %4271 = vmatprep.mubr.f32.mxu0 %v3703
        %4272 = vmatmul.mubr.f32.gmra.mxu0 %v3702
        %v4273 = vpop.f32.mrf.mxu0
        %v4274 = vadd.f32 %v4169, %v4273
        %v4275 = vpop.f32.mrf.mxu0
        %4276 = vmatprep.mubr.f32.mxu0 %v3711
        %4277 = vmatmul.mubr.f32.gmra.mxu0 %v3710
        %v4278 = vpop.f32.mrf.mxu0
        %v4279 = vadd.f32 %v4174, %v4278
        %v4280 = vpop.f32.mrf.mxu0
        %4281 = vmatprep.mubr.f32.mxu0 %v3719
        %4282 = vmatmul.mubr.f32.gmra.mxu0 %v3718
        %v4283 = vpop.f32.mrf.mxu0
        %v4284 = vadd.f32 %v4179, %v4283
        %v4285 = vpop.f32.mrf.mxu0
        %4286 = vmatprep.mubr.f32.mxu0 %v3727
        %4287 = vmatmul.mubr.f32.gmra.mxu0 %v3726
        %v4288 = vpop.f32.mrf.mxu0
        %v4289 = vadd.f32 %v4184, %v4288
        %v4290 = vpop.f32.mrf.mxu0
        %4291 = vmatprep.mubr.f32.mxu0 %v3735
        %4292 = vmatmul.mubr.f32.gmra.mxu0 %v3734
        %v4293 = vpop.f32.mrf.mxu0
        %v4294 = vadd.f32 %v4189, %v4293
        %v4295 = vpop.f32.mrf.mxu0
        %4296 = vmatprep.mubr.f32.mxu0 %v3743
        %4297 = vmatmul.mubr.f32.gmra.mxu0 %v3742
        %v4298 = vpop.f32.mrf.mxu0
        %v4299 = vadd.f32 %v4194, %v4298
        %v4300 = vpop.f32.mrf.mxu0
        %4301 = vmatprep.mubr.f32.mxu0 %v3751
        %4302 = vmatmul.mubr.f32.gmra.mxu0 %v3750
        %v4303 = vpop.f32.mrf.mxu0
        %v4304 = vadd.f32 %v4199, %v4303
        %v4305 = vpop.f32.mrf.mxu0
        %4306 = vdwg.mxu0
        %v4307 = vadd.f32 %v3058, %v4269
        %v4308 = vadd.f32 %v3059, %v4274
        %v4309 = vadd.f32 %v3060, %v4279
        %v4310 = vadd.f32 %v3061, %v4284
        %v4311 = vadd.f32 %v3062, %v4289
        %v4312 = vadd.f32 %v3063, %v4294
        %v4313 = vadd.f32 %v3064, %v4299
        %v4314 = vadd.f32 %v3065, %v4304
        %v4315 = vld [vmem:[#allocation2] sm:$0x1]
        %v4316 = vld [vmem:[#allocation4] sm:$0x1]
        %4317 = vadd.xlane.f32.xlu0 %v4307
        %v4318 = vpop.xlane.xlu0 %4317
        %4319 = vadd.xlane.f32.xlu0 %v4308
        %v4320 = vpop.xlane.xlu0 %4319
        %4321 = vadd.xlane.f32.xlu0 %v4309
        %v4322 = vpop.xlane.xlu0 %4321
        %4323 = vadd.xlane.f32.xlu0 %v4310
        %v4324 = vpop.xlane.xlu0 %4323
        %4325 = vadd.xlane.f32.xlu0 %v4311
        %v4326 = vpop.xlane.xlu0 %4325
        %4327 = vadd.xlane.f32.xlu0 %v4312
        %v4328 = vpop.xlane.xlu0 %4327
        %4329 = vadd.xlane.f32.xlu0 %v4313
        %v4330 = vpop.xlane.xlu0 %4329
        %4331 = vadd.xlane.f32.xlu0 %v4314
        %v4332 = vpop.xlane.xlu0 %4331
        %v4333 = vmul.f32 %v4318, %v2965
        %v4334 = vmul.f32 %v4320, %v2965
        %v4335 = vmul.f32 %v4322, %v2965
        %v4336 = vmul.f32 %v4324, %v2965
        %v4337 = vmul.f32 %v4326, %v2965
        %v4338 = vmul.f32 %v4328, %v2965
        %v4339 = vmul.f32 %v4330, %v2965
        %v4340 = vmul.f32 %v4332, %v2965
        %v4341 = vsub.f32 %v4307, %v4333
        %v4342 = vsub.f32 %v4308, %v4334
        %v4343 = vsub.f32 %v4309, %v4335
        %v4344 = vsub.f32 %v4310, %v4336
        %v4345 = vsub.f32 %v4311, %v4337
        %v4346 = vsub.f32 %v4312, %v4338
        %v4347 = vsub.f32 %v4313, %v4339
        %v4348 = vsub.f32 %v4314, %v4340
        %v4349 = vmul.f32 %v4341, %v4341
        %v4350 = vmul.f32 %v4342, %v4342
        %v4351 = vmul.f32 %v4343, %v4343
        %v4352 = vmul.f32 %v4344, %v4344
        %v4353 = vmul.f32 %v4345, %v4345
        %v4354 = vmul.f32 %v4346, %v4346
        %v4355 = vmul.f32 %v4347, %v4347
        %v4356 = vmul.f32 %v4348, %v4348
        %4357 = vadd.xlane.f32.xlu0 %v4349
        %v4358 = vpop.xlane.xlu0 %4357
        %4359 = vadd.xlane.f32.xlu0 %v4350
        %v4360 = vpop.xlane.xlu0 %4359
        %4361 = vadd.xlane.f32.xlu0 %v4351
        %v4362 = vpop.xlane.xlu0 %4361
        %4363 = vadd.xlane.f32.xlu0 %v4352
        %v4364 = vpop.xlane.xlu0 %4363
        %4365 = vadd.xlane.f32.xlu0 %v4353
        %v4366 = vpop.xlane.xlu0 %4365
        %4367 = vadd.xlane.f32.xlu0 %v4354
        %v4368 = vpop.xlane.xlu0 %4367
        %4369 = vadd.xlane.f32.xlu0 %v4355
        %v4370 = vpop.xlane.xlu0 %4369
        %4371 = vadd.xlane.f32.xlu0 %v4356
        %v4372 = vpop.xlane.xlu0 %4371
        %v4373 = vmul.f32 %v4358, %v2965
        %v4374 = vmul.f32 %v4360, %v2965
        %v4375 = vmul.f32 %v4362, %v2965
        %v4376 = vmul.f32 %v4364, %v2965
        %v4377 = vmul.f32 %v4366, %v2965
        %v4378 = vmul.f32 %v4368, %v2965
        %v4379 = vmul.f32 %v4370, %v2965
        %v4380 = vmul.f32 %v4372, %v2965
        %v4381 = vadd.f32 %v4373, 1e-05
        %v4382 = vadd.f32 %v4374, 1e-05
        %v4383 = vadd.f32 %v4375, 1e-05
        %v4384 = vadd.f32 %v4376, 1e-05
        %v4385 = vadd.f32 %v4377, 1e-05
        %v4386 = vadd.f32 %v4378, 1e-05
        %v4387 = vadd.f32 %v4379, 1e-05
        %v4388 = vadd.f32 %v4380, 1e-05
        %v4389 = vrsqrt.pop %v4381
        %v4390 = vrsqrt.pop %v4382
        %v4391 = vrsqrt.pop %v4383
        %v4392 = vrsqrt.pop %v4384
        %v4393 = vrsqrt.pop %v4385
        %v4394 = vrsqrt.pop %v4386
        %v4395 = vrsqrt.pop %v4387
        %v4396 = vrsqrt.pop %v4388
        %v4397 = vmul.f32 %v4341, %v4389
        %v4398 = vmul.f32 %v4342, %v4390
        %v4399 = vmul.f32 %v4343, %v4391
        %v4400 = vmul.f32 %v4344, %v4392
        %v4401 = vmul.f32 %v4345, %v4393
        %v4402 = vmul.f32 %v4346, %v4394
        %v4403 = vmul.f32 %v4347, %v4395
        %v4404 = vmul.f32 %v4348, %v4396
        %v4406 = vlaneseq
        %v4407 = vshrl.u32 %v4406, 7
        %v4408 = vsub.s32 0, %v4407
        %v4409 = vrot.slane %v4315, %v4408
        %v4411 = vmul.f32 %v4397, %v4409
        %v4412 = vmul.f32 %v4398, %v4409
        %v4413 = vmul.f32 %v4399, %v4409
        %v4414 = vmul.f32 %v4400, %v4409
        %v4415 = vmul.f32 %v4401, %v4409
        %v4416 = vmul.f32 %v4402, %v4409
        %v4417 = vmul.f32 %v4403, %v4409
        %v4418 = vmul.f32 %v4404, %v4409
        %v4420 = vlaneseq
        %v4421 = vshrl.u32 %v4420, 7
        %v4422 = vsub.s32 0, %v4421
        %v4423 = vrot.slane %v4316, %v4422
        %v4425 = vadd.f32 %v4411, %v4423
        %v4426 = vadd.f32 %v4412, %v4423
        %v4427 = vadd.f32 %v4413, %v4423
        %v4428 = vadd.f32 %v4414, %v4423
        %v4429 = vadd.f32 %v4415, %v4423
        %v4430 = vadd.f32 %v4416, %v4423
        %v4431 = vadd.f32 %v4417, %v4423
        %v4432 = vadd.f32 %v4418, %v4423
        %4433 = vst [vmem:[%s466] sm:$0xff] %v4425
        %4434 = vst [vmem:[%s466 + $0x8] sm:$0xff] %v4426
        %4435 = vst [vmem:[%s466 + $0x10] sm:$0xff] %v4427
        %4436 = vst [vmem:[%s466 + $0x18] sm:$0xff] %v4428
        %4437 = vst [vmem:[%s466 + $0x20] sm:$0xff] %v4429
        %4438 = vst [vmem:[%s466 + $0x28] sm:$0xff] %v4430
        %4439 = vst [vmem:[%s466 + $0x30] sm:$0xff] %v4431
        %4440 = vst [vmem:[%s466 + $0x38] sm:$0xff] %v4432
        %p4441 = scmp.lt.s32.totalorder %s26, 1
        %s4442 = scalar_select %p4441, %s26, 1
        %s4443 = smul.addr %s4442, 8
        %s4444 = smul.addr %s4443, 8
        %s4445 = scalar_lea.vmem %s13, %s4444
        // Predicated region
        $region81: #{patch_transformer_encoder.8} parent=71 // pred_check
          %p4446 = pneg %p322
        $region82: #{patch_transformer_encoder.8} parent=71 // pred_check_branch
          %4448 = sbr.rel (%p4446) target = $region84
        $region83: #{patch_transformer_encoder.8} parent=71 // pred_region
          _
        $region84: #{patch_transformer_encoder.8} parent=71 // pred_fallthru
          _
      $region72: #{patch_transformer_encoder.8} parent=5 // pred_fallthru
        _
      %p4449 = scmp.le.s32.totalorder 2, %s21
      // Predicated region
      $region85: #{patch_transformer_encoder.8} parent=5 // pred_check
        %p4450 = pneg %p4449
      $region86: #{patch_transformer_encoder.8} parent=5 // pred_check_branch
        %4452 = sbr.rel (%p4450) target = $region88
      $region87: #{patch_transformer_encoder.8} parent=5 // pred_region
        %s4453 = ssub.s32 %s21, 2
        // Predicated region
        $region89: #{patch_transformer_encoder.8} parent=87 // pred_check
          %p4454 = pneg %p328
        $region90: #{patch_transformer_encoder.8} parent=87 // pred_check_branch
          %4456 = sbr.rel (%p4454) target = $region92
        $region91: #{patch_transformer_encoder.8} parent=87 // pred_region
          %p4457 = scmp.lt.s32.totalorder %s27, 1
          %s4458 = scalar_select %p4457, %s27, 1
          %s4459 = smul.addr %s4458, 8
          %s4460 = smul.addr %s4459, 8
          %s4461 = scalar_lea.vmem %s13, %s4460
        $region92: #{patch_transformer_encoder.8} parent=87 // pred_fallthru
          _
      $region88: #{patch_transformer_encoder.8} parent=5 // pred_fallthru
        _
    $region6: #{patch_transformer_encoder.8} parent=1 // loop_footer
      %s25 = sadd.s32 1, %s21
    $region7: #{patch_transformer_encoder.8} parent=1 // loop_footer_branch
      %20 = sbr.rel target = $region3
    $region8: #{patch_transformer_encoder.8} parent=1 // loop_exit
      _
    %4462 = vsyncpa [#allocation3], 1
    %s4463 = scalar_lea.sflag [#allocation3], 1
    %4464 = vsyncpa %s4463, 1
    %4465 = vsyncpa [#allocation5], 1

// kernel: patch_transformer_encoder.6
$region0: #{patch_transformer_encoder.6}
  #allocation0 [shape = 'u32[]', space=smem, size = 0x4, offset = 0x4, fixed_abs, tag = 'smem constant byte address 0x4 - core index']
  #allocation1 [shape = 'u32[144,128]{1,0:T(1,128)}', space=vmem, size = 0x12000, scoped, tag = 'internal scratch']
  %s0 = inlined_call_operand.vmem [shape: f32[2,64,128], index: 0, kind: input, shape index: {}]
  %s1 = inlined_call_operand.vmem [shape: f32[128,384], index: 1, kind: input, shape index: {}]
  %s2 = inlined_call_operand.vmem [shape: f32[1,384], index: 2, kind: input, shape index: {}]
  %s3 = inlined_call_operand.vmem [shape: f32[128,128], index: 3, kind: input, shape index: {}]
  %s4 = inlined_call_operand.vmem [shape: f32[1,128], index: 4, kind: input, shape index: {}]
  %s5 = inlined_call_operand.vmem [shape: f32[1,128], index: 5, kind: input, shape index: {}]
  %s6 = inlined_call_operand.vmem [shape: f32[1,128], index: 6, kind: input, shape index: {}]
  %s7 = inlined_call_operand.vmem [shape: f32[128,1024], index: 7, kind: input, shape index: {}]
  %s8 = inlined_call_operand.vmem [shape: f32[1,1024], index: 8, kind: input, shape index: {}]
  %s9 = inlined_call_operand.vmem [shape: f32[1024,128], index: 9, kind: input, shape index: {}]
  %s10 = inlined_call_operand.vmem [shape: f32[1,128], index: 10, kind: input, shape index: {}]
  %s11 = inlined_call_operand.vmem [shape: f32[1,128], index: 11, kind: input, shape index: {}]
  %s12 = inlined_call_operand.vmem [shape: f32[1,128], index: 12, kind: input, shape index: {}]
  %s13 = inlined_call_operand.vmem [shape: f32[2,64,128], index: 13, kind: output, shape index: {}]
  %s14 = sld [smem:[#allocation0]]
  $region85: #{patch_transformer_encoder.6} parent=0
    _
  %s16 = ssub.s32 1, %s14
  %s17 = scalar_select 0, %s16, %s14
  loop: start=0, step=1, limit=4
  $region2: #{patch_transformer_encoder.6} parent=0 // loop_pre_header
    _
  $region3: #{patch_transformer_encoder.6} parent=0 // loop_header
    %s19 = sphi 0, %s23
    %p20 = scmp.ge.s32.totalorder %s19, 4
    %s29 = sphi 0, %s31
    %s32 = sphi 0, %s29
    %s33 = sphi 0, %s32
    %s49 = sphi 0, %s33
    %s53 = sphi 0, %s53
    %s55 = sphi 0, %s53
    %s56 = sphi 0, %s55
    %s70 = sphi 0, %s56
    %s74 = sphi 0, %s74
    %s76 = sphi 0, %s74
    %s77 = sphi 0, %s76
    %s91 = sphi 0, %s77
    %s95 = sphi 0, %s95
    %s97 = sphi 0, %s95
    %s98 = sphi 0, %s97
    %s112 = sphi 0, %s98
    %s116 = sphi 0, %s116
    %s118 = sphi 0, %s116
    %s119 = sphi 0, %s118
    %s133 = sphi 0, %s119
    %s137 = sphi 0, %s137
    %s139 = sphi 0, %s137
    %s140 = sphi 0, %s139
    %s154 = sphi 0, %s140
    %s158 = sphi 0, %s158
    %s160 = sphi 0, %s158
    %s161 = sphi 0, %s160
    %s175 = sphi 0, %s161
    %s179 = sphi 0, %s179
    %s181 = sphi 0, %s179
    %s182 = sphi 0, %s181
    %s196 = sphi 0, %s182
    %s200 = sphi 0, %s200
    %s202 = sphi 0, %s200
    %s203 = sphi 0, %s202
    %s217 = sphi 0, %s203
    %s221 = sphi 0, %s221
    %s223 = sphi 0, %s221
    %s224 = sphi 0, %s223
    %s238 = sphi 0, %s224
    %s242 = sphi 0, %s242
    %s244 = sphi 0, %s242
    %s245 = sphi 0, %s244
    %s259 = sphi 0, %s245
    %s263 = sphi 0, %s263
    %s265 = sphi 0, %s263
    %s266 = sphi 0, %s265
    %s280 = sphi 0, %s266
    %s284 = sphi 0, %s284
    %s286 = sphi 0, %s284
    %s287 = sphi 0, %s286
    %s301 = sphi 0, %s287
    %s307 = sphi 0, %s309
    %s310 = sphi 0, %s307
    %s311 = sphi 0, %s310
    %s327 = sphi 0, %s311
  $region4: #{patch_transformer_encoder.6} parent=0 // loop_header_branch
    %22 = sbr.rel (%p20) target = $region8
  $region5: #{patch_transformer_encoder.6} parent=0 // loop_body
    %s24 = ssub.s32 %s19, 1
    %s25 = ssub.s32 %s19, 2
    %s26 = sadd.s32 %s19, 1
    %s27 = ssub.s32 %s19, %s26
    %p28 = scmp.eq.s32.totalorder %s27, 0
    %s30 = sadd.s32 %s29, 1
    %s31 = scalar_select %p28, %s29, %s30
    %p34 = pneg %p28
    %p35 = scmp.eq.s32.totalorder %s19, 1
    %p36 = por %p34, %p35
    %p37 = scmp.ne.s32.totalorder %s29, %s32
    %p38 = scmp.eq.s32.totalorder %s19, 0
    %p39 = por %p37, %p38
    %p40 = scmp.ne.s32.totalorder %s29, %s32
    %p41 = scmp.eq.s32.totalorder %s24, 1
    %p42 = por %p40, %p41
    %p43 = scmp.ne.s32.totalorder %s32, %s33
    %p44 = scmp.eq.s32.totalorder %s24, 0
    %p45 = por %p43, %p44
    %p46 = scmp.ne.s32.totalorder %s32, %s33
    %p47 = scmp.eq.s32.totalorder %s25, 1
    %p48 = por %p46, %p47
    %p50 = scmp.ne.s32.totalorder %s33, %s49
    %p51 = scmp.eq.s32.totalorder %s25, 0
    %p52 = por %p50, %p51
    %s54 = sadd.s32 %s53, 1
    %p57 = scmp.eq.s32.totalorder %s19, 1
    %p58 = scmp.ne.s32.totalorder %s53, %s55
    %p59 = scmp.eq.s32.totalorder %s19, 0
    %p60 = por %p58, %p59
    %p61 = scmp.ne.s32.totalorder %s53, %s55
    %p62 = scmp.eq.s32.totalorder %s24, 1
    %p63 = por %p61, %p62
    %p64 = scmp.ne.s32.totalorder %s55, %s56
    %p65 = scmp.eq.s32.totalorder %s24, 0
    %p66 = por %p64, %p65
    %p67 = scmp.ne.s32.totalorder %s55, %s56
    %p68 = scmp.eq.s32.totalorder %s25, 1
    %p69 = por %p67, %p68
    %p71 = scmp.ne.s32.totalorder %s56, %s70
    %p72 = scmp.eq.s32.totalorder %s25, 0
    %p73 = por %p71, %p72
    %s75 = sadd.s32 %s74, 1
    %p78 = scmp.eq.s32.totalorder %s19, 1
    %p79 = scmp.ne.s32.totalorder %s74, %s76
    %p80 = scmp.eq.s32.totalorder %s19, 0
    %p81 = por %p79, %p80
    %p82 = scmp.ne.s32.totalorder %s74, %s76
    %p83 = scmp.eq.s32.totalorder %s24, 1
    %p84 = por %p82, %p83
    %p85 = scmp.ne.s32.totalorder %s76, %s77
    %p86 = scmp.eq.s32.totalorder %s24, 0
    %p87 = por %p85, %p86
    %p88 = scmp.ne.s32.totalorder %s76, %s77
    %p89 = scmp.eq.s32.totalorder %s25, 1
    %p90 = por %p88, %p89
    %p92 = scmp.ne.s32.totalorder %s77, %s91
    %p93 = scmp.eq.s32.totalorder %s25, 0
    %p94 = por %p92, %p93
    %s96 = sadd.s32 %s95, 1
    %p99 = scmp.eq.s32.totalorder %s19, 1
    %p100 = scmp.ne.s32.totalorder %s95, %s97
    %p101 = scmp.eq.s32.totalorder %s19, 0
    %p102 = por %p100, %p101
    %p103 = scmp.ne.s32.totalorder %s95, %s97
    %p104 = scmp.eq.s32.totalorder %s24, 1
    %p105 = por %p103, %p104
    %p106 = scmp.ne.s32.totalorder %s97, %s98
    %p107 = scmp.eq.s32.totalorder %s24, 0
    %p108 = por %p106, %p107
    %p109 = scmp.ne.s32.totalorder %s97, %s98
    %p110 = scmp.eq.s32.totalorder %s25, 1
    %p111 = por %p109, %p110
    %p113 = scmp.ne.s32.totalorder %s98, %s112
    %p114 = scmp.eq.s32.totalorder %s25, 0
    %p115 = por %p113, %p114
    %s117 = sadd.s32 %s116, 1
    %p120 = scmp.eq.s32.totalorder %s19, 1
    %p121 = scmp.ne.s32.totalorder %s116, %s118
    %p122 = scmp.eq.s32.totalorder %s19, 0
    %p123 = por %p121, %p122
    %p124 = scmp.ne.s32.totalorder %s116, %s118
    %p125 = scmp.eq.s32.totalorder %s24, 1
    %p126 = por %p124, %p125
    %p127 = scmp.ne.s32.totalorder %s118, %s119
    %p128 = scmp.eq.s32.totalorder %s24, 0
    %p129 = por %p127, %p128
    %p130 = scmp.ne.s32.totalorder %s118, %s119
    %p131 = scmp.eq.s32.totalorder %s25, 1
    %p132 = por %p130, %p131
    %p134 = scmp.ne.s32.totalorder %s119, %s133
    %p135 = scmp.eq.s32.totalorder %s25, 0
    %p136 = por %p134, %p135
    %s138 = sadd.s32 %s137, 1
    %p141 = scmp.eq.s32.totalorder %s19, 1
    %p142 = scmp.ne.s32.totalorder %s137, %s139
    %p143 = scmp.eq.s32.totalorder %s19, 0
    %p144 = por %p142, %p143
    %p145 = scmp.ne.s32.totalorder %s137, %s139
    %p146 = scmp.eq.s32.totalorder %s24, 1
    %p147 = por %p145, %p146
    %p148 = scmp.ne.s32.totalorder %s139, %s140
    %p149 = scmp.eq.s32.totalorder %s24, 0
    %p150 = por %p148, %p149
    %p151 = scmp.ne.s32.totalorder %s139, %s140
    %p152 = scmp.eq.s32.totalorder %s25, 1
    %p153 = por %p151, %p152
    %p155 = scmp.ne.s32.totalorder %s140, %s154
    %p156 = scmp.eq.s32.totalorder %s25, 0
    %p157 = por %p155, %p156
    %s159 = sadd.s32 %s158, 1
    %p162 = scmp.eq.s32.totalorder %s19, 1
    %p163 = scmp.ne.s32.totalorder %s158, %s160
    %p164 = scmp.eq.s32.totalorder %s19, 0
    %p165 = por %p163, %p164
    %p166 = scmp.ne.s32.totalorder %s158, %s160
    %p167 = scmp.eq.s32.totalorder %s24, 1
    %p168 = por %p166, %p167
    %p169 = scmp.ne.s32.totalorder %s160, %s161
    %p170 = scmp.eq.s32.totalorder %s24, 0
    %p171 = por %p169, %p170
    %p172 = scmp.ne.s32.totalorder %s160, %s161
    %p173 = scmp.eq.s32.totalorder %s25, 1
    %p174 = por %p172, %p173
    %p176 = scmp.ne.s32.totalorder %s161, %s175
    %p177 = scmp.eq.s32.totalorder %s25, 0
    %p178 = por %p176, %p177
    %s180 = sadd.s32 %s179, 1
    %p183 = scmp.eq.s32.totalorder %s19, 1
    %p184 = scmp.ne.s32.totalorder %s179, %s181
    %p185 = scmp.eq.s32.totalorder %s19, 0
    %p186 = por %p184, %p185
    %p187 = scmp.ne.s32.totalorder %s179, %s181
    %p188 = scmp.eq.s32.totalorder %s24, 1
    %p189 = por %p187, %p188
    %p190 = scmp.ne.s32.totalorder %s181, %s182
    %p191 = scmp.eq.s32.totalorder %s24, 0
    %p192 = por %p190, %p191
    %p193 = scmp.ne.s32.totalorder %s181, %s182
    %p194 = scmp.eq.s32.totalorder %s25, 1
    %p195 = por %p193, %p194
    %p197 = scmp.ne.s32.totalorder %s182, %s196
    %p198 = scmp.eq.s32.totalorder %s25, 0
    %p199 = por %p197, %p198
    %s201 = sadd.s32 %s200, 1
    %p204 = scmp.eq.s32.totalorder %s19, 1
    %p205 = scmp.ne.s32.totalorder %s200, %s202
    %p206 = scmp.eq.s32.totalorder %s19, 0
    %p207 = por %p205, %p206
    %p208 = scmp.ne.s32.totalorder %s200, %s202
    %p209 = scmp.eq.s32.totalorder %s24, 1
    %p210 = por %p208, %p209
    %p211 = scmp.ne.s32.totalorder %s202, %s203
    %p212 = scmp.eq.s32.totalorder %s24, 0
    %p213 = por %p211, %p212
    %p214 = scmp.ne.s32.totalorder %s202, %s203
    %p215 = scmp.eq.s32.totalorder %s25, 1
    %p216 = por %p214, %p215
    %p218 = scmp.ne.s32.totalorder %s203, %s217
    %p219 = scmp.eq.s32.totalorder %s25, 0
    %p220 = por %p218, %p219
    %s222 = sadd.s32 %s221, 1
    %p225 = scmp.eq.s32.totalorder %s19, 1
    %p226 = scmp.ne.s32.totalorder %s221, %s223
    %p227 = scmp.eq.s32.totalorder %s19, 0
    %p228 = por %p226, %p227
    %p229 = scmp.ne.s32.totalorder %s221, %s223
    %p230 = scmp.eq.s32.totalorder %s24, 1
    %p231 = por %p229, %p230
    %p232 = scmp.ne.s32.totalorder %s223, %s224
    %p233 = scmp.eq.s32.totalorder %s24, 0
    %p234 = por %p232, %p233
    %p235 = scmp.ne.s32.totalorder %s223, %s224
    %p236 = scmp.eq.s32.totalorder %s25, 1
    %p237 = por %p235, %p236
    %p239 = scmp.ne.s32.totalorder %s224, %s238
    %p240 = scmp.eq.s32.totalorder %s25, 0
    %p241 = por %p239, %p240
    %s243 = sadd.s32 %s242, 1
    %p246 = scmp.eq.s32.totalorder %s19, 1
    %p247 = scmp.ne.s32.totalorder %s242, %s244
    %p248 = scmp.eq.s32.totalorder %s19, 0
    %p249 = por %p247, %p248
    %p250 = scmp.ne.s32.totalorder %s242, %s244
    %p251 = scmp.eq.s32.totalorder %s24, 1
    %p252 = por %p250, %p251
    %p253 = scmp.ne.s32.totalorder %s244, %s245
    %p254 = scmp.eq.s32.totalorder %s24, 0
    %p255 = por %p253, %p254
    %p256 = scmp.ne.s32.totalorder %s244, %s245
    %p257 = scmp.eq.s32.totalorder %s25, 1
    %p258 = por %p256, %p257
    %p260 = scmp.ne.s32.totalorder %s245, %s259
    %p261 = scmp.eq.s32.totalorder %s25, 0
    %p262 = por %p260, %p261
    %s264 = sadd.s32 %s263, 1
    %p267 = scmp.eq.s32.totalorder %s19, 1
    %p268 = scmp.ne.s32.totalorder %s263, %s265
    %p269 = scmp.eq.s32.totalorder %s19, 0
    %p270 = por %p268, %p269
    %p271 = scmp.ne.s32.totalorder %s263, %s265
    %p272 = scmp.eq.s32.totalorder %s24, 1
    %p273 = por %p271, %p272
    %p274 = scmp.ne.s32.totalorder %s265, %s266
    %p275 = scmp.eq.s32.totalorder %s24, 0
    %p276 = por %p274, %p275
    %p277 = scmp.ne.s32.totalorder %s265, %s266
    %p278 = scmp.eq.s32.totalorder %s25, 1
    %p279 = por %p277, %p278
    %p281 = scmp.ne.s32.totalorder %s266, %s280
    %p282 = scmp.eq.s32.totalorder %s25, 0
    %p283 = por %p281, %p282
    %s285 = sadd.s32 %s284, 1
    %p288 = scmp.eq.s32.totalorder %s19, 1
    %p289 = scmp.ne.s32.totalorder %s284, %s286
    %p290 = scmp.eq.s32.totalorder %s19, 0
    %p291 = por %p289, %p290
    %p292 = scmp.ne.s32.totalorder %s284, %s286
    %p293 = scmp.eq.s32.totalorder %s24, 1
    %p294 = por %p292, %p293
    %p295 = scmp.ne.s32.totalorder %s286, %s287
    %p296 = scmp.eq.s32.totalorder %s24, 0
    %p297 = por %p295, %p296
    %p298 = scmp.ne.s32.totalorder %s286, %s287
    %p299 = scmp.eq.s32.totalorder %s25, 1
    %p300 = por %p298, %p299
    %p302 = scmp.ne.s32.totalorder %s287, %s301
    %p303 = scmp.eq.s32.totalorder %s25, 0
    %p304 = por %p302, %p303
    %s305 = ssub.s32 %s19, %s26
    %p306 = scmp.eq.s32.totalorder %s305, 0
    %s308 = sadd.s32 %s307, 1
    %s309 = scalar_select %p306, %s307, %s308
    %p312 = pneg %p306
    %p313 = scmp.eq.s32.totalorder %s19, 1
    %p314 = por %p312, %p313
    %p315 = scmp.ne.s32.totalorder %s307, %s310
    %p316 = scmp.eq.s32.totalorder %s19, 0
    %p317 = por %p315, %p316
    %p318 = scmp.ne.s32.totalorder %s307, %s310
    %p319 = scmp.eq.s32.totalorder %s24, 1
    %p320 = por %p318, %p319
    %p321 = scmp.ne.s32.totalorder %s310, %s311
    %p322 = scmp.eq.s32.totalorder %s24, 0
    %p323 = por %p321, %p322
    %p324 = scmp.ne.s32.totalorder %s310, %s311
    %p325 = scmp.eq.s32.totalorder %s25, 1
    %p326 = por %p324, %p325
    %p328 = scmp.ne.s32.totalorder %s311, %s327
    %p329 = scmp.eq.s32.totalorder %s25, 0
    %p330 = por %p328, %p329
    %p331 = scmp.le.s32.totalorder 1, %s19
    %p332 = scmp.lt.s32.totalorder %s19, 3
    %p333 = pnand %p331, %p332
    %p334 = pneg %p333
    // Predicated region
    $region9: #{patch_transformer_encoder.6} parent=5 // pred_check
      _
    $region10: #{patch_transformer_encoder.6} parent=5 // pred_check_branch
      %336 = sbr.rel (%p333) target = $region12
    $region11: #{patch_transformer_encoder.6} parent=5 // pred_region
      %s337 = ssub.s32 %s19, 1
      // Predicated region
      $region13: #{patch_transformer_encoder.6} parent=11 // pred_check
        %p338 = pneg %p66
      $region14: #{patch_transformer_encoder.6} parent=11 // pred_check_branch
        %340 = sbr.rel (%p338) target = $region16
      $region15: #{patch_transformer_encoder.6} parent=11 // pred_region
        _
      $region16: #{patch_transformer_encoder.6} parent=11 // pred_fallthru
        _
      // Predicated region
      $region17: #{patch_transformer_encoder.6} parent=11 // pred_check
        %p341 = pneg %p87
      $region18: #{patch_transformer_encoder.6} parent=11 // pred_check_branch
        %343 = sbr.rel (%p341) target = $region20
      $region19: #{patch_transformer_encoder.6} parent=11 // pred_region
        _
      $region20: #{patch_transformer_encoder.6} parent=11 // pred_fallthru
        _
      // Predicated region
      $region21: #{patch_transformer_encoder.6} parent=11 // pred_check
        %p344 = pneg %p108
      $region22: #{patch_transformer_encoder.6} parent=11 // pred_check_branch
        %346 = sbr.rel (%p344) target = $region24
      $region23: #{patch_transformer_encoder.6} parent=11 // pred_region
        _
      $region24: #{patch_transformer_encoder.6} parent=11 // pred_fallthru
        _
      // Predicated region
      $region25: #{patch_transformer_encoder.6} parent=11 // pred_check
        %p347 = pneg %p129
      $region26: #{patch_transformer_encoder.6} parent=11 // pred_check_branch
        %349 = sbr.rel (%p347) target = $region28
      $region27: #{patch_transformer_encoder.6} parent=11 // pred_region
        _
      $region28: #{patch_transformer_encoder.6} parent=11 // pred_fallthru
        _
      // Predicated region
      $region29: #{patch_transformer_encoder.6} parent=11 // pred_check
        %p350 = pneg %p150
      $region30: #{patch_transformer_encoder.6} parent=11 // pred_check_branch
        %352 = sbr.rel (%p350) target = $region32
      $region31: #{patch_transformer_encoder.6} parent=11 // pred_region
        _
      $region32: #{patch_transformer_encoder.6} parent=11 // pred_fallthru
        _
      // Predicated region
      $region33: #{patch_transformer_encoder.6} parent=11 // pred_check
        %p353 = pneg %p171
      $region34: #{patch_transformer_encoder.6} parent=11 // pred_check_branch
        %355 = sbr.rel (%p353) target = $region36
      $region35: #{patch_transformer_encoder.6} parent=11 // pred_region
        _
      $region36: #{patch_transformer_encoder.6} parent=11 // pred_fallthru
        _
      // Predicated region
      $region37: #{patch_transformer_encoder.6} parent=11 // pred_check
        %p356 = pneg %p192
      $region38: #{patch_transformer_encoder.6} parent=11 // pred_check_branch
        %358 = sbr.rel (%p356) target = $region40
      $region39: #{patch_transformer_encoder.6} parent=11 // pred_region
        _
      $region40: #{patch_transformer_encoder.6} parent=11 // pred_fallthru
        _
      // Predicated region
      $region41: #{patch_transformer_encoder.6} parent=11 // pred_check
        %p359 = pneg %p213
      $region42: #{patch_transformer_encoder.6} parent=11 // pred_check_branch
        %361 = sbr.rel (%p359) target = $region44
      $region43: #{patch_transformer_encoder.6} parent=11 // pred_region
        _
      $region44: #{patch_transformer_encoder.6} parent=11 // pred_fallthru
        _
      // Predicated region
      $region45: #{patch_transformer_encoder.6} parent=11 // pred_check
        %p362 = pneg %p234
      $region46: #{patch_transformer_encoder.6} parent=11 // pred_check_branch
        %364 = sbr.rel (%p362) target = $region48
      $region47: #{patch_transformer_encoder.6} parent=11 // pred_region
        _
      $region48: #{patch_transformer_encoder.6} parent=11 // pred_fallthru
        _
      // Predicated region
      $region49: #{patch_transformer_encoder.6} parent=11 // pred_check
        %p365 = pneg %p255
      $region50: #{patch_transformer_encoder.6} parent=11 // pred_check_branch
        %367 = sbr.rel (%p365) target = $region52
      $region51: #{patch_transformer_encoder.6} parent=11 // pred_region
        _
      $region52: #{patch_transformer_encoder.6} parent=11 // pred_fallthru
        _
      // Predicated region
      $region53: #{patch_transformer_encoder.6} parent=11 // pred_check
        %p368 = pneg %p276
      $region54: #{patch_transformer_encoder.6} parent=11 // pred_check_branch
        %370 = sbr.rel (%p368) target = $region56
      $region55: #{patch_transformer_encoder.6} parent=11 // pred_region
        _
      $region56: #{patch_transformer_encoder.6} parent=11 // pred_fallthru
        _
      // Predicated region
      $region57: #{patch_transformer_encoder.6} parent=11 // pred_check
        %p371 = pneg %p297
      $region58: #{patch_transformer_encoder.6} parent=11 // pred_check_branch
        %373 = sbr.rel (%p371) target = $region60
      $region59: #{patch_transformer_encoder.6} parent=11 // pred_region
        _
      $region60: #{patch_transformer_encoder.6} parent=11 // pred_fallthru
        _
    $region12: #{patch_transformer_encoder.6} parent=5 // pred_fallthru
      _
    %p374 = scmp.lt.s32.totalorder %s19, 2
    // Predicated region
    $region61: #{patch_transformer_encoder.6} parent=5 // pred_check
      %p375 = pneg %p374
    $region62: #{patch_transformer_encoder.6} parent=5 // pred_check_branch
      %377 = sbr.rel (%p375) target = $region64
    $region63: #{patch_transformer_encoder.6} parent=5 // pred_region
      // Predicated region
      $region65: #{patch_transformer_encoder.6} parent=63 // pred_check
        %p378 = pneg %p39
      $region66: #{patch_transformer_encoder.6} parent=63 // pred_check_branch
        %380 = sbr.rel (%p378) target = $region68
      $region67: #{patch_transformer_encoder.6} parent=63 // pred_region
        %p381 = scmp.lt.s32.totalorder %s19, 1
        %s382 = scalar_select %p381, %s19, 1
        %s383 = smul.addr %s382, 8
        %s384 = smul.addr %s383, 8
        %s385 = scalar_lea.vmem %s0, %s384
      $region68: #{patch_transformer_encoder.6} parent=63 // pred_fallthru
        _
    $region64: #{patch_transformer_encoder.6} parent=5 // pred_fallthru
      _
    %p386 = scmp.le.s32.totalorder 1, %s19
    %p387 = scmp.lt.s32.totalorder %s19, 3
    %p388 = pnand %p386, %p387
    %p389 = pneg %p388
    // Predicated region
    $region69: #{patch_transformer_encoder.6} parent=5 // pred_check
      _
    $region70: #{patch_transformer_encoder.6} parent=5 // pred_check_branch
      %391 = sbr.rel (%p388) target = $region72
    $region71: #{patch_transformer_encoder.6} parent=5 // pred_region
      %s392 = ssub.s32 %s19, 1
      %p393 = scmp.lt.s32.totalorder %s24, 1
      %s394 = scalar_select %p393, %s24, 1
      %s395 = smul.addr %s394, 8
      %s396 = smul.addr %s395, 8
      %s397 = scalar_lea.vmem %s0, %s396
      %p398 = pneg %p45
      %p399 = pneg %p42
      %p400 = pneg %p66
      %p401 = pneg %p63
      %p402 = pneg %p87
      %p403 = pneg %p84
      %p404 = pneg %p108
      %p405 = pneg %p105
      %p406 = pneg %p129
      %p407 = pneg %p126
      %p408 = pneg %p150
      %p409 = pneg %p147
      %p410 = pneg %p171
      %p411 = pneg %p168
      %p412 = pneg %p192
      %p413 = pneg %p189
      %p414 = pneg %p213
      %p415 = pneg %p210
      %p416 = pneg %p234
      %p417 = pneg %p231
      %p418 = pneg %p255
      %p419 = pneg %p252
      %p420 = pneg %p276
      %p421 = pneg %p273
      %p422 = pneg %p297
      %p423 = pneg %p294
      %p424 = pneg %p323
      %p425 = pneg %p320
      %p426 = scmp.lt.s32.totalorder %s24, 1
      %s427 = scalar_select %p426, %s24, 1
      %s428 = smul.addr %s427, 8
      %s429 = smul.addr %s428, 8
      %s430 = scalar_lea.vmem %s13, %s429
      %p431 = scmp.lt.s32.totalorder %s24, 1
      %s432 = scalar_select %p431, %s24, 1
      %s433 = smul.addr %s432, 8
      %s434 = smul.addr %s433, 8
      %s435 = scalar_lea.vmem %s0, %s434
      %p436 = scmp.lt.s32.totalorder %s24, 1
      %s437 = scalar_select %p436, %s24, 1
      %s438 = smul.addr %s437, 8
      %s439 = smul.addr %s438, 8
      %s440 = scalar_lea.vmem %s13, %s439
      %v441 = vld [vmem:[%s435] sm:$0xff]
      %v442 = vld [vmem:[%s435 + $0x8] sm:$0xff]
      %v443 = vld [vmem:[%s435 + $0x10] sm:$0xff]
      %v444 = vld [vmem:[%s435 + $0x18] sm:$0xff]
      %v445 = vld [vmem:[%s435 + $0x20] sm:$0xff]
      %v446 = vld [vmem:[%s435 + $0x28] sm:$0xff]
      %v447 = vld [vmem:[%s435 + $0x30] sm:$0xff]
      %v448 = vld [vmem:[%s435 + $0x38] sm:$0xff]
      %v449 = vld [vmem:[%s1] sm:$0xff]
      %v450 = vld [vmem:[%s1 + $0x8] sm:$0xff]
      %v451 = vld [vmem:[%s1 + $0x10] sm:$0xff]
      %v452 = vld [vmem:[%s1 + $0x18] sm:$0xff]
      %v453 = vld [vmem:[%s1 + $0x20] sm:$0xff]
      %v454 = vld [vmem:[%s1 + $0x28] sm:$0xff]
      %v455 = vld [vmem:[%s1 + $0x30] sm:$0xff]
      %v456 = vld [vmem:[%s1 + $0x38] sm:$0xff]
      %v457 = vld [vmem:[%s1 + $0x40] sm:$0xff]
      %v458 = vld [vmem:[%s1 + $0x48] sm:$0xff]
      %v459 = vld [vmem:[%s1 + $0x50] sm:$0xff]
      %v460 = vld [vmem:[%s1 + $0x58] sm:$0xff]
      %v461 = vld [vmem:[%s1 + $0x60] sm:$0xff]
      %v462 = vld [vmem:[%s1 + $0x68] sm:$0xff]
      %v463 = vld [vmem:[%s1 + $0x70] sm:$0xff]
      %v464 = vld [vmem:[%s1 + $0x78] sm:$0xff]
      %v465 = vld [vmem:[%s1 + $0x80] sm:$0xff]
      %v466 = vld [vmem:[%s1 + $0x88] sm:$0xff]
      %v467 = vld [vmem:[%s1 + $0x90] sm:$0xff]
      %v468 = vld [vmem:[%s1 + $0x98] sm:$0xff]
      %v469 = vld [vmem:[%s1 + $0xa0] sm:$0xff]
      %v470 = vld [vmem:[%s1 + $0xa8] sm:$0xff]
      %v471 = vld [vmem:[%s1 + $0xb0] sm:$0xff]
      %v472 = vld [vmem:[%s1 + $0xb8] sm:$0xff]
      %v473 = vld [vmem:[%s1 + $0xc0] sm:$0xff]
      %v474 = vld [vmem:[%s1 + $0xc8] sm:$0xff]
      %v475 = vld [vmem:[%s1 + $0xd0] sm:$0xff]
      %v476 = vld [vmem:[%s1 + $0xd8] sm:$0xff]
      %v477 = vld [vmem:[%s1 + $0xe0] sm:$0xff]
      %v478 = vld [vmem:[%s1 + $0xe8] sm:$0xff]
      %v479 = vld [vmem:[%s1 + $0xf0] sm:$0xff]
      %v480 = vld [vmem:[%s1 + $0xf8] sm:$0xff]
      %v481 = vld [vmem:[%s1 + $0x100] sm:$0xff]
      %v482 = vld [vmem:[%s1 + $0x108] sm:$0xff]
      %v483 = vld [vmem:[%s1 + $0x110] sm:$0xff]
      %v484 = vld [vmem:[%s1 + $0x118] sm:$0xff]
      %v485 = vld [vmem:[%s1 + $0x120] sm:$0xff]
      %v486 = vld [vmem:[%s1 + $0x128] sm:$0xff]
      %v487 = vld [vmem:[%s1 + $0x130] sm:$0xff]
      %v488 = vld [vmem:[%s1 + $0x138] sm:$0xff]
      %v489 = vld [vmem:[%s1 + $0x140] sm:$0xff]
      %v490 = vld [vmem:[%s1 + $0x148] sm:$0xff]
      %v491 = vld [vmem:[%s1 + $0x150] sm:$0xff]
      %v492 = vld [vmem:[%s1 + $0x158] sm:$0xff]
      %v493 = vld [vmem:[%s1 + $0x160] sm:$0xff]
      %v494 = vld [vmem:[%s1 + $0x168] sm:$0xff]
      %v495 = vld [vmem:[%s1 + $0x170] sm:$0xff]
      %v496 = vld [vmem:[%s1 + $0x178] sm:$0xff]
      %v497 = vld [vmem:[%s2] sm:$0x7]
      %v499 = vlaneseq
      %v500 = vshrl.u32 %v499, 7
      %v501 = vsub.s32 0, %v500
      %v502 = vrot.slane %v497, %v501
      %v503 = vlaneseq
      %v504 = vshrl.u32 %v503, 7
      %v505 = vsub.s32 1, %v504
      %v506 = vrot.slane %v497, %v505
      %v507 = vlaneseq
      %v508 = vshrl.u32 %v507, 7
      %v509 = vsub.s32 2, %v508
      %v510 = vrot.slane %v497, %v509
      %514 = vmatprep.subr.mxu0 %v495
      %515 = vmatpush1.msra.mxu0 %v494
      %516 = vmatprep.subr.mxu0 %v492
      %517 = vmatpush1.msra.mxu0 %v491
      %518 = vmatprep.subr.mxu0 %v489
      %519 = vmatpush1.msra.mxu0 %v488
      %520 = vmatprep.subr.mxu0 %v486
      %521 = vmatpush1.msra.mxu0 %v485
      %522 = vmatprep.subr.mxu0 %v483
      %523 = vmatpush1.msra.mxu0 %v482
      %524 = vmatprep.subr.mxu0 %v480
      %525 = vmatpush1.msra.mxu0 %v479
      %526 = vmatprep.subr.mxu0 %v477
      %527 = vmatpush1.msra.mxu0 %v476
      %528 = vmatprep.subr.mxu0 %v474
      %529 = vmatpush1.msra.mxu0 %v473
      %530 = vmatprep.subr.mxu0 %v471
      %531 = vmatpush1.msra.mxu0 %v470
      %532 = vmatprep.subr.mxu0 %v468
      %533 = vmatpush1.msra.mxu0 %v467
      %534 = vmatprep.subr.mxu0 %v465
      %535 = vmatpush1.msra.mxu0 %v464
      %536 = vmatprep.subr.mxu0 %v462
      %537 = vmatpush1.msra.mxu0 %v461
      %538 = vmatprep.subr.mxu0 %v459
      %539 = vmatpush1.msra.mxu0 %v458
      %540 = vmatprep.subr.mxu0 %v456
      %541 = vmatpush1.msra.mxu0 %v455
      %542 = vmatprep.subr.mxu0 %v453
      %543 = vmatpush1.msra.mxu0 %v452
      %544 = vmatprep.subr.mxu0 %v450
      %545 = vmatpush1.msra.mxu0 %v449
      %546 = vmatprep.subr.mxu0 0.0
      %547 = vmatpush2.msra.mxu0 0.0
      %548 = vmatprep.subr.mxu0 0.0
      %549 = vmatpush2.msra.mxu0 0.0
      %550 = vmatprep.subr.mxu0 0.0
      %551 = vmatpush2.msra.mxu0 0.0
      %552 = vmatprep.subr.mxu0 0.0
      %553 = vmatpush2.msra.mxu0 0.0
      %554 = vmatprep.subr.mxu0 0.0
      %555 = vmatpush2.msra.mxu0 0.0
      %556 = vmatprep.subr.mxu0 0.0
      %557 = vmatpush2.msra.mxu0 0.0
      %558 = vmatprep.subr.mxu0 0.0
      %559 = vmatpush2.msra.mxu0 0.0
      %560 = vmatprep.subr.mxu0 0.0
      %561 = vmatpush2.msra.mxu0 0.0
      %562 = vmatprep.subr.mxu0 0.0
      %563 = vmatpush2.msra.mxu0 0.0
      %564 = vmatprep.subr.mxu0 0.0
      %565 = vmatpush2.msra.mxu0 0.0
      %566 = vmatprep.subr.mxu0 0.0
      %567 = vmatpush2.msra.mxu0 0.0
      %568 = vmatprep.subr.mxu0 0.0
      %569 = vmatpush2.msra.mxu0 0.0
      %570 = vmatprep.subr.mxu0 0.0
      %571 = vmatpush2.msra.mxu0 0.0
      %572 = vmatprep.subr.mxu0 0.0
      %573 = vmatpush2.msra.mxu0 0.0
      %574 = vmatprep.subr.mxu0 0.0
      %575 = vmatpush2.msra.mxu0 0.0
      %576 = vmatprep.subr.mxu0 0.0
      %577 = vmatpush2.msra.mxu0 0.0
      %578 = vmatprep.mubr.f32.mxu0 0.0
      %579 = vmatmul.mubr.f32.gmra.mxu0 %v441
      %v580 = vpop.f32.mrf.mxu0
      %v581 = vadd.f32 %v502, %v580
      %v582 = vpop.f32.mrf.mxu0
      %v583 = vadd.f32 %v506, %v582
      %584 = vmatprep.mubr.f32.mxu0 0.0
      %585 = vmatmul.mubr.f32.gmra.mxu0 %v442
      %v586 = vpop.f32.mrf.mxu0
      %v587 = vadd.f32 %v502, %v586
      %v588 = vpop.f32.mrf.mxu0
      %v589 = vadd.f32 %v506, %v588
      %590 = vmatprep.mubr.f32.mxu0 0.0
      %591 = vmatmul.mubr.f32.gmra.mxu0 %v443
      %v592 = vpop.f32.mrf.mxu0
      %v593 = vadd.f32 %v502, %v592
      %v594 = vpop.f32.mrf.mxu0
      %v595 = vadd.f32 %v506, %v594
      %596 = vmatprep.mubr.f32.mxu0 0.0
      %597 = vmatmul.mubr.f32.gmra.mxu0 %v444
      %v598 = vpop.f32.mrf.mxu0
      %v599 = vadd.f32 %v502, %v598
      %v600 = vpop.f32.mrf.mxu0
      %v601 = vadd.f32 %v506, %v600
      %602 = vmatprep.mubr.f32.mxu0 0.0
      %603 = vmatmul.mubr.f32.gmra.mxu0 %v445
      %v604 = vpop.f32.mrf.mxu0
      %v605 = vadd.f32 %v502, %v604
      %v606 = vpop.f32.mrf.mxu0
      %v607 = vadd.f32 %v506, %v606
      %608 = vmatprep.mubr.f32.mxu0 0.0
      %609 = vmatmul.mubr.f32.gmra.mxu0 %v446
      %v610 = vpop.f32.mrf.mxu0
      %v611 = vadd.f32 %v502, %v610
      %v612 = vpop.f32.mrf.mxu0
      %v613 = vadd.f32 %v506, %v612
      %614 = vmatprep.mubr.f32.mxu0 0.0
      %615 = vmatmul.mubr.f32.gmra.mxu0 %v447
      %v616 = vpop.f32.mrf.mxu0
      %v617 = vadd.f32 %v502, %v616
      %v618 = vpop.f32.mrf.mxu0
      %v619 = vadd.f32 %v506, %v618
      %620 = vmatprep.mubr.f32.mxu0 0.0
      %621 = vmatmul.mubr.f32.gmra.mxu0 %v448
      %v622 = vpop.f32.mrf.mxu0
      %v623 = vadd.f32 %v502, %v622
      %v624 = vpop.f32.mrf.mxu0
      %v625 = vadd.f32 %v506, %v624
      %626 = vdwg.mxu0
      %627 = vmatprep.subr.mxu0 0.0
      %628 = vmatpush1.msra.mxu0 %v496
      %629 = vmatprep.subr.mxu0 0.0
      %630 = vmatpush1.msra.mxu0 %v493
      %631 = vmatprep.subr.mxu0 0.0
      %632 = vmatpush1.msra.mxu0 %v490
      %633 = vmatprep.subr.mxu0 0.0
      %634 = vmatpush1.msra.mxu0 %v487
      %635 = vmatprep.subr.mxu0 0.0
      %636 = vmatpush1.msra.mxu0 %v484
      %637 = vmatprep.subr.mxu0 0.0
      %638 = vmatpush1.msra.mxu0 %v481
      %639 = vmatprep.subr.mxu0 0.0
      %640 = vmatpush1.msra.mxu0 %v478
      %641 = vmatprep.subr.mxu0 0.0
      %642 = vmatpush1.msra.mxu0 %v475
      %643 = vmatprep.subr.mxu0 0.0
      %644 = vmatpush1.msra.mxu0 %v472
      %645 = vmatprep.subr.mxu0 0.0
      %646 = vmatpush1.msra.mxu0 %v469
      %647 = vmatprep.subr.mxu0 0.0
      %648 = vmatpush1.msra.mxu0 %v466
      %649 = vmatprep.subr.mxu0 0.0
      %650 = vmatpush1.msra.mxu0 %v463
      %651 = vmatprep.subr.mxu0 0.0
      %652 = vmatpush1.msra.mxu0 %v460
      %653 = vmatprep.subr.mxu0 0.0
      %654 = vmatpush1.msra.mxu0 %v457
      %655 = vmatprep.subr.mxu0 0.0
      %656 = vmatpush1.msra.mxu0 %v454
      %657 = vmatprep.subr.mxu0 0.0
      %658 = vmatpush1.msra.mxu0 %v451
      %659 = vmatprep.subr.mxu0 0.0
      %660 = vmatpush2.msra.mxu0 0.0
      %661 = vmatprep.subr.mxu0 0.0
      %662 = vmatpush2.msra.mxu0 0.0
      %663 = vmatprep.subr.mxu0 0.0
      %664 = vmatpush2.msra.mxu0 0.0
      %665 = vmatprep.subr.mxu0 0.0
      %666 = vmatpush2.msra.mxu0 0.0
      %667 = vmatprep.subr.mxu0 0.0
      %668 = vmatpush2.msra.mxu0 0.0
      %669 = vmatprep.subr.mxu0 0.0
      %670 = vmatpush2.msra.mxu0 0.0
      %671 = vmatprep.subr.mxu0 0.0
      %672 = vmatpush2.msra.mxu0 0.0
      %673 = vmatprep.subr.mxu0 0.0
      %674 = vmatpush2.msra.mxu0 0.0
      %675 = vmatprep.subr.mxu0 0.0
      %676 = vmatpush2.msra.mxu0 0.0
      %677 = vmatprep.subr.mxu0 0.0
      %678 = vmatpush2.msra.mxu0 0.0
      %679 = vmatprep.subr.mxu0 0.0
      %680 = vmatpush2.msra.mxu0 0.0
      %681 = vmatprep.subr.mxu0 0.0
      %682 = vmatpush2.msra.mxu0 0.0
      %683 = vmatprep.subr.mxu0 0.0
      %684 = vmatpush2.msra.mxu0 0.0
      %685 = vmatprep.subr.mxu0 0.0
      %686 = vmatpush2.msra.mxu0 0.0
      %687 = vmatprep.subr.mxu0 0.0
      %688 = vmatpush2.msra.mxu0 0.0
      %689 = vmatprep.subr.mxu0 0.0
      %690 = vmatpush2.msra.mxu0 0.0
      %691 = vmatprep.mubr.f32.mxu0 0.0
      %692 = vmatmul.mubr.f32.gmra.mxu0 %v441
      %v693 = vpop.f32.mrf.mxu0
      %v694 = vadd.f32 %v510, %v693
      %v695 = vpop.f32.mrf.mxu0
      %696 = vmatprep.mubr.f32.mxu0 0.0
      %697 = vmatmul.mubr.f32.gmra.mxu0 %v442
      %v698 = vpop.f32.mrf.mxu0
      %v699 = vadd.f32 %v510, %v698
      %v700 = vpop.f32.mrf.mxu0
      %701 = vmatprep.mubr.f32.mxu0 0.0
      %702 = vmatmul.mubr.f32.gmra.mxu0 %v443
      %v703 = vpop.f32.mrf.mxu0
      %v704 = vadd.f32 %v510, %v703
      %v705 = vpop.f32.mrf.mxu0
      %706 = vmatprep.mubr.f32.mxu0 0.0
      %707 = vmatmul.mubr.f32.gmra.mxu0 %v444
      %v708 = vpop.f32.mrf.mxu0
      %v709 = vadd.f32 %v510, %v708
      %v710 = vpop.f32.mrf.mxu0
      %711 = vmatprep.mubr.f32.mxu0 0.0
      %712 = vmatmul.mubr.f32.gmra.mxu0 %v445
      %v713 = vpop.f32.mrf.mxu0
      %v714 = vadd.f32 %v510, %v713
      %v715 = vpop.f32.mrf.mxu0
      %716 = vmatprep.mubr.f32.mxu0 0.0
      %717 = vmatmul.mubr.f32.gmra.mxu0 %v446
      %v718 = vpop.f32.mrf.mxu0
      %v719 = vadd.f32 %v510, %v718
      %v720 = vpop.f32.mrf.mxu0
      %721 = vmatprep.mubr.f32.mxu0 0.0
      %722 = vmatmul.mubr.f32.gmra.mxu0 %v447
      %v723 = vpop.f32.mrf.mxu0
      %v724 = vadd.f32 %v510, %v723
      %v725 = vpop.f32.mrf.mxu0
      %726 = vmatprep.mubr.f32.mxu0 0.0
      %727 = vmatmul.mubr.f32.gmra.mxu0 %v448
      %v728 = vpop.f32.mrf.mxu0
      %v729 = vadd.f32 %v510, %v728
      %v730 = vpop.f32.mrf.mxu0
      %731 = vdwg.mxu0
      %v732 = vmul.f32 %v581, 0.17677669
      %v733 = vmul.f32 %v587, 0.17677669
      %v734 = vmul.f32 %v593, 0.17677669
      %v735 = vmul.f32 %v599, 0.17677669
      %v736 = vmul.f32 %v605, 0.17677669
      %v737 = vmul.f32 %v611, 0.17677669
      %v738 = vmul.f32 %v617, 0.17677669
      %v739 = vmul.f32 %v623, 0.17677669
      %v740 = vld [vmem:[%s3] sm:$0xff]
      %v741 = vld [vmem:[%s3 + $0x8] sm:$0xff]
      %v742 = vld [vmem:[%s3 + $0x10] sm:$0xff]
      %v743 = vld [vmem:[%s3 + $0x18] sm:$0xff]
      %v744 = vld [vmem:[%s3 + $0x20] sm:$0xff]
      %v745 = vld [vmem:[%s3 + $0x28] sm:$0xff]
      %v746 = vld [vmem:[%s3 + $0x30] sm:$0xff]
      %v747 = vld [vmem:[%s3 + $0x38] sm:$0xff]
      %v748 = vld [vmem:[%s3 + $0x40] sm:$0xff]
      %v749 = vld [vmem:[%s3 + $0x48] sm:$0xff]
      %v750 = vld [vmem:[%s3 + $0x50] sm:$0xff]
      %v751 = vld [vmem:[%s3 + $0x58] sm:$0xff]
      %v752 = vld [vmem:[%s3 + $0x60] sm:$0xff]
      %v753 = vld [vmem:[%s3 + $0x68] sm:$0xff]
      %v754 = vld [vmem:[%s3 + $0x70] sm:$0xff]
      %v755 = vld [vmem:[%s3 + $0x78] sm:$0xff]
      %vm756 = vcmask 261120
      %v758 = vsel %vm756, %v732, 0
      %v761 = vsel %vm756, %v733, 0
      %v764 = vsel %vm756, %v734, 0
      %v767 = vsel %vm756, %v735, 0
      %v770 = vsel %vm756, %v736, 0
      %v773 = vsel %vm756, %v737, 0
      %v776 = vsel %vm756, %v738, 0
      %v779 = vsel %vm756, %v739, 0
      %v782 = vsel %vm756, %v583, 0
      %v785 = vsel %vm756, %v589, 0
      %v788 = vsel %vm756, %v595, 0
      %v791 = vsel %vm756, %v601, 0
      %v794 = vsel %vm756, %v607, 0
      %v797 = vsel %vm756, %v613, 0
      %v800 = vsel %vm756, %v619, 0
      %v803 = vsel %vm756, %v625, 0
      %805 = vmatprep.subr.mxu0 0.0
      %806 = vmatpush1.xpose.msra.mxu0 0.0
      %807 = vmatprep.subr.mxu0 0.0
      %808 = vmatpush1.xpose.msra.mxu0 0.0
      %809 = vmatprep.subr.mxu0 0.0
      %810 = vmatpush1.xpose.msra.mxu0 0.0
      %811 = vmatprep.subr.mxu0 0.0
      %812 = vmatpush1.xpose.msra.mxu0 0.0
      %813 = vmatprep.subr.mxu0 0.0
      %814 = vmatpush1.xpose.msra.mxu0 0.0
      %815 = vmatprep.subr.mxu0 0.0
      %816 = vmatpush1.xpose.msra.mxu0 0.0
      %817 = vmatprep.subr.mxu0 0.0
      %818 = vmatpush1.xpose.msra.mxu0 0.0
      %819 = vmatprep.subr.mxu0 0.0
      %820 = vmatpush1.xpose.msra.mxu0 0.0
      %821 = vmatprep.subr.mxu0 0.0
      %822 = vmatpush1.xpose.msra.mxu0 %v803
      %823 = vmatprep.subr.mxu0 0.0
      %824 = vmatpush1.xpose.msra.mxu0 %v800
      %825 = vmatprep.subr.mxu0 0.0
      %826 = vmatpush1.xpose.msra.mxu0 %v797
      %827 = vmatprep.subr.mxu0 0.0
      %828 = vmatpush1.xpose.msra.mxu0 %v794
      %829 = vmatprep.subr.mxu0 0.0
      %830 = vmatpush1.xpose.msra.mxu0 %v791
      %831 = vmatprep.subr.mxu0 0.0
      %832 = vmatpush1.xpose.msra.mxu0 %v788
      %833 = vmatprep.subr.mxu0 0.0
      %834 = vmatpush1.xpose.msra.mxu0 %v785
      %835 = vmatprep.subr.mxu0 0.0
      %836 = vmatpush1.xpose.msra.mxu0 %v782
      %837 = vmatprep.subr.mxu0 0.0
      %838 = vmatpush2.xpose.msra.mxu0 0.0
      %839 = vmatprep.subr.mxu0 0.0
      %840 = vmatpush2.xpose.msra.mxu0 0.0
      %841 = vmatprep.subr.mxu0 0.0
      %842 = vmatpush2.xpose.msra.mxu0 0.0
      %843 = vmatprep.subr.mxu0 0.0
      %844 = vmatpush2.xpose.msra.mxu0 0.0
      %845 = vmatprep.subr.mxu0 0.0
      %846 = vmatpush2.xpose.msra.mxu0 0.0
      %847 = vmatprep.subr.mxu0 0.0
      %848 = vmatpush2.xpose.msra.mxu0 0.0
      %849 = vmatprep.subr.mxu0 0.0
      %850 = vmatpush2.xpose.msra.mxu0 0.0
      %851 = vmatprep.subr.mxu0 0.0
      %852 = vmatpush2.xpose.msra.mxu0 0.0
      %853 = vmatprep.subr.mxu0 0.0
      %854 = vmatpush2.xpose.msra.mxu0 0.0
      %855 = vmatprep.subr.mxu0 0.0
      %856 = vmatpush2.xpose.msra.mxu0 0.0
      %857 = vmatprep.subr.mxu0 0.0
      %858 = vmatpush2.xpose.msra.mxu0 0.0
      %859 = vmatprep.subr.mxu0 0.0
      %860 = vmatpush2.xpose.msra.mxu0 0.0
      %861 = vmatprep.subr.mxu0 0.0
      %862 = vmatpush2.xpose.msra.mxu0 0.0
      %863 = vmatprep.subr.mxu0 0.0
      %864 = vmatpush2.xpose.msra.mxu0 0.0
      %865 = vmatprep.subr.mxu0 0.0
      %866 = vmatpush2.xpose.msra.mxu0 0.0
      %867 = vmatprep.subr.mxu0 0.0
      %868 = vmatpush2.xpose.msra.mxu0 0.0
      %869 = vmatprep.mubr.f32.mxu0 0.0
      %870 = vmatmul.mubr.f32.gmra.mxu0 %v758
      %v871 = vpop.f32.mrf.mxu0
      %v872 = vadd.f32 0.0, %v871
      %v873 = vpop.f32.mrf.mxu0
      %874 = vmatprep.mubr.f32.mxu0 0.0
      %875 = vmatmul.mubr.f32.gmra.mxu0 %v761
      %v876 = vpop.f32.mrf.mxu0
      %v877 = vadd.f32 0.0, %v876
      %v878 = vpop.f32.mrf.mxu0
      %879 = vmatprep.mubr.f32.mxu0 0.0
      %880 = vmatmul.mubr.f32.gmra.mxu0 %v764
      %v881 = vpop.f32.mrf.mxu0
      %v882 = vadd.f32 0.0, %v881
      %v883 = vpop.f32.mrf.mxu0
      %884 = vmatprep.mubr.f32.mxu0 0.0
      %885 = vmatmul.mubr.f32.gmra.mxu0 %v767
      %v886 = vpop.f32.mrf.mxu0
      %v887 = vadd.f32 0.0, %v886
      %v888 = vpop.f32.mrf.mxu0
      %889 = vmatprep.mubr.f32.mxu0 0.0
      %890 = vmatmul.mubr.f32.gmra.mxu0 %v770
      %v891 = vpop.f32.mrf.mxu0
      %v892 = vadd.f32 0.0, %v891
      %v893 = vpop.f32.mrf.mxu0
      %894 = vmatprep.mubr.f32.mxu0 0.0
      %895 = vmatmul.mubr.f32.gmra.mxu0 %v773
      %v896 = vpop.f32.mrf.mxu0
      %v897 = vadd.f32 0.0, %v896
      %v898 = vpop.f32.mrf.mxu0
      %899 = vmatprep.mubr.f32.mxu0 0.0
      %900 = vmatmul.mubr.f32.gmra.mxu0 %v776
      %v901 = vpop.f32.mrf.mxu0
      %v902 = vadd.f32 0.0, %v901
      %v903 = vpop.f32.mrf.mxu0
      %904 = vmatprep.mubr.f32.mxu0 0.0
      %905 = vmatmul.mubr.f32.gmra.mxu0 %v779
      %v906 = vpop.f32.mrf.mxu0
      %v907 = vadd.f32 0.0, %v906
      %v908 = vpop.f32.mrf.mxu0
      %909 = vdwg.mxu0
      %vm910 = vcmask 523264
      %v911 = vsel %vm910, %v872, -inf
      %912 = vmax.xlane.f32.xlu0 %v911
      %v913 = vpop.xlane.xlu0 %912
      %v914 = vsel %vm910, %v877, -inf
      %915 = vmax.xlane.f32.xlu0 %v914
      %v916 = vpop.xlane.xlu0 %915
      %v917 = vsel %vm910, %v882, -inf
      %918 = vmax.xlane.f32.xlu0 %v917
      %v919 = vpop.xlane.xlu0 %918
      %v920 = vsel %vm910, %v887, -inf
      %921 = vmax.xlane.f32.xlu0 %v920
      %v922 = vpop.xlane.xlu0 %921
      %v923 = vsel %vm910, %v892, -inf
      %924 = vmax.xlane.f32.xlu0 %v923
      %v925 = vpop.xlane.xlu0 %924
      %v926 = vsel %vm910, %v897, -inf
      %927 = vmax.xlane.f32.xlu0 %v926
      %v928 = vpop.xlane.xlu0 %927
      %v929 = vsel %vm910, %v902, -inf
      %930 = vmax.xlane.f32.xlu0 %v929
      %v931 = vpop.xlane.xlu0 %930
      %v932 = vsel %vm910, %v907, -inf
      %933 = vmax.xlane.f32.xlu0 %v932
      %v934 = vpop.xlane.xlu0 %933
      %v935 = vsub.f32 %v872, %v913
      %v936 = vsub.f32 %v877, %v916
      %v937 = vsub.f32 %v882, %v919
      %v938 = vsub.f32 %v887, %v922
      %v939 = vsub.f32 %v892, %v925
      %v940 = vsub.f32 %v897, %v928
      %v941 = vsub.f32 %v902, %v931
      %v942 = vsub.f32 %v907, %v934
      %v943 = vmul.f32 %v935, 1.442695
      %v944 = vpow.pop %v943
      %v945 = vmul.f32 %v936, 1.442695
      %v946 = vpow.pop %v945
      %v947 = vmul.f32 %v937, 1.442695
      %v948 = vpow.pop %v947
      %v949 = vmul.f32 %v938, 1.442695
      %v950 = vpow.pop %v949
      %v951 = vmul.f32 %v939, 1.442695
      %v952 = vpow.pop %v951
      %v953 = vmul.f32 %v940, 1.442695
      %v954 = vpow.pop %v953
      %v955 = vmul.f32 %v941, 1.442695
      %v956 = vpow.pop %v955
      %v957 = vmul.f32 %v942, 1.442695
      %v958 = vpow.pop %v957
      %v959 = vsel %vm910, %v944, 0.0
      %960 = vadd.xlane.f32.xlu0 %v959
      %v961 = vpop.xlane.xlu0 %960
      %v962 = vsel %vm910, %v946, 0.0
      %963 = vadd.xlane.f32.xlu0 %v962
      %v964 = vpop.xlane.xlu0 %963
      %v965 = vsel %vm910, %v948, 0.0
      %966 = vadd.xlane.f32.xlu0 %v965
      %v967 = vpop.xlane.xlu0 %966
      %v968 = vsel %vm910, %v950, 0.0
      %969 = vadd.xlane.f32.xlu0 %v968
      %v970 = vpop.xlane.xlu0 %969
      %v971 = vsel %vm910, %v952, 0.0
      %972 = vadd.xlane.f32.xlu0 %v971
      %v973 = vpop.xlane.xlu0 %972
      %v974 = vsel %vm910, %v954, 0.0
      %975 = vadd.xlane.f32.xlu0 %v974
      %v976 = vpop.xlane.xlu0 %975
      %v977 = vsel %vm910, %v956, 0.0
      %978 = vadd.xlane.f32.xlu0 %v977
      %v979 = vpop.xlane.xlu0 %978
      %v980 = vsel %vm910, %v958, 0.0
      %981 = vadd.xlane.f32.xlu0 %v980
      %v982 = vpop.xlane.xlu0 %981
      %v983 = vrcp.pop %v961
      %v984 = vmul.f32 %v944, %v983
      %v985 = vrcp.pop %v964
      %v986 = vmul.f32 %v946, %v985
      %v987 = vrcp.pop %v967
      %v988 = vmul.f32 %v948, %v987
      %v989 = vrcp.pop %v970
      %v990 = vmul.f32 %v950, %v989
      %v991 = vrcp.pop %v973
      %v992 = vmul.f32 %v952, %v991
      %v993 = vrcp.pop %v976
      %v994 = vmul.f32 %v954, %v993
      %v995 = vrcp.pop %v979
      %v996 = vmul.f32 %v956, %v995
      %v997 = vrcp.pop %v982
      %v998 = vmul.f32 %v958, %v997
      %v1000 = vsel %vm910, %v984, 0
      %v1003 = vsel %vm910, %v986, 0
      %v1006 = vsel %vm910, %v988, 0
      %v1009 = vsel %vm910, %v990, 0
      %v1012 = vsel %vm910, %v992, 0
      %v1015 = vsel %vm910, %v994, 0
      %v1018 = vsel %vm910, %v996, 0
      %v1021 = vsel %vm910, %v998, 0
      %1023 = vmatprep.subr.mxu0 0.0
      %1024 = vmatpush1.msra.mxu0 0.0
      %1025 = vmatprep.subr.mxu0 0.0
      %1026 = vmatpush1.msra.mxu0 0.0
      %1027 = vmatprep.subr.mxu0 0.0
      %1028 = vmatpush1.msra.mxu0 0.0
      %1029 = vmatprep.subr.mxu0 0.0
      %1030 = vmatpush1.msra.mxu0 0.0
      %1031 = vmatprep.subr.mxu0 0.0
      %1032 = vmatpush1.msra.mxu0 0.0
      %1033 = vmatprep.subr.mxu0 0.0
      %1034 = vmatpush1.msra.mxu0 0.0
      %1035 = vmatprep.subr.mxu0 0.0
      %1036 = vmatpush1.msra.mxu0 0.0
      %1037 = vmatprep.subr.mxu0 0.0
      %1038 = vmatpush1.msra.mxu0 0.0
      %1039 = vmatprep.subr.mxu0 0.0
      %1040 = vmatpush1.msra.mxu0 %v729
      %1041 = vmatprep.subr.mxu0 0.0
      %1042 = vmatpush1.msra.mxu0 %v724
      %1043 = vmatprep.subr.mxu0 0.0
      %1044 = vmatpush1.msra.mxu0 %v719
      %1045 = vmatprep.subr.mxu0 0.0
      %1046 = vmatpush1.msra.mxu0 %v714
      %1047 = vmatprep.subr.mxu0 0.0
      %1048 = vmatpush1.msra.mxu0 %v709
      %1049 = vmatprep.subr.mxu0 0.0
      %1050 = vmatpush1.msra.mxu0 %v704
      %1051 = vmatprep.subr.mxu0 0.0
      %1052 = vmatpush1.msra.mxu0 %v699
      %1053 = vmatprep.subr.mxu0 0.0
      %1054 = vmatpush1.msra.mxu0 %v694
      %1055 = vmatprep.subr.mxu0 0.0
      %1056 = vmatpush2.msra.mxu0 0.0
      %1057 = vmatprep.subr.mxu0 0.0
      %1058 = vmatpush2.msra.mxu0 0.0
      %1059 = vmatprep.subr.mxu0 0.0
      %1060 = vmatpush2.msra.mxu0 0.0
      %1061 = vmatprep.subr.mxu0 0.0
      %1062 = vmatpush2.msra.mxu0 0.0
      %1063 = vmatprep.subr.mxu0 0.0
      %1064 = vmatpush2.msra.mxu0 0.0
      %1065 = vmatprep.subr.mxu0 0.0
      %1066 = vmatpush2.msra.mxu0 0.0
      %1067 = vmatprep.subr.mxu0 0.0
      %1068 = vmatpush2.msra.mxu0 0.0
      %1069 = vmatprep.subr.mxu0 0.0
      %1070 = vmatpush2.msra.mxu0 0.0
      %1071 = vmatprep.subr.mxu0 0.0
      %1072 = vmatpush2.msra.mxu0 0.0
      %1073 = vmatprep.subr.mxu0 0.0
      %1074 = vmatpush2.msra.mxu0 0.0
      %1075 = vmatprep.subr.mxu0 0.0
      %1076 = vmatpush2.msra.mxu0 0.0
      %1077 = vmatprep.subr.mxu0 0.0
      %1078 = vmatpush2.msra.mxu0 0.0
      %1079 = vmatprep.subr.mxu0 0.0
      %1080 = vmatpush2.msra.mxu0 0.0
      %1081 = vmatprep.subr.mxu0 0.0
      %1082 = vmatpush2.msra.mxu0 0.0
      %1083 = vmatprep.subr.mxu0 0.0
      %1084 = vmatpush2.msra.mxu0 0.0
      %1085 = vmatprep.subr.mxu0 0.0
      %1086 = vmatpush2.msra.mxu0 0.0
      %1087 = vmatprep.mubr.f32.mxu0 0.0
      %1088 = vmatmul.mubr.f32.gmra.mxu0 %v1000
      %v1089 = vpop.f32.mrf.mxu0
      %v1090 = vadd.f32 0.0, %v1089
      %v1091 = vpop.f32.mrf.mxu0
      %1092 = vmatprep.mubr.f32.mxu0 0.0
      %1093 = vmatmul.mubr.f32.gmra.mxu0 %v1003
      %v1094 = vpop.f32.mrf.mxu0
      %v1095 = vadd.f32 0.0, %v1094
      %v1096 = vpop.f32.mrf.mxu0
      %1097 = vmatprep.mubr.f32.mxu0 0.0
      %1098 = vmatmul.mubr.f32.gmra.mxu0 %v1006
      %v1099 = vpop.f32.mrf.mxu0
      %v1100 = vadd.f32 0.0, %v1099
      %v1101 = vpop.f32.mrf.mxu0
      %1102 = vmatprep.mubr.f32.mxu0 0.0
      %1103 = vmatmul.mubr.f32.gmra.mxu0 %v1009
      %v1104 = vpop.f32.mrf.mxu0
      %v1105 = vadd.f32 0.0, %v1104
      %v1106 = vpop.f32.mrf.mxu0
      %1107 = vmatprep.mubr.f32.mxu0 0.0
      %1108 = vmatmul.mubr.f32.gmra.mxu0 %v1012
      %v1109 = vpop.f32.mrf.mxu0
      %v1110 = vadd.f32 0.0, %v1109
      %v1111 = vpop.f32.mrf.mxu0
      %1112 = vmatprep.mubr.f32.mxu0 0.0
      %1113 = vmatmul.mubr.f32.gmra.mxu0 %v1015
      %v1114 = vpop.f32.mrf.mxu0
      %v1115 = vadd.f32 0.0, %v1114
      %v1116 = vpop.f32.mrf.mxu0
      %1117 = vmatprep.mubr.f32.mxu0 0.0
      %1118 = vmatmul.mubr.f32.gmra.mxu0 %v1018
      %v1119 = vpop.f32.mrf.mxu0
      %v1120 = vadd.f32 0.0, %v1119
      %v1121 = vpop.f32.mrf.mxu0
      %1122 = vmatprep.mubr.f32.mxu0 0.0
      %1123 = vmatmul.mubr.f32.gmra.mxu0 %v1021
      %v1124 = vpop.f32.mrf.mxu0
      %v1125 = vadd.f32 0.0, %v1124
      %v1126 = vpop.f32.mrf.mxu0
      %1127 = vdwg.mxu0
      %1128 = vrot.lane.b32.xlu0 %v732, 96
      %v1129 = vpop.permute.xlu0 %1128
      %1130 = vrot.lane.b32.xlu0 %v733, 96
      %v1131 = vpop.permute.xlu0 %1130
      %1132 = vrot.lane.b32.xlu0 %v734, 96
      %v1133 = vpop.permute.xlu0 %1132
      %1134 = vrot.lane.b32.xlu0 %v735, 96
      %v1135 = vpop.permute.xlu0 %1134
      %1136 = vrot.lane.b32.xlu0 %v736, 96
      %v1137 = vpop.permute.xlu0 %1136
      %1138 = vrot.lane.b32.xlu0 %v737, 96
      %v1139 = vpop.permute.xlu0 %1138
      %1140 = vrot.lane.b32.xlu0 %v738, 96
      %v1141 = vpop.permute.xlu0 %1140
      %1142 = vrot.lane.b32.xlu0 %v739, 96
      %v1143 = vpop.permute.xlu0 %1142
      %1144 = vrot.lane.b32.xlu0 %v583, 96
      %v1145 = vpop.permute.xlu0 %1144
      %1146 = vrot.lane.b32.xlu0 %v589, 96
      %v1147 = vpop.permute.xlu0 %1146
      %1148 = vrot.lane.b32.xlu0 %v595, 96
      %v1149 = vpop.permute.xlu0 %1148
      %1150 = vrot.lane.b32.xlu0 %v601, 96
      %v1151 = vpop.permute.xlu0 %1150
      %1152 = vrot.lane.b32.xlu0 %v607, 96
      %v1153 = vpop.permute.xlu0 %1152
      %1154 = vrot.lane.b32.xlu0 %v613, 96
      %v1155 = vpop.permute.xlu0 %1154
      %1156 = vrot.lane.b32.xlu0 %v619, 96
      %v1157 = vpop.permute.xlu0 %1156
      %1158 = vrot.lane.b32.xlu0 %v625, 96
      %v1159 = vpop.permute.xlu0 %1158
      %v1160 = vsel %vm756, %v1129, 0
      %v1162 = vsel %vm756, %v1131, 0
      %v1164 = vsel %vm756, %v1133, 0
      %v1166 = vsel %vm756, %v1135, 0
      %v1168 = vsel %vm756, %v1137, 0
      %v1170 = vsel %vm756, %v1139, 0
      %v1172 = vsel %vm756, %v1141, 0
      %v1174 = vsel %vm756, %v1143, 0
      %v1176 = vsel %vm756, %v1145, 0
      %v1178 = vsel %vm756, %v1147, 0
      %v1180 = vsel %vm756, %v1149, 0
      %v1182 = vsel %vm756, %v1151, 0
      %v1184 = vsel %vm756, %v1153, 0
      %v1186 = vsel %vm756, %v1155, 0
      %v1188 = vsel %vm756, %v1157, 0
      %v1190 = vsel %vm756, %v1159, 0
      %1192 = vmatprep.subr.mxu0 0.0
      %1193 = vmatpush1.xpose.msra.mxu0 0.0
      %1194 = vmatprep.subr.mxu0 0.0
      %1195 = vmatpush1.xpose.msra.mxu0 0.0
      %1196 = vmatprep.subr.mxu0 0.0
      %1197 = vmatpush1.xpose.msra.mxu0 0.0
      %1198 = vmatprep.subr.mxu0 0.0
      %1199 = vmatpush1.xpose.msra.mxu0 0.0
      %1200 = vmatprep.subr.mxu0 0.0
      %1201 = vmatpush1.xpose.msra.mxu0 0.0
      %1202 = vmatprep.subr.mxu0 0.0
      %1203 = vmatpush1.xpose.msra.mxu0 0.0
      %1204 = vmatprep.subr.mxu0 0.0
      %1205 = vmatpush1.xpose.msra.mxu0 0.0
      %1206 = vmatprep.subr.mxu0 0.0
      %1207 = vmatpush1.xpose.msra.mxu0 0.0
      %1208 = vmatprep.subr.mxu0 0.0
      %1209 = vmatpush1.xpose.msra.mxu0 %v1190
      %1210 = vmatprep.subr.mxu0 0.0
      %1211 = vmatpush1.xpose.msra.mxu0 %v1188
      %1212 = vmatprep.subr.mxu0 0.0
      %1213 = vmatpush1.xpose.msra.mxu0 %v1186
      %1214 = vmatprep.subr.mxu0 0.0
      %1215 = vmatpush1.xpose.msra.mxu0 %v1184
      %1216 = vmatprep.subr.mxu0 0.0
      %1217 = vmatpush1.xpose.msra.mxu0 %v1182
      %1218 = vmatprep.subr.mxu0 0.0
      %1219 = vmatpush1.xpose.msra.mxu0 %v1180
      %1220 = vmatprep.subr.mxu0 0.0
      %1221 = vmatpush1.xpose.msra.mxu0 %v1178
      %1222 = vmatprep.subr.mxu0 0.0
      %1223 = vmatpush1.xpose.msra.mxu0 %v1176
      %1224 = vmatprep.subr.mxu0 0.0
      %1225 = vmatpush2.xpose.msra.mxu0 0.0
      %1226 = vmatprep.subr.mxu0 0.0
      %1227 = vmatpush2.xpose.msra.mxu0 0.0
      %1228 = vmatprep.subr.mxu0 0.0
      %1229 = vmatpush2.xpose.msra.mxu0 0.0
      %1230 = vmatprep.subr.mxu0 0.0
      %1231 = vmatpush2.xpose.msra.mxu0 0.0
      %1232 = vmatprep.subr.mxu0 0.0
      %1233 = vmatpush2.xpose.msra.mxu0 0.0
      %1234 = vmatprep.subr.mxu0 0.0
      %1235 = vmatpush2.xpose.msra.mxu0 0.0
      %1236 = vmatprep.subr.mxu0 0.0
      %1237 = vmatpush2.xpose.msra.mxu0 0.0
      %1238 = vmatprep.subr.mxu0 0.0
      %1239 = vmatpush2.xpose.msra.mxu0 0.0
      %1240 = vmatprep.subr.mxu0 0.0
      %1241 = vmatpush2.xpose.msra.mxu0 0.0
      %1242 = vmatprep.subr.mxu0 0.0
      %1243 = vmatpush2.xpose.msra.mxu0 0.0
      %1244 = vmatprep.subr.mxu0 0.0
      %1245 = vmatpush2.xpose.msra.mxu0 0.0
      %1246 = vmatprep.subr.mxu0 0.0
      %1247 = vmatpush2.xpose.msra.mxu0 0.0
      %1248 = vmatprep.subr.mxu0 0.0
      %1249 = vmatpush2.xpose.msra.mxu0 0.0
      %1250 = vmatprep.subr.mxu0 0.0
      %1251 = vmatpush2.xpose.msra.mxu0 0.0
      %1252 = vmatprep.subr.mxu0 0.0
      %1253 = vmatpush2.xpose.msra.mxu0 0.0
      %1254 = vmatprep.subr.mxu0 0.0
      %1255 = vmatpush2.xpose.msra.mxu0 0.0
      %1256 = vmatprep.mubr.f32.mxu0 0.0
      %1257 = vmatmul.mubr.f32.gmra.mxu0 %v1160
      %v1258 = vpop.f32.mrf.mxu0
      %v1259 = vadd.f32 0.0, %v1258
      %v1260 = vpop.f32.mrf.mxu0
      %1261 = vmatprep.mubr.f32.mxu0 0.0
      %1262 = vmatmul.mubr.f32.gmra.mxu0 %v1162
      %v1263 = vpop.f32.mrf.mxu0
      %v1264 = vadd.f32 0.0, %v1263
      %v1265 = vpop.f32.mrf.mxu0
      %1266 = vmatprep.mubr.f32.mxu0 0.0
      %1267 = vmatmul.mubr.f32.gmra.mxu0 %v1164
      %v1268 = vpop.f32.mrf.mxu0
      %v1269 = vadd.f32 0.0, %v1268
      %v1270 = vpop.f32.mrf.mxu0
      %1271 = vmatprep.mubr.f32.mxu0 0.0
      %1272 = vmatmul.mubr.f32.gmra.mxu0 %v1166
      %v1273 = vpop.f32.mrf.mxu0
      %v1274 = vadd.f32 0.0, %v1273
      %v1275 = vpop.f32.mrf.mxu0
      %1276 = vmatprep.mubr.f32.mxu0 0.0
      %1277 = vmatmul.mubr.f32.gmra.mxu0 %v1168
      %v1278 = vpop.f32.mrf.mxu0
      %v1279 = vadd.f32 0.0, %v1278
      %v1280 = vpop.f32.mrf.mxu0
      %1281 = vmatprep.mubr.f32.mxu0 0.0
      %1282 = vmatmul.mubr.f32.gmra.mxu0 %v1170
      %v1283 = vpop.f32.mrf.mxu0
      %v1284 = vadd.f32 0.0, %v1283
      %v1285 = vpop.f32.mrf.mxu0
      %1286 = vmatprep.mubr.f32.mxu0 0.0
      %1287 = vmatmul.mubr.f32.gmra.mxu0 %v1172
      %v1288 = vpop.f32.mrf.mxu0
      %v1289 = vadd.f32 0.0, %v1288
      %v1290 = vpop.f32.mrf.mxu0
      %1291 = vmatprep.mubr.f32.mxu0 0.0
      %1292 = vmatmul.mubr.f32.gmra.mxu0 %v1174
      %v1293 = vpop.f32.mrf.mxu0
      %v1294 = vadd.f32 0.0, %v1293
      %v1295 = vpop.f32.mrf.mxu0
      %1296 = vdwg.mxu0
      %v1297 = vsel %vm910, %v1259, -inf
      %1298 = vmax.xlane.f32.xlu0 %v1297
      %v1299 = vpop.xlane.xlu0 %1298
      %v1300 = vsel %vm910, %v1264, -inf
      %1301 = vmax.xlane.f32.xlu0 %v1300
      %v1302 = vpop.xlane.xlu0 %1301
      %v1303 = vsel %vm910, %v1269, -inf
      %1304 = vmax.xlane.f32.xlu0 %v1303
      %v1305 = vpop.xlane.xlu0 %1304
      %v1306 = vsel %vm910, %v1274, -inf
      %1307 = vmax.xlane.f32.xlu0 %v1306
      %v1308 = vpop.xlane.xlu0 %1307
      %v1309 = vsel %vm910, %v1279, -inf
      %1310 = vmax.xlane.f32.xlu0 %v1309
      %v1311 = vpop.xlane.xlu0 %1310
      %v1312 = vsel %vm910, %v1284, -inf
      %1313 = vmax.xlane.f32.xlu0 %v1312
      %v1314 = vpop.xlane.xlu0 %1313
      %v1315 = vsel %vm910, %v1289, -inf
      %1316 = vmax.xlane.f32.xlu0 %v1315
      %v1317 = vpop.xlane.xlu0 %1316
      %v1318 = vsel %vm910, %v1294, -inf
      %1319 = vmax.xlane.f32.xlu0 %v1318
      %v1320 = vpop.xlane.xlu0 %1319
      %v1321 = vsub.f32 %v1259, %v1299
      %v1322 = vsub.f32 %v1264, %v1302
      %v1323 = vsub.f32 %v1269, %v1305
      %v1324 = vsub.f32 %v1274, %v1308
      %v1325 = vsub.f32 %v1279, %v1311
      %v1326 = vsub.f32 %v1284, %v1314
      %v1327 = vsub.f32 %v1289, %v1317
      %v1328 = vsub.f32 %v1294, %v1320
      %v1329 = vmul.f32 %v1321, 1.442695
      %v1330 = vpow.pop %v1329
      %v1331 = vmul.f32 %v1322, 1.442695
      %v1332 = vpow.pop %v1331
      %v1333 = vmul.f32 %v1323, 1.442695
      %v1334 = vpow.pop %v1333
      %v1335 = vmul.f32 %v1324, 1.442695
      %v1336 = vpow.pop %v1335
      %v1337 = vmul.f32 %v1325, 1.442695
      %v1338 = vpow.pop %v1337
      %v1339 = vmul.f32 %v1326, 1.442695
      %v1340 = vpow.pop %v1339
      %v1341 = vmul.f32 %v1327, 1.442695
      %v1342 = vpow.pop %v1341
      %v1343 = vmul.f32 %v1328, 1.442695
      %v1344 = vpow.pop %v1343
      %v1345 = vsel %vm910, %v1330, 0.0
      %1346 = vadd.xlane.f32.xlu0 %v1345
      %v1347 = vpop.xlane.xlu0 %1346
      %v1348 = vsel %vm910, %v1332, 0.0
      %1349 = vadd.xlane.f32.xlu0 %v1348
      %v1350 = vpop.xlane.xlu0 %1349
      %v1351 = vsel %vm910, %v1334, 0.0
      %1352 = vadd.xlane.f32.xlu0 %v1351
      %v1353 = vpop.xlane.xlu0 %1352
      %v1354 = vsel %vm910, %v1336, 0.0
      %1355 = vadd.xlane.f32.xlu0 %v1354
      %v1356 = vpop.xlane.xlu0 %1355
      %v1357 = vsel %vm910, %v1338, 0.0
      %1358 = vadd.xlane.f32.xlu0 %v1357
      %v1359 = vpop.xlane.xlu0 %1358
      %v1360 = vsel %vm910, %v1340, 0.0
      %1361 = vadd.xlane.f32.xlu0 %v1360
      %v1362 = vpop.xlane.xlu0 %1361
      %v1363 = vsel %vm910, %v1342, 0.0
      %1364 = vadd.xlane.f32.xlu0 %v1363
      %v1365 = vpop.xlane.xlu0 %1364
      %v1366 = vsel %vm910, %v1344, 0.0
      %1367 = vadd.xlane.f32.xlu0 %v1366
      %v1368 = vpop.xlane.xlu0 %1367
      %v1369 = vrcp.pop %v1347
      %v1370 = vmul.f32 %v1330, %v1369
      %v1371 = vrcp.pop %v1350
      %v1372 = vmul.f32 %v1332, %v1371
      %v1373 = vrcp.pop %v1353
      %v1374 = vmul.f32 %v1334, %v1373
      %v1375 = vrcp.pop %v1356
      %v1376 = vmul.f32 %v1336, %v1375
      %v1377 = vrcp.pop %v1359
      %v1378 = vmul.f32 %v1338, %v1377
      %v1379 = vrcp.pop %v1362
      %v1380 = vmul.f32 %v1340, %v1379
      %v1381 = vrcp.pop %v1365
      %v1382 = vmul.f32 %v1342, %v1381
      %v1383 = vrcp.pop %v1368
      %v1384 = vmul.f32 %v1344, %v1383
      %1393 = vrot.lane.b32.xlu0 %v694, 96
      %v1394 = vpop.permute.xlu0 %1393
      %1395 = vrot.lane.b32.xlu0 %v699, 96
      %v1396 = vpop.permute.xlu0 %1395
      %1397 = vrot.lane.b32.xlu0 %v704, 96
      %v1398 = vpop.permute.xlu0 %1397
      %1399 = vrot.lane.b32.xlu0 %v709, 96
      %v1400 = vpop.permute.xlu0 %1399
      %1401 = vrot.lane.b32.xlu0 %v714, 96
      %v1402 = vpop.permute.xlu0 %1401
      %1403 = vrot.lane.b32.xlu0 %v719, 96
      %v1404 = vpop.permute.xlu0 %1403
      %1405 = vrot.lane.b32.xlu0 %v724, 96
      %v1406 = vpop.permute.xlu0 %1405
      %1407 = vrot.lane.b32.xlu0 %v729, 96
      %v1408 = vpop.permute.xlu0 %1407
      %v1418 = vsel %vm910, %v1370, 0
      %v1421 = vsel %vm910, %v1372, 0
      %v1424 = vsel %vm910, %v1374, 0
      %v1427 = vsel %vm910, %v1376, 0
      %v1430 = vsel %vm910, %v1378, 0
      %v1433 = vsel %vm910, %v1380, 0
      %v1436 = vsel %vm910, %v1382, 0
      %v1439 = vsel %vm910, %v1384, 0
      %1441 = vmatprep.subr.mxu0 0.0
      %1442 = vmatpush1.msra.mxu0 0.0
      %1443 = vmatprep.subr.mxu0 0.0
      %1444 = vmatpush1.msra.mxu0 0.0
      %1445 = vmatprep.subr.mxu0 0.0
      %1446 = vmatpush1.msra.mxu0 0.0
      %1447 = vmatprep.subr.mxu0 0.0
      %1448 = vmatpush1.msra.mxu0 0.0
      %1449 = vmatprep.subr.mxu0 0.0
      %1450 = vmatpush1.msra.mxu0 0.0
      %1451 = vmatprep.subr.mxu0 0.0
      %1452 = vmatpush1.msra.mxu0 0.0
      %1453 = vmatprep.subr.mxu0 0.0
      %1454 = vmatpush1.msra.mxu0 0.0
      %1455 = vmatprep.subr.mxu0 0.0
      %1456 = vmatpush1.msra.mxu0 0.0
      %1457 = vmatprep.subr.mxu0 0.0
      %1458 = vmatpush1.msra.mxu0 %v1408
      %1459 = vmatprep.subr.mxu0 0.0
      %1460 = vmatpush1.msra.mxu0 %v1406
      %1461 = vmatprep.subr.mxu0 0.0
      %1462 = vmatpush1.msra.mxu0 %v1404
      %1463 = vmatprep.subr.mxu0 0.0
      %1464 = vmatpush1.msra.mxu0 %v1402
      %1465 = vmatprep.subr.mxu0 0.0
      %1466 = vmatpush1.msra.mxu0 %v1400
      %1467 = vmatprep.subr.mxu0 0.0
      %1468 = vmatpush1.msra.mxu0 %v1398
      %1469 = vmatprep.subr.mxu0 0.0
      %1470 = vmatpush1.msra.mxu0 %v1396
      %1471 = vmatprep.subr.mxu0 0.0
      %1472 = vmatpush1.msra.mxu0 %v1394
      %1473 = vmatprep.subr.mxu0 0.0
      %1474 = vmatpush2.msra.mxu0 0.0
      %1475 = vmatprep.subr.mxu0 0.0
      %1476 = vmatpush2.msra.mxu0 0.0
      %1477 = vmatprep.subr.mxu0 0.0
      %1478 = vmatpush2.msra.mxu0 0.0
      %1479 = vmatprep.subr.mxu0 0.0
      %1480 = vmatpush2.msra.mxu0 0.0
      %1481 = vmatprep.subr.mxu0 0.0
      %1482 = vmatpush2.msra.mxu0 0.0
      %1483 = vmatprep.subr.mxu0 0.0
      %1484 = vmatpush2.msra.mxu0 0.0
      %1485 = vmatprep.subr.mxu0 0.0
      %1486 = vmatpush2.msra.mxu0 0.0
      %1487 = vmatprep.subr.mxu0 0.0
      %1488 = vmatpush2.msra.mxu0 0.0
      %1489 = vmatprep.subr.mxu0 0.0
      %1490 = vmatpush2.msra.mxu0 0.0
      %1491 = vmatprep.subr.mxu0 0.0
      %1492 = vmatpush2.msra.mxu0 0.0
      %1493 = vmatprep.subr.mxu0 0.0
      %1494 = vmatpush2.msra.mxu0 0.0
      %1495 = vmatprep.subr.mxu0 0.0
      %1496 = vmatpush2.msra.mxu0 0.0
      %1497 = vmatprep.subr.mxu0 0.0
      %1498 = vmatpush2.msra.mxu0 0.0
      %1499 = vmatprep.subr.mxu0 0.0
      %1500 = vmatpush2.msra.mxu0 0.0
      %1501 = vmatprep.subr.mxu0 0.0
      %1502 = vmatpush2.msra.mxu0 0.0
      %1503 = vmatprep.subr.mxu0 0.0
      %1504 = vmatpush2.msra.mxu0 0.0
      %1505 = vmatprep.mubr.f32.mxu0 0.0
      %1506 = vmatmul.mubr.f32.gmra.mxu0 %v1418
      %v1507 = vpop.f32.mrf.mxu0
      %v1508 = vadd.f32 0.0, %v1507
      %v1509 = vpop.f32.mrf.mxu0
      %1510 = vmatprep.mubr.f32.mxu0 0.0
      %1511 = vmatmul.mubr.f32.gmra.mxu0 %v1421
      %v1512 = vpop.f32.mrf.mxu0
      %v1513 = vadd.f32 0.0, %v1512
      %v1514 = vpop.f32.mrf.mxu0
      %1515 = vmatprep.mubr.f32.mxu0 0.0
      %1516 = vmatmul.mubr.f32.gmra.mxu0 %v1424
      %v1517 = vpop.f32.mrf.mxu0
      %v1518 = vadd.f32 0.0, %v1517
      %v1519 = vpop.f32.mrf.mxu0
      %1520 = vmatprep.mubr.f32.mxu0 0.0
      %1521 = vmatmul.mubr.f32.gmra.mxu0 %v1427
      %v1522 = vpop.f32.mrf.mxu0
      %v1523 = vadd.f32 0.0, %v1522
      %v1524 = vpop.f32.mrf.mxu0
      %1525 = vmatprep.mubr.f32.mxu0 0.0
      %1526 = vmatmul.mubr.f32.gmra.mxu0 %v1430
      %v1527 = vpop.f32.mrf.mxu0
      %v1528 = vadd.f32 0.0, %v1527
      %v1529 = vpop.f32.mrf.mxu0
      %1530 = vmatprep.mubr.f32.mxu0 0.0
      %1531 = vmatmul.mubr.f32.gmra.mxu0 %v1433
      %v1532 = vpop.f32.mrf.mxu0
      %v1533 = vadd.f32 0.0, %v1532
      %v1534 = vpop.f32.mrf.mxu0
      %1535 = vmatprep.mubr.f32.mxu0 0.0
      %1536 = vmatmul.mubr.f32.gmra.mxu0 %v1436
      %v1537 = vpop.f32.mrf.mxu0
      %v1538 = vadd.f32 0.0, %v1537
      %v1539 = vpop.f32.mrf.mxu0
      %1540 = vmatprep.mubr.f32.mxu0 0.0
      %1541 = vmatmul.mubr.f32.gmra.mxu0 %v1439
      %v1542 = vpop.f32.mrf.mxu0
      %v1543 = vadd.f32 0.0, %v1542
      %v1544 = vpop.f32.mrf.mxu0
      %1545 = vdwg.mxu0
      %v1547 = vsel %vm756, %v1508, 0
      %v1550 = vsel %vm756, %v1513, 0
      %v1553 = vsel %vm756, %v1518, 0
      %v1556 = vsel %vm756, %v1523, 0
      %v1559 = vsel %vm756, %v1528, 0
      %v1562 = vsel %vm756, %v1533, 0
      %v1565 = vsel %vm756, %v1538, 0
      %v1568 = vsel %vm756, %v1543, 0
      %1570 = vmatprep.subr.mxu0 0.0
      %1571 = vmatpush1.msra.mxu0 0.0
      %1572 = vmatprep.subr.mxu0 0.0
      %1573 = vmatpush1.msra.mxu0 0.0
      %1574 = vmatprep.subr.mxu0 0.0
      %1575 = vmatpush1.msra.mxu0 0.0
      %1576 = vmatprep.subr.mxu0 0.0
      %1577 = vmatpush1.msra.mxu0 0.0
      %1578 = vmatprep.subr.mxu0 0.0
      %1579 = vmatpush1.msra.mxu0 0.0
      %1580 = vmatprep.subr.mxu0 0.0
      %1581 = vmatpush1.msra.mxu0 0.0
      %1582 = vmatprep.subr.mxu0 0.0
      %1583 = vmatpush1.msra.mxu0 0.0
      %1584 = vmatprep.subr.mxu0 0.0
      %1585 = vmatpush1.msra.mxu0 0.0
      %1586 = vmatprep.subr.mxu0 0.0
      %1587 = vmatpush1.msra.mxu0 0.0
      %1588 = vmatprep.subr.mxu0 0.0
      %1589 = vmatpush1.msra.mxu0 0.0
      %1590 = vmatprep.subr.mxu0 0.0
      %1591 = vmatpush1.msra.mxu0 0.0
      %1592 = vmatprep.subr.mxu0 0.0
      %1593 = vmatpush1.msra.mxu0 0.0
      %1594 = vmatprep.subr.mxu0 0.0
      %1595 = vmatpush1.msra.mxu0 %v747
      %1596 = vmatprep.subr.mxu0 0.0
      %1597 = vmatpush1.msra.mxu0 %v746
      %1598 = vmatprep.subr.mxu0 0.0
      %1599 = vmatpush1.msra.mxu0 %v745
      %1600 = vmatprep.subr.mxu0 0.0
      %1601 = vmatpush1.msra.mxu0 %v744
      %1602 = vmatprep.subr.mxu0 0.0
      %1603 = vmatpush2.msra.mxu0 0.0
      %1604 = vmatprep.subr.mxu0 0.0
      %1605 = vmatpush2.msra.mxu0 0.0
      %1606 = vmatprep.subr.mxu0 0.0
      %1607 = vmatpush2.msra.mxu0 0.0
      %1608 = vmatprep.subr.mxu0 0.0
      %1609 = vmatpush2.msra.mxu0 0.0
      %1610 = vmatprep.subr.mxu0 0.0
      %1611 = vmatpush2.msra.mxu0 0.0
      %1612 = vmatprep.subr.mxu0 0.0
      %1613 = vmatpush2.msra.mxu0 0.0
      %1614 = vmatprep.subr.mxu0 0.0
      %1615 = vmatpush2.msra.mxu0 0.0
      %1616 = vmatprep.subr.mxu0 0.0
      %1617 = vmatpush2.msra.mxu0 0.0
      %1618 = vmatprep.subr.mxu0 0.0
      %1619 = vmatpush2.msra.mxu0 0.0
      %1620 = vmatprep.subr.mxu0 0.0
      %1621 = vmatpush2.msra.mxu0 0.0
      %1622 = vmatprep.subr.mxu0 0.0
      %1623 = vmatpush2.msra.mxu0 0.0
      %1624 = vmatprep.subr.mxu0 0.0
      %1625 = vmatpush2.msra.mxu0 0.0
      %1626 = vmatprep.subr.mxu0 0.0
      %1627 = vmatpush2.msra.mxu0 0.0
      %1628 = vmatprep.subr.mxu0 0.0
      %1629 = vmatpush2.msra.mxu0 0.0
      %1630 = vmatprep.subr.mxu0 0.0
      %1631 = vmatpush2.msra.mxu0 0.0
      %1632 = vmatprep.subr.mxu0 0.0
      %1633 = vmatpush2.msra.mxu0 0.0
      %1634 = vmatprep.mubr.f32.mxu0 0.0
      %1635 = vmatmul.mubr.f32.gmra.mxu0 %v1547
      %v1636 = vpop.f32.mrf.mxu0
      %v1637 = vadd.f32 0.0, %v1636
      %v1638 = vpop.f32.mrf.mxu0
      %1639 = vmatprep.mubr.f32.mxu0 0.0
      %1640 = vmatmul.mubr.f32.gmra.mxu0 %v1550
      %v1641 = vpop.f32.mrf.mxu0
      %v1642 = vadd.f32 0.0, %v1641
      %v1643 = vpop.f32.mrf.mxu0
      %1644 = vmatprep.mubr.f32.mxu0 0.0
      %1645 = vmatmul.mubr.f32.gmra.mxu0 %v1553
      %v1646 = vpop.f32.mrf.mxu0
      %v1647 = vadd.f32 0.0, %v1646
      %v1648 = vpop.f32.mrf.mxu0
      %1649 = vmatprep.mubr.f32.mxu0 0.0
      %1650 = vmatmul.mubr.f32.gmra.mxu0 %v1556
      %v1651 = vpop.f32.mrf.mxu0
      %v1652 = vadd.f32 0.0, %v1651
      %v1653 = vpop.f32.mrf.mxu0
      %1654 = vmatprep.mubr.f32.mxu0 0.0
      %1655 = vmatmul.mubr.f32.gmra.mxu0 %v1559
      %v1656 = vpop.f32.mrf.mxu0
      %v1657 = vadd.f32 0.0, %v1656
      %v1658 = vpop.f32.mrf.mxu0
      %1659 = vmatprep.mubr.f32.mxu0 0.0
      %1660 = vmatmul.mubr.f32.gmra.mxu0 %v1562
      %v1661 = vpop.f32.mrf.mxu0
      %v1662 = vadd.f32 0.0, %v1661
      %v1663 = vpop.f32.mrf.mxu0
      %1664 = vmatprep.mubr.f32.mxu0 0.0
      %1665 = vmatmul.mubr.f32.gmra.mxu0 %v1565
      %v1666 = vpop.f32.mrf.mxu0
      %v1667 = vadd.f32 0.0, %v1666
      %v1668 = vpop.f32.mrf.mxu0
      %1669 = vmatprep.mubr.f32.mxu0 0.0
      %1670 = vmatmul.mubr.f32.gmra.mxu0 %v1568
      %v1671 = vpop.f32.mrf.mxu0
      %v1672 = vadd.f32 0.0, %v1671
      %v1673 = vpop.f32.mrf.mxu0
      %1674 = vdwg.mxu0
      %v1676 = vsel %vm756, %v1090, 0
      %v1679 = vsel %vm756, %v1095, 0
      %v1682 = vsel %vm756, %v1100, 0
      %v1685 = vsel %vm756, %v1105, 0
      %v1688 = vsel %vm756, %v1110, 0
      %v1691 = vsel %vm756, %v1115, 0
      %v1694 = vsel %vm756, %v1120, 0
      %v1697 = vsel %vm756, %v1125, 0
      %1699 = vmatprep.subr.mxu0 0.0
      %1700 = vmatpush1.msra.mxu0 0.0
      %1701 = vmatprep.subr.mxu0 0.0
      %1702 = vmatpush1.msra.mxu0 0.0
      %1703 = vmatprep.subr.mxu0 0.0
      %1704 = vmatpush1.msra.mxu0 0.0
      %1705 = vmatprep.subr.mxu0 0.0
      %1706 = vmatpush1.msra.mxu0 0.0
      %1707 = vmatprep.subr.mxu0 0.0
      %1708 = vmatpush1.msra.mxu0 0.0
      %1709 = vmatprep.subr.mxu0 0.0
      %1710 = vmatpush1.msra.mxu0 0.0
      %1711 = vmatprep.subr.mxu0 0.0
      %1712 = vmatpush1.msra.mxu0 0.0
      %1713 = vmatprep.subr.mxu0 0.0
      %1714 = vmatpush1.msra.mxu0 0.0
      %1715 = vmatprep.subr.mxu0 0.0
      %1716 = vmatpush1.msra.mxu0 0.0
      %1717 = vmatprep.subr.mxu0 0.0
      %1718 = vmatpush1.msra.mxu0 0.0
      %1719 = vmatprep.subr.mxu0 0.0
      %1720 = vmatpush1.msra.mxu0 0.0
      %1721 = vmatprep.subr.mxu0 0.0
      %1722 = vmatpush1.msra.mxu0 0.0
      %1723 = vmatprep.subr.mxu0 0.0
      %1724 = vmatpush1.msra.mxu0 %v743
      %1725 = vmatprep.subr.mxu0 0.0
      %1726 = vmatpush1.msra.mxu0 %v742
      %1727 = vmatprep.subr.mxu0 0.0
      %1728 = vmatpush1.msra.mxu0 %v741
      %1729 = vmatprep.subr.mxu0 0.0
      %1730 = vmatpush1.msra.mxu0 %v740
      %1731 = vmatprep.subr.mxu0 0.0
      %1732 = vmatpush2.msra.mxu0 0.0
      %1733 = vmatprep.subr.mxu0 0.0
      %1734 = vmatpush2.msra.mxu0 0.0
      %1735 = vmatprep.subr.mxu0 0.0
      %1736 = vmatpush2.msra.mxu0 0.0
      %1737 = vmatprep.subr.mxu0 0.0
      %1738 = vmatpush2.msra.mxu0 0.0
      %1739 = vmatprep.subr.mxu0 0.0
      %1740 = vmatpush2.msra.mxu0 0.0
      %1741 = vmatprep.subr.mxu0 0.0
      %1742 = vmatpush2.msra.mxu0 0.0
      %1743 = vmatprep.subr.mxu0 0.0
      %1744 = vmatpush2.msra.mxu0 0.0
      %1745 = vmatprep.subr.mxu0 0.0
      %1746 = vmatpush2.msra.mxu0 0.0
      %1747 = vmatprep.subr.mxu0 0.0
      %1748 = vmatpush2.msra.mxu0 0.0
      %1749 = vmatprep.subr.mxu0 0.0
      %1750 = vmatpush2.msra.mxu0 0.0
      %1751 = vmatprep.subr.mxu0 0.0
      %1752 = vmatpush2.msra.mxu0 0.0
      %1753 = vmatprep.subr.mxu0 0.0
      %1754 = vmatpush2.msra.mxu0 0.0
      %1755 = vmatprep.subr.mxu0 0.0
      %1756 = vmatpush2.msra.mxu0 0.0
      %1757 = vmatprep.subr.mxu0 0.0
      %1758 = vmatpush2.msra.mxu0 0.0
      %1759 = vmatprep.subr.mxu0 0.0
      %1760 = vmatpush2.msra.mxu0 0.0
      %1761 = vmatprep.subr.mxu0 0.0
      %1762 = vmatpush2.msra.mxu0 0.0
      %1763 = vmatprep.mubr.f32.mxu0 0.0
      %1764 = vmatmul.mubr.f32.gmra.mxu0 %v1676
      %v1765 = vpop.f32.mrf.mxu0
      %v1766 = vadd.f32 %v1637, %v1765
      %v1767 = vpop.f32.mrf.mxu0
      %1768 = vmatprep.mubr.f32.mxu0 0.0
      %1769 = vmatmul.mubr.f32.gmra.mxu0 %v1679
      %v1770 = vpop.f32.mrf.mxu0
      %v1771 = vadd.f32 %v1642, %v1770
      %v1772 = vpop.f32.mrf.mxu0
      %1773 = vmatprep.mubr.f32.mxu0 0.0
      %1774 = vmatmul.mubr.f32.gmra.mxu0 %v1682
      %v1775 = vpop.f32.mrf.mxu0
      %v1776 = vadd.f32 %v1647, %v1775
      %v1777 = vpop.f32.mrf.mxu0
      %1778 = vmatprep.mubr.f32.mxu0 0.0
      %1779 = vmatmul.mubr.f32.gmra.mxu0 %v1685
      %v1780 = vpop.f32.mrf.mxu0
      %v1781 = vadd.f32 %v1652, %v1780
      %v1782 = vpop.f32.mrf.mxu0
      %1783 = vmatprep.mubr.f32.mxu0 0.0
      %1784 = vmatmul.mubr.f32.gmra.mxu0 %v1688
      %v1785 = vpop.f32.mrf.mxu0
      %v1786 = vadd.f32 %v1657, %v1785
      %v1787 = vpop.f32.mrf.mxu0
      %1788 = vmatprep.mubr.f32.mxu0 0.0
      %1789 = vmatmul.mubr.f32.gmra.mxu0 %v1691
      %v1790 = vpop.f32.mrf.mxu0
      %v1791 = vadd.f32 %v1662, %v1790
      %v1792 = vpop.f32.mrf.mxu0
      %1793 = vmatprep.mubr.f32.mxu0 0.0
      %1794 = vmatmul.mubr.f32.gmra.mxu0 %v1694
      %v1795 = vpop.f32.mrf.mxu0
      %v1796 = vadd.f32 %v1667, %v1795
      %v1797 = vpop.f32.mrf.mxu0
      %1798 = vmatprep.mubr.f32.mxu0 0.0
      %1799 = vmatmul.mubr.f32.gmra.mxu0 %v1697
      %v1800 = vpop.f32.mrf.mxu0
      %v1801 = vadd.f32 %v1672, %v1800
      %v1802 = vpop.f32.mrf.mxu0
      %1803 = vdwg.mxu0
      %1804 = vrot.lane.b32.xlu0 %v732, 64
      %v1805 = vpop.permute.xlu0 %1804
      %1806 = vrot.lane.b32.xlu0 %v733, 64
      %v1807 = vpop.permute.xlu0 %1806
      %1808 = vrot.lane.b32.xlu0 %v734, 64
      %v1809 = vpop.permute.xlu0 %1808
      %1810 = vrot.lane.b32.xlu0 %v735, 64
      %v1811 = vpop.permute.xlu0 %1810
      %1812 = vrot.lane.b32.xlu0 %v736, 64
      %v1813 = vpop.permute.xlu0 %1812
      %1814 = vrot.lane.b32.xlu0 %v737, 64
      %v1815 = vpop.permute.xlu0 %1814
      %1816 = vrot.lane.b32.xlu0 %v738, 64
      %v1817 = vpop.permute.xlu0 %1816
      %1818 = vrot.lane.b32.xlu0 %v739, 64
      %v1819 = vpop.permute.xlu0 %1818
      %1820 = vrot.lane.b32.xlu0 %v583, 64
      %v1821 = vpop.permute.xlu0 %1820
      %1822 = vrot.lane.b32.xlu0 %v589, 64
      %v1823 = vpop.permute.xlu0 %1822
      %1824 = vrot.lane.b32.xlu0 %v595, 64
      %v1825 = vpop.permute.xlu0 %1824
      %1826 = vrot.lane.b32.xlu0 %v601, 64
      %v1827 = vpop.permute.xlu0 %1826
      %1828 = vrot.lane.b32.xlu0 %v607, 64
      %v1829 = vpop.permute.xlu0 %1828
      %1830 = vrot.lane.b32.xlu0 %v613, 64
      %v1831 = vpop.permute.xlu0 %1830
      %1832 = vrot.lane.b32.xlu0 %v619, 64
      %v1833 = vpop.permute.xlu0 %1832
      %1834 = vrot.lane.b32.xlu0 %v625, 64
      %v1835 = vpop.permute.xlu0 %1834
      %v1836 = vsel %vm756, %v1805, 0
      %v1838 = vsel %vm756, %v1807, 0
      %v1840 = vsel %vm756, %v1809, 0
      %v1842 = vsel %vm756, %v1811, 0
      %v1844 = vsel %vm756, %v1813, 0
      %v1846 = vsel %vm756, %v1815, 0
      %v1848 = vsel %vm756, %v1817, 0
      %v1850 = vsel %vm756, %v1819, 0
      %v1852 = vsel %vm756, %v1821, 0
      %v1854 = vsel %vm756, %v1823, 0
      %v1856 = vsel %vm756, %v1825, 0
      %v1858 = vsel %vm756, %v1827, 0
      %v1860 = vsel %vm756, %v1829, 0
      %v1862 = vsel %vm756, %v1831, 0
      %v1864 = vsel %vm756, %v1833, 0
      %v1866 = vsel %vm756, %v1835, 0
      %1868 = vmatprep.subr.mxu0 0.0
      %1869 = vmatpush1.xpose.msra.mxu0 0.0
      %1870 = vmatprep.subr.mxu0 0.0
      %1871 = vmatpush1.xpose.msra.mxu0 0.0
      %1872 = vmatprep.subr.mxu0 0.0
      %1873 = vmatpush1.xpose.msra.mxu0 0.0
      %1874 = vmatprep.subr.mxu0 0.0
      %1875 = vmatpush1.xpose.msra.mxu0 0.0
      %1876 = vmatprep.subr.mxu0 0.0
      %1877 = vmatpush1.xpose.msra.mxu0 0.0
      %1878 = vmatprep.subr.mxu0 0.0
      %1879 = vmatpush1.xpose.msra.mxu0 0.0
      %1880 = vmatprep.subr.mxu0 0.0
      %1881 = vmatpush1.xpose.msra.mxu0 0.0
      %1882 = vmatprep.subr.mxu0 0.0
      %1883 = vmatpush1.xpose.msra.mxu0 0.0
      %1884 = vmatprep.subr.mxu0 0.0
      %1885 = vmatpush1.xpose.msra.mxu0 %v1866
      %1886 = vmatprep.subr.mxu0 0.0
      %1887 = vmatpush1.xpose.msra.mxu0 %v1864
      %1888 = vmatprep.subr.mxu0 0.0
      %1889 = vmatpush1.xpose.msra.mxu0 %v1862
      %1890 = vmatprep.subr.mxu0 0.0
      %1891 = vmatpush1.xpose.msra.mxu0 %v1860
      %1892 = vmatprep.subr.mxu0 0.0
      %1893 = vmatpush1.xpose.msra.mxu0 %v1858
      %1894 = vmatprep.subr.mxu0 0.0
      %1895 = vmatpush1.xpose.msra.mxu0 %v1856
      %1896 = vmatprep.subr.mxu0 0.0
      %1897 = vmatpush1.xpose.msra.mxu0 %v1854
      %1898 = vmatprep.subr.mxu0 0.0
      %1899 = vmatpush1.xpose.msra.mxu0 %v1852
      %1900 = vmatprep.subr.mxu0 0.0
      %1901 = vmatpush2.xpose.msra.mxu0 0.0
      %1902 = vmatprep.subr.mxu0 0.0
      %1903 = vmatpush2.xpose.msra.mxu0 0.0
      %1904 = vmatprep.subr.mxu0 0.0
      %1905 = vmatpush2.xpose.msra.mxu0 0.0
      %1906 = vmatprep.subr.mxu0 0.0
      %1907 = vmatpush2.xpose.msra.mxu0 0.0
      %1908 = vmatprep.subr.mxu0 0.0
      %1909 = vmatpush2.xpose.msra.mxu0 0.0
      %1910 = vmatprep.subr.mxu0 0.0
      %1911 = vmatpush2.xpose.msra.mxu0 0.0
      %1912 = vmatprep.subr.mxu0 0.0
      %1913 = vmatpush2.xpose.msra.mxu0 0.0
      %1914 = vmatprep.subr.mxu0 0.0
      %1915 = vmatpush2.xpose.msra.mxu0 0.0
      %1916 = vmatprep.subr.mxu0 0.0
      %1917 = vmatpush2.xpose.msra.mxu0 0.0
      %1918 = vmatprep.subr.mxu0 0.0
      %1919 = vmatpush2.xpose.msra.mxu0 0.0
      %1920 = vmatprep.subr.mxu0 0.0
      %1921 = vmatpush2.xpose.msra.mxu0 0.0
      %1922 = vmatprep.subr.mxu0 0.0
      %1923 = vmatpush2.xpose.msra.mxu0 0.0
      %1924 = vmatprep.subr.mxu0 0.0
      %1925 = vmatpush2.xpose.msra.mxu0 0.0
      %1926 = vmatprep.subr.mxu0 0.0
      %1927 = vmatpush2.xpose.msra.mxu0 0.0
      %1928 = vmatprep.subr.mxu0 0.0
      %1929 = vmatpush2.xpose.msra.mxu0 0.0
      %1930 = vmatprep.subr.mxu0 0.0
      %1931 = vmatpush2.xpose.msra.mxu0 0.0
      %1932 = vmatprep.mubr.f32.mxu0 0.0
      %1933 = vmatmul.mubr.f32.gmra.mxu0 %v1836
      %v1934 = vpop.f32.mrf.mxu0
      %v1935 = vadd.f32 0.0, %v1934
      %v1936 = vpop.f32.mrf.mxu0
      %1937 = vmatprep.mubr.f32.mxu0 0.0
      %1938 = vmatmul.mubr.f32.gmra.mxu0 %v1838
      %v1939 = vpop.f32.mrf.mxu0
      %v1940 = vadd.f32 0.0, %v1939
      %v1941 = vpop.f32.mrf.mxu0
      %1942 = vmatprep.mubr.f32.mxu0 0.0
      %1943 = vmatmul.mubr.f32.gmra.mxu0 %v1840
      %v1944 = vpop.f32.mrf.mxu0
      %v1945 = vadd.f32 0.0, %v1944
      %v1946 = vpop.f32.mrf.mxu0
      %1947 = vmatprep.mubr.f32.mxu0 0.0
      %1948 = vmatmul.mubr.f32.gmra.mxu0 %v1842
      %v1949 = vpop.f32.mrf.mxu0
      %v1950 = vadd.f32 0.0, %v1949
      %v1951 = vpop.f32.mrf.mxu0
      %1952 = vmatprep.mubr.f32.mxu0 0.0
      %1953 = vmatmul.mubr.f32.gmra.mxu0 %v1844
      %v1954 = vpop.f32.mrf.mxu0
      %v1955 = vadd.f32 0.0, %v1954
      %v1956 = vpop.f32.mrf.mxu0
      %1957 = vmatprep.mubr.f32.mxu0 0.0
      %1958 = vmatmul.mubr.f32.gmra.mxu0 %v1846
      %v1959 = vpop.f32.mrf.mxu0
      %v1960 = vadd.f32 0.0, %v1959
      %v1961 = vpop.f32.mrf.mxu0
      %1962 = vmatprep.mubr.f32.mxu0 0.0
      %1963 = vmatmul.mubr.f32.gmra.mxu0 %v1848
      %v1964 = vpop.f32.mrf.mxu0
      %v1965 = vadd.f32 0.0, %v1964
      %v1966 = vpop.f32.mrf.mxu0
      %1967 = vmatprep.mubr.f32.mxu0 0.0
      %1968 = vmatmul.mubr.f32.gmra.mxu0 %v1850
      %v1969 = vpop.f32.mrf.mxu0
      %v1970 = vadd.f32 0.0, %v1969
      %v1971 = vpop.f32.mrf.mxu0
      %1972 = vdwg.mxu0
      %v1973 = vsel %vm910, %v1935, -inf
      %1974 = vmax.xlane.f32.xlu0 %v1973
      %v1975 = vpop.xlane.xlu0 %1974
      %v1976 = vsel %vm910, %v1940, -inf
      %1977 = vmax.xlane.f32.xlu0 %v1976
      %v1978 = vpop.xlane.xlu0 %1977
      %v1979 = vsel %vm910, %v1945, -inf
      %1980 = vmax.xlane.f32.xlu0 %v1979
      %v1981 = vpop.xlane.xlu0 %1980
      %v1982 = vsel %vm910, %v1950, -inf
      %1983 = vmax.xlane.f32.xlu0 %v1982
      %v1984 = vpop.xlane.xlu0 %1983
      %v1985 = vsel %vm910, %v1955, -inf
      %1986 = vmax.xlane.f32.xlu0 %v1985
      %v1987 = vpop.xlane.xlu0 %1986
      %v1988 = vsel %vm910, %v1960, -inf
      %1989 = vmax.xlane.f32.xlu0 %v1988
      %v1990 = vpop.xlane.xlu0 %1989
      %v1991 = vsel %vm910, %v1965, -inf
      %1992 = vmax.xlane.f32.xlu0 %v1991
      %v1993 = vpop.xlane.xlu0 %1992
      %v1994 = vsel %vm910, %v1970, -inf
      %1995 = vmax.xlane.f32.xlu0 %v1994
      %v1996 = vpop.xlane.xlu0 %1995
      %v1997 = vsub.f32 %v1935, %v1975
      %v1998 = vsub.f32 %v1940, %v1978
      %v1999 = vsub.f32 %v1945, %v1981
      %v2000 = vsub.f32 %v1950, %v1984
      %v2001 = vsub.f32 %v1955, %v1987
      %v2002 = vsub.f32 %v1960, %v1990
      %v2003 = vsub.f32 %v1965, %v1993
      %v2004 = vsub.f32 %v1970, %v1996
      %v2005 = vmul.f32 %v1997, 1.442695
      %v2006 = vpow.pop %v2005
      %v2007 = vmul.f32 %v1998, 1.442695
      %v2008 = vpow.pop %v2007
      %v2009 = vmul.f32 %v1999, 1.442695
      %v2010 = vpow.pop %v2009
      %v2011 = vmul.f32 %v2000, 1.442695
      %v2012 = vpow.pop %v2011
      %v2013 = vmul.f32 %v2001, 1.442695
      %v2014 = vpow.pop %v2013
      %v2015 = vmul.f32 %v2002, 1.442695
      %v2016 = vpow.pop %v2015
      %v2017 = vmul.f32 %v2003, 1.442695
      %v2018 = vpow.pop %v2017
      %v2019 = vmul.f32 %v2004, 1.442695
      %v2020 = vpow.pop %v2019
      %v2021 = vsel %vm910, %v2006, 0.0
      %2022 = vadd.xlane.f32.xlu0 %v2021
      %v2023 = vpop.xlane.xlu0 %2022
      %v2024 = vsel %vm910, %v2008, 0.0
      %2025 = vadd.xlane.f32.xlu0 %v2024
      %v2026 = vpop.xlane.xlu0 %2025
      %v2027 = vsel %vm910, %v2010, 0.0
      %2028 = vadd.xlane.f32.xlu0 %v2027
      %v2029 = vpop.xlane.xlu0 %2028
      %v2030 = vsel %vm910, %v2012, 0.0
      %2031 = vadd.xlane.f32.xlu0 %v2030
      %v2032 = vpop.xlane.xlu0 %2031
      %v2033 = vsel %vm910, %v2014, 0.0
      %2034 = vadd.xlane.f32.xlu0 %v2033
      %v2035 = vpop.xlane.xlu0 %2034
      %v2036 = vsel %vm910, %v2016, 0.0
      %2037 = vadd.xlane.f32.xlu0 %v2036
      %v2038 = vpop.xlane.xlu0 %2037
      %v2039 = vsel %vm910, %v2018, 0.0
      %2040 = vadd.xlane.f32.xlu0 %v2039
      %v2041 = vpop.xlane.xlu0 %2040
      %v2042 = vsel %vm910, %v2020, 0.0
      %2043 = vadd.xlane.f32.xlu0 %v2042
      %v2044 = vpop.xlane.xlu0 %2043
      %v2045 = vrcp.pop %v2023
      %v2046 = vmul.f32 %v2006, %v2045
      %v2047 = vrcp.pop %v2026
      %v2048 = vmul.f32 %v2008, %v2047
      %v2049 = vrcp.pop %v2029
      %v2050 = vmul.f32 %v2010, %v2049
      %v2051 = vrcp.pop %v2032
      %v2052 = vmul.f32 %v2012, %v2051
      %v2053 = vrcp.pop %v2035
      %v2054 = vmul.f32 %v2014, %v2053
      %v2055 = vrcp.pop %v2038
      %v2056 = vmul.f32 %v2016, %v2055
      %v2057 = vrcp.pop %v2041
      %v2058 = vmul.f32 %v2018, %v2057
      %v2059 = vrcp.pop %v2044
      %v2060 = vmul.f32 %v2020, %v2059
      %2061 = vrot.lane.b32.xlu0 %v694, 64
      %v2062 = vpop.permute.xlu0 %2061
      %2063 = vrot.lane.b32.xlu0 %v699, 64
      %v2064 = vpop.permute.xlu0 %2063
      %2065 = vrot.lane.b32.xlu0 %v704, 64
      %v2066 = vpop.permute.xlu0 %2065
      %2067 = vrot.lane.b32.xlu0 %v709, 64
      %v2068 = vpop.permute.xlu0 %2067
      %2069 = vrot.lane.b32.xlu0 %v714, 64
      %v2070 = vpop.permute.xlu0 %2069
      %2071 = vrot.lane.b32.xlu0 %v719, 64
      %v2072 = vpop.permute.xlu0 %2071
      %2073 = vrot.lane.b32.xlu0 %v724, 64
      %v2074 = vpop.permute.xlu0 %2073
      %2075 = vrot.lane.b32.xlu0 %v729, 64
      %v2076 = vpop.permute.xlu0 %2075
      %v2086 = vsel %vm910, %v2046, 0
      %v2089 = vsel %vm910, %v2048, 0
      %v2092 = vsel %vm910, %v2050, 0
      %v2095 = vsel %vm910, %v2052, 0
      %v2098 = vsel %vm910, %v2054, 0
      %v2101 = vsel %vm910, %v2056, 0
      %v2104 = vsel %vm910, %v2058, 0
      %v2107 = vsel %vm910, %v2060, 0
      %2109 = vmatprep.subr.mxu0 0.0
      %2110 = vmatpush1.msra.mxu0 0.0
      %2111 = vmatprep.subr.mxu0 0.0
      %2112 = vmatpush1.msra.mxu0 0.0
      %2113 = vmatprep.subr.mxu0 0.0
      %2114 = vmatpush1.msra.mxu0 0.0
      %2115 = vmatprep.subr.mxu0 0.0
      %2116 = vmatpush1.msra.mxu0 0.0
      %2117 = vmatprep.subr.mxu0 0.0
      %2118 = vmatpush1.msra.mxu0 0.0
      %2119 = vmatprep.subr.mxu0 0.0
      %2120 = vmatpush1.msra.mxu0 0.0
      %2121 = vmatprep.subr.mxu0 0.0
      %2122 = vmatpush1.msra.mxu0 0.0
      %2123 = vmatprep.subr.mxu0 0.0
      %2124 = vmatpush1.msra.mxu0 0.0
      %2125 = vmatprep.subr.mxu0 0.0
      %2126 = vmatpush1.msra.mxu0 %v2076
      %2127 = vmatprep.subr.mxu0 0.0
      %2128 = vmatpush1.msra.mxu0 %v2074
      %2129 = vmatprep.subr.mxu0 0.0
      %2130 = vmatpush1.msra.mxu0 %v2072
      %2131 = vmatprep.subr.mxu0 0.0
      %2132 = vmatpush1.msra.mxu0 %v2070
      %2133 = vmatprep.subr.mxu0 0.0
      %2134 = vmatpush1.msra.mxu0 %v2068
      %2135 = vmatprep.subr.mxu0 0.0
      %2136 = vmatpush1.msra.mxu0 %v2066
      %2137 = vmatprep.subr.mxu0 0.0
      %2138 = vmatpush1.msra.mxu0 %v2064
      %2139 = vmatprep.subr.mxu0 0.0
      %2140 = vmatpush1.msra.mxu0 %v2062
      %2141 = vmatprep.subr.mxu0 0.0
      %2142 = vmatpush2.msra.mxu0 0.0
      %2143 = vmatprep.subr.mxu0 0.0
      %2144 = vmatpush2.msra.mxu0 0.0
      %2145 = vmatprep.subr.mxu0 0.0
      %2146 = vmatpush2.msra.mxu0 0.0
      %2147 = vmatprep.subr.mxu0 0.0
      %2148 = vmatpush2.msra.mxu0 0.0
      %2149 = vmatprep.subr.mxu0 0.0
      %2150 = vmatpush2.msra.mxu0 0.0
      %2151 = vmatprep.subr.mxu0 0.0
      %2152 = vmatpush2.msra.mxu0 0.0
      %2153 = vmatprep.subr.mxu0 0.0
      %2154 = vmatpush2.msra.mxu0 0.0
      %2155 = vmatprep.subr.mxu0 0.0
      %2156 = vmatpush2.msra.mxu0 0.0
      %2157 = vmatprep.subr.mxu0 0.0
      %2158 = vmatpush2.msra.mxu0 0.0
      %2159 = vmatprep.subr.mxu0 0.0
      %2160 = vmatpush2.msra.mxu0 0.0
      %2161 = vmatprep.subr.mxu0 0.0
      %2162 = vmatpush2.msra.mxu0 0.0
      %2163 = vmatprep.subr.mxu0 0.0
      %2164 = vmatpush2.msra.mxu0 0.0
      %2165 = vmatprep.subr.mxu0 0.0
      %2166 = vmatpush2.msra.mxu0 0.0
      %2167 = vmatprep.subr.mxu0 0.0
      %2168 = vmatpush2.msra.mxu0 0.0
      %2169 = vmatprep.subr.mxu0 0.0
      %2170 = vmatpush2.msra.mxu0 0.0
      %2171 = vmatprep.subr.mxu0 0.0
      %2172 = vmatpush2.msra.mxu0 0.0
      %2173 = vmatprep.mubr.f32.mxu0 0.0
      %2174 = vmatmul.mubr.f32.gmra.mxu0 %v2086
      %v2175 = vpop.f32.mrf.mxu0
      %v2176 = vadd.f32 0.0, %v2175
      %v2177 = vpop.f32.mrf.mxu0
      %2178 = vmatprep.mubr.f32.mxu0 0.0
      %2179 = vmatmul.mubr.f32.gmra.mxu0 %v2089
      %v2180 = vpop.f32.mrf.mxu0
      %v2181 = vadd.f32 0.0, %v2180
      %v2182 = vpop.f32.mrf.mxu0
      %2183 = vmatprep.mubr.f32.mxu0 0.0
      %2184 = vmatmul.mubr.f32.gmra.mxu0 %v2092
      %v2185 = vpop.f32.mrf.mxu0
      %v2186 = vadd.f32 0.0, %v2185
      %v2187 = vpop.f32.mrf.mxu0
      %2188 = vmatprep.mubr.f32.mxu0 0.0
      %2189 = vmatmul.mubr.f32.gmra.mxu0 %v2095
      %v2190 = vpop.f32.mrf.mxu0
      %v2191 = vadd.f32 0.0, %v2190
      %v2192 = vpop.f32.mrf.mxu0
      %2193 = vmatprep.mubr.f32.mxu0 0.0
      %2194 = vmatmul.mubr.f32.gmra.mxu0 %v2098
      %v2195 = vpop.f32.mrf.mxu0
      %v2196 = vadd.f32 0.0, %v2195
      %v2197 = vpop.f32.mrf.mxu0
      %2198 = vmatprep.mubr.f32.mxu0 0.0
      %2199 = vmatmul.mubr.f32.gmra.mxu0 %v2101
      %v2200 = vpop.f32.mrf.mxu0
      %v2201 = vadd.f32 0.0, %v2200
      %v2202 = vpop.f32.mrf.mxu0
      %2203 = vmatprep.mubr.f32.mxu0 0.0
      %2204 = vmatmul.mubr.f32.gmra.mxu0 %v2104
      %v2205 = vpop.f32.mrf.mxu0
      %v2206 = vadd.f32 0.0, %v2205
      %v2207 = vpop.f32.mrf.mxu0
      %2208 = vmatprep.mubr.f32.mxu0 0.0
      %2209 = vmatmul.mubr.f32.gmra.mxu0 %v2107
      %v2210 = vpop.f32.mrf.mxu0
      %v2211 = vadd.f32 0.0, %v2210
      %v2212 = vpop.f32.mrf.mxu0
      %2213 = vdwg.mxu0
      %v2215 = vsel %vm756, %v2176, 0
      %v2218 = vsel %vm756, %v2181, 0
      %v2221 = vsel %vm756, %v2186, 0
      %v2224 = vsel %vm756, %v2191, 0
      %v2227 = vsel %vm756, %v2196, 0
      %v2230 = vsel %vm756, %v2201, 0
      %v2233 = vsel %vm756, %v2206, 0
      %v2236 = vsel %vm756, %v2211, 0
      %2238 = vmatprep.subr.mxu0 0.0
      %2239 = vmatpush1.msra.mxu0 0.0
      %2240 = vmatprep.subr.mxu0 0.0
      %2241 = vmatpush1.msra.mxu0 0.0
      %2242 = vmatprep.subr.mxu0 0.0
      %2243 = vmatpush1.msra.mxu0 0.0
      %2244 = vmatprep.subr.mxu0 0.0
      %2245 = vmatpush1.msra.mxu0 0.0
      %2246 = vmatprep.subr.mxu0 0.0
      %2247 = vmatpush1.msra.mxu0 0.0
      %2248 = vmatprep.subr.mxu0 0.0
      %2249 = vmatpush1.msra.mxu0 0.0
      %2250 = vmatprep.subr.mxu0 0.0
      %2251 = vmatpush1.msra.mxu0 0.0
      %2252 = vmatprep.subr.mxu0 0.0
      %2253 = vmatpush1.msra.mxu0 0.0
      %2254 = vmatprep.subr.mxu0 0.0
      %2255 = vmatpush1.msra.mxu0 0.0
      %2256 = vmatprep.subr.mxu0 0.0
      %2257 = vmatpush1.msra.mxu0 0.0
      %2258 = vmatprep.subr.mxu0 0.0
      %2259 = vmatpush1.msra.mxu0 0.0
      %2260 = vmatprep.subr.mxu0 0.0
      %2261 = vmatpush1.msra.mxu0 0.0
      %2262 = vmatprep.subr.mxu0 0.0
      %2263 = vmatpush1.msra.mxu0 %v751
      %2264 = vmatprep.subr.mxu0 0.0
      %2265 = vmatpush1.msra.mxu0 %v750
      %2266 = vmatprep.subr.mxu0 0.0
      %2267 = vmatpush1.msra.mxu0 %v749
      %2268 = vmatprep.subr.mxu0 0.0
      %2269 = vmatpush1.msra.mxu0 %v748
      %2270 = vmatprep.subr.mxu0 0.0
      %2271 = vmatpush2.msra.mxu0 0.0
      %2272 = vmatprep.subr.mxu0 0.0
      %2273 = vmatpush2.msra.mxu0 0.0
      %2274 = vmatprep.subr.mxu0 0.0
      %2275 = vmatpush2.msra.mxu0 0.0
      %2276 = vmatprep.subr.mxu0 0.0
      %2277 = vmatpush2.msra.mxu0 0.0
      %2278 = vmatprep.subr.mxu0 0.0
      %2279 = vmatpush2.msra.mxu0 0.0
      %2280 = vmatprep.subr.mxu0 0.0
      %2281 = vmatpush2.msra.mxu0 0.0
      %2282 = vmatprep.subr.mxu0 0.0
      %2283 = vmatpush2.msra.mxu0 0.0
      %2284 = vmatprep.subr.mxu0 0.0
      %2285 = vmatpush2.msra.mxu0 0.0
      %2286 = vmatprep.subr.mxu0 0.0
      %2287 = vmatpush2.msra.mxu0 0.0
      %2288 = vmatprep.subr.mxu0 0.0
      %2289 = vmatpush2.msra.mxu0 0.0
      %2290 = vmatprep.subr.mxu0 0.0
      %2291 = vmatpush2.msra.mxu0 0.0
      %2292 = vmatprep.subr.mxu0 0.0
      %2293 = vmatpush2.msra.mxu0 0.0
      %2294 = vmatprep.subr.mxu0 0.0
      %2295 = vmatpush2.msra.mxu0 0.0
      %2296 = vmatprep.subr.mxu0 0.0
      %2297 = vmatpush2.msra.mxu0 0.0
      %2298 = vmatprep.subr.mxu0 0.0
      %2299 = vmatpush2.msra.mxu0 0.0
      %2300 = vmatprep.subr.mxu0 0.0
      %2301 = vmatpush2.msra.mxu0 0.0
      %2302 = vmatprep.mubr.f32.mxu0 0.0
      %2303 = vmatmul.mubr.f32.gmra.mxu0 %v2215
      %v2304 = vpop.f32.mrf.mxu0
      %v2305 = vadd.f32 0.0, %v2304
      %v2306 = vpop.f32.mrf.mxu0
      %2307 = vmatprep.mubr.f32.mxu0 0.0
      %2308 = vmatmul.mubr.f32.gmra.mxu0 %v2218
      %v2309 = vpop.f32.mrf.mxu0
      %v2310 = vadd.f32 0.0, %v2309
      %v2311 = vpop.f32.mrf.mxu0
      %2312 = vmatprep.mubr.f32.mxu0 0.0
      %2313 = vmatmul.mubr.f32.gmra.mxu0 %v2221
      %v2314 = vpop.f32.mrf.mxu0
      %v2315 = vadd.f32 0.0, %v2314
      %v2316 = vpop.f32.mrf.mxu0
      %2317 = vmatprep.mubr.f32.mxu0 0.0
      %2318 = vmatmul.mubr.f32.gmra.mxu0 %v2224
      %v2319 = vpop.f32.mrf.mxu0
      %v2320 = vadd.f32 0.0, %v2319
      %v2321 = vpop.f32.mrf.mxu0
      %2322 = vmatprep.mubr.f32.mxu0 0.0
      %2323 = vmatmul.mubr.f32.gmra.mxu0 %v2227
      %v2324 = vpop.f32.mrf.mxu0
      %v2325 = vadd.f32 0.0, %v2324
      %v2326 = vpop.f32.mrf.mxu0
      %2327 = vmatprep.mubr.f32.mxu0 0.0
      %2328 = vmatmul.mubr.f32.gmra.mxu0 %v2230
      %v2329 = vpop.f32.mrf.mxu0
      %v2330 = vadd.f32 0.0, %v2329
      %v2331 = vpop.f32.mrf.mxu0
      %2332 = vmatprep.mubr.f32.mxu0 0.0
      %2333 = vmatmul.mubr.f32.gmra.mxu0 %v2233
      %v2334 = vpop.f32.mrf.mxu0
      %v2335 = vadd.f32 0.0, %v2334
      %v2336 = vpop.f32.mrf.mxu0
      %2337 = vmatprep.mubr.f32.mxu0 0.0
      %2338 = vmatmul.mubr.f32.gmra.mxu0 %v2236
      %v2339 = vpop.f32.mrf.mxu0
      %v2340 = vadd.f32 0.0, %v2339
      %v2341 = vpop.f32.mrf.mxu0
      %2342 = vdwg.mxu0
      %v2343 = vadd.f32 %v1766, %v2305
      %v2344 = vadd.f32 %v1771, %v2310
      %v2345 = vadd.f32 %v1776, %v2315
      %v2346 = vadd.f32 %v1781, %v2320
      %v2347 = vadd.f32 %v1786, %v2325
      %v2348 = vadd.f32 %v1791, %v2330
      %v2349 = vadd.f32 %v1796, %v2335
      %v2350 = vadd.f32 %v1801, %v2340
      %2351 = vrot.lane.b32.xlu0 %v732, 32
      %v2352 = vpop.permute.xlu0 %2351
      %2353 = vrot.lane.b32.xlu0 %v733, 32
      %v2354 = vpop.permute.xlu0 %2353
      %2355 = vrot.lane.b32.xlu0 %v734, 32
      %v2356 = vpop.permute.xlu0 %2355
      %2357 = vrot.lane.b32.xlu0 %v735, 32
      %v2358 = vpop.permute.xlu0 %2357
      %2359 = vrot.lane.b32.xlu0 %v736, 32
      %v2360 = vpop.permute.xlu0 %2359
      %2361 = vrot.lane.b32.xlu0 %v737, 32
      %v2362 = vpop.permute.xlu0 %2361
      %2363 = vrot.lane.b32.xlu0 %v738, 32
      %v2364 = vpop.permute.xlu0 %2363
      %2365 = vrot.lane.b32.xlu0 %v739, 32
      %v2366 = vpop.permute.xlu0 %2365
      %2367 = vrot.lane.b32.xlu0 %v583, 32
      %v2368 = vpop.permute.xlu0 %2367
      %2369 = vrot.lane.b32.xlu0 %v589, 32
      %v2370 = vpop.permute.xlu0 %2369
      %2371 = vrot.lane.b32.xlu0 %v595, 32
      %v2372 = vpop.permute.xlu0 %2371
      %2373 = vrot.lane.b32.xlu0 %v601, 32
      %v2374 = vpop.permute.xlu0 %2373
      %2375 = vrot.lane.b32.xlu0 %v607, 32
      %v2376 = vpop.permute.xlu0 %2375
      %2377 = vrot.lane.b32.xlu0 %v613, 32
      %v2378 = vpop.permute.xlu0 %2377
      %2379 = vrot.lane.b32.xlu0 %v619, 32
      %v2380 = vpop.permute.xlu0 %2379
      %2381 = vrot.lane.b32.xlu0 %v625, 32
      %v2382 = vpop.permute.xlu0 %2381
      %v2383 = vsel %vm756, %v2352, 0
      %v2385 = vsel %vm756, %v2354, 0
      %v2387 = vsel %vm756, %v2356, 0
      %v2389 = vsel %vm756, %v2358, 0
      %v2391 = vsel %vm756, %v2360, 0
      %v2393 = vsel %vm756, %v2362, 0
      %v2395 = vsel %vm756, %v2364, 0
      %v2397 = vsel %vm756, %v2366, 0
      %v2399 = vsel %vm756, %v2368, 0
      %v2401 = vsel %vm756, %v2370, 0
      %v2403 = vsel %vm756, %v2372, 0
      %v2405 = vsel %vm756, %v2374, 0
      %v2407 = vsel %vm756, %v2376, 0
      %v2409 = vsel %vm756, %v2378, 0
      %v2411 = vsel %vm756, %v2380, 0
      %v2413 = vsel %vm756, %v2382, 0
      %2415 = vmatprep.subr.mxu0 0.0
      %2416 = vmatpush1.xpose.msra.mxu0 0.0
      %2417 = vmatprep.subr.mxu0 0.0
      %2418 = vmatpush1.xpose.msra.mxu0 0.0
      %2419 = vmatprep.subr.mxu0 0.0
      %2420 = vmatpush1.xpose.msra.mxu0 0.0
      %2421 = vmatprep.subr.mxu0 0.0
      %2422 = vmatpush1.xpose.msra.mxu0 0.0
      %2423 = vmatprep.subr.mxu0 0.0
      %2424 = vmatpush1.xpose.msra.mxu0 0.0
      %2425 = vmatprep.subr.mxu0 0.0
      %2426 = vmatpush1.xpose.msra.mxu0 0.0
      %2427 = vmatprep.subr.mxu0 0.0
      %2428 = vmatpush1.xpose.msra.mxu0 0.0
      %2429 = vmatprep.subr.mxu0 0.0
      %2430 = vmatpush1.xpose.msra.mxu0 0.0
      %2431 = vmatprep.subr.mxu0 0.0
      %2432 = vmatpush1.xpose.msra.mxu0 %v2413
      %2433 = vmatprep.subr.mxu0 0.0
      %2434 = vmatpush1.xpose.msra.mxu0 %v2411
      %2435 = vmatprep.subr.mxu0 0.0
      %2436 = vmatpush1.xpose.msra.mxu0 %v2409
      %2437 = vmatprep.subr.mxu0 0.0
      %2438 = vmatpush1.xpose.msra.mxu0 %v2407
      %2439 = vmatprep.subr.mxu0 0.0
      %2440 = vmatpush1.xpose.msra.mxu0 %v2405
      %2441 = vmatprep.subr.mxu0 0.0
      %2442 = vmatpush1.xpose.msra.mxu0 %v2403
      %2443 = vmatprep.subr.mxu0 0.0
      %2444 = vmatpush1.xpose.msra.mxu0 %v2401
      %2445 = vmatprep.subr.mxu0 0.0
      %2446 = vmatpush1.xpose.msra.mxu0 %v2399
      %2447 = vmatprep.subr.mxu0 0.0
      %2448 = vmatpush2.xpose.msra.mxu0 0.0
      %2449 = vmatprep.subr.mxu0 0.0
      %2450 = vmatpush2.xpose.msra.mxu0 0.0
      %2451 = vmatprep.subr.mxu0 0.0
      %2452 = vmatpush2.xpose.msra.mxu0 0.0
      %2453 = vmatprep.subr.mxu0 0.0
      %2454 = vmatpush2.xpose.msra.mxu0 0.0
      %2455 = vmatprep.subr.mxu0 0.0
      %2456 = vmatpush2.xpose.msra.mxu0 0.0
      %2457 = vmatprep.subr.mxu0 0.0
      %2458 = vmatpush2.xpose.msra.mxu0 0.0
      %2459 = vmatprep.subr.mxu0 0.0
      %2460 = vmatpush2.xpose.msra.mxu0 0.0
      %2461 = vmatprep.subr.mxu0 0.0
      %2462 = vmatpush2.xpose.msra.mxu0 0.0
      %2463 = vmatprep.subr.mxu0 0.0
      %2464 = vmatpush2.xpose.msra.mxu0 0.0
      %2465 = vmatprep.subr.mxu0 0.0
      %2466 = vmatpush2.xpose.msra.mxu0 0.0
      %2467 = vmatprep.subr.mxu0 0.0
      %2468 = vmatpush2.xpose.msra.mxu0 0.0
      %2469 = vmatprep.subr.mxu0 0.0
      %2470 = vmatpush2.xpose.msra.mxu0 0.0
      %2471 = vmatprep.subr.mxu0 0.0
      %2472 = vmatpush2.xpose.msra.mxu0 0.0
      %2473 = vmatprep.subr.mxu0 0.0
      %2474 = vmatpush2.xpose.msra.mxu0 0.0
      %2475 = vmatprep.subr.mxu0 0.0
      %2476 = vmatpush2.xpose.msra.mxu0 0.0
      %2477 = vmatprep.subr.mxu0 0.0
      %2478 = vmatpush2.xpose.msra.mxu0 0.0
      %2479 = vmatprep.mubr.f32.mxu0 0.0
      %2480 = vmatmul.mubr.f32.gmra.mxu0 %v2383
      %v2481 = vpop.f32.mrf.mxu0
      %v2482 = vadd.f32 0.0, %v2481
      %v2483 = vpop.f32.mrf.mxu0
      %2484 = vmatprep.mubr.f32.mxu0 0.0
      %2485 = vmatmul.mubr.f32.gmra.mxu0 %v2385
      %v2486 = vpop.f32.mrf.mxu0
      %v2487 = vadd.f32 0.0, %v2486
      %v2488 = vpop.f32.mrf.mxu0
      %2489 = vmatprep.mubr.f32.mxu0 0.0
      %2490 = vmatmul.mubr.f32.gmra.mxu0 %v2387
      %v2491 = vpop.f32.mrf.mxu0
      %v2492 = vadd.f32 0.0, %v2491
      %v2493 = vpop.f32.mrf.mxu0
      %2494 = vmatprep.mubr.f32.mxu0 0.0
      %2495 = vmatmul.mubr.f32.gmra.mxu0 %v2389
      %v2496 = vpop.f32.mrf.mxu0
      %v2497 = vadd.f32 0.0, %v2496
      %v2498 = vpop.f32.mrf.mxu0
      %2499 = vmatprep.mubr.f32.mxu0 0.0
      %2500 = vmatmul.mubr.f32.gmra.mxu0 %v2391
      %v2501 = vpop.f32.mrf.mxu0
      %v2502 = vadd.f32 0.0, %v2501
      %v2503 = vpop.f32.mrf.mxu0
      %2504 = vmatprep.mubr.f32.mxu0 0.0
      %2505 = vmatmul.mubr.f32.gmra.mxu0 %v2393
      %v2506 = vpop.f32.mrf.mxu0
      %v2507 = vadd.f32 0.0, %v2506
      %v2508 = vpop.f32.mrf.mxu0
      %2509 = vmatprep.mubr.f32.mxu0 0.0
      %2510 = vmatmul.mubr.f32.gmra.mxu0 %v2395
      %v2511 = vpop.f32.mrf.mxu0
      %v2512 = vadd.f32 0.0, %v2511
      %v2513 = vpop.f32.mrf.mxu0
      %2514 = vmatprep.mubr.f32.mxu0 0.0
      %2515 = vmatmul.mubr.f32.gmra.mxu0 %v2397
      %v2516 = vpop.f32.mrf.mxu0
      %v2517 = vadd.f32 0.0, %v2516
      %v2518 = vpop.f32.mrf.mxu0
      %2519 = vdwg.mxu0
      %v2520 = vsel %vm910, %v2482, -inf
      %2521 = vmax.xlane.f32.xlu0 %v2520
      %v2522 = vpop.xlane.xlu0 %2521
      %v2523 = vsel %vm910, %v2487, -inf
      %2524 = vmax.xlane.f32.xlu0 %v2523
      %v2525 = vpop.xlane.xlu0 %2524
      %v2526 = vsel %vm910, %v2492, -inf
      %2527 = vmax.xlane.f32.xlu0 %v2526
      %v2528 = vpop.xlane.xlu0 %2527
      %v2529 = vsel %vm910, %v2497, -inf
      %2530 = vmax.xlane.f32.xlu0 %v2529
      %v2531 = vpop.xlane.xlu0 %2530
      %v2532 = vsel %vm910, %v2502, -inf
      %2533 = vmax.xlane.f32.xlu0 %v2532
      %v2534 = vpop.xlane.xlu0 %2533
      %v2535 = vsel %vm910, %v2507, -inf
      %2536 = vmax.xlane.f32.xlu0 %v2535
      %v2537 = vpop.xlane.xlu0 %2536
      %v2538 = vsel %vm910, %v2512, -inf
      %2539 = vmax.xlane.f32.xlu0 %v2538
      %v2540 = vpop.xlane.xlu0 %2539
      %v2541 = vsel %vm910, %v2517, -inf
      %2542 = vmax.xlane.f32.xlu0 %v2541
      %v2543 = vpop.xlane.xlu0 %2542
      %v2544 = vsub.f32 %v2482, %v2522
      %v2545 = vsub.f32 %v2487, %v2525
      %v2546 = vsub.f32 %v2492, %v2528
      %v2547 = vsub.f32 %v2497, %v2531
      %v2548 = vsub.f32 %v2502, %v2534
      %v2549 = vsub.f32 %v2507, %v2537
      %v2550 = vsub.f32 %v2512, %v2540
      %v2551 = vsub.f32 %v2517, %v2543
      %v2552 = vmul.f32 %v2544, 1.442695
      %v2553 = vpow.pop %v2552
      %v2554 = vmul.f32 %v2545, 1.442695
      %v2555 = vpow.pop %v2554
      %v2556 = vmul.f32 %v2546, 1.442695
      %v2557 = vpow.pop %v2556
      %v2558 = vmul.f32 %v2547, 1.442695
      %v2559 = vpow.pop %v2558
      %v2560 = vmul.f32 %v2548, 1.442695
      %v2561 = vpow.pop %v2560
      %v2562 = vmul.f32 %v2549, 1.442695
      %v2563 = vpow.pop %v2562
      %v2564 = vmul.f32 %v2550, 1.442695
      %v2565 = vpow.pop %v2564
      %v2566 = vmul.f32 %v2551, 1.442695
      %v2567 = vpow.pop %v2566
      %v2568 = vsel %vm910, %v2553, 0.0
      %2569 = vadd.xlane.f32.xlu0 %v2568
      %v2570 = vpop.xlane.xlu0 %2569
      %v2571 = vsel %vm910, %v2555, 0.0
      %2572 = vadd.xlane.f32.xlu0 %v2571
      %v2573 = vpop.xlane.xlu0 %2572
      %v2574 = vsel %vm910, %v2557, 0.0
      %2575 = vadd.xlane.f32.xlu0 %v2574
      %v2576 = vpop.xlane.xlu0 %2575
      %v2577 = vsel %vm910, %v2559, 0.0
      %2578 = vadd.xlane.f32.xlu0 %v2577
      %v2579 = vpop.xlane.xlu0 %2578
      %v2580 = vsel %vm910, %v2561, 0.0
      %2581 = vadd.xlane.f32.xlu0 %v2580
      %v2582 = vpop.xlane.xlu0 %2581
      %v2583 = vsel %vm910, %v2563, 0.0
      %2584 = vadd.xlane.f32.xlu0 %v2583
      %v2585 = vpop.xlane.xlu0 %2584
      %v2586 = vsel %vm910, %v2565, 0.0
      %2587 = vadd.xlane.f32.xlu0 %v2586
      %v2588 = vpop.xlane.xlu0 %2587
      %v2589 = vsel %vm910, %v2567, 0.0
      %2590 = vadd.xlane.f32.xlu0 %v2589
      %v2591 = vpop.xlane.xlu0 %2590
      %v2592 = vrcp.pop %v2570
      %v2593 = vmul.f32 %v2553, %v2592
      %v2594 = vrcp.pop %v2573
      %v2595 = vmul.f32 %v2555, %v2594
      %v2596 = vrcp.pop %v2576
      %v2597 = vmul.f32 %v2557, %v2596
      %v2598 = vrcp.pop %v2579
      %v2599 = vmul.f32 %v2559, %v2598
      %v2600 = vrcp.pop %v2582
      %v2601 = vmul.f32 %v2561, %v2600
      %v2602 = vrcp.pop %v2585
      %v2603 = vmul.f32 %v2563, %v2602
      %v2604 = vrcp.pop %v2588
      %v2605 = vmul.f32 %v2565, %v2604
      %v2606 = vrcp.pop %v2591
      %v2607 = vmul.f32 %v2567, %v2606
      %2608 = vrot.lane.b32.xlu0 %v694, 32
      %v2609 = vpop.permute.xlu0 %2608
      %2610 = vrot.lane.b32.xlu0 %v699, 32
      %v2611 = vpop.permute.xlu0 %2610
      %2612 = vrot.lane.b32.xlu0 %v704, 32
      %v2613 = vpop.permute.xlu0 %2612
      %2614 = vrot.lane.b32.xlu0 %v709, 32
      %v2615 = vpop.permute.xlu0 %2614
      %2616 = vrot.lane.b32.xlu0 %v714, 32
      %v2617 = vpop.permute.xlu0 %2616
      %2618 = vrot.lane.b32.xlu0 %v719, 32
      %v2619 = vpop.permute.xlu0 %2618
      %2620 = vrot.lane.b32.xlu0 %v724, 32
      %v2621 = vpop.permute.xlu0 %2620
      %2622 = vrot.lane.b32.xlu0 %v729, 32
      %v2623 = vpop.permute.xlu0 %2622
      %v2633 = vsel %vm910, %v2593, 0
      %v2636 = vsel %vm910, %v2595, 0
      %v2639 = vsel %vm910, %v2597, 0
      %v2642 = vsel %vm910, %v2599, 0
      %v2645 = vsel %vm910, %v2601, 0
      %v2648 = vsel %vm910, %v2603, 0
      %v2651 = vsel %vm910, %v2605, 0
      %v2654 = vsel %vm910, %v2607, 0
      %2656 = vmatprep.subr.mxu0 0.0
      %2657 = vmatpush1.msra.mxu0 0.0
      %2658 = vmatprep.subr.mxu0 0.0
      %2659 = vmatpush1.msra.mxu0 0.0
      %2660 = vmatprep.subr.mxu0 0.0
      %2661 = vmatpush1.msra.mxu0 0.0
      %2662 = vmatprep.subr.mxu0 0.0
      %2663 = vmatpush1.msra.mxu0 0.0
      %2664 = vmatprep.subr.mxu0 0.0
      %2665 = vmatpush1.msra.mxu0 0.0
      %2666 = vmatprep.subr.mxu0 0.0
      %2667 = vmatpush1.msra.mxu0 0.0
      %2668 = vmatprep.subr.mxu0 0.0
      %2669 = vmatpush1.msra.mxu0 0.0
      %2670 = vmatprep.subr.mxu0 0.0
      %2671 = vmatpush1.msra.mxu0 0.0
      %2672 = vmatprep.subr.mxu0 0.0
      %2673 = vmatpush1.msra.mxu0 %v2623
      %2674 = vmatprep.subr.mxu0 0.0
      %2675 = vmatpush1.msra.mxu0 %v2621
      %2676 = vmatprep.subr.mxu0 0.0
      %2677 = vmatpush1.msra.mxu0 %v2619
      %2678 = vmatprep.subr.mxu0 0.0
      %2679 = vmatpush1.msra.mxu0 %v2617
      %2680 = vmatprep.subr.mxu0 0.0
      %2681 = vmatpush1.msra.mxu0 %v2615
      %2682 = vmatprep.subr.mxu0 0.0
      %2683 = vmatpush1.msra.mxu0 %v2613
      %2684 = vmatprep.subr.mxu0 0.0
      %2685 = vmatpush1.msra.mxu0 %v2611
      %2686 = vmatprep.subr.mxu0 0.0
      %2687 = vmatpush1.msra.mxu0 %v2609
      %2688 = vmatprep.subr.mxu0 0.0
      %2689 = vmatpush2.msra.mxu0 0.0
      %2690 = vmatprep.subr.mxu0 0.0
      %2691 = vmatpush2.msra.mxu0 0.0
      %2692 = vmatprep.subr.mxu0 0.0
      %2693 = vmatpush2.msra.mxu0 0.0
      %2694 = vmatprep.subr.mxu0 0.0
      %2695 = vmatpush2.msra.mxu0 0.0
      %2696 = vmatprep.subr.mxu0 0.0
      %2697 = vmatpush2.msra.mxu0 0.0
      %2698 = vmatprep.subr.mxu0 0.0
      %2699 = vmatpush2.msra.mxu0 0.0
      %2700 = vmatprep.subr.mxu0 0.0
      %2701 = vmatpush2.msra.mxu0 0.0
      %2702 = vmatprep.subr.mxu0 0.0
      %2703 = vmatpush2.msra.mxu0 0.0
      %2704 = vmatprep.subr.mxu0 0.0
      %2705 = vmatpush2.msra.mxu0 0.0
      %2706 = vmatprep.subr.mxu0 0.0
      %2707 = vmatpush2.msra.mxu0 0.0
      %2708 = vmatprep.subr.mxu0 0.0
      %2709 = vmatpush2.msra.mxu0 0.0
      %2710 = vmatprep.subr.mxu0 0.0
      %2711 = vmatpush2.msra.mxu0 0.0
      %2712 = vmatprep.subr.mxu0 0.0
      %2713 = vmatpush2.msra.mxu0 0.0
      %2714 = vmatprep.subr.mxu0 0.0
      %2715 = vmatpush2.msra.mxu0 0.0
      %2716 = vmatprep.subr.mxu0 0.0
      %2717 = vmatpush2.msra.mxu0 0.0
      %2718 = vmatprep.subr.mxu0 0.0
      %2719 = vmatpush2.msra.mxu0 0.0
      %2720 = vmatprep.mubr.f32.mxu0 0.0
      %2721 = vmatmul.mubr.f32.gmra.mxu0 %v2633
      %v2722 = vpop.f32.mrf.mxu0
      %v2723 = vadd.f32 0.0, %v2722
      %v2724 = vpop.f32.mrf.mxu0
      %2725 = vmatprep.mubr.f32.mxu0 0.0
      %2726 = vmatmul.mubr.f32.gmra.mxu0 %v2636
      %v2727 = vpop.f32.mrf.mxu0
      %v2728 = vadd.f32 0.0, %v2727
      %v2729 = vpop.f32.mrf.mxu0
      %2730 = vmatprep.mubr.f32.mxu0 0.0
      %2731 = vmatmul.mubr.f32.gmra.mxu0 %v2639
      %v2732 = vpop.f32.mrf.mxu0
      %v2733 = vadd.f32 0.0, %v2732
      %v2734 = vpop.f32.mrf.mxu0
      %2735 = vmatprep.mubr.f32.mxu0 0.0
      %2736 = vmatmul.mubr.f32.gmra.mxu0 %v2642
      %v2737 = vpop.f32.mrf.mxu0
      %v2738 = vadd.f32 0.0, %v2737
      %v2739 = vpop.f32.mrf.mxu0
      %2740 = vmatprep.mubr.f32.mxu0 0.0
      %2741 = vmatmul.mubr.f32.gmra.mxu0 %v2645
      %v2742 = vpop.f32.mrf.mxu0
      %v2743 = vadd.f32 0.0, %v2742
      %v2744 = vpop.f32.mrf.mxu0
      %2745 = vmatprep.mubr.f32.mxu0 0.0
      %2746 = vmatmul.mubr.f32.gmra.mxu0 %v2648
      %v2747 = vpop.f32.mrf.mxu0
      %v2748 = vadd.f32 0.0, %v2747
      %v2749 = vpop.f32.mrf.mxu0
      %2750 = vmatprep.mubr.f32.mxu0 0.0
      %2751 = vmatmul.mubr.f32.gmra.mxu0 %v2651
      %v2752 = vpop.f32.mrf.mxu0
      %v2753 = vadd.f32 0.0, %v2752
      %v2754 = vpop.f32.mrf.mxu0
      %2755 = vmatprep.mubr.f32.mxu0 0.0
      %2756 = vmatmul.mubr.f32.gmra.mxu0 %v2654
      %v2757 = vpop.f32.mrf.mxu0
      %v2758 = vadd.f32 0.0, %v2757
      %v2759 = vpop.f32.mrf.mxu0
      %2760 = vdwg.mxu0
      %v2762 = vsel %vm756, %v2723, 0
      %v2765 = vsel %vm756, %v2728, 0
      %v2768 = vsel %vm756, %v2733, 0
      %v2771 = vsel %vm756, %v2738, 0
      %v2774 = vsel %vm756, %v2743, 0
      %v2777 = vsel %vm756, %v2748, 0
      %v2780 = vsel %vm756, %v2753, 0
      %v2783 = vsel %vm756, %v2758, 0
      %2785 = vmatprep.subr.mxu0 0.0
      %2786 = vmatpush1.msra.mxu0 0.0
      %2787 = vmatprep.subr.mxu0 0.0
      %2788 = vmatpush1.msra.mxu0 0.0
      %2789 = vmatprep.subr.mxu0 0.0
      %2790 = vmatpush1.msra.mxu0 0.0
      %2791 = vmatprep.subr.mxu0 0.0
      %2792 = vmatpush1.msra.mxu0 0.0
      %2793 = vmatprep.subr.mxu0 0.0
      %2794 = vmatpush1.msra.mxu0 0.0
      %2795 = vmatprep.subr.mxu0 0.0
      %2796 = vmatpush1.msra.mxu0 0.0
      %2797 = vmatprep.subr.mxu0 0.0
      %2798 = vmatpush1.msra.mxu0 0.0
      %2799 = vmatprep.subr.mxu0 0.0
      %2800 = vmatpush1.msra.mxu0 0.0
      %2801 = vmatprep.subr.mxu0 0.0
      %2802 = vmatpush1.msra.mxu0 0.0
      %2803 = vmatprep.subr.mxu0 0.0
      %2804 = vmatpush1.msra.mxu0 0.0
      %2805 = vmatprep.subr.mxu0 0.0
      %2806 = vmatpush1.msra.mxu0 0.0
      %2807 = vmatprep.subr.mxu0 0.0
      %2808 = vmatpush1.msra.mxu0 0.0
      %2809 = vmatprep.subr.mxu0 0.0
      %2810 = vmatpush1.msra.mxu0 %v755
      %2811 = vmatprep.subr.mxu0 0.0
      %2812 = vmatpush1.msra.mxu0 %v754
      %2813 = vmatprep.subr.mxu0 0.0
      %2814 = vmatpush1.msra.mxu0 %v753
      %2815 = vmatprep.subr.mxu0 0.0
      %2816 = vmatpush1.msra.mxu0 %v752
      %2817 = vmatprep.subr.mxu0 0.0
      %2818 = vmatpush2.msra.mxu0 0.0
      %2819 = vmatprep.subr.mxu0 0.0
      %2820 = vmatpush2.msra.mxu0 0.0
      %2821 = vmatprep.subr.mxu0 0.0
      %2822 = vmatpush2.msra.mxu0 0.0
      %2823 = vmatprep.subr.mxu0 0.0
      %2824 = vmatpush2.msra.mxu0 0.0
      %2825 = vmatprep.subr.mxu0 0.0
      %2826 = vmatpush2.msra.mxu0 0.0
      %2827 = vmatprep.subr.mxu0 0.0
      %2828 = vmatpush2.msra.mxu0 0.0
      %2829 = vmatprep.subr.mxu0 0.0
      %2830 = vmatpush2.msra.mxu0 0.0
      %2831 = vmatprep.subr.mxu0 0.0
      %2832 = vmatpush2.msra.mxu0 0.0
      %2833 = vmatprep.subr.mxu0 0.0
      %2834 = vmatpush2.msra.mxu0 0.0
      %2835 = vmatprep.subr.mxu0 0.0
      %2836 = vmatpush2.msra.mxu0 0.0
      %2837 = vmatprep.subr.mxu0 0.0
      %2838 = vmatpush2.msra.mxu0 0.0
      %2839 = vmatprep.subr.mxu0 0.0
      %2840 = vmatpush2.msra.mxu0 0.0
      %2841 = vmatprep.subr.mxu0 0.0
      %2842 = vmatpush2.msra.mxu0 0.0
      %2843 = vmatprep.subr.mxu0 0.0
      %2844 = vmatpush2.msra.mxu0 0.0
      %2845 = vmatprep.subr.mxu0 0.0
      %2846 = vmatpush2.msra.mxu0 0.0
      %2847 = vmatprep.subr.mxu0 0.0
      %2848 = vmatpush2.msra.mxu0 0.0
      %2849 = vmatprep.mubr.f32.mxu0 0.0
      %2850 = vmatmul.mubr.f32.gmra.mxu0 %v2762
      %v2851 = vpop.f32.mrf.mxu0
      %v2852 = vadd.f32 0.0, %v2851
      %v2853 = vpop.f32.mrf.mxu0
      %2854 = vmatprep.mubr.f32.mxu0 0.0
      %2855 = vmatmul.mubr.f32.gmra.mxu0 %v2765
      %v2856 = vpop.f32.mrf.mxu0
      %v2857 = vadd.f32 0.0, %v2856
      %v2858 = vpop.f32.mrf.mxu0
      %2859 = vmatprep.mubr.f32.mxu0 0.0
      %2860 = vmatmul.mubr.f32.gmra.mxu0 %v2768
      %v2861 = vpop.f32.mrf.mxu0
      %v2862 = vadd.f32 0.0, %v2861
      %v2863 = vpop.f32.mrf.mxu0
      %2864 = vmatprep.mubr.f32.mxu0 0.0
      %2865 = vmatmul.mubr.f32.gmra.mxu0 %v2771
      %v2866 = vpop.f32.mrf.mxu0
      %v2867 = vadd.f32 0.0, %v2866
      %v2868 = vpop.f32.mrf.mxu0
      %2869 = vmatprep.mubr.f32.mxu0 0.0
      %2870 = vmatmul.mubr.f32.gmra.mxu0 %v2774
      %v2871 = vpop.f32.mrf.mxu0
      %v2872 = vadd.f32 0.0, %v2871
      %v2873 = vpop.f32.mrf.mxu0
      %2874 = vmatprep.mubr.f32.mxu0 0.0
      %2875 = vmatmul.mubr.f32.gmra.mxu0 %v2777
      %v2876 = vpop.f32.mrf.mxu0
      %v2877 = vadd.f32 0.0, %v2876
      %v2878 = vpop.f32.mrf.mxu0
      %2879 = vmatprep.mubr.f32.mxu0 0.0
      %2880 = vmatmul.mubr.f32.gmra.mxu0 %v2780
      %v2881 = vpop.f32.mrf.mxu0
      %v2882 = vadd.f32 0.0, %v2881
      %v2883 = vpop.f32.mrf.mxu0
      %2884 = vmatprep.mubr.f32.mxu0 0.0
      %2885 = vmatmul.mubr.f32.gmra.mxu0 %v2783
      %v2886 = vpop.f32.mrf.mxu0
      %v2887 = vadd.f32 0.0, %v2886
      %v2888 = vpop.f32.mrf.mxu0
      %2889 = vdwg.mxu0
      %v2890 = vadd.f32 %v2343, %v2852
      %v2891 = vadd.f32 %v2344, %v2857
      %v2892 = vadd.f32 %v2345, %v2862
      %v2893 = vadd.f32 %v2346, %v2867
      %v2894 = vadd.f32 %v2347, %v2872
      %v2895 = vadd.f32 %v2348, %v2877
      %v2896 = vadd.f32 %v2349, %v2882
      %v2897 = vadd.f32 %v2350, %v2887
      %v2898 = vld [vmem:[%s4] sm:$0x1]
      %v2900 = vlaneseq
      %v2901 = vshrl.u32 %v2900, 7
      %v2902 = vsub.s32 0, %v2901
      %v2903 = vrot.slane %v2898, %v2902
      %v2905 = vadd.f32 %v2890, %v2903
      %v2906 = vadd.f32 %v2891, %v2903
      %v2907 = vadd.f32 %v2892, %v2903
      %v2908 = vadd.f32 %v2893, %v2903
      %v2909 = vadd.f32 %v2894, %v2903
      %v2910 = vadd.f32 %v2895, %v2903
      %v2911 = vadd.f32 %v2896, %v2903
      %v2912 = vadd.f32 %v2897, %v2903
      %v2913 = vadd.f32 %v441, %v2905
      %v2914 = vadd.f32 %v442, %v2906
      %v2915 = vadd.f32 %v443, %v2907
      %v2916 = vadd.f32 %v444, %v2908
      %v2917 = vadd.f32 %v445, %v2909
      %v2918 = vadd.f32 %v446, %v2910
      %v2919 = vadd.f32 %v447, %v2911
      %v2920 = vadd.f32 %v448, %v2912
      %v2921 = vld [vmem:[%s5] sm:$0x1]
      %v2922 = vld [vmem:[%s6] sm:$0x1]
      %2923 = vadd.xlane.f32.xlu0 %v2913
      %v2924 = vpop.xlane.xlu0 %2923
      %2925 = vadd.xlane.f32.xlu0 %v2914
      %v2926 = vpop.xlane.xlu0 %2925
      %2927 = vadd.xlane.f32.xlu0 %v2915
      %v2928 = vpop.xlane.xlu0 %2927
      %2929 = vadd.xlane.f32.xlu0 %v2916
      %v2930 = vpop.xlane.xlu0 %2929
      %2931 = vadd.xlane.f32.xlu0 %v2917
      %v2932 = vpop.xlane.xlu0 %2931
      %2933 = vadd.xlane.f32.xlu0 %v2918
      %v2934 = vpop.xlane.xlu0 %2933
      %2935 = vadd.xlane.f32.xlu0 %v2919
      %v2936 = vpop.xlane.xlu0 %2935
      %2937 = vadd.xlane.f32.xlu0 %v2920
      %v2938 = vpop.xlane.xlu0 %2937
      %v2939 = vrcp.pop 128.0
      %v2940 = vmul.f32 %v2924, %v2939
      %v2941 = vmul.f32 %v2926, %v2939
      %v2942 = vmul.f32 %v2928, %v2939
      %v2943 = vmul.f32 %v2930, %v2939
      %v2944 = vmul.f32 %v2932, %v2939
      %v2945 = vmul.f32 %v2934, %v2939
      %v2946 = vmul.f32 %v2936, %v2939
      %v2947 = vmul.f32 %v2938, %v2939
      %v2948 = vsub.f32 %v2913, %v2940
      %v2949 = vsub.f32 %v2914, %v2941
      %v2950 = vsub.f32 %v2915, %v2942
      %v2951 = vsub.f32 %v2916, %v2943
      %v2952 = vsub.f32 %v2917, %v2944
      %v2953 = vsub.f32 %v2918, %v2945
      %v2954 = vsub.f32 %v2919, %v2946
      %v2955 = vsub.f32 %v2920, %v2947
      %v2956 = vmul.f32 %v2948, %v2948
      %v2957 = vmul.f32 %v2949, %v2949
      %v2958 = vmul.f32 %v2950, %v2950
      %v2959 = vmul.f32 %v2951, %v2951
      %v2960 = vmul.f32 %v2952, %v2952
      %v2961 = vmul.f32 %v2953, %v2953
      %v2962 = vmul.f32 %v2954, %v2954
      %v2963 = vmul.f32 %v2955, %v2955
      %2964 = vadd.xlane.f32.xlu0 %v2956
      %v2965 = vpop.xlane.xlu0 %2964
      %2966 = vadd.xlane.f32.xlu0 %v2957
      %v2967 = vpop.xlane.xlu0 %2966
      %2968 = vadd.xlane.f32.xlu0 %v2958
      %v2969 = vpop.xlane.xlu0 %2968
      %2970 = vadd.xlane.f32.xlu0 %v2959
      %v2971 = vpop.xlane.xlu0 %2970
      %2972 = vadd.xlane.f32.xlu0 %v2960
      %v2973 = vpop.xlane.xlu0 %2972
      %2974 = vadd.xlane.f32.xlu0 %v2961
      %v2975 = vpop.xlane.xlu0 %2974
      %2976 = vadd.xlane.f32.xlu0 %v2962
      %v2977 = vpop.xlane.xlu0 %2976
      %2978 = vadd.xlane.f32.xlu0 %v2963
      %v2979 = vpop.xlane.xlu0 %2978
      %v2980 = vmul.f32 %v2965, %v2939
      %v2981 = vmul.f32 %v2967, %v2939
      %v2982 = vmul.f32 %v2969, %v2939
      %v2983 = vmul.f32 %v2971, %v2939
      %v2984 = vmul.f32 %v2973, %v2939
      %v2985 = vmul.f32 %v2975, %v2939
      %v2986 = vmul.f32 %v2977, %v2939
      %v2987 = vmul.f32 %v2979, %v2939
      %v2988 = vadd.f32 %v2980, 1e-05
      %v2989 = vadd.f32 %v2981, 1e-05
      %v2990 = vadd.f32 %v2982, 1e-05
      %v2991 = vadd.f32 %v2983, 1e-05
      %v2992 = vadd.f32 %v2984, 1e-05
      %v2993 = vadd.f32 %v2985, 1e-05
      %v2994 = vadd.f32 %v2986, 1e-05
      %v2995 = vadd.f32 %v2987, 1e-05
      %v2996 = vrsqrt.pop %v2988
      %v2997 = vrsqrt.pop %v2989
      %v2998 = vrsqrt.pop %v2990
      %v2999 = vrsqrt.pop %v2991
      %v3000 = vrsqrt.pop %v2992
      %v3001 = vrsqrt.pop %v2993
      %v3002 = vrsqrt.pop %v2994
      %v3003 = vrsqrt.pop %v2995
      %v3004 = vmul.f32 %v2948, %v2996
      %v3005 = vmul.f32 %v2949, %v2997
      %v3006 = vmul.f32 %v2950, %v2998
      %v3007 = vmul.f32 %v2951, %v2999
      %v3008 = vmul.f32 %v2952, %v3000
      %v3009 = vmul.f32 %v2953, %v3001
      %v3010 = vmul.f32 %v2954, %v3002
      %v3011 = vmul.f32 %v2955, %v3003
      %v3013 = vlaneseq
      %v3014 = vshrl.u32 %v3013, 7
      %v3015 = vsub.s32 0, %v3014
      %v3016 = vrot.slane %v2921, %v3015
      %v3018 = vmul.f32 %v3004, %v3016
      %v3019 = vmul.f32 %v3005, %v3016
      %v3020 = vmul.f32 %v3006, %v3016
      %v3021 = vmul.f32 %v3007, %v3016
      %v3022 = vmul.f32 %v3008, %v3016
      %v3023 = vmul.f32 %v3009, %v3016
      %v3024 = vmul.f32 %v3010, %v3016
      %v3025 = vmul.f32 %v3011, %v3016
      %v3027 = vlaneseq
      %v3028 = vshrl.u32 %v3027, 7
      %v3029 = vsub.s32 0, %v3028
      %v3030 = vrot.slane %v2922, %v3029
      %v3032 = vadd.f32 %v3018, %v3030
      %v3033 = vadd.f32 %v3019, %v3030
      %v3034 = vadd.f32 %v3020, %v3030
      %v3035 = vadd.f32 %v3021, %v3030
      %v3036 = vadd.f32 %v3022, %v3030
      %v3037 = vadd.f32 %v3023, %v3030
      %v3038 = vadd.f32 %v3024, %v3030
      %v3039 = vadd.f32 %v3025, %v3030
      %v3040 = vld [vmem:[%s7] sm:$0xff]
      %v3041 = vld [vmem:[%s7 + $0x8] sm:$0xff]
      %v3042 = vld [vmem:[%s7 + $0x10] sm:$0xff]
      %v3043 = vld [vmem:[%s7 + $0x18] sm:$0xff]
      %v3044 = vld [vmem:[%s7 + $0x20] sm:$0xff]
      %v3045 = vld [vmem:[%s7 + $0x28] sm:$0xff]
      %v3046 = vld [vmem:[%s7 + $0x30] sm:$0xff]
      %v3047 = vld [vmem:[%s7 + $0x38] sm:$0xff]
      %v3048 = vld [vmem:[%s7 + $0x40] sm:$0xff]
      %v3049 = vld [vmem:[%s7 + $0x48] sm:$0xff]
      %v3050 = vld [vmem:[%s7 + $0x50] sm:$0xff]
      %v3051 = vld [vmem:[%s7 + $0x58] sm:$0xff]
      %v3052 = vld [vmem:[%s7 + $0x60] sm:$0xff]
      %v3053 = vld [vmem:[%s7 + $0x68] sm:$0xff]
      %v3054 = vld [vmem:[%s7 + $0x70] sm:$0xff]
      %v3055 = vld [vmem:[%s7 + $0x78] sm:$0xff]
      %v3056 = vld [vmem:[%s7 + $0x80] sm:$0xff]
      %v3057 = vld [vmem:[%s7 + $0x88] sm:$0xff]
      %v3058 = vld [vmem:[%s7 + $0x90] sm:$0xff]
      %v3059 = vld [vmem:[%s7 + $0x98] sm:$0xff]
      %v3060 = vld [vmem:[%s7 + $0xa0] sm:$0xff]
      %v3061 = vld [vmem:[%s7 + $0xa8] sm:$0xff]
      %v3062 = vld [vmem:[%s7 + $0xb0] sm:$0xff]
      %v3063 = vld [vmem:[%s7 + $0xb8] sm:$0xff]
      %v3064 = vld [vmem:[%s7 + $0xc0] sm:$0xff]
      %v3065 = vld [vmem:[%s7 + $0xc8] sm:$0xff]
      %v3066 = vld [vmem:[%s7 + $0xd0] sm:$0xff]
      %v3067 = vld [vmem:[%s7 + $0xd8] sm:$0xff]
      %v3068 = vld [vmem:[%s7 + $0xe0] sm:$0xff]
      %v3069 = vld [vmem:[%s7 + $0xe8] sm:$0xff]
      %v3070 = vld [vmem:[%s7 + $0xf0] sm:$0xff]
      %v3071 = vld [vmem:[%s7 + $0xf8] sm:$0xff]
      %v3072 = vld [vmem:[%s7 + $0x100] sm:$0xff]
      %v3073 = vld [vmem:[%s7 + $0x108] sm:$0xff]
      %v3074 = vld [vmem:[%s7 + $0x110] sm:$0xff]
      %v3075 = vld [vmem:[%s7 + $0x118] sm:$0xff]
      %v3076 = vld [vmem:[%s7 + $0x120] sm:$0xff]
      %v3077 = vld [vmem:[%s7 + $0x128] sm:$0xff]
      %v3078 = vld [vmem:[%s7 + $0x130] sm:$0xff]
      %v3079 = vld [vmem:[%s7 + $0x138] sm:$0xff]
      %v3080 = vld [vmem:[%s7 + $0x140] sm:$0xff]
      %v3081 = vld [vmem:[%s7 + $0x148] sm:$0xff]
      %v3082 = vld [vmem:[%s7 + $0x150] sm:$0xff]
      %v3083 = vld [vmem:[%s7 + $0x158] sm:$0xff]
      %v3084 = vld [vmem:[%s7 + $0x160] sm:$0xff]
      %v3085 = vld [vmem:[%s7 + $0x168] sm:$0xff]
      %v3086 = vld [vmem:[%s7 + $0x170] sm:$0xff]
      %v3087 = vld [vmem:[%s7 + $0x178] sm:$0xff]
      %v3088 = vld [vmem:[%s7 + $0x180] sm:$0xff]
      %v3089 = vld [vmem:[%s7 + $0x188] sm:$0xff]
      %v3090 = vld [vmem:[%s7 + $0x190] sm:$0xff]
      %v3091 = vld [vmem:[%s7 + $0x198] sm:$0xff]
      %v3092 = vld [vmem:[%s7 + $0x1a0] sm:$0xff]
      %v3093 = vld [vmem:[%s7 + $0x1a8] sm:$0xff]
      %v3094 = vld [vmem:[%s7 + $0x1b0] sm:$0xff]
      %v3095 = vld [vmem:[%s7 + $0x1b8] sm:$0xff]
      %v3096 = vld [vmem:[%s7 + $0x1c0] sm:$0xff]
      %v3097 = vld [vmem:[%s7 + $0x1c8] sm:$0xff]
      %v3098 = vld [vmem:[%s7 + $0x1d0] sm:$0xff]
      %v3099 = vld [vmem:[%s7 + $0x1d8] sm:$0xff]
      %v3100 = vld [vmem:[%s7 + $0x1e0] sm:$0xff]
      %v3101 = vld [vmem:[%s7 + $0x1e8] sm:$0xff]
      %v3102 = vld [vmem:[%s7 + $0x1f0] sm:$0xff]
      %v3103 = vld [vmem:[%s7 + $0x1f8] sm:$0xff]
      %v3104 = vld [vmem:[%s7 + $0x200] sm:$0xff]
      %v3105 = vld [vmem:[%s7 + $0x208] sm:$0xff]
      %v3106 = vld [vmem:[%s7 + $0x210] sm:$0xff]
      %v3107 = vld [vmem:[%s7 + $0x218] sm:$0xff]
      %v3108 = vld [vmem:[%s7 + $0x220] sm:$0xff]
      %v3109 = vld [vmem:[%s7 + $0x228] sm:$0xff]
      %v3110 = vld [vmem:[%s7 + $0x230] sm:$0xff]
      %v3111 = vld [vmem:[%s7 + $0x238] sm:$0xff]
      %v3112 = vld [vmem:[%s7 + $0x240] sm:$0xff]
      %v3113 = vld [vmem:[%s7 + $0x248] sm:$0xff]
      %v3114 = vld [vmem:[%s7 + $0x250] sm:$0xff]
      %v3115 = vld [vmem:[%s7 + $0x258] sm:$0xff]
      %v3116 = vld [vmem:[%s7 + $0x260] sm:$0xff]
      %v3117 = vld [vmem:[%s7 + $0x268] sm:$0xff]
      %v3118 = vld [vmem:[%s7 + $0x270] sm:$0xff]
      %v3119 = vld [vmem:[%s7 + $0x278] sm:$0xff]
      %v3120 = vld [vmem:[%s7 + $0x280] sm:$0xff]
      %v3121 = vld [vmem:[%s7 + $0x288] sm:$0xff]
      %v3122 = vld [vmem:[%s7 + $0x290] sm:$0xff]
      %v3123 = vld [vmem:[%s7 + $0x298] sm:$0xff]
      %v3124 = vld [vmem:[%s7 + $0x2a0] sm:$0xff]
      %v3125 = vld [vmem:[%s7 + $0x2a8] sm:$0xff]
      %v3126 = vld [vmem:[%s7 + $0x2b0] sm:$0xff]
      %v3127 = vld [vmem:[%s7 + $0x2b8] sm:$0xff]
      %v3128 = vld [vmem:[%s7 + $0x2c0] sm:$0xff]
      %v3129 = vld [vmem:[%s7 + $0x2c8] sm:$0xff]
      %v3130 = vld [vmem:[%s7 + $0x2d0] sm:$0xff]
      %v3131 = vld [vmem:[%s7 + $0x2d8] sm:$0xff]
      %v3132 = vld [vmem:[%s7 + $0x2e0] sm:$0xff]
      %v3133 = vld [vmem:[%s7 + $0x2e8] sm:$0xff]
      %v3134 = vld [vmem:[%s7 + $0x2f0] sm:$0xff]
      %v3135 = vld [vmem:[%s7 + $0x2f8] sm:$0xff]
      %v3136 = vld [vmem:[%s7 + $0x300] sm:$0xff]
      %v3137 = vld [vmem:[%s7 + $0x308] sm:$0xff]
      %v3138 = vld [vmem:[%s7 + $0x310] sm:$0xff]
      %v3139 = vld [vmem:[%s7 + $0x318] sm:$0xff]
      %v3140 = vld [vmem:[%s7 + $0x320] sm:$0xff]
      %v3141 = vld [vmem:[%s7 + $0x328] sm:$0xff]
      %v3142 = vld [vmem:[%s7 + $0x330] sm:$0xff]
      %v3143 = vld [vmem:[%s7 + $0x338] sm:$0xff]
      %v3144 = vld [vmem:[%s7 + $0x340] sm:$0xff]
      %v3145 = vld [vmem:[%s7 + $0x348] sm:$0xff]
      %v3146 = vld [vmem:[%s7 + $0x350] sm:$0xff]
      %v3147 = vld [vmem:[%s7 + $0x358] sm:$0xff]
      %v3148 = vld [vmem:[%s7 + $0x360] sm:$0xff]
      %v3149 = vld [vmem:[%s7 + $0x368] sm:$0xff]
      %v3150 = vld [vmem:[%s7 + $0x370] sm:$0xff]
      %v3151 = vld [vmem:[%s7 + $0x378] sm:$0xff]
      %v3152 = vld [vmem:[%s7 + $0x380] sm:$0xff]
      %v3153 = vld [vmem:[%s7 + $0x388] sm:$0xff]
      %v3154 = vld [vmem:[%s7 + $0x390] sm:$0xff]
      %v3155 = vld [vmem:[%s7 + $0x398] sm:$0xff]
      %v3156 = vld [vmem:[%s7 + $0x3a0] sm:$0xff]
      %v3157 = vld [vmem:[%s7 + $0x3a8] sm:$0xff]
      %v3158 = vld [vmem:[%s7 + $0x3b0] sm:$0xff]
      %v3159 = vld [vmem:[%s7 + $0x3b8] sm:$0xff]
      %v3160 = vld [vmem:[%s7 + $0x3c0] sm:$0xff]
      %v3161 = vld [vmem:[%s7 + $0x3c8] sm:$0xff]
      %v3162 = vld [vmem:[%s7 + $0x3d0] sm:$0xff]
      %v3163 = vld [vmem:[%s7 + $0x3d8] sm:$0xff]
      %v3164 = vld [vmem:[%s7 + $0x3e0] sm:$0xff]
      %v3165 = vld [vmem:[%s7 + $0x3e8] sm:$0xff]
      %v3166 = vld [vmem:[%s7 + $0x3f0] sm:$0xff]
      %v3167 = vld [vmem:[%s7 + $0x3f8] sm:$0xff]
      %v3168 = vld [vmem:[%s8] sm:$0xff]
      %v3170 = vlaneseq
      %v3171 = vshrl.u32 %v3170, 7
      %v3172 = vsub.s32 0, %v3171
      %v3173 = vrot.slane %v3168, %v3172
      %v3174 = vlaneseq
      %v3175 = vshrl.u32 %v3174, 7
      %v3176 = vsub.s32 1, %v3175
      %v3177 = vrot.slane %v3168, %v3176
      %v3178 = vlaneseq
      %v3179 = vshrl.u32 %v3178, 7
      %v3180 = vsub.s32 2, %v3179
      %v3181 = vrot.slane %v3168, %v3180
      %v3182 = vlaneseq
      %v3183 = vshrl.u32 %v3182, 7
      %v3184 = vsub.s32 3, %v3183
      %v3185 = vrot.slane %v3168, %v3184
      %v3186 = vlaneseq
      %v3187 = vshrl.u32 %v3186, 7
      %v3188 = vsub.s32 4, %v3187
      %v3189 = vrot.slane %v3168, %v3188
      %v3190 = vlaneseq
      %v3191 = vshrl.u32 %v3190, 7
      %v3192 = vsub.s32 5, %v3191
      %v3193 = vrot.slane %v3168, %v3192
      %v3194 = vlaneseq
      %v3195 = vshrl.u32 %v3194, 7
      %v3196 = vsub.s32 6, %v3195
      %v3197 = vrot.slane %v3168, %v3196
      %v3198 = vlaneseq
      %v3199 = vshrl.u32 %v3198, 7
      %v3200 = vsub.s32 7, %v3199
      %v3201 = vrot.slane %v3168, %v3200
      %3210 = vmatprep.subr.mxu0 %v3161
      %3211 = vmatpush1.msra.mxu0 %v3160
      %3212 = vmatprep.subr.mxu0 %v3153
      %3213 = vmatpush1.msra.mxu0 %v3152
      %3214 = vmatprep.subr.mxu0 %v3145
      %3215 = vmatpush1.msra.mxu0 %v3144
      %3216 = vmatprep.subr.mxu0 %v3137
      %3217 = vmatpush1.msra.mxu0 %v3136
      %3218 = vmatprep.subr.mxu0 %v3129
      %3219 = vmatpush1.msra.mxu0 %v3128
      %3220 = vmatprep.subr.mxu0 %v3121
      %3221 = vmatpush1.msra.mxu0 %v3120
      %3222 = vmatprep.subr.mxu0 %v3113
      %3223 = vmatpush1.msra.mxu0 %v3112
      %3224 = vmatprep.subr.mxu0 %v3105
      %3225 = vmatpush1.msra.mxu0 %v3104
      %3226 = vmatprep.subr.mxu0 %v3097
      %3227 = vmatpush1.msra.mxu0 %v3096
      %3228 = vmatprep.subr.mxu0 %v3089
      %3229 = vmatpush1.msra.mxu0 %v3088
      %3230 = vmatprep.subr.mxu0 %v3081
      %3231 = vmatpush1.msra.mxu0 %v3080
      %3232 = vmatprep.subr.mxu0 %v3073
      %3233 = vmatpush1.msra.mxu0 %v3072
      %3234 = vmatprep.subr.mxu0 %v3065
      %3235 = vmatpush1.msra.mxu0 %v3064
      %3236 = vmatprep.subr.mxu0 %v3057
      %3237 = vmatpush1.msra.mxu0 %v3056
      %3238 = vmatprep.subr.mxu0 %v3049
      %3239 = vmatpush1.msra.mxu0 %v3048
      %3240 = vmatprep.subr.mxu0 %v3041
      %3241 = vmatpush1.msra.mxu0 %v3040
      %3242 = vmatprep.subr.mxu0 0.0
      %3243 = vmatpush2.msra.mxu0 0.0
      %3244 = vmatprep.subr.mxu0 0.0
      %3245 = vmatpush2.msra.mxu0 0.0
      %3246 = vmatprep.subr.mxu0 0.0
      %3247 = vmatpush2.msra.mxu0 0.0
      %3248 = vmatprep.subr.mxu0 0.0
      %3249 = vmatpush2.msra.mxu0 0.0
      %3250 = vmatprep.subr.mxu0 0.0
      %3251 = vmatpush2.msra.mxu0 0.0
      %3252 = vmatprep.subr.mxu0 0.0
      %3253 = vmatpush2.msra.mxu0 0.0
      %3254 = vmatprep.subr.mxu0 0.0
      %3255 = vmatpush2.msra.mxu0 0.0
      %3256 = vmatprep.subr.mxu0 0.0
      %3257 = vmatpush2.msra.mxu0 0.0
      %3258 = vmatprep.subr.mxu0 0.0
      %3259 = vmatpush2.msra.mxu0 0.0
      %3260 = vmatprep.subr.mxu0 0.0
      %3261 = vmatpush2.msra.mxu0 0.0
      %3262 = vmatprep.subr.mxu0 0.0
      %3263 = vmatpush2.msra.mxu0 0.0
      %3264 = vmatprep.subr.mxu0 0.0
      %3265 = vmatpush2.msra.mxu0 0.0
      %3266 = vmatprep.subr.mxu0 0.0
      %3267 = vmatpush2.msra.mxu0 0.0
      %3268 = vmatprep.subr.mxu0 0.0
      %3269 = vmatpush2.msra.mxu0 0.0
      %3270 = vmatprep.subr.mxu0 0.0
      %3271 = vmatpush2.msra.mxu0 0.0
      %3272 = vmatprep.subr.mxu0 0.0
      %3273 = vmatpush2.msra.mxu0 0.0
      %3274 = vmatprep.mubr.f32.mxu0 0.0
      %3275 = vmatmul.mubr.f32.gmra.mxu0 %v3032
      %v3276 = vpop.f32.mrf.mxu0
      %v3277 = vadd.f32 %v3173, %v3276
      %v3278 = vpop.f32.mrf.mxu0
      %v3279 = vadd.f32 %v3177, %v3278
      %3280 = vmatprep.mubr.f32.mxu0 0.0
      %3281 = vmatmul.mubr.f32.gmra.mxu0 %v3033
      %v3282 = vpop.f32.mrf.mxu0
      %v3283 = vadd.f32 %v3173, %v3282
      %v3284 = vpop.f32.mrf.mxu0
      %v3285 = vadd.f32 %v3177, %v3284
      %3286 = vmatprep.mubr.f32.mxu0 0.0
      %3287 = vmatmul.mubr.f32.gmra.mxu0 %v3034
      %v3288 = vpop.f32.mrf.mxu0
      %v3289 = vadd.f32 %v3173, %v3288
      %v3290 = vpop.f32.mrf.mxu0
      %v3291 = vadd.f32 %v3177, %v3290
      %3292 = vmatprep.mubr.f32.mxu0 0.0
      %3293 = vmatmul.mubr.f32.gmra.mxu0 %v3035
      %v3294 = vpop.f32.mrf.mxu0
      %v3295 = vadd.f32 %v3173, %v3294
      %v3296 = vpop.f32.mrf.mxu0
      %v3297 = vadd.f32 %v3177, %v3296
      %3298 = vmatprep.mubr.f32.mxu0 0.0
      %3299 = vmatmul.mubr.f32.gmra.mxu0 %v3036
      %v3300 = vpop.f32.mrf.mxu0
      %v3301 = vadd.f32 %v3173, %v3300
      %v3302 = vpop.f32.mrf.mxu0
      %v3303 = vadd.f32 %v3177, %v3302
      %3304 = vmatprep.mubr.f32.mxu0 0.0
      %3305 = vmatmul.mubr.f32.gmra.mxu0 %v3037
      %v3306 = vpop.f32.mrf.mxu0
      %v3307 = vadd.f32 %v3173, %v3306
      %v3308 = vpop.f32.mrf.mxu0
      %v3309 = vadd.f32 %v3177, %v3308
      %3310 = vmatprep.mubr.f32.mxu0 0.0
      %3311 = vmatmul.mubr.f32.gmra.mxu0 %v3038
      %v3312 = vpop.f32.mrf.mxu0
      %v3313 = vadd.f32 %v3173, %v3312
      %v3314 = vpop.f32.mrf.mxu0
      %v3315 = vadd.f32 %v3177, %v3314
      %3316 = vmatprep.mubr.f32.mxu0 0.0
      %3317 = vmatmul.mubr.f32.gmra.mxu0 %v3039
      %v3318 = vpop.f32.mrf.mxu0
      %v3319 = vadd.f32 %v3173, %v3318
      %v3320 = vpop.f32.mrf.mxu0
      %v3321 = vadd.f32 %v3177, %v3320
      %3322 = vdwg.mxu0
      %3323 = vmatprep.subr.mxu0 %v3163
      %3324 = vmatpush1.msra.mxu0 %v3162
      %3325 = vmatprep.subr.mxu0 %v3155
      %3326 = vmatpush1.msra.mxu0 %v3154
      %3327 = vmatprep.subr.mxu0 %v3147
      %3328 = vmatpush1.msra.mxu0 %v3146
      %3329 = vmatprep.subr.mxu0 %v3139
      %3330 = vmatpush1.msra.mxu0 %v3138
      %3331 = vmatprep.subr.mxu0 %v3131
      %3332 = vmatpush1.msra.mxu0 %v3130
      %3333 = vmatprep.subr.mxu0 %v3123
      %3334 = vmatpush1.msra.mxu0 %v3122
      %3335 = vmatprep.subr.mxu0 %v3115
      %3336 = vmatpush1.msra.mxu0 %v3114
      %3337 = vmatprep.subr.mxu0 %v3107
      %3338 = vmatpush1.msra.mxu0 %v3106
      %3339 = vmatprep.subr.mxu0 %v3099
      %3340 = vmatpush1.msra.mxu0 %v3098
      %3341 = vmatprep.subr.mxu0 %v3091
      %3342 = vmatpush1.msra.mxu0 %v3090
      %3343 = vmatprep.subr.mxu0 %v3083
      %3344 = vmatpush1.msra.mxu0 %v3082
      %3345 = vmatprep.subr.mxu0 %v3075
      %3346 = vmatpush1.msra.mxu0 %v3074
      %3347 = vmatprep.subr.mxu0 %v3067
      %3348 = vmatpush1.msra.mxu0 %v3066
      %3349 = vmatprep.subr.mxu0 %v3059
      %3350 = vmatpush1.msra.mxu0 %v3058
      %3351 = vmatprep.subr.mxu0 %v3051
      %3352 = vmatpush1.msra.mxu0 %v3050
      %3353 = vmatprep.subr.mxu0 %v3043
      %3354 = vmatpush1.msra.mxu0 %v3042
      %3355 = vmatprep.subr.mxu0 0.0
      %3356 = vmatpush2.msra.mxu0 0.0
      %3357 = vmatprep.subr.mxu0 0.0
      %3358 = vmatpush2.msra.mxu0 0.0
      %3359 = vmatprep.subr.mxu0 0.0
      %3360 = vmatpush2.msra.mxu0 0.0
      %3361 = vmatprep.subr.mxu0 0.0
      %3362 = vmatpush2.msra.mxu0 0.0
      %3363 = vmatprep.subr.mxu0 0.0
      %3364 = vmatpush2.msra.mxu0 0.0
      %3365 = vmatprep.subr.mxu0 0.0
      %3366 = vmatpush2.msra.mxu0 0.0
      %3367 = vmatprep.subr.mxu0 0.0
      %3368 = vmatpush2.msra.mxu0 0.0
      %3369 = vmatprep.subr.mxu0 0.0
      %3370 = vmatpush2.msra.mxu0 0.0
      %3371 = vmatprep.subr.mxu0 0.0
      %3372 = vmatpush2.msra.mxu0 0.0
      %3373 = vmatprep.subr.mxu0 0.0
      %3374 = vmatpush2.msra.mxu0 0.0
      %3375 = vmatprep.subr.mxu0 0.0
      %3376 = vmatpush2.msra.mxu0 0.0
      %3377 = vmatprep.subr.mxu0 0.0
      %3378 = vmatpush2.msra.mxu0 0.0
      %3379 = vmatprep.subr.mxu0 0.0
      %3380 = vmatpush2.msra.mxu0 0.0
      %3381 = vmatprep.subr.mxu0 0.0
      %3382 = vmatpush2.msra.mxu0 0.0
      %3383 = vmatprep.subr.mxu0 0.0
      %3384 = vmatpush2.msra.mxu0 0.0
      %3385 = vmatprep.subr.mxu0 0.0
      %3386 = vmatpush2.msra.mxu0 0.0
      %3387 = vmatprep.mubr.f32.mxu0 0.0
      %3388 = vmatmul.mubr.f32.gmra.mxu0 %v3032
      %v3389 = vpop.f32.mrf.mxu0
      %v3390 = vadd.f32 %v3181, %v3389
      %v3391 = vpop.f32.mrf.mxu0
      %v3392 = vadd.f32 %v3185, %v3391
      %3393 = vmatprep.mubr.f32.mxu0 0.0
      %3394 = vmatmul.mubr.f32.gmra.mxu0 %v3033
      %v3395 = vpop.f32.mrf.mxu0
      %v3396 = vadd.f32 %v3181, %v3395
      %v3397 = vpop.f32.mrf.mxu0
      %v3398 = vadd.f32 %v3185, %v3397
      %3399 = vmatprep.mubr.f32.mxu0 0.0
      %3400 = vmatmul.mubr.f32.gmra.mxu0 %v3034
      %v3401 = vpop.f32.mrf.mxu0
      %v3402 = vadd.f32 %v3181, %v3401
      %v3403 = vpop.f32.mrf.mxu0
      %v3404 = vadd.f32 %v3185, %v3403
      %3405 = vmatprep.mubr.f32.mxu0 0.0
      %3406 = vmatmul.mubr.f32.gmra.mxu0 %v3035
      %v3407 = vpop.f32.mrf.mxu0
      %v3408 = vadd.f32 %v3181, %v3407
      %v3409 = vpop.f32.mrf.mxu0
      %v3410 = vadd.f32 %v3185, %v3409
      %3411 = vmatprep.mubr.f32.mxu0 0.0
      %3412 = vmatmul.mubr.f32.gmra.mxu0 %v3036
      %v3413 = vpop.f32.mrf.mxu0
      %v3414 = vadd.f32 %v3181, %v3413
      %v3415 = vpop.f32.mrf.mxu0
      %v3416 = vadd.f32 %v3185, %v3415
      %3417 = vmatprep.mubr.f32.mxu0 0.0
      %3418 = vmatmul.mubr.f32.gmra.mxu0 %v3037
      %v3419 = vpop.f32.mrf.mxu0
      %v3420 = vadd.f32 %v3181, %v3419
      %v3421 = vpop.f32.mrf.mxu0
      %v3422 = vadd.f32 %v3185, %v3421
      %3423 = vmatprep.mubr.f32.mxu0 0.0
      %3424 = vmatmul.mubr.f32.gmra.mxu0 %v3038
      %v3425 = vpop.f32.mrf.mxu0
      %v3426 = vadd.f32 %v3181, %v3425
      %v3427 = vpop.f32.mrf.mxu0
      %v3428 = vadd.f32 %v3185, %v3427
      %3429 = vmatprep.mubr.f32.mxu0 0.0
      %3430 = vmatmul.mubr.f32.gmra.mxu0 %v3039
      %v3431 = vpop.f32.mrf.mxu0
      %v3432 = vadd.f32 %v3181, %v3431
      %v3433 = vpop.f32.mrf.mxu0
      %v3434 = vadd.f32 %v3185, %v3433
      %3435 = vdwg.mxu0
      %3436 = vmatprep.subr.mxu0 %v3165
      %3437 = vmatpush1.msra.mxu0 %v3164
      %3438 = vmatprep.subr.mxu0 %v3157
      %3439 = vmatpush1.msra.mxu0 %v3156
      %3440 = vmatprep.subr.mxu0 %v3149
      %3441 = vmatpush1.msra.mxu0 %v3148
      %3442 = vmatprep.subr.mxu0 %v3141
      %3443 = vmatpush1.msra.mxu0 %v3140
      %3444 = vmatprep.subr.mxu0 %v3133
      %3445 = vmatpush1.msra.mxu0 %v3132
      %3446 = vmatprep.subr.mxu0 %v3125
      %3447 = vmatpush1.msra.mxu0 %v3124
      %3448 = vmatprep.subr.mxu0 %v3117
      %3449 = vmatpush1.msra.mxu0 %v3116
      %3450 = vmatprep.subr.mxu0 %v3109
      %3451 = vmatpush1.msra.mxu0 %v3108
      %3452 = vmatprep.subr.mxu0 %v3101
      %3453 = vmatpush1.msra.mxu0 %v3100
      %3454 = vmatprep.subr.mxu0 %v3093
      %3455 = vmatpush1.msra.mxu0 %v3092
      %3456 = vmatprep.subr.mxu0 %v3085
      %3457 = vmatpush1.msra.mxu0 %v3084
      %3458 = vmatprep.subr.mxu0 %v3077
      %3459 = vmatpush1.msra.mxu0 %v3076
      %3460 = vmatprep.subr.mxu0 %v3069
      %3461 = vmatpush1.msra.mxu0 %v3068
      %3462 = vmatprep.subr.mxu0 %v3061
      %3463 = vmatpush1.msra.mxu0 %v3060
      %3464 = vmatprep.subr.mxu0 %v3053
      %3465 = vmatpush1.msra.mxu0 %v3052
      %3466 = vmatprep.subr.mxu0 %v3045
      %3467 = vmatpush1.msra.mxu0 %v3044
      %3468 = vmatprep.subr.mxu0 0.0
      %3469 = vmatpush2.msra.mxu0 0.0
      %3470 = vmatprep.subr.mxu0 0.0
      %3471 = vmatpush2.msra.mxu0 0.0
      %3472 = vmatprep.subr.mxu0 0.0
      %3473 = vmatpush2.msra.mxu0 0.0
      %3474 = vmatprep.subr.mxu0 0.0
      %3475 = vmatpush2.msra.mxu0 0.0
      %3476 = vmatprep.subr.mxu0 0.0
      %3477 = vmatpush2.msra.mxu0 0.0
      %3478 = vmatprep.subr.mxu0 0.0
      %3479 = vmatpush2.msra.mxu0 0.0
      %3480 = vmatprep.subr.mxu0 0.0
      %3481 = vmatpush2.msra.mxu0 0.0
      %3482 = vmatprep.subr.mxu0 0.0
      %3483 = vmatpush2.msra.mxu0 0.0
      %3484 = vmatprep.subr.mxu0 0.0
      %3485 = vmatpush2.msra.mxu0 0.0
      %3486 = vmatprep.subr.mxu0 0.0
      %3487 = vmatpush2.msra.mxu0 0.0
      %3488 = vmatprep.subr.mxu0 0.0
      %3489 = vmatpush2.msra.mxu0 0.0
      %3490 = vmatprep.subr.mxu0 0.0
      %3491 = vmatpush2.msra.mxu0 0.0
      %3492 = vmatprep.subr.mxu0 0.0
      %3493 = vmatpush2.msra.mxu0 0.0
      %3494 = vmatprep.subr.mxu0 0.0
      %3495 = vmatpush2.msra.mxu0 0.0
      %3496 = vmatprep.subr.mxu0 0.0
      %3497 = vmatpush2.msra.mxu0 0.0
      %3498 = vmatprep.subr.mxu0 0.0
      %3499 = vmatpush2.msra.mxu0 0.0
      %3500 = vmatprep.mubr.f32.mxu0 0.0
      %3501 = vmatmul.mubr.f32.gmra.mxu0 %v3032
      %v3502 = vpop.f32.mrf.mxu0
      %v3503 = vadd.f32 %v3189, %v3502
      %v3504 = vpop.f32.mrf.mxu0
      %v3505 = vadd.f32 %v3193, %v3504
      %3506 = vmatprep.mubr.f32.mxu0 0.0
      %3507 = vmatmul.mubr.f32.gmra.mxu0 %v3033
      %v3508 = vpop.f32.mrf.mxu0
      %v3509 = vadd.f32 %v3189, %v3508
      %v3510 = vpop.f32.mrf.mxu0
      %v3511 = vadd.f32 %v3193, %v3510
      %3512 = vmatprep.mubr.f32.mxu0 0.0
      %3513 = vmatmul.mubr.f32.gmra.mxu0 %v3034
      %v3514 = vpop.f32.mrf.mxu0
      %v3515 = vadd.f32 %v3189, %v3514
      %v3516 = vpop.f32.mrf.mxu0
      %v3517 = vadd.f32 %v3193, %v3516
      %3518 = vmatprep.mubr.f32.mxu0 0.0
      %3519 = vmatmul.mubr.f32.gmra.mxu0 %v3035
      %v3520 = vpop.f32.mrf.mxu0
      %v3521 = vadd.f32 %v3189, %v3520
      %v3522 = vpop.f32.mrf.mxu0
      %v3523 = vadd.f32 %v3193, %v3522
      %3524 = vmatprep.mubr.f32.mxu0 0.0
      %3525 = vmatmul.mubr.f32.gmra.mxu0 %v3036
      %v3526 = vpop.f32.mrf.mxu0
      %v3527 = vadd.f32 %v3189, %v3526
      %v3528 = vpop.f32.mrf.mxu0
      %v3529 = vadd.f32 %v3193, %v3528
      %3530 = vmatprep.mubr.f32.mxu0 0.0
      %3531 = vmatmul.mubr.f32.gmra.mxu0 %v3037
      %v3532 = vpop.f32.mrf.mxu0
      %v3533 = vadd.f32 %v3189, %v3532
      %v3534 = vpop.f32.mrf.mxu0
      %v3535 = vadd.f32 %v3193, %v3534
      %3536 = vmatprep.mubr.f32.mxu0 0.0
      %3537 = vmatmul.mubr.f32.gmra.mxu0 %v3038
      %v3538 = vpop.f32.mrf.mxu0
      %v3539 = vadd.f32 %v3189, %v3538
      %v3540 = vpop.f32.mrf.mxu0
      %v3541 = vadd.f32 %v3193, %v3540
      %3542 = vmatprep.mubr.f32.mxu0 0.0
      %3543 = vmatmul.mubr.f32.gmra.mxu0 %v3039
      %v3544 = vpop.f32.mrf.mxu0
      %v3545 = vadd.f32 %v3189, %v3544
      %v3546 = vpop.f32.mrf.mxu0
      %v3547 = vadd.f32 %v3193, %v3546
      %3548 = vdwg.mxu0
      %3549 = vmatprep.subr.mxu0 %v3167
      %3550 = vmatpush1.msra.mxu0 %v3166
      %3551 = vmatprep.subr.mxu0 %v3159
      %3552 = vmatpush1.msra.mxu0 %v3158
      %3553 = vmatprep.subr.mxu0 %v3151
      %3554 = vmatpush1.msra.mxu0 %v3150
      %3555 = vmatprep.subr.mxu0 %v3143
      %3556 = vmatpush1.msra.mxu0 %v3142
      %3557 = vmatprep.subr.mxu0 %v3135
      %3558 = vmatpush1.msra.mxu0 %v3134
      %3559 = vmatprep.subr.mxu0 %v3127
      %3560 = vmatpush1.msra.mxu0 %v3126
      %3561 = vmatprep.subr.mxu0 %v3119
      %3562 = vmatpush1.msra.mxu0 %v3118
      %3563 = vmatprep.subr.mxu0 %v3111
      %3564 = vmatpush1.msra.mxu0 %v3110
      %3565 = vmatprep.subr.mxu0 %v3103
      %3566 = vmatpush1.msra.mxu0 %v3102
      %3567 = vmatprep.subr.mxu0 %v3095
      %3568 = vmatpush1.msra.mxu0 %v3094
      %3569 = vmatprep.subr.mxu0 %v3087
      %3570 = vmatpush1.msra.mxu0 %v3086
      %3571 = vmatprep.subr.mxu0 %v3079
      %3572 = vmatpush1.msra.mxu0 %v3078
      %3573 = vmatprep.subr.mxu0 %v3071
      %3574 = vmatpush1.msra.mxu0 %v3070
      %3575 = vmatprep.subr.mxu0 %v3063
      %3576 = vmatpush1.msra.mxu0 %v3062
      %3577 = vmatprep.subr.mxu0 %v3055
      %3578 = vmatpush1.msra.mxu0 %v3054
      %3579 = vmatprep.subr.mxu0 %v3047
      %3580 = vmatpush1.msra.mxu0 %v3046
      %3581 = vmatprep.subr.mxu0 0.0
      %3582 = vmatpush2.msra.mxu0 0.0
      %3583 = vmatprep.subr.mxu0 0.0
      %3584 = vmatpush2.msra.mxu0 0.0
      %3585 = vmatprep.subr.mxu0 0.0
      %3586 = vmatpush2.msra.mxu0 0.0
      %3587 = vmatprep.subr.mxu0 0.0
      %3588 = vmatpush2.msra.mxu0 0.0
      %3589 = vmatprep.subr.mxu0 0.0
      %3590 = vmatpush2.msra.mxu0 0.0
      %3591 = vmatprep.subr.mxu0 0.0
      %3592 = vmatpush2.msra.mxu0 0.0
      %3593 = vmatprep.subr.mxu0 0.0
      %3594 = vmatpush2.msra.mxu0 0.0
      %3595 = vmatprep.subr.mxu0 0.0
      %3596 = vmatpush2.msra.mxu0 0.0
      %3597 = vmatprep.subr.mxu0 0.0
      %3598 = vmatpush2.msra.mxu0 0.0
      %3599 = vmatprep.subr.mxu0 0.0
      %3600 = vmatpush2.msra.mxu0 0.0
      %3601 = vmatprep.subr.mxu0 0.0
      %3602 = vmatpush2.msra.mxu0 0.0
      %3603 = vmatprep.subr.mxu0 0.0
      %3604 = vmatpush2.msra.mxu0 0.0
      %3605 = vmatprep.subr.mxu0 0.0
      %3606 = vmatpush2.msra.mxu0 0.0
      %3607 = vmatprep.subr.mxu0 0.0
      %3608 = vmatpush2.msra.mxu0 0.0
      %3609 = vmatprep.subr.mxu0 0.0
      %3610 = vmatpush2.msra.mxu0 0.0
      %3611 = vmatprep.subr.mxu0 0.0
      %3612 = vmatpush2.msra.mxu0 0.0
      %3613 = vmatprep.mubr.f32.mxu0 0.0
      %3614 = vmatmul.mubr.f32.gmra.mxu0 %v3032
      %v3615 = vpop.f32.mrf.mxu0
      %v3616 = vadd.f32 %v3197, %v3615
      %v3617 = vpop.f32.mrf.mxu0
      %v3618 = vadd.f32 %v3201, %v3617
      %3619 = vmatprep.mubr.f32.mxu0 0.0
      %3620 = vmatmul.mubr.f32.gmra.mxu0 %v3033
      %v3621 = vpop.f32.mrf.mxu0
      %v3622 = vadd.f32 %v3197, %v3621
      %v3623 = vpop.f32.mrf.mxu0
      %v3624 = vadd.f32 %v3201, %v3623
      %3625 = vmatprep.mubr.f32.mxu0 0.0
      %3626 = vmatmul.mubr.f32.gmra.mxu0 %v3034
      %v3627 = vpop.f32.mrf.mxu0
      %v3628 = vadd.f32 %v3197, %v3627
      %v3629 = vpop.f32.mrf.mxu0
      %v3630 = vadd.f32 %v3201, %v3629
      %3631 = vmatprep.mubr.f32.mxu0 0.0
      %3632 = vmatmul.mubr.f32.gmra.mxu0 %v3035
      %v3633 = vpop.f32.mrf.mxu0
      %v3634 = vadd.f32 %v3197, %v3633
      %v3635 = vpop.f32.mrf.mxu0
      %v3636 = vadd.f32 %v3201, %v3635
      %3637 = vmatprep.mubr.f32.mxu0 0.0
      %3638 = vmatmul.mubr.f32.gmra.mxu0 %v3036
      %v3639 = vpop.f32.mrf.mxu0
      %v3640 = vadd.f32 %v3197, %v3639
      %v3641 = vpop.f32.mrf.mxu0
      %v3642 = vadd.f32 %v3201, %v3641
      %3643 = vmatprep.mubr.f32.mxu0 0.0
      %3644 = vmatmul.mubr.f32.gmra.mxu0 %v3037
      %v3645 = vpop.f32.mrf.mxu0
      %v3646 = vadd.f32 %v3197, %v3645
      %v3647 = vpop.f32.mrf.mxu0
      %v3648 = vadd.f32 %v3201, %v3647
      %3649 = vmatprep.mubr.f32.mxu0 0.0
      %3650 = vmatmul.mubr.f32.gmra.mxu0 %v3038
      %v3651 = vpop.f32.mrf.mxu0
      %v3652 = vadd.f32 %v3197, %v3651
      %v3653 = vpop.f32.mrf.mxu0
      %v3654 = vadd.f32 %v3201, %v3653
      %3655 = vmatprep.mubr.f32.mxu0 0.0
      %3656 = vmatmul.mubr.f32.gmra.mxu0 %v3039
      %v3657 = vpop.f32.mrf.mxu0
      %v3658 = vadd.f32 %v3197, %v3657
      %v3659 = vpop.f32.mrf.mxu0
      %v3660 = vadd.f32 %v3201, %v3659
      %3661 = vdwg.mxu0
      %v3662 = vmax.f32 %v3277, 0.0
      %v3663 = vmax.f32 %v3279, 0.0
      %v3664 = vmax.f32 %v3390, 0.0
      %v3665 = vmax.f32 %v3392, 0.0
      %v3666 = vmax.f32 %v3503, 0.0
      %v3667 = vmax.f32 %v3505, 0.0
      %v3668 = vmax.f32 %v3616, 0.0
      %v3669 = vmax.f32 %v3618, 0.0
      %v3670 = vmax.f32 %v3283, 0.0
      %v3671 = vmax.f32 %v3285, 0.0
      %v3672 = vmax.f32 %v3396, 0.0
      %v3673 = vmax.f32 %v3398, 0.0
      %v3674 = vmax.f32 %v3509, 0.0
      %v3675 = vmax.f32 %v3511, 0.0
      %v3676 = vmax.f32 %v3622, 0.0
      %v3677 = vmax.f32 %v3624, 0.0
      %v3678 = vmax.f32 %v3289, 0.0
      %v3679 = vmax.f32 %v3291, 0.0
      %v3680 = vmax.f32 %v3402, 0.0
      %v3681 = vmax.f32 %v3404, 0.0
      %v3682 = vmax.f32 %v3515, 0.0
      %v3683 = vmax.f32 %v3517, 0.0
      %v3684 = vmax.f32 %v3628, 0.0
      %v3685 = vmax.f32 %v3630, 0.0
      %v3686 = vmax.f32 %v3295, 0.0
      %v3687 = vmax.f32 %v3297, 0.0
      %v3688 = vmax.f32 %v3408, 0.0
      %v3689 = vmax.f32 %v3410, 0.0
      %v3690 = vmax.f32 %v3521, 0.0
      %v3691 = vmax.f32 %v3523, 0.0
      %v3692 = vmax.f32 %v3634, 0.0
      %v3693 = vmax.f32 %v3636, 0.0
      %v3694 = vmax.f32 %v3301, 0.0
      %v3695 = vmax.f32 %v3303, 0.0
      %v3696 = vmax.f32 %v3414, 0.0
      %v3697 = vmax.f32 %v3416, 0.0
      %v3698 = vmax.f32 %v3527, 0.0
      %v3699 = vmax.f32 %v3529, 0.0
      %v3700 = vmax.f32 %v3640, 0.0
      %v3701 = vmax.f32 %v3642, 0.0
      %v3702 = vmax.f32 %v3307, 0.0
      %v3703 = vmax.f32 %v3309, 0.0
      %v3704 = vmax.f32 %v3420, 0.0
      %v3705 = vmax.f32 %v3422, 0.0
      %v3706 = vmax.f32 %v3533, 0.0
      %v3707 = vmax.f32 %v3535, 0.0
      %v3708 = vmax.f32 %v3646, 0.0
      %v3709 = vmax.f32 %v3648, 0.0
      %v3710 = vmax.f32 %v3313, 0.0
      %v3711 = vmax.f32 %v3315, 0.0
      %v3712 = vmax.f32 %v3426, 0.0
      %v3713 = vmax.f32 %v3428, 0.0
      %v3714 = vmax.f32 %v3539, 0.0
      %v3715 = vmax.f32 %v3541, 0.0
      %v3716 = vmax.f32 %v3652, 0.0
      %v3717 = vmax.f32 %v3654, 0.0
      %v3718 = vmax.f32 %v3319, 0.0
      %v3719 = vmax.f32 %v3321, 0.0
      %v3720 = vmax.f32 %v3432, 0.0
      %v3721 = vmax.f32 %v3434, 0.0
      %v3722 = vmax.f32 %v3545, 0.0
      %v3723 = vmax.f32 %v3547, 0.0
      %v3724 = vmax.f32 %v3658, 0.0
      %v3725 = vmax.f32 %v3660, 0.0
      %v3726 = vld [vmem:[%s9] sm:$0xff]
      %v3727 = vld [vmem:[%s9 + $0x8] sm:$0xff]
      %v3728 = vld [vmem:[%s9 + $0x10] sm:$0xff]
      %v3729 = vld [vmem:[%s9 + $0x18] sm:$0xff]
      %v3730 = vld [vmem:[%s9 + $0x20] sm:$0xff]
      %v3731 = vld [vmem:[%s9 + $0x28] sm:$0xff]
      %v3732 = vld [vmem:[%s9 + $0x30] sm:$0xff]
      %v3733 = vld [vmem:[%s9 + $0x38] sm:$0xff]
      %v3734 = vld [vmem:[%s9 + $0x40] sm:$0xff]
      %v3735 = vld [vmem:[%s9 + $0x48] sm:$0xff]
      %v3736 = vld [vmem:[%s9 + $0x50] sm:$0xff]
      %v3737 = vld [vmem:[%s9 + $0x58] sm:$0xff]
      %v3738 = vld [vmem:[%s9 + $0x60] sm:$0xff]
      %v3739 = vld [vmem:[%s9 + $0x68] sm:$0xff]
      %v3740 = vld [vmem:[%s9 + $0x70] sm:$0xff]
      %v3741 = vld [vmem:[%s9 + $0x78] sm:$0xff]
      %v3742 = vld [vmem:[%s9 + $0x80] sm:$0xff]
      %v3743 = vld [vmem:[%s9 + $0x88] sm:$0xff]
      %v3744 = vld [vmem:[%s9 + $0x90] sm:$0xff]
      %v3745 = vld [vmem:[%s9 + $0x98] sm:$0xff]
      %v3746 = vld [vmem:[%s9 + $0xa0] sm:$0xff]
      %v3747 = vld [vmem:[%s9 + $0xa8] sm:$0xff]
      %v3748 = vld [vmem:[%s9 + $0xb0] sm:$0xff]
      %v3749 = vld [vmem:[%s9 + $0xb8] sm:$0xff]
      %v3750 = vld [vmem:[%s9 + $0xc0] sm:$0xff]
      %v3751 = vld [vmem:[%s9 + $0xc8] sm:$0xff]
      %v3752 = vld [vmem:[%s9 + $0xd0] sm:$0xff]
      %v3753 = vld [vmem:[%s9 + $0xd8] sm:$0xff]
      %v3754 = vld [vmem:[%s9 + $0xe0] sm:$0xff]
      %v3755 = vld [vmem:[%s9 + $0xe8] sm:$0xff]
      %v3756 = vld [vmem:[%s9 + $0xf0] sm:$0xff]
      %v3757 = vld [vmem:[%s9 + $0xf8] sm:$0xff]
      %v3758 = vld [vmem:[%s9 + $0x100] sm:$0xff]
      %v3759 = vld [vmem:[%s9 + $0x108] sm:$0xff]
      %v3760 = vld [vmem:[%s9 + $0x110] sm:$0xff]
      %v3761 = vld [vmem:[%s9 + $0x118] sm:$0xff]
      %v3762 = vld [vmem:[%s9 + $0x120] sm:$0xff]
      %v3763 = vld [vmem:[%s9 + $0x128] sm:$0xff]
      %v3764 = vld [vmem:[%s9 + $0x130] sm:$0xff]
      %v3765 = vld [vmem:[%s9 + $0x138] sm:$0xff]
      %v3766 = vld [vmem:[%s9 + $0x140] sm:$0xff]
      %v3767 = vld [vmem:[%s9 + $0x148] sm:$0xff]
      %v3768 = vld [vmem:[%s9 + $0x150] sm:$0xff]
      %v3769 = vld [vmem:[%s9 + $0x158] sm:$0xff]
      %v3770 = vld [vmem:[%s9 + $0x160] sm:$0xff]
      %v3771 = vld [vmem:[%s9 + $0x168] sm:$0xff]
      %v3772 = vld [vmem:[%s9 + $0x170] sm:$0xff]
      %v3773 = vld [vmem:[%s9 + $0x178] sm:$0xff]
      %v3774 = vld [vmem:[%s9 + $0x180] sm:$0xff]
      %v3775 = vld [vmem:[%s9 + $0x188] sm:$0xff]
      %v3776 = vld [vmem:[%s9 + $0x190] sm:$0xff]
      %v3777 = vld [vmem:[%s9 + $0x198] sm:$0xff]
      %v3778 = vld [vmem:[%s9 + $0x1a0] sm:$0xff]
      %v3779 = vld [vmem:[%s9 + $0x1a8] sm:$0xff]
      %v3780 = vld [vmem:[%s9 + $0x1b0] sm:$0xff]
      %v3781 = vld [vmem:[%s9 + $0x1b8] sm:$0xff]
      %v3782 = vld [vmem:[%s9 + $0x1c0] sm:$0xff]
      %v3783 = vld [vmem:[%s9 + $0x1c8] sm:$0xff]
      %v3784 = vld [vmem:[%s9 + $0x1d0] sm:$0xff]
      %v3785 = vld [vmem:[%s9 + $0x1d8] sm:$0xff]
      %v3786 = vld [vmem:[%s9 + $0x1e0] sm:$0xff]
      %v3787 = vld [vmem:[%s9 + $0x1e8] sm:$0xff]
      %v3788 = vld [vmem:[%s9 + $0x1f0] sm:$0xff]
      %v3789 = vld [vmem:[%s9 + $0x1f8] sm:$0xff]
      %v3790 = vld [vmem:[%s9 + $0x200] sm:$0xff]
      %v3791 = vld [vmem:[%s9 + $0x208] sm:$0xff]
      %v3792 = vld [vmem:[%s9 + $0x210] sm:$0xff]
      %v3793 = vld [vmem:[%s9 + $0x218] sm:$0xff]
      %v3794 = vld [vmem:[%s9 + $0x220] sm:$0xff]
      %v3795 = vld [vmem:[%s9 + $0x228] sm:$0xff]
      %v3796 = vld [vmem:[%s9 + $0x230] sm:$0xff]
      %v3797 = vld [vmem:[%s9 + $0x238] sm:$0xff]
      %v3798 = vld [vmem:[%s9 + $0x240] sm:$0xff]
      %v3799 = vld [vmem:[%s9 + $0x248] sm:$0xff]
      %v3800 = vld [vmem:[%s9 + $0x250] sm:$0xff]
      %v3801 = vld [vmem:[%s9 + $0x258] sm:$0xff]
      %v3802 = vld [vmem:[%s9 + $0x260] sm:$0xff]
      %v3803 = vld [vmem:[%s9 + $0x268] sm:$0xff]
      %v3804 = vld [vmem:[%s9 + $0x270] sm:$0xff]
      %v3805 = vld [vmem:[%s9 + $0x278] sm:$0xff]
      %v3806 = vld [vmem:[%s9 + $0x280] sm:$0xff]
      %v3807 = vld [vmem:[%s9 + $0x288] sm:$0xff]
      %v3808 = vld [vmem:[%s9 + $0x290] sm:$0xff]
      %v3809 = vld [vmem:[%s9 + $0x298] sm:$0xff]
      %v3810 = vld [vmem:[%s9 + $0x2a0] sm:$0xff]
      %v3811 = vld [vmem:[%s9 + $0x2a8] sm:$0xff]
      %v3812 = vld [vmem:[%s9 + $0x2b0] sm:$0xff]
      %v3813 = vld [vmem:[%s9 + $0x2b8] sm:$0xff]
      %v3814 = vld [vmem:[%s9 + $0x2c0] sm:$0xff]
      %v3815 = vld [vmem:[%s9 + $0x2c8] sm:$0xff]
      %v3816 = vld [vmem:[%s9 + $0x2d0] sm:$0xff]
      %v3817 = vld [vmem:[%s9 + $0x2d8] sm:$0xff]
      %v3818 = vld [vmem:[%s9 + $0x2e0] sm:$0xff]
      %v3819 = vld [vmem:[%s9 + $0x2e8] sm:$0xff]
      %v3820 = vld [vmem:[%s9 + $0x2f0] sm:$0xff]
      %v3821 = vld [vmem:[%s9 + $0x2f8] sm:$0xff]
      %v3822 = vld [vmem:[%s9 + $0x300] sm:$0xff]
      %v3823 = vld [vmem:[%s9 + $0x308] sm:$0xff]
      %v3824 = vld [vmem:[%s9 + $0x310] sm:$0xff]
      %v3825 = vld [vmem:[%s9 + $0x318] sm:$0xff]
      %v3826 = vld [vmem:[%s9 + $0x320] sm:$0xff]
      %v3827 = vld [vmem:[%s9 + $0x328] sm:$0xff]
      %v3828 = vld [vmem:[%s9 + $0x330] sm:$0xff]
      %v3829 = vld [vmem:[%s9 + $0x338] sm:$0xff]
      %v3830 = vld [vmem:[%s9 + $0x340] sm:$0xff]
      %v3831 = vld [vmem:[%s9 + $0x348] sm:$0xff]
      %v3832 = vld [vmem:[%s9 + $0x350] sm:$0xff]
      %v3833 = vld [vmem:[%s9 + $0x358] sm:$0xff]
      %v3834 = vld [vmem:[%s9 + $0x360] sm:$0xff]
      %v3835 = vld [vmem:[%s9 + $0x368] sm:$0xff]
      %v3836 = vld [vmem:[%s9 + $0x370] sm:$0xff]
      %v3837 = vld [vmem:[%s9 + $0x378] sm:$0xff]
      %v3838 = vld [vmem:[%s9 + $0x380] sm:$0xff]
      %v3839 = vld [vmem:[%s9 + $0x388] sm:$0xff]
      %v3840 = vld [vmem:[%s9 + $0x390] sm:$0xff]
      %v3841 = vld [vmem:[%s9 + $0x398] sm:$0xff]
      %v3842 = vld [vmem:[%s9 + $0x3a0] sm:$0xff]
      %v3843 = vld [vmem:[%s9 + $0x3a8] sm:$0xff]
      %v3844 = vld [vmem:[%s9 + $0x3b0] sm:$0xff]
      %v3845 = vld [vmem:[%s9 + $0x3b8] sm:$0xff]
      %v3846 = vld [vmem:[%s9 + $0x3c0] sm:$0xff]
      %v3847 = vld [vmem:[%s9 + $0x3c8] sm:$0xff]
      %v3848 = vld [vmem:[%s9 + $0x3d0] sm:$0xff]
      %v3849 = vld [vmem:[%s9 + $0x3d8] sm:$0xff]
      %v3850 = vld [vmem:[%s9 + $0x3e0] sm:$0xff]
      %v3851 = vld [vmem:[%s9 + $0x3e8] sm:$0xff]
      %v3852 = vld [vmem:[%s9 + $0x3f0] sm:$0xff]
      %v3853 = vld [vmem:[%s9 + $0x3f8] sm:$0xff]
      %v3854 = vld [vmem:[%s10] sm:$0x1]
      %v3856 = vlaneseq
      %v3857 = vshrl.u32 %v3856, 7
      %v3858 = vsub.s32 0, %v3857
      %v3859 = vrot.slane %v3854, %v3858
      %3861 = vmatprep.subr.mxu0 0.0
      %3862 = vmatpush1.msra.mxu0 %v3741
      %3863 = vmatprep.subr.mxu0 0.0
      %3864 = vmatpush1.msra.mxu0 %v3740
      %3865 = vmatprep.subr.mxu0 0.0
      %3866 = vmatpush1.msra.mxu0 %v3739
      %3867 = vmatprep.subr.mxu0 0.0
      %3868 = vmatpush1.msra.mxu0 %v3738
      %3869 = vmatprep.subr.mxu0 0.0
      %3870 = vmatpush1.msra.mxu0 %v3737
      %3871 = vmatprep.subr.mxu0 0.0
      %3872 = vmatpush1.msra.mxu0 %v3736
      %3873 = vmatprep.subr.mxu0 0.0
      %3874 = vmatpush1.msra.mxu0 %v3735
      %3875 = vmatprep.subr.mxu0 0.0
      %3876 = vmatpush1.msra.mxu0 %v3734
      %3877 = vmatprep.subr.mxu0 0.0
      %3878 = vmatpush1.msra.mxu0 %v3733
      %3879 = vmatprep.subr.mxu0 0.0
      %3880 = vmatpush1.msra.mxu0 %v3732
      %3881 = vmatprep.subr.mxu0 0.0
      %3882 = vmatpush1.msra.mxu0 %v3731
      %3883 = vmatprep.subr.mxu0 0.0
      %3884 = vmatpush1.msra.mxu0 %v3730
      %3885 = vmatprep.subr.mxu0 0.0
      %3886 = vmatpush1.msra.mxu0 %v3729
      %3887 = vmatprep.subr.mxu0 0.0
      %3888 = vmatpush1.msra.mxu0 %v3728
      %3889 = vmatprep.subr.mxu0 0.0
      %3890 = vmatpush1.msra.mxu0 %v3727
      %3891 = vmatprep.subr.mxu0 0.0
      %3892 = vmatpush1.msra.mxu0 %v3726
      %3893 = vmatprep.subr.mxu0 0.0
      %3894 = vmatpush2.msra.mxu0 %v3757
      %3895 = vmatprep.subr.mxu0 0.0
      %3896 = vmatpush2.msra.mxu0 %v3756
      %3897 = vmatprep.subr.mxu0 0.0
      %3898 = vmatpush2.msra.mxu0 %v3755
      %3899 = vmatprep.subr.mxu0 0.0
      %3900 = vmatpush2.msra.mxu0 %v3754
      %3901 = vmatprep.subr.mxu0 0.0
      %3902 = vmatpush2.msra.mxu0 %v3753
      %3903 = vmatprep.subr.mxu0 0.0
      %3904 = vmatpush2.msra.mxu0 %v3752
      %3905 = vmatprep.subr.mxu0 0.0
      %3906 = vmatpush2.msra.mxu0 %v3751
      %3907 = vmatprep.subr.mxu0 0.0
      %3908 = vmatpush2.msra.mxu0 %v3750
      %3909 = vmatprep.subr.mxu0 0.0
      %3910 = vmatpush2.msra.mxu0 %v3749
      %3911 = vmatprep.subr.mxu0 0.0
      %3912 = vmatpush2.msra.mxu0 %v3748
      %3913 = vmatprep.subr.mxu0 0.0
      %3914 = vmatpush2.msra.mxu0 %v3747
      %3915 = vmatprep.subr.mxu0 0.0
      %3916 = vmatpush2.msra.mxu0 %v3746
      %3917 = vmatprep.subr.mxu0 0.0
      %3918 = vmatpush2.msra.mxu0 %v3745
      %3919 = vmatprep.subr.mxu0 0.0
      %3920 = vmatpush2.msra.mxu0 %v3744
      %3921 = vmatprep.subr.mxu0 0.0
      %3922 = vmatpush2.msra.mxu0 %v3743
      %3923 = vmatprep.subr.mxu0 0.0
      %3924 = vmatpush2.msra.mxu0 %v3742
      %3925 = vmatprep.mubr.f32.mxu0 %v3663
      %3926 = vmatmul.mubr.f32.gmra.mxu0 %v3662
      %v3927 = vpop.f32.mrf.mxu0
      %v3928 = vadd.f32 %v3859, %v3927
      %v3929 = vpop.f32.mrf.mxu0
      %3930 = vmatprep.mubr.f32.mxu0 %v3671
      %3931 = vmatmul.mubr.f32.gmra.mxu0 %v3670
      %v3932 = vpop.f32.mrf.mxu0
      %v3933 = vadd.f32 %v3859, %v3932
      %v3934 = vpop.f32.mrf.mxu0
      %3935 = vmatprep.mubr.f32.mxu0 %v3679
      %3936 = vmatmul.mubr.f32.gmra.mxu0 %v3678
      %v3937 = vpop.f32.mrf.mxu0
      %v3938 = vadd.f32 %v3859, %v3937
      %v3939 = vpop.f32.mrf.mxu0
      %3940 = vmatprep.mubr.f32.mxu0 %v3687
      %3941 = vmatmul.mubr.f32.gmra.mxu0 %v3686
      %v3942 = vpop.f32.mrf.mxu0
      %v3943 = vadd.f32 %v3859, %v3942
      %v3944 = vpop.f32.mrf.mxu0
      %3945 = vmatprep.mubr.f32.mxu0 %v3695
      %3946 = vmatmul.mubr.f32.gmra.mxu0 %v3694
      %v3947 = vpop.f32.mrf.mxu0
      %v3948 = vadd.f32 %v3859, %v3947
      %v3949 = vpop.f32.mrf.mxu0
      %3950 = vmatprep.mubr.f32.mxu0 %v3703
      %3951 = vmatmul.mubr.f32.gmra.mxu0 %v3702
      %v3952 = vpop.f32.mrf.mxu0
      %v3953 = vadd.f32 %v3859, %v3952
      %v3954 = vpop.f32.mrf.mxu0
      %3955 = vmatprep.mubr.f32.mxu0 %v3711
      %3956 = vmatmul.mubr.f32.gmra.mxu0 %v3710
      %v3957 = vpop.f32.mrf.mxu0
      %v3958 = vadd.f32 %v3859, %v3957
      %v3959 = vpop.f32.mrf.mxu0
      %3960 = vmatprep.mubr.f32.mxu0 %v3719
      %3961 = vmatmul.mubr.f32.gmra.mxu0 %v3718
      %v3962 = vpop.f32.mrf.mxu0
      %v3963 = vadd.f32 %v3859, %v3962
      %v3964 = vpop.f32.mrf.mxu0
      %3965 = vdwg.mxu0
      %3966 = vmatprep.subr.mxu0 0.0
      %3967 = vmatpush1.msra.mxu0 %v3773
      %3968 = vmatprep.subr.mxu0 0.0
      %3969 = vmatpush1.msra.mxu0 %v3772
      %3970 = vmatprep.subr.mxu0 0.0
      %3971 = vmatpush1.msra.mxu0 %v3771
      %3972 = vmatprep.subr.mxu0 0.0
      %3973 = vmatpush1.msra.mxu0 %v3770
      %3974 = vmatprep.subr.mxu0 0.0
      %3975 = vmatpush1.msra.mxu0 %v3769
      %3976 = vmatprep.subr.mxu0 0.0
      %3977 = vmatpush1.msra.mxu0 %v3768
      %3978 = vmatprep.subr.mxu0 0.0
      %3979 = vmatpush1.msra.mxu0 %v3767
      %3980 = vmatprep.subr.mxu0 0.0
      %3981 = vmatpush1.msra.mxu0 %v3766
      %3982 = vmatprep.subr.mxu0 0.0
      %3983 = vmatpush1.msra.mxu0 %v3765
      %3984 = vmatprep.subr.mxu0 0.0
      %3985 = vmatpush1.msra.mxu0 %v3764
      %3986 = vmatprep.subr.mxu0 0.0
      %3987 = vmatpush1.msra.mxu0 %v3763
      %3988 = vmatprep.subr.mxu0 0.0
      %3989 = vmatpush1.msra.mxu0 %v3762
      %3990 = vmatprep.subr.mxu0 0.0
      %3991 = vmatpush1.msra.mxu0 %v3761
      %3992 = vmatprep.subr.mxu0 0.0
      %3993 = vmatpush1.msra.mxu0 %v3760
      %3994 = vmatprep.subr.mxu0 0.0
      %3995 = vmatpush1.msra.mxu0 %v3759
      %3996 = vmatprep.subr.mxu0 0.0
      %3997 = vmatpush1.msra.mxu0 %v3758
      %3998 = vmatprep.subr.mxu0 0.0
      %3999 = vmatpush2.msra.mxu0 %v3789
      %4000 = vmatprep.subr.mxu0 0.0
      %4001 = vmatpush2.msra.mxu0 %v3788
      %4002 = vmatprep.subr.mxu0 0.0
      %4003 = vmatpush2.msra.mxu0 %v3787
      %4004 = vmatprep.subr.mxu0 0.0
      %4005 = vmatpush2.msra.mxu0 %v3786
      %4006 = vmatprep.subr.mxu0 0.0
      %4007 = vmatpush2.msra.mxu0 %v3785
      %4008 = vmatprep.subr.mxu0 0.0
      %4009 = vmatpush2.msra.mxu0 %v3784
      %4010 = vmatprep.subr.mxu0 0.0
      %4011 = vmatpush2.msra.mxu0 %v3783
      %4012 = vmatprep.subr.mxu0 0.0
      %4013 = vmatpush2.msra.mxu0 %v3782
      %4014 = vmatprep.subr.mxu0 0.0
      %4015 = vmatpush2.msra.mxu0 %v3781
      %4016 = vmatprep.subr.mxu0 0.0
      %4017 = vmatpush2.msra.mxu0 %v3780
      %4018 = vmatprep.subr.mxu0 0.0
      %4019 = vmatpush2.msra.mxu0 %v3779
      %4020 = vmatprep.subr.mxu0 0.0
      %4021 = vmatpush2.msra.mxu0 %v3778
      %4022 = vmatprep.subr.mxu0 0.0
      %4023 = vmatpush2.msra.mxu0 %v3777
      %4024 = vmatprep.subr.mxu0 0.0
      %4025 = vmatpush2.msra.mxu0 %v3776
      %4026 = vmatprep.subr.mxu0 0.0
      %4027 = vmatpush2.msra.mxu0 %v3775
      %4028 = vmatprep.subr.mxu0 0.0
      %4029 = vmatpush2.msra.mxu0 %v3774
      %4030 = vmatprep.mubr.f32.mxu0 %v3665
      %4031 = vmatmul.mubr.f32.gmra.mxu0 %v3664
      %v4032 = vpop.f32.mrf.mxu0
      %v4033 = vadd.f32 %v3928, %v4032
      %v4034 = vpop.f32.mrf.mxu0
      %4035 = vmatprep.mubr.f32.mxu0 %v3673
      %4036 = vmatmul.mubr.f32.gmra.mxu0 %v3672
      %v4037 = vpop.f32.mrf.mxu0
      %v4038 = vadd.f32 %v3933, %v4037
      %v4039 = vpop.f32.mrf.mxu0
      %4040 = vmatprep.mubr.f32.mxu0 %v3681
      %4041 = vmatmul.mubr.f32.gmra.mxu0 %v3680
      %v4042 = vpop.f32.mrf.mxu0
      %v4043 = vadd.f32 %v3938, %v4042
      %v4044 = vpop.f32.mrf.mxu0
      %4045 = vmatprep.mubr.f32.mxu0 %v3689
      %4046 = vmatmul.mubr.f32.gmra.mxu0 %v3688
      %v4047 = vpop.f32.mrf.mxu0
      %v4048 = vadd.f32 %v3943, %v4047
      %v4049 = vpop.f32.mrf.mxu0
      %4050 = vmatprep.mubr.f32.mxu0 %v3697
      %4051 = vmatmul.mubr.f32.gmra.mxu0 %v3696
      %v4052 = vpop.f32.mrf.mxu0
      %v4053 = vadd.f32 %v3948, %v4052
      %v4054 = vpop.f32.mrf.mxu0
      %4055 = vmatprep.mubr.f32.mxu0 %v3705
      %4056 = vmatmul.mubr.f32.gmra.mxu0 %v3704
      %v4057 = vpop.f32.mrf.mxu0
      %v4058 = vadd.f32 %v3953, %v4057
      %v4059 = vpop.f32.mrf.mxu0
      %4060 = vmatprep.mubr.f32.mxu0 %v3713
      %4061 = vmatmul.mubr.f32.gmra.mxu0 %v3712
      %v4062 = vpop.f32.mrf.mxu0
      %v4063 = vadd.f32 %v3958, %v4062
      %v4064 = vpop.f32.mrf.mxu0
      %4065 = vmatprep.mubr.f32.mxu0 %v3721
      %4066 = vmatmul.mubr.f32.gmra.mxu0 %v3720
      %v4067 = vpop.f32.mrf.mxu0
      %v4068 = vadd.f32 %v3963, %v4067
      %v4069 = vpop.f32.mrf.mxu0
      %4070 = vdwg.mxu0
      %4071 = vmatprep.subr.mxu0 0.0
      %4072 = vmatpush1.msra.mxu0 %v3805
      %4073 = vmatprep.subr.mxu0 0.0
      %4074 = vmatpush1.msra.mxu0 %v3804
      %4075 = vmatprep.subr.mxu0 0.0
      %4076 = vmatpush1.msra.mxu0 %v3803
      %4077 = vmatprep.subr.mxu0 0.0
      %4078 = vmatpush1.msra.mxu0 %v3802
      %4079 = vmatprep.subr.mxu0 0.0
      %4080 = vmatpush1.msra.mxu0 %v3801
      %4081 = vmatprep.subr.mxu0 0.0
      %4082 = vmatpush1.msra.mxu0 %v3800
      %4083 = vmatprep.subr.mxu0 0.0
      %4084 = vmatpush1.msra.mxu0 %v3799
      %4085 = vmatprep.subr.mxu0 0.0
      %4086 = vmatpush1.msra.mxu0 %v3798
      %4087 = vmatprep.subr.mxu0 0.0
      %4088 = vmatpush1.msra.mxu0 %v3797
      %4089 = vmatprep.subr.mxu0 0.0
      %4090 = vmatpush1.msra.mxu0 %v3796
      %4091 = vmatprep.subr.mxu0 0.0
      %4092 = vmatpush1.msra.mxu0 %v3795
      %4093 = vmatprep.subr.mxu0 0.0
      %4094 = vmatpush1.msra.mxu0 %v3794
      %4095 = vmatprep.subr.mxu0 0.0
      %4096 = vmatpush1.msra.mxu0 %v3793
      %4097 = vmatprep.subr.mxu0 0.0
      %4098 = vmatpush1.msra.mxu0 %v3792
      %4099 = vmatprep.subr.mxu0 0.0
      %4100 = vmatpush1.msra.mxu0 %v3791
      %4101 = vmatprep.subr.mxu0 0.0
      %4102 = vmatpush1.msra.mxu0 %v3790
      %4103 = vmatprep.subr.mxu0 0.0
      %4104 = vmatpush2.msra.mxu0 %v3821
      %4105 = vmatprep.subr.mxu0 0.0
      %4106 = vmatpush2.msra.mxu0 %v3820
      %4107 = vmatprep.subr.mxu0 0.0
      %4108 = vmatpush2.msra.mxu0 %v3819
      %4109 = vmatprep.subr.mxu0 0.0
      %4110 = vmatpush2.msra.mxu0 %v3818
      %4111 = vmatprep.subr.mxu0 0.0
      %4112 = vmatpush2.msra.mxu0 %v3817
      %4113 = vmatprep.subr.mxu0 0.0
      %4114 = vmatpush2.msra.mxu0 %v3816
      %4115 = vmatprep.subr.mxu0 0.0
      %4116 = vmatpush2.msra.mxu0 %v3815
      %4117 = vmatprep.subr.mxu0 0.0
      %4118 = vmatpush2.msra.mxu0 %v3814
      %4119 = vmatprep.subr.mxu0 0.0
      %4120 = vmatpush2.msra.mxu0 %v3813
      %4121 = vmatprep.subr.mxu0 0.0
      %4122 = vmatpush2.msra.mxu0 %v3812
      %4123 = vmatprep.subr.mxu0 0.0
      %4124 = vmatpush2.msra.mxu0 %v3811
      %4125 = vmatprep.subr.mxu0 0.0
      %4126 = vmatpush2.msra.mxu0 %v3810
      %4127 = vmatprep.subr.mxu0 0.0
      %4128 = vmatpush2.msra.mxu0 %v3809
      %4129 = vmatprep.subr.mxu0 0.0
      %4130 = vmatpush2.msra.mxu0 %v3808
      %4131 = vmatprep.subr.mxu0 0.0
      %4132 = vmatpush2.msra.mxu0 %v3807
      %4133 = vmatprep.subr.mxu0 0.0
      %4134 = vmatpush2.msra.mxu0 %v3806
      %4135 = vmatprep.mubr.f32.mxu0 %v3667
      %4136 = vmatmul.mubr.f32.gmra.mxu0 %v3666
      %v4137 = vpop.f32.mrf.mxu0
      %v4138 = vadd.f32 %v4033, %v4137
      %v4139 = vpop.f32.mrf.mxu0
      %4140 = vmatprep.mubr.f32.mxu0 %v3675
      %4141 = vmatmul.mubr.f32.gmra.mxu0 %v3674
      %v4142 = vpop.f32.mrf.mxu0
      %v4143 = vadd.f32 %v4038, %v4142
      %v4144 = vpop.f32.mrf.mxu0
      %4145 = vmatprep.mubr.f32.mxu0 %v3683
      %4146 = vmatmul.mubr.f32.gmra.mxu0 %v3682
      %v4147 = vpop.f32.mrf.mxu0
      %v4148 = vadd.f32 %v4043, %v4147
      %v4149 = vpop.f32.mrf.mxu0
      %4150 = vmatprep.mubr.f32.mxu0 %v3691
      %4151 = vmatmul.mubr.f32.gmra.mxu0 %v3690
      %v4152 = vpop.f32.mrf.mxu0
      %v4153 = vadd.f32 %v4048, %v4152
      %v4154 = vpop.f32.mrf.mxu0
      %4155 = vmatprep.mubr.f32.mxu0 %v3699
      %4156 = vmatmul.mubr.f32.gmra.mxu0 %v3698
      %v4157 = vpop.f32.mrf.mxu0
      %v4158 = vadd.f32 %v4053, %v4157
      %v4159 = vpop.f32.mrf.mxu0
      %4160 = vmatprep.mubr.f32.mxu0 %v3707
      %4161 = vmatmul.mubr.f32.gmra.mxu0 %v3706
      %v4162 = vpop.f32.mrf.mxu0
      %v4163 = vadd.f32 %v4058, %v4162
      %v4164 = vpop.f32.mrf.mxu0
      %4165 = vmatprep.mubr.f32.mxu0 %v3715
      %4166 = vmatmul.mubr.f32.gmra.mxu0 %v3714
      %v4167 = vpop.f32.mrf.mxu0
      %v4168 = vadd.f32 %v4063, %v4167
      %v4169 = vpop.f32.mrf.mxu0
      %4170 = vmatprep.mubr.f32.mxu0 %v3723
      %4171 = vmatmul.mubr.f32.gmra.mxu0 %v3722
      %v4172 = vpop.f32.mrf.mxu0
      %v4173 = vadd.f32 %v4068, %v4172
      %v4174 = vpop.f32.mrf.mxu0
      %4175 = vdwg.mxu0
      %4176 = vmatprep.subr.mxu0 0.0
      %4177 = vmatpush1.msra.mxu0 %v3837
      %4178 = vmatprep.subr.mxu0 0.0
      %4179 = vmatpush1.msra.mxu0 %v3836
      %4180 = vmatprep.subr.mxu0 0.0
      %4181 = vmatpush1.msra.mxu0 %v3835
      %4182 = vmatprep.subr.mxu0 0.0
      %4183 = vmatpush1.msra.mxu0 %v3834
      %4184 = vmatprep.subr.mxu0 0.0
      %4185 = vmatpush1.msra.mxu0 %v3833
      %4186 = vmatprep.subr.mxu0 0.0
      %4187 = vmatpush1.msra.mxu0 %v3832
      %4188 = vmatprep.subr.mxu0 0.0
      %4189 = vmatpush1.msra.mxu0 %v3831
      %4190 = vmatprep.subr.mxu0 0.0
      %4191 = vmatpush1.msra.mxu0 %v3830
      %4192 = vmatprep.subr.mxu0 0.0
      %4193 = vmatpush1.msra.mxu0 %v3829
      %4194 = vmatprep.subr.mxu0 0.0
      %4195 = vmatpush1.msra.mxu0 %v3828
      %4196 = vmatprep.subr.mxu0 0.0
      %4197 = vmatpush1.msra.mxu0 %v3827
      %4198 = vmatprep.subr.mxu0 0.0
      %4199 = vmatpush1.msra.mxu0 %v3826
      %4200 = vmatprep.subr.mxu0 0.0
      %4201 = vmatpush1.msra.mxu0 %v3825
      %4202 = vmatprep.subr.mxu0 0.0
      %4203 = vmatpush1.msra.mxu0 %v3824
      %4204 = vmatprep.subr.mxu0 0.0
      %4205 = vmatpush1.msra.mxu0 %v3823
      %4206 = vmatprep.subr.mxu0 0.0
      %4207 = vmatpush1.msra.mxu0 %v3822
      %4208 = vmatprep.subr.mxu0 0.0
      %4209 = vmatpush2.msra.mxu0 %v3853
      %4210 = vmatprep.subr.mxu0 0.0
      %4211 = vmatpush2.msra.mxu0 %v3852
      %4212 = vmatprep.subr.mxu0 0.0
      %4213 = vmatpush2.msra.mxu0 %v3851
      %4214 = vmatprep.subr.mxu0 0.0
      %4215 = vmatpush2.msra.mxu0 %v3850
      %4216 = vmatprep.subr.mxu0 0.0
      %4217 = vmatpush2.msra.mxu0 %v3849
      %4218 = vmatprep.subr.mxu0 0.0
      %4219 = vmatpush2.msra.mxu0 %v3848
      %4220 = vmatprep.subr.mxu0 0.0
      %4221 = vmatpush2.msra.mxu0 %v3847
      %4222 = vmatprep.subr.mxu0 0.0
      %4223 = vmatpush2.msra.mxu0 %v3846
      %4224 = vmatprep.subr.mxu0 0.0
      %4225 = vmatpush2.msra.mxu0 %v3845
      %4226 = vmatprep.subr.mxu0 0.0
      %4227 = vmatpush2.msra.mxu0 %v3844
      %4228 = vmatprep.subr.mxu0 0.0
      %4229 = vmatpush2.msra.mxu0 %v3843
      %4230 = vmatprep.subr.mxu0 0.0
      %4231 = vmatpush2.msra.mxu0 %v3842
      %4232 = vmatprep.subr.mxu0 0.0
      %4233 = vmatpush2.msra.mxu0 %v3841
      %4234 = vmatprep.subr.mxu0 0.0
      %4235 = vmatpush2.msra.mxu0 %v3840
      %4236 = vmatprep.subr.mxu0 0.0
      %4237 = vmatpush2.msra.mxu0 %v3839
      %4238 = vmatprep.subr.mxu0 0.0
      %4239 = vmatpush2.msra.mxu0 %v3838
      %4240 = vmatprep.mubr.f32.mxu0 %v3669
      %4241 = vmatmul.mubr.f32.gmra.mxu0 %v3668
      %v4242 = vpop.f32.mrf.mxu0
      %v4243 = vadd.f32 %v4138, %v4242
      %v4244 = vpop.f32.mrf.mxu0
      %4245 = vmatprep.mubr.f32.mxu0 %v3677
      %4246 = vmatmul.mubr.f32.gmra.mxu0 %v3676
      %v4247 = vpop.f32.mrf.mxu0
      %v4248 = vadd.f32 %v4143, %v4247
      %v4249 = vpop.f32.mrf.mxu0
      %4250 = vmatprep.mubr.f32.mxu0 %v3685
      %4251 = vmatmul.mubr.f32.gmra.mxu0 %v3684
      %v4252 = vpop.f32.mrf.mxu0
      %v4253 = vadd.f32 %v4148, %v4252
      %v4254 = vpop.f32.mrf.mxu0
      %4255 = vmatprep.mubr.f32.mxu0 %v3693
      %4256 = vmatmul.mubr.f32.gmra.mxu0 %v3692
      %v4257 = vpop.f32.mrf.mxu0
      %v4258 = vadd.f32 %v4153, %v4257
      %v4259 = vpop.f32.mrf.mxu0
      %4260 = vmatprep.mubr.f32.mxu0 %v3701
      %4261 = vmatmul.mubr.f32.gmra.mxu0 %v3700
      %v4262 = vpop.f32.mrf.mxu0
      %v4263 = vadd.f32 %v4158, %v4262
      %v4264 = vpop.f32.mrf.mxu0
      %4265 = vmatprep.mubr.f32.mxu0 %v3709
      %4266 = vmatmul.mubr.f32.gmra.mxu0 %v3708
      %v4267 = vpop.f32.mrf.mxu0
      %v4268 = vadd.f32 %v4163, %v4267
      %v4269 = vpop.f32.mrf.mxu0
      %4270 = vmatprep.mubr.f32.mxu0 %v3717
      %4271 = vmatmul.mubr.f32.gmra.mxu0 %v3716
      %v4272 = vpop.f32.mrf.mxu0
      %v4273 = vadd.f32 %v4168, %v4272
      %v4274 = vpop.f32.mrf.mxu0
      %4275 = vmatprep.mubr.f32.mxu0 %v3725
      %4276 = vmatmul.mubr.f32.gmra.mxu0 %v3724
      %v4277 = vpop.f32.mrf.mxu0
      %v4278 = vadd.f32 %v4173, %v4277
      %v4279 = vpop.f32.mrf.mxu0
      %4280 = vdwg.mxu0
      %v4281 = vadd.f32 %v3032, %v4243
      %v4282 = vadd.f32 %v3033, %v4248
      %v4283 = vadd.f32 %v3034, %v4253
      %v4284 = vadd.f32 %v3035, %v4258
      %v4285 = vadd.f32 %v3036, %v4263
      %v4286 = vadd.f32 %v3037, %v4268
      %v4287 = vadd.f32 %v3038, %v4273
      %v4288 = vadd.f32 %v3039, %v4278
      %v4289 = vld [vmem:[%s11] sm:$0x1]
      %v4290 = vld [vmem:[%s12] sm:$0x1]
      %4291 = vadd.xlane.f32.xlu0 %v4281
      %v4292 = vpop.xlane.xlu0 %4291
      %4293 = vadd.xlane.f32.xlu0 %v4282
      %v4294 = vpop.xlane.xlu0 %4293
      %4295 = vadd.xlane.f32.xlu0 %v4283
      %v4296 = vpop.xlane.xlu0 %4295
      %4297 = vadd.xlane.f32.xlu0 %v4284
      %v4298 = vpop.xlane.xlu0 %4297
      %4299 = vadd.xlane.f32.xlu0 %v4285
      %v4300 = vpop.xlane.xlu0 %4299
      %4301 = vadd.xlane.f32.xlu0 %v4286
      %v4302 = vpop.xlane.xlu0 %4301
      %4303 = vadd.xlane.f32.xlu0 %v4287
      %v4304 = vpop.xlane.xlu0 %4303
      %4305 = vadd.xlane.f32.xlu0 %v4288
      %v4306 = vpop.xlane.xlu0 %4305
      %v4307 = vmul.f32 %v4292, %v2939
      %v4308 = vmul.f32 %v4294, %v2939
      %v4309 = vmul.f32 %v4296, %v2939
      %v4310 = vmul.f32 %v4298, %v2939
      %v4311 = vmul.f32 %v4300, %v2939
      %v4312 = vmul.f32 %v4302, %v2939
      %v4313 = vmul.f32 %v4304, %v2939
      %v4314 = vmul.f32 %v4306, %v2939
      %v4315 = vsub.f32 %v4281, %v4307
      %v4316 = vsub.f32 %v4282, %v4308
      %v4317 = vsub.f32 %v4283, %v4309
      %v4318 = vsub.f32 %v4284, %v4310
      %v4319 = vsub.f32 %v4285, %v4311
      %v4320 = vsub.f32 %v4286, %v4312
      %v4321 = vsub.f32 %v4287, %v4313
      %v4322 = vsub.f32 %v4288, %v4314
      %v4323 = vmul.f32 %v4315, %v4315
      %v4324 = vmul.f32 %v4316, %v4316
      %v4325 = vmul.f32 %v4317, %v4317
      %v4326 = vmul.f32 %v4318, %v4318
      %v4327 = vmul.f32 %v4319, %v4319
      %v4328 = vmul.f32 %v4320, %v4320
      %v4329 = vmul.f32 %v4321, %v4321
      %v4330 = vmul.f32 %v4322, %v4322
      %4331 = vadd.xlane.f32.xlu0 %v4323
      %v4332 = vpop.xlane.xlu0 %4331
      %4333 = vadd.xlane.f32.xlu0 %v4324
      %v4334 = vpop.xlane.xlu0 %4333
      %4335 = vadd.xlane.f32.xlu0 %v4325
      %v4336 = vpop.xlane.xlu0 %4335
      %4337 = vadd.xlane.f32.xlu0 %v4326
      %v4338 = vpop.xlane.xlu0 %4337
      %4339 = vadd.xlane.f32.xlu0 %v4327
      %v4340 = vpop.xlane.xlu0 %4339
      %4341 = vadd.xlane.f32.xlu0 %v4328
      %v4342 = vpop.xlane.xlu0 %4341
      %4343 = vadd.xlane.f32.xlu0 %v4329
      %v4344 = vpop.xlane.xlu0 %4343
      %4345 = vadd.xlane.f32.xlu0 %v4330
      %v4346 = vpop.xlane.xlu0 %4345
      %v4347 = vmul.f32 %v4332, %v2939
      %v4348 = vmul.f32 %v4334, %v2939
      %v4349 = vmul.f32 %v4336, %v2939
      %v4350 = vmul.f32 %v4338, %v2939
      %v4351 = vmul.f32 %v4340, %v2939
      %v4352 = vmul.f32 %v4342, %v2939
      %v4353 = vmul.f32 %v4344, %v2939
      %v4354 = vmul.f32 %v4346, %v2939
      %v4355 = vadd.f32 %v4347, 1e-05
      %v4356 = vadd.f32 %v4348, 1e-05
      %v4357 = vadd.f32 %v4349, 1e-05
      %v4358 = vadd.f32 %v4350, 1e-05
      %v4359 = vadd.f32 %v4351, 1e-05
      %v4360 = vadd.f32 %v4352, 1e-05
      %v4361 = vadd.f32 %v4353, 1e-05
      %v4362 = vadd.f32 %v4354, 1e-05
      %v4363 = vrsqrt.pop %v4355
      %v4364 = vrsqrt.pop %v4356
      %v4365 = vrsqrt.pop %v4357
      %v4366 = vrsqrt.pop %v4358
      %v4367 = vrsqrt.pop %v4359
      %v4368 = vrsqrt.pop %v4360
      %v4369 = vrsqrt.pop %v4361
      %v4370 = vrsqrt.pop %v4362
      %v4371 = vmul.f32 %v4315, %v4363
      %v4372 = vmul.f32 %v4316, %v4364
      %v4373 = vmul.f32 %v4317, %v4365
      %v4374 = vmul.f32 %v4318, %v4366
      %v4375 = vmul.f32 %v4319, %v4367
      %v4376 = vmul.f32 %v4320, %v4368
      %v4377 = vmul.f32 %v4321, %v4369
      %v4378 = vmul.f32 %v4322, %v4370
      %v4380 = vlaneseq
      %v4381 = vshrl.u32 %v4380, 7
      %v4382 = vsub.s32 0, %v4381
      %v4383 = vrot.slane %v4289, %v4382
      %v4385 = vmul.f32 %v4371, %v4383
      %v4386 = vmul.f32 %v4372, %v4383
      %v4387 = vmul.f32 %v4373, %v4383
      %v4388 = vmul.f32 %v4374, %v4383
      %v4389 = vmul.f32 %v4375, %v4383
      %v4390 = vmul.f32 %v4376, %v4383
      %v4391 = vmul.f32 %v4377, %v4383
      %v4392 = vmul.f32 %v4378, %v4383
      %v4394 = vlaneseq
      %v4395 = vshrl.u32 %v4394, 7
      %v4396 = vsub.s32 0, %v4395
      %v4397 = vrot.slane %v4290, %v4396
      %v4399 = vadd.f32 %v4385, %v4397
      %v4400 = vadd.f32 %v4386, %v4397
      %v4401 = vadd.f32 %v4387, %v4397
      %v4402 = vadd.f32 %v4388, %v4397
      %v4403 = vadd.f32 %v4389, %v4397
      %v4404 = vadd.f32 %v4390, %v4397
      %v4405 = vadd.f32 %v4391, %v4397
      %v4406 = vadd.f32 %v4392, %v4397
      %4407 = vst [vmem:[%s440] sm:$0xff] %v4399
      %4408 = vst [vmem:[%s440 + $0x8] sm:$0xff] %v4400
      %4409 = vst [vmem:[%s440 + $0x10] sm:$0xff] %v4401
      %4410 = vst [vmem:[%s440 + $0x18] sm:$0xff] %v4402
      %4411 = vst [vmem:[%s440 + $0x20] sm:$0xff] %v4403
      %4412 = vst [vmem:[%s440 + $0x28] sm:$0xff] %v4404
      %4413 = vst [vmem:[%s440 + $0x30] sm:$0xff] %v4405
      %4414 = vst [vmem:[%s440 + $0x38] sm:$0xff] %v4406
      %p4415 = scmp.lt.s32.totalorder %s24, 1
      %s4416 = scalar_select %p4415, %s24, 1
      %s4417 = smul.addr %s4416, 8
      %s4418 = smul.addr %s4417, 8
      %s4419 = scalar_lea.vmem %s13, %s4418
      // Predicated region
      $region73: #{patch_transformer_encoder.6} parent=71 // pred_check
        %p4420 = pneg %p320
      $region74: #{patch_transformer_encoder.6} parent=71 // pred_check_branch
        %4422 = sbr.rel (%p4420) target = $region76
      $region75: #{patch_transformer_encoder.6} parent=71 // pred_region
        _
      $region76: #{patch_transformer_encoder.6} parent=71 // pred_fallthru
        _
    $region72: #{patch_transformer_encoder.6} parent=5 // pred_fallthru
      _
    %p4423 = scmp.le.s32.totalorder 2, %s19
    // Predicated region
    $region77: #{patch_transformer_encoder.6} parent=5 // pred_check
      %p4424 = pneg %p4423
    $region78: #{patch_transformer_encoder.6} parent=5 // pred_check_branch
      %4426 = sbr.rel (%p4424) target = $region80
    $region79: #{patch_transformer_encoder.6} parent=5 // pred_region
      %s4427 = ssub.s32 %s19, 2
      // Predicated region
      $region81: #{patch_transformer_encoder.6} parent=79 // pred_check
        %p4428 = pneg %p326
      $region82: #{patch_transformer_encoder.6} parent=79 // pred_check_branch
        %4430 = sbr.rel (%p4428) target = $region84
      $region83: #{patch_transformer_encoder.6} parent=79 // pred_region
        %p4431 = scmp.lt.s32.totalorder %s25, 1
        %s4432 = scalar_select %p4431, %s25, 1
        %s4433 = smul.addr %s4432, 8
        %s4434 = smul.addr %s4433, 8
        %s4435 = scalar_lea.vmem %s13, %s4434
      $region84: #{patch_transformer_encoder.6} parent=79 // pred_fallthru
        _
    $region80: #{patch_transformer_encoder.6} parent=5 // pred_fallthru
      _
  $region6: #{patch_transformer_encoder.6} parent=0 // loop_footer
    %s23 = sadd.s32 1, %s19
  $region7: #{patch_transformer_encoder.6} parent=0 // loop_footer_branch
    %18 = sbr.rel target = $region3
  $region8: #{patch_transformer_encoder.6} parent=0 // loop_exit
    _

</llo_original>
